<compile_context>
chip_gen: v6e
topology: v6e:2x2x1
jax: 0.10.0
libtpu: 0.0.40
codegen_flags: <defaults>
</compile_context>

<pallas_src>
import jax
import jax.numpy as jnp
from jax import lax
from jax.experimental import pallas as pl
from jax.experimental.pallas import tpu as pltpu


def sepconv_gru_kernel(ht_ref, xt_ref, x_ref,
                       wzr1_ref, bzr1_ref, wq1_ref, bq1_ref,
                       wzr2_ref, bzr2_ref, wq2_ref, bq2_ref,
                       o_ref,
                       padw_ref, padh_ref, h1_ref):
    # ht_ref:   (1, W, H, Ch)   hidden state, W-major (wrapper-transposed)
    # xt_ref:   (1, W, H, Cx)   features, W-major
    # x_ref:    (1, H, W, Cx)   features, natural NHWC order
    # wzr1_ref: (5, Ctot, 2*Ch) bf16 fused convz1|convr1 taps (tap = kx)
    # wq1_ref:  (5, Ctot, Ch)   bf16 convq1 taps
    # wzr2/wq2: same for the (5,1) vertical convs (tap = ky)
    # b*_ref:   (1, Cout)       f32 biases
    # o_ref:    (1, H, W, Ch)
    # padw_ref: (W+4, H, Ctot)  f32 scratch, conv axis (W) on the leading dim
    # padh_ref: (H+4, W, Ctot)  bf16 scratch, conv axis (H) on the leading dim
    # h1_ref:   (H, W, Ch)      f32 scratch used for the WH->HW reorder of h1
    H, W, Ch = o_ref.shape[1], o_ref.shape[2], o_ref.shape[3]
    Cx = x_ref.shape[3]
    Ctot = Ch + Cx
    M = H * W

    def conv5(pad_ref, extent, w_ref, b_ref):
        # 5-tap separable conv = 5 accumulating bf16 MXU matmuls (f32 acc).
        # pad_ref carries the conv axis (extent + 4, zero borders) on its
        # leading dim, so every per-tap slab slice is a tile-aligned load and
        # the (extent, inner, Ctot) -> (M, Ctot) reshape is free.
        cout = w_ref.shape[2]
        acc = jnp.zeros((M, cout), jnp.float32)
        for k in range(5):
            slab = pad_ref[k:k + extent].reshape(M, Ctot).astype(jnp.bfloat16)
            acc = acc + jnp.dot(slab, w_ref[k],
                                preferred_element_type=jnp.float32)
        return acc + b_ref[...]

    # ------------- horizontal pass: (1,5) convs, data in (W, H, C) ----------
    ht = ht_ref[0]                          # (W, H, Ch) f32
    xt = xt_ref[0]                          # (W, H, Cx) f32

    # Zero only the 2-wide borders (interior is fully overwritten below).
    zw = jnp.zeros((2, H, Ctot), jnp.float32)
    padw_ref[0:2] = zw
    padw_ref[W + 2:W + 4] = zw
    # Channel-split fill: x half is written once and reused by the q stage.
    padw_ref[2:2 + W, :, :Ch] = ht
    padw_ref[2:2 + W, :, Ch:] = xt

    zr = jax.nn.sigmoid(
        conv5(padw_ref, W, wzr1_ref, bzr1_ref)).reshape(W, H, 2 * Ch)
    z1 = zr[..., :Ch]
    r1 = zr[..., Ch:]
    padw_ref[2:2 + W, :, :Ch] = r1 * ht            # only the h half changes
    q1 = jnp.tanh(conv5(padw_ref, W, wq1_ref, bq1_ref)).reshape(W, H, Ch)
    h1_t = ht + z1 * (q1 - ht)                     # (W, H, Ch) f32, W-major

    # WH -> HW reorder of h1: W static column stores into a small f32 scratch.
    for w in range(W):
        h1_ref[:, w, :] = h1_t[w]
    h1 = h1_ref[...]                               # (H, W, Ch) f32

    # ------------- vertical pass: (5,1) convs, data in (H, W, C) ------------
    x0 = x_ref[0]                                  # (H, W, Cx) f32
    zh = jnp.zeros((2, W, Ctot), jnp.bfloat16)
    padh_ref[0:2] = zh
    padh_ref[H + 2:H + 4] = zh
    padh_ref[2:2 + H, :, :Ch] = h1.astype(jnp.bfloat16)
    padh_ref[2:2 + H, :, Ch:] = x0.astype(jnp.bfloat16)

    zr = jax.nn.sigmoid(
        conv5(padh_ref, H, wzr2_ref, bzr2_ref)).reshape(H, W, 2 * Ch)
    z2 = zr[..., :Ch]
    r2 = zr[..., Ch:]
    padh_ref[2:2 + H, :, :Ch] = (r2 * h1).astype(jnp.bfloat16)
    q2 = jnp.tanh(conv5(padh_ref, H, wq2_ref, bq2_ref)).reshape(H, W, Ch)
    h2 = h1 + z2 * (q2 - h1)

    o_ref[0] = h2.astype(o_ref.dtype)


def sep_conv_gru(h_nchw, *xs, params):
    """h_nchw: (N, Ch, H, W); xs: one or more (N, Cxi, H, W) tensors
    (concatenated along channels, like torch.cat(x, dim=1)).
    params: (wz1, bz1, wr1, br1, wq1, bq1, wz2, bz2, wr2, br2, wq2, bq2)
    with conv weights stored per-tap as (5, Ch+Cx, Ch) (tap = kernel position
    along the conv axis; from a torch Conv2d weight (Cout, Cin, kh, kw) this is
    weight.squeeze(spatial-1).permute(k, Cin, Cout)) and biases (1, Ch).
    Returns the new hidden state (N, Ch, H, W)."""
    wz1, bz1, wr1, br1, wq1, bq1, wz2, bz2, wr2, br2, wq2, bq2 = params
    x_nchw = xs[0] if len(xs) == 1 else jnp.concatenate(xs, axis=1)

    N, Ch, H, W = h_nchw.shape
    Cx = x_nchw.shape[1]
    Ctot = Ch + Cx

    # Lane-aligned channel splits/fills assume 128-multiples; pad if needed.
    assert Ch % 128 == 0 and Cx % 128 == 0, "pad channels to multiples of 128"

    # Fuse z/r weights along the output dim (they share the same input) and
    # cast weights to bf16 (halves weight VMEM/DMA; MXU bf16 with f32 acc).
    cat = lambda a, b: jnp.concatenate([a, b], axis=-1)
    wzr1 = cat(wz1, wr1).astype(jnp.bfloat16)     # (5, Ctot, 2*Ch)
    bzr1 = cat(bz1, br1)                          # (1, 2*Ch) f32
    wzr2 = cat(wz2, wr2).astype(jnp.bfloat16)
    bzr2 = cat(bz2, br2)
    wq1b = wq1.astype(jnp.bfloat16)
    wq2b = wq2.astype(jnp.bfloat16)

    # NCHW -> kernel layouts.  The horizontal pass consumes (W, H, C) so the
    # conv shift sits on the leading (untiled) scratch axis; the vertical pass
    # and the output stay (H, W, C).  These transposes are plain XLA ops.
    h_whc = jnp.transpose(h_nchw, (0, 3, 2, 1))   # (N, W, H, Ch)
    x_whc = jnp.transpose(x_nchw, (0, 3, 2, 1))   # (N, W, H, Cx)
    x_hwc = jnp.transpose(x_nchw, (0, 2, 3, 1))   # (N, H, W, Cx)

    out_nhwc = pl.pallas_call(
        sepconv_gru_kernel,
        out_shape=jax.ShapeDtypeStruct((N, H, W, Ch), jnp.float32),
        grid_spec=pltpu.PrefetchScalarGridSpec(
            num_scalar_prefetch=0,
            grid=(N,),
            in_specs=[
                pl.BlockSpec((1, W, H, Ch), lambda b: (b, 0, 0, 0)),
                pl.BlockSpec((1, W, H, Cx), lambda b: (b, 0, 0, 0)),
                pl.BlockSpec((1, H, W, Cx), lambda b: (b, 0, 0, 0)),
                pl.BlockSpec((5, Ctot, 2 * Ch), lambda b: (0, 0, 0)),
                pl.BlockSpec((1, 2 * Ch), lambda b: (0, 0)),
                pl.BlockSpec((5, Ctot, Ch), lambda b: (0, 0, 0)),
                pl.BlockSpec((1, Ch), lambda b: (0, 0)),
                pl.BlockSpec((5, Ctot, 2 * Ch), lambda b: (0, 0, 0)),
                pl.BlockSpec((1, 2 * Ch), lambda b: (0, 0)),
                pl.BlockSpec((5, Ctot, Ch), lambda b: (0, 0, 0)),
                pl.BlockSpec((1, Ch), lambda b: (0, 0)),
            ],
            out_specs=pl.BlockSpec((1, H, W, Ch), lambda b: (b, 0, 0, 0)),
            scratch_shapes=[
                # Horizontal-pass scratch stays f32: its second-minor dim is
                # H (=8), below the bf16 sublane tile (16), so a bf16 layout
                # would make the per-tap slab reshape a relayout.
                pltpu.VMEM((W + 4, H, Ctot), jnp.float32),
                # Vertical-pass scratch in bf16 (W is a sublane-tile multiple):
                # slabs feed the MXU directly, half the scratch traffic.
                pltpu.VMEM((H + 4, W, Ctot), jnp.bfloat16),
                # h1 in (H, W, Ch) order, f32 (gate math stays f32).
                pltpu.VMEM((H, W, Ch), jnp.float32),
            ],
        ),
        compiler_params=pltpu.CompilerParams(
            dimension_semantics=("parallel",),     # 1 batch elem per TC on v7x
            vmem_limit_bytes=32 * 1024 * 1024,
        ),
    )(h_whc, x_whc, x_hwc, wzr1, bzr1, wq1b, bq1, wzr2, bzr2, wq2b, bq2)

    return jnp.transpose(out_nhwc, (0, 3, 1, 2))


def sepconv_gru_ref(h_nchw, x_nchw,
                    wz1, bz1, wr1, br1, wq1, bq1,
                    wz2, bz2, wr2, br2, wq2, bq2):
    """Pure-JAX f32 reference mirroring the PyTorch SepConvGRU.forward."""
    dn = ("NHWC", "HWIO", "NHWC")

    def conv_w(inp, w, b):   # (1,5) conv, padding (0,2)
        k = w.reshape(1, 5, w.shape[1], w.shape[2])
        return lax.conv_general_dilated(inp, k, (1, 1), "SAME",
                                        dimension_numbers=dn) + b[0]

    def conv_h(inp, w, b):   # (5,1) conv, padding (2,0)
        k = w.reshape(5, 1, w.shape[1], w.shape[2])
        return lax.conv_general_dilated(inp, k, (1, 1), "SAME",
                                        dimension_numbers=dn) + b[0]

    h = jnp.transpose(h_nchw, (0, 2, 3, 1))
    x = jnp.transpose(x_nchw, (0, 2, 3, 1))

    hx = jnp.concatenate([h, x], axis=-1)
    z = jax.nn.sigmoid(conv_w(hx, wz1, bz1))
    r = jax.nn.sigmoid(conv_w(hx, wr1, br1))
    q = jnp.tanh(conv_w(jnp.concatenate([r * h, x], axis=-1), wq1, bq1))
    h = (1.0 - z) * h + z * q

    hx = jnp.concatenate([h, x], axis=-1)
    z = jax.nn.sigmoid(conv_h(hx, wz2, bz2))
    r = jax.nn.sigmoid(conv_h(hx, wr2, br2))
    q = jnp.tanh(conv_h(jnp.concatenate([r * h, x], axis=-1), wq2, bq2))
    h = (1.0 - z) * h + z * q

    return jnp.transpose(h, (0, 3, 1, 2))


if __name__ == "__main__":
    # Small shapes consistent with SepConvGRU (hidden_dim=128; reduced input_dim).
    N, Ch, Cx, H, W = 2, 128, 128, 8, 16
    Ctot = Ch + Cx

    key = jax.random.PRNGKey(0)
    keys = jax.random.split(key, 16)

    h = jax.random.normal(keys[0], (N, Ch, H, W), dtype=jnp.float32)
    x = jax.random.normal(keys[1], (N, Cx, H, W), dtype=jnp.float32)

    def mk_w(k, shape):
        return 0.05 * jax.random.normal(k, shape, dtype=jnp.float32)

    # Conv weights stored per-tap: (5, Ctot, Ch), tap index = kx for the (1,5)
    # convs and ky for the (5,1) convs. Biases: (1, Ch).
    wz1, bz1 = mk_w(keys[2], (5, Ctot, Ch)), mk_w(keys[3], (1, Ch))
    wr1, br1 = mk_w(keys[4], (5, Ctot, Ch)), mk_w(keys[5], (1, Ch))
    wq1, bq1 = mk_w(keys[6], (5, Ctot, Ch)), mk_w(keys[7], (1, Ch))
    wz2, bz2 = mk_w(keys[8], (5, Ctot, Ch)), mk_w(keys[9], (1, Ch))
    wr2, br2 = mk_w(keys[10], (5, Ctot, Ch)), mk_w(keys[11], (1, Ch))
    wq2, bq2 = mk_w(keys[12], (5, Ctot, Ch)), mk_w(keys[13], (1, Ch))
    params = (wz1, bz1, wr1, br1, wq1, bq1, wz2, bz2, wr2, br2, wq2, bq2)

    out = sep_conv_gru(h, x, params=params)
    out = jax.block_until_ready(out)

    ref = jax.block_until_ready(sepconv_gru_ref(h, x, *params))
    assert out.shape == (N, Ch, H, W), out.shape
    max_err = float(jnp.max(jnp.abs(out - ref)))
    # bf16 MXU operands with f32 accumulation vs. a pure-f32 reference:
    # tolerance loosened as anticipated by the perf review.
    assert jnp.allclose(out, ref, atol=6e-2, rtol=6e-2), max_err

    print("KERNEL_OK")
</pallas_src>

<mosaic_0001>
module attributes {stable_mosaic.version = 11 : i64} {
  func.func @sepconv_gru_kernel(%arg0: i32, %arg1: memref<1x16x8x128xf32, #tpu.memory_space<vmem>>, %arg2: memref<1x16x8x128xf32, #tpu.memory_space<vmem>>, %arg3: memref<1x8x16x128xf32, #tpu.memory_space<vmem>>, %arg4: memref<5x256x256xbf16, #tpu.memory_space<vmem>>, %arg5: memref<1x256xf32, #tpu.memory_space<vmem>>, %arg6: memref<5x256x128xbf16, #tpu.memory_space<vmem>>, %arg7: memref<1x128xf32, #tpu.memory_space<vmem>>, %arg8: memref<5x256x256xbf16, #tpu.memory_space<vmem>>, %arg9: memref<1x256xf32, #tpu.memory_space<vmem>>, %arg10: memref<5x256x128xbf16, #tpu.memory_space<vmem>>, %arg11: memref<1x128xf32, #tpu.memory_space<vmem>>, %arg12: memref<1x8x16x128xf32, #tpu.memory_space<vmem>>, %arg13: memref<20x8x256xf32, #tpu.memory_space<vmem>>, %arg14: memref<12x16x256xbf16, #tpu.memory_space<vmem>>, %arg15: memref<8x16x128xf32, #tpu.memory_space<vmem>>) attributes {dimension_semantics = [#tpu.dimension_semantics<parallel>], iteration_bounds = array<i64: 2>, scalar_prefetch = 0 : i64, scratch_operands = 3 : i64, tpu.core_type = #tpu.core_type<tc>, window_params = [{transform_indices = @transform_0, window_bounds = array<i64: 1, 16, 8, 128>}, {transform_indices = @transform_1, window_bounds = array<i64: 1, 16, 8, 128>}, {transform_indices = @transform_2, window_bounds = array<i64: 1, 8, 16, 128>}, {pipeline_mode = #tpu.pipeline_mode<synchronous>, transform_indices = @transform_3, window_bounds = array<i64: 5, 256, 256>}, {pipeline_mode = #tpu.pipeline_mode<synchronous>, transform_indices = @transform_4, window_bounds = array<i64: 1, 256>}, {pipeline_mode = #tpu.pipeline_mode<synchronous>, transform_indices = @transform_5, window_bounds = array<i64: 5, 256, 128>}, {pipeline_mode = #tpu.pipeline_mode<synchronous>, transform_indices = @transform_6, window_bounds = array<i64: 1, 128>}, {pipeline_mode = #tpu.pipeline_mode<synchronous>, transform_indices = @transform_7, window_bounds = array<i64: 5, 256, 256>}, {pipeline_mode = #tpu.pipeline_mode<synchronous>, transform_indices = @transform_8, window_bounds = array<i64: 1, 256>}, {pipeline_mode = #tpu.pipeline_mode<synchronous>, transform_indices = @transform_9, window_bounds = array<i64: 5, 256, 128>}, {pipeline_mode = #tpu.pipeline_mode<synchronous>, transform_indices = @transform_10, window_bounds = array<i64: 1, 128>}, {transform_indices = @transform_11, window_bounds = array<i64: 1, 8, 16, 128>}]} {
    %c0 = arith.constant 0 : index
    %c0_0 = arith.constant 0 : index
    %c0_1 = arith.constant 0 : index
    %c0_2 = arith.constant 0 : index
    %0 = vector.load %arg1[%c0, %c0_0, %c0_1, %c0_2] : memref<1x16x8x128xf32, #tpu.memory_space<vmem>>, vector<1x16x8x128xf32>
    %1 = vector.shape_cast %0 : vector<1x16x8x128xf32> to vector<16x8x128xf32>
    %c0_3 = arith.constant 0 : index
    %c0_4 = arith.constant 0 : index
    %c0_5 = arith.constant 0 : index
    %c0_6 = arith.constant 0 : index
    %2 = vector.load %arg2[%c0_3, %c0_4, %c0_5, %c0_6] : memref<1x16x8x128xf32, #tpu.memory_space<vmem>>, vector<1x16x8x128xf32>
    %3 = vector.shape_cast %2 : vector<1x16x8x128xf32> to vector<16x8x128xf32>
    %cst = arith.constant 0.000000e+00 : f32
    %4 = vector.broadcast %cst : f32 to vector<2x8x256xf32>
    %c0_7 = arith.constant 0 : index
    %c0_8 = arith.constant 0 : index
    %c0_9 = arith.constant 0 : index
    %5 = vector.load %arg13[%c0_7, %c0_8, %c0_9] : memref<20x8x256xf32, #tpu.memory_space<vmem>>, vector<2x8x256xf32>
    tpu.vector_store %arg13[%c0_7, %c0_8, %c0_9], %4 {strides = array<i32>} : memref<20x8x256xf32, #tpu.memory_space<vmem>>, vector<2x8x256xf32>,
    %c18 = arith.constant 18 : index
    %c0_10 = arith.constant 0 : index
    %c0_11 = arith.constant 0 : index
    %6 = vector.load %arg13[%c18, %c0_10, %c0_11] : memref<20x8x256xf32, #tpu.memory_space<vmem>>, vector<2x8x256xf32>
    tpu.vector_store %arg13[%c18, %c0_10, %c0_11], %4 {strides = array<i32>} : memref<20x8x256xf32, #tpu.memory_space<vmem>>, vector<2x8x256xf32>,
    %c2 = arith.constant 2 : index
    %c0_12 = arith.constant 0 : index
    %c0_13 = arith.constant 0 : index
    %7 = vector.load %arg13[%c2, %c0_12, %c0_13] : memref<20x8x256xf32, #tpu.memory_space<vmem>>, vector<16x8x128xf32>
    tpu.vector_store %arg13[%c2, %c0_12, %c0_13], %1 {strides = array<i32>} : memref<20x8x256xf32, #tpu.memory_space<vmem>>, vector<16x8x128xf32>,
    %c2_14 = arith.constant 2 : index
    %c0_15 = arith.constant 0 : index
    %c128 = arith.constant 128 : index
    %8 = vector.load %arg13[%c2_14, %c0_15, %c128] : memref<20x8x256xf32, #tpu.memory_space<vmem>>, vector<16x8x128xf32>
    tpu.vector_store %arg13[%c2_14, %c0_15, %c128], %3 {strides = array<i32>} : memref<20x8x256xf32, #tpu.memory_space<vmem>>, vector<16x8x128xf32>,
    %cst_16 = arith.constant 0.000000e+00 : f32
    %9 = vector.broadcast %cst_16 : f32 to vector<128x256xf32>
    %c0_17 = arith.constant 0 : index
    %c0_18 = arith.constant 0 : index
    %c0_19 = arith.constant 0 : index
    %10 = vector.load %arg13[%c0_17, %c0_18, %c0_19] : memref<20x8x256xf32, #tpu.memory_space<vmem>>, vector<16x8x256xf32>
    %11 = vector.shape_cast %10 : vector<16x8x256xf32> to vector<128x256xf32>
    %12 = arith.truncf %11 : vector<128x256xf32> to vector<128x256xbf16>
    %c0_20 = arith.constant 0 : index
    %c0_21 = arith.constant 0 : index
    %c0_22 = arith.constant 0 : index
    %13 = vector.load %arg4[%c0_20, %c0_21, %c0_22] : memref<5x256x256xbf16, #tpu.memory_space<vmem>>, vector<1x256x256xbf16>
    %14 = vector.shape_cast %13 : vector<1x256x256xbf16> to vector<256x256xbf16>
    %cst_23 = arith.constant dense<0.000000e+00> : vector<128x256xf32>
    %15 = tpu.matmul %12, %14, %cst_23 {dimension_numbers = #tpu.dot_dimension_numbers<[1], [0], [0], [1], [0, 0, 1, 1], [], []>} : vector<128x256xbf16>, vector<256x256xbf16>, vector<128x256xf32> -> vector<128x256xf32>
    %16 = arith.addf %9, %15 : vector<128x256xf32>
    %c1 = arith.constant 1 : index
    %c0_24 = arith.constant 0 : index
    %c0_25 = arith.constant 0 : index
    %17 = vector.load %arg13[%c1, %c0_24, %c0_25] : memref<20x8x256xf32, #tpu.memory_space<vmem>>, vector<16x8x256xf32>
    %18 = vector.shape_cast %17 : vector<16x8x256xf32> to vector<128x256xf32>
    %19 = arith.truncf %18 : vector<128x256xf32> to vector<128x256xbf16>
    %c1_26 = arith.constant 1 : index
    %c0_27 = arith.constant 0 : index
    %c0_28 = arith.constant 0 : index
    %20 = vector.load %arg4[%c1_26, %c0_27, %c0_28] : memref<5x256x256xbf16, #tpu.memory_space<vmem>>, vector<1x256x256xbf16>
    %21 = vector.shape_cast %20 : vector<1x256x256xbf16> to vector<256x256xbf16>
    %cst_29 = arith.constant dense<0.000000e+00> : vector<128x256xf32>
    %22 = tpu.matmul %19, %21, %cst_29 {dimension_numbers = #tpu.dot_dimension_numbers<[1], [0], [0], [1], [0, 0, 1, 1], [], []>} : vector<128x256xbf16>, vector<256x256xbf16>, vector<128x256xf32> -> vector<128x256xf32>
    %23 = arith.addf %16, %22 : vector<128x256xf32>
    %c2_30 = arith.constant 2 : index
    %c0_31 = arith.constant 0 : index
    %c0_32 = arith.constant 0 : index
    %24 = vector.load %arg13[%c2_30, %c0_31, %c0_32] : memref<20x8x256xf32, #tpu.memory_space<vmem>>, vector<16x8x256xf32>
    %25 = vector.shape_cast %24 : vector<16x8x256xf32> to vector<128x256xf32>
    %26 = arith.truncf %25 : vector<128x256xf32> to vector<128x256xbf16>
    %c2_33 = arith.constant 2 : index
    %c0_34 = arith.constant 0 : index
    %c0_35 = arith.constant 0 : index
    %27 = vector.load %arg4[%c2_33, %c0_34, %c0_35] : memref<5x256x256xbf16, #tpu.memory_space<vmem>>, vector<1x256x256xbf16>
    %28 = vector.shape_cast %27 : vector<1x256x256xbf16> to vector<256x256xbf16>
    %cst_36 = arith.constant dense<0.000000e+00> : vector<128x256xf32>
    %29 = tpu.matmul %26, %28, %cst_36 {dimension_numbers = #tpu.dot_dimension_numbers<[1], [0], [0], [1], [0, 0, 1, 1], [], []>} : vector<128x256xbf16>, vector<256x256xbf16>, vector<128x256xf32> -> vector<128x256xf32>
    %30 = arith.addf %23, %29 : vector<128x256xf32>
    %c3 = arith.constant 3 : index
    %c0_37 = arith.constant 0 : index
    %c0_38 = arith.constant 0 : index
    %31 = vector.load %arg13[%c3, %c0_37, %c0_38] : memref<20x8x256xf32, #tpu.memory_space<vmem>>, vector<16x8x256xf32>
    %32 = vector.shape_cast %31 : vector<16x8x256xf32> to vector<128x256xf32>
    %33 = arith.truncf %32 : vector<128x256xf32> to vector<128x256xbf16>
    %c3_39 = arith.constant 3 : index
    %c0_40 = arith.constant 0 : index
    %c0_41 = arith.constant 0 : index
    %34 = vector.load %arg4[%c3_39, %c0_40, %c0_41] : memref<5x256x256xbf16, #tpu.memory_space<vmem>>, vector<1x256x256xbf16>
    %35 = vector.shape_cast %34 : vector<1x256x256xbf16> to vector<256x256xbf16>
    %cst_42 = arith.constant dense<0.000000e+00> : vector<128x256xf32>
    %36 = tpu.matmul %33, %35, %cst_42 {dimension_numbers = #tpu.dot_dimension_numbers<[1], [0], [0], [1], [0, 0, 1, 1], [], []>} : vector<128x256xbf16>, vector<256x256xbf16>, vector<128x256xf32> -> vector<128x256xf32>
    %37 = arith.addf %30, %36 : vector<128x256xf32>
    %c4 = arith.constant 4 : index
    %c0_43 = arith.constant 0 : index
    %c0_44 = arith.constant 0 : index
    %38 = vector.load %arg13[%c4, %c0_43, %c0_44] : memref<20x8x256xf32, #tpu.memory_space<vmem>>, vector<16x8x256xf32>
    %39 = vector.shape_cast %38 : vector<16x8x256xf32> to vector<128x256xf32>
    %40 = arith.truncf %39 : vector<128x256xf32> to vector<128x256xbf16>
    %c4_45 = arith.constant 4 : index
    %c0_46 = arith.constant 0 : index
    %c0_47 = arith.constant 0 : index
    %41 = vector.load %arg4[%c4_45, %c0_46, %c0_47] : memref<5x256x256xbf16, #tpu.memory_space<vmem>>, vector<1x256x256xbf16>
    %42 = vector.shape_cast %41 : vector<1x256x256xbf16> to vector<256x256xbf16>
    %cst_48 = arith.constant dense<0.000000e+00> : vector<128x256xf32>
    %43 = tpu.matmul %40, %42, %cst_48 {dimension_numbers = #tpu.dot_dimension_numbers<[1], [0], [0], [1], [0, 0, 1, 1], [], []>} : vector<128x256xbf16>, vector<256x256xbf16>, vector<128x256xf32> -> vector<128x256xf32>
    %44 = arith.addf %37, %43 : vector<128x256xf32>
    %c0_49 = arith.constant 0 : index
    %c0_50 = arith.constant 0 : index
    %45 = vector.load %arg5[%c0_49, %c0_50] : memref<1x256xf32, #tpu.memory_space<vmem>>, vector<1x256xf32>
    %46 = vector.broadcast %45 : vector<1x256xf32> to vector<128x256xf32>
    %47 = arith.addf %44, %46 : vector<128x256xf32>
    %48 = arith.negf %47 : vector<128x256xf32>
    %49 = math.exp %48 : vector<128x256xf32>
    %cst_51 = arith.constant 1.000000e+00 : f32
    %50 = vector.broadcast %cst_51 : f32 to vector<128x256xf32>
    %51 = arith.addf %50, %49 : vector<128x256xf32>
    %52 = arith.divf %50, %51 : vector<128x256xf32>
    %53 = vector.shape_cast %52 : vector<128x256xf32> to vector<16x8x256xf32>
    %54 = vector.extract_strided_slice %53 {offsets = [0, 0, 0], sizes = [16, 8, 128], strides = [1, 1, 1]} : vector<16x8x256xf32> to vector<16x8x128xf32>
    %55 = vector.extract_strided_slice %53 {offsets = [0, 0, 128], sizes = [16, 8, 128], strides = [1, 1, 1]} : vector<16x8x256xf32> to vector<16x8x128xf32>
    %56 = arith.mulf %55, %1 : vector<16x8x128xf32>
    %c2_52 = arith.constant 2 : index
    %c0_53 = arith.constant 0 : index
    %c0_54 = arith.constant 0 : index
    %57 = vector.load %arg13[%c2_52, %c0_53, %c0_54] : memref<20x8x256xf32, #tpu.memory_space<vmem>>, vector<16x8x128xf32>
    tpu.vector_store %arg13[%c2_52, %c0_53, %c0_54], %56 {strides = array<i32>} : memref<20x8x256xf32, #tpu.memory_space<vmem>>, vector<16x8x128xf32>,
    %cst_55 = arith.constant 0.000000e+00 : f32
    %58 = vector.broadcast %cst_55 : f32 to vector<128x128xf32>
    %c0_56 = arith.constant 0 : index
    %c0_57 = arith.constant 0 : index
    %c0_58 = arith.constant 0 : index
    %59 = vector.load %arg13[%c0_56, %c0_57, %c0_58] : memref<20x8x256xf32, #tpu.memory_space<vmem>>, vector<16x8x256xf32>
    %60 = vector.shape_cast %59 : vector<16x8x256xf32> to vector<128x256xf32>
    %61 = arith.truncf %60 : vector<128x256xf32> to vector<128x256xbf16>
    %c0_59 = arith.constant 0 : index
    %c0_60 = arith.constant 0 : index
    %c0_61 = arith.constant 0 : index
    %62 = vector.load %arg6[%c0_59, %c0_60, %c0_61] : memref<5x256x128xbf16, #tpu.memory_space<vmem>>, vector<1x256x128xbf16>
    %63 = vector.shape_cast %62 : vector<1x256x128xbf16> to vector<256x128xbf16>
    %cst_62 = arith.constant dense<0.000000e+00> : vector<128x128xf32>
    %64 = tpu.matmul %61, %63, %cst_62 {dimension_numbers = #tpu.dot_dimension_numbers<[1], [0], [0], [1], [0, 0, 1, 1], [], []>} : vector<128x256xbf16>, vector<256x128xbf16>, vector<128x128xf32> -> vector<128x128xf32>
    %65 = arith.addf %58, %64 : vector<128x128xf32>
    %c1_63 = arith.constant 1 : index
    %c0_64 = arith.constant 0 : index
    %c0_65 = arith.constant 0 : index
    %66 = vector.load %arg13[%c1_63, %c0_64, %c0_65] : memref<20x8x256xf32, #tpu.memory_space<vmem>>, vector<16x8x256xf32>
    %67 = vector.shape_cast %66 : vector<16x8x256xf32> to vector<128x256xf32>
    %68 = arith.truncf %67 : vector<128x256xf32> to vector<128x256xbf16>
    %c1_66 = arith.constant 1 : index
    %c0_67 = arith.constant 0 : index
    %c0_68 = arith.constant 0 : index
    %69 = vector.load %arg6[%c1_66, %c0_67, %c0_68] : memref<5x256x128xbf16, #tpu.memory_space<vmem>>, vector<1x256x128xbf16>
    %70 = vector.shape_cast %69 : vector<1x256x128xbf16> to vector<256x128xbf16>
    %cst_69 = arith.constant dense<0.000000e+00> : vector<128x128xf32>
    %71 = tpu.matmul %68, %70, %cst_69 {dimension_numbers = #tpu.dot_dimension_numbers<[1], [0], [0], [1], [0, 0, 1, 1], [], []>} : vector<128x256xbf16>, vector<256x128xbf16>, vector<128x128xf32> -> vector<128x128xf32>
    %72 = arith.addf %65, %71 : vector<128x128xf32>
    %c2_70 = arith.constant 2 : index
    %c0_71 = arith.constant 0 : index
    %c0_72 = arith.constant 0 : index
    %73 = vector.load %arg13[%c2_70, %c0_71, %c0_72] : memref<20x8x256xf32, #tpu.memory_space<vmem>>, vector<16x8x256xf32>
    %74 = vector.shape_cast %73 : vector<16x8x256xf32> to vector<128x256xf32>
    %75 = arith.truncf %74 : vector<128x256xf32> to vector<128x256xbf16>
    %c2_73 = arith.constant 2 : index
    %c0_74 = arith.constant 0 : index
    %c0_75 = arith.constant 0 : index
    %76 = vector.load %arg6[%c2_73, %c0_74, %c0_75] : memref<5x256x128xbf16, #tpu.memory_space<vmem>>, vector<1x256x128xbf16>
    %77 = vector.shape_cast %76 : vector<1x256x128xbf16> to vector<256x128xbf16>
    %cst_76 = arith.constant dense<0.000000e+00> : vector<128x128xf32>
    %78 = tpu.matmul %75, %77, %cst_76 {dimension_numbers = #tpu.dot_dimension_numbers<[1], [0], [0], [1], [0, 0, 1, 1], [], []>} : vector<128x256xbf16>, vector<256x128xbf16>, vector<128x128xf32> -> vector<128x128xf32>
    %79 = arith.addf %72, %78 : vector<128x128xf32>
    %c3_77 = arith.constant 3 : index
    %c0_78 = arith.constant 0 : index
    %c0_79 = arith.constant 0 : index
    %80 = vector.load %arg13[%c3_77, %c0_78, %c0_79] : memref<20x8x256xf32, #tpu.memory_space<vmem>>, vector<16x8x256xf32>
    %81 = vector.shape_cast %80 : vector<16x8x256xf32> to vector<128x256xf32>
    %82 = arith.truncf %81 : vector<128x256xf32> to vector<128x256xbf16>
    %c3_80 = arith.constant 3 : index
    %c0_81 = arith.constant 0 : index
    %c0_82 = arith.constant 0 : index
    %83 = vector.load %arg6[%c3_80, %c0_81, %c0_82] : memref<5x256x128xbf16, #tpu.memory_space<vmem>>, vector<1x256x128xbf16>
    %84 = vector.shape_cast %83 : vector<1x256x128xbf16> to vector<256x128xbf16>
    %cst_83 = arith.constant dense<0.000000e+00> : vector<128x128xf32>
    %85 = tpu.matmul %82, %84, %cst_83 {dimension_numbers = #tpu.dot_dimension_numbers<[1], [0], [0], [1], [0, 0, 1, 1], [], []>} : vector<128x256xbf16>, vector<256x128xbf16>, vector<128x128xf32> -> vector<128x128xf32>
    %86 = arith.addf %79, %85 : vector<128x128xf32>
    %c4_84 = arith.constant 4 : index
    %c0_85 = arith.constant 0 : index
    %c0_86 = arith.constant 0 : index
    %87 = vector.load %arg13[%c4_84, %c0_85, %c0_86] : memref<20x8x256xf32, #tpu.memory_space<vmem>>, vector<16x8x256xf32>
    %88 = vector.shape_cast %87 : vector<16x8x256xf32> to vector<128x256xf32>
    %89 = arith.truncf %88 : vector<128x256xf32> to vector<128x256xbf16>
    %c4_87 = arith.constant 4 : index
    %c0_88 = arith.constant 0 : index
    %c0_89 = arith.constant 0 : index
    %90 = vector.load %arg6[%c4_87, %c0_88, %c0_89] : memref<5x256x128xbf16, #tpu.memory_space<vmem>>, vector<1x256x128xbf16>
    %91 = vector.shape_cast %90 : vector<1x256x128xbf16> to vector<256x128xbf16>
    %cst_90 = arith.constant dense<0.000000e+00> : vector<128x128xf32>
    %92 = tpu.matmul %89, %91, %cst_90 {dimension_numbers = #tpu.dot_dimension_numbers<[1], [0], [0], [1], [0, 0, 1, 1], [], []>} : vector<128x256xbf16>, vector<256x128xbf16>, vector<128x128xf32> -> vector<128x128xf32>
    %93 = arith.addf %86, %92 : vector<128x128xf32>
    %c0_91 = arith.constant 0 : index
    %c0_92 = arith.constant 0 : index
    %94 = vector.load %arg7[%c0_91, %c0_92] : memref<1x128xf32, #tpu.memory_space<vmem>>, vector<1x128xf32>
    %95 = vector.broadcast %94 : vector<1x128xf32> to vector<128x128xf32>
    %96 = arith.addf %93, %95 : vector<128x128xf32>
    %97 = math.tanh %96 : vector<128x128xf32>
    %98 = vector.shape_cast %97 : vector<128x128xf32> to vector<16x8x128xf32>
    %99 = arith.subf %98, %1 : vector<16x8x128xf32>
    %100 = arith.mulf %54, %99 : vector<16x8x128xf32>
    %101 = arith.addf %1, %100 : vector<16x8x128xf32>
    %102 = vector.extract_strided_slice %101 {offsets = [0, 0, 0], sizes = [1, 8, 128], strides = [1, 1, 1]} : vector<16x8x128xf32> to vector<1x8x128xf32>
    %103 = vector.shape_cast %102 : vector<1x8x128xf32> to vector<8x128xf32>
    %c0_93 = arith.constant 0 : index
    %c0_94 = arith.constant 0 : index
    %c0_95 = arith.constant 0 : index
    %104 = vector.load %arg15[%c0_93, %c0_94, %c0_95] : memref<8x16x128xf32, #tpu.memory_space<vmem>>, vector<8x1x128xf32>
    %105 = vector.shape_cast %104 : vector<8x1x128xf32> to vector<8x128xf32>
    %106 = vector.shape_cast %103 : vector<8x128xf32> to vector<8x1x128xf32>
    tpu.vector_store %arg15[%c0_93, %c0_94, %c0_95], %106 {strides = array<i32>} : memref<8x16x128xf32, #tpu.memory_space<vmem>>, vector<8x1x128xf32>,
    %107 = vector.extract_strided_slice %101 {offsets = [1, 0, 0], sizes = [1, 8, 128], strides = [1, 1, 1]} : vector<16x8x128xf32> to vector<1x8x128xf32>
    %108 = vector.shape_cast %107 : vector<1x8x128xf32> to vector<8x128xf32>
    %c0_96 = arith.constant 0 : index
    %c1_97 = arith.constant 1 : index
    %c0_98 = arith.constant 0 : index
    %109 = vector.load %arg15[%c0_96, %c1_97, %c0_98] : memref<8x16x128xf32, #tpu.memory_space<vmem>>, vector<8x1x128xf32>
    %110 = vector.shape_cast %109 : vector<8x1x128xf32> to vector<8x128xf32>
    %111 = vector.shape_cast %108 : vector<8x128xf32> to vector<8x1x128xf32>
    tpu.vector_store %arg15[%c0_96, %c1_97, %c0_98], %111 {strides = array<i32>} : memref<8x16x128xf32, #tpu.memory_space<vmem>>, vector<8x1x128xf32>,
    %112 = vector.extract_strided_slice %101 {offsets = [2, 0, 0], sizes = [1, 8, 128], strides = [1, 1, 1]} : vector<16x8x128xf32> to vector<1x8x128xf32>
    %113 = vector.shape_cast %112 : vector<1x8x128xf32> to vector<8x128xf32>
    %c0_99 = arith.constant 0 : index
    %c2_100 = arith.constant 2 : index
    %c0_101 = arith.constant 0 : index
    %114 = vector.load %arg15[%c0_99, %c2_100, %c0_101] : memref<8x16x128xf32, #tpu.memory_space<vmem>>, vector<8x1x128xf32>
    %115 = vector.shape_cast %114 : vector<8x1x128xf32> to vector<8x128xf32>
    %116 = vector.shape_cast %113 : vector<8x128xf32> to vector<8x1x128xf32>
    tpu.vector_store %arg15[%c0_99, %c2_100, %c0_101], %116 {strides = array<i32>} : memref<8x16x128xf32, #tpu.memory_space<vmem>>, vector<8x1x128xf32>,
    %117 = vector.extract_strided_slice %101 {offsets = [3, 0, 0], sizes = [1, 8, 128], strides = [1, 1, 1]} : vector<16x8x128xf32> to vector<1x8x128xf32>
    %118 = vector.shape_cast %117 : vector<1x8x128xf32> to vector<8x128xf32>
    %c0_102 = arith.constant 0 : index
    %c3_103 = arith.constant 3 : index
    %c0_104 = arith.constant 0 : index
    %119 = vector.load %arg15[%c0_102, %c3_103, %c0_104] : memref<8x16x128xf32, #tpu.memory_space<vmem>>, vector<8x1x128xf32>
    %120 = vector.shape_cast %119 : vector<8x1x128xf32> to vector<8x128xf32>
    %121 = vector.shape_cast %118 : vector<8x128xf32> to vector<8x1x128xf32>
    tpu.vector_store %arg15[%c0_102, %c3_103, %c0_104], %121 {strides = array<i32>} : memref<8x16x128xf32, #tpu.memory_space<vmem>>, vector<8x1x128xf32>,
    %122 = vector.extract_strided_slice %101 {offsets = [4, 0, 0], sizes = [1, 8, 128], strides = [1, 1, 1]} : vector<16x8x128xf32> to vector<1x8x128xf32>
    %123 = vector.shape_cast %122 : vector<1x8x128xf32> to vector<8x128xf32>
    %c0_105 = arith.constant 0 : index
    %c4_106 = arith.constant 4 : index
    %c0_107 = arith.constant 0 : index
    %124 = vector.load %arg15[%c0_105, %c4_106, %c0_107] : memref<8x16x128xf32, #tpu.memory_space<vmem>>, vector<8x1x128xf32>
    %125 = vector.shape_cast %124 : vector<8x1x128xf32> to vector<8x128xf32>
    %126 = vector.shape_cast %123 : vector<8x128xf32> to vector<8x1x128xf32>
    tpu.vector_store %arg15[%c0_105, %c4_106, %c0_107], %126 {strides = array<i32>} : memref<8x16x128xf32, #tpu.memory_space<vmem>>, vector<8x1x128xf32>,
    %127 = vector.extract_strided_slice %101 {offsets = [5, 0, 0], sizes = [1, 8, 128], strides = [1, 1, 1]} : vector<16x8x128xf32> to vector<1x8x128xf32>
    %128 = vector.shape_cast %127 : vector<1x8x128xf32> to vector<8x128xf32>
    %c0_108 = arith.constant 0 : index
    %c5 = arith.constant 5 : index
    %c0_109 = arith.constant 0 : index
    %129 = vector.load %arg15[%c0_108, %c5, %c0_109] : memref<8x16x128xf32, #tpu.memory_space<vmem>>, vector<8x1x128xf32>
    %130 = vector.shape_cast %129 : vector<8x1x128xf32> to vector<8x128xf32>
    %131 = vector.shape_cast %128 : vector<8x128xf32> to vector<8x1x128xf32>
    tpu.vector_store %arg15[%c0_108, %c5, %c0_109], %131 {strides = array<i32>} : memref<8x16x128xf32, #tpu.memory_space<vmem>>, vector<8x1x128xf32>,
    %132 = vector.extract_strided_slice %101 {offsets = [6, 0, 0], sizes = [1, 8, 128], strides = [1, 1, 1]} : vector<16x8x128xf32> to vector<1x8x128xf32>
    %133 = vector.shape_cast %132 : vector<1x8x128xf32> to vector<8x128xf32>
    %c0_110 = arith.constant 0 : index
    %c6 = arith.constant 6 : index
    %c0_111 = arith.constant 0 : index
    %134 = vector.load %arg15[%c0_110, %c6, %c0_111] : memref<8x16x128xf32, #tpu.memory_space<vmem>>, vector<8x1x128xf32>
    %135 = vector.shape_cast %134 : vector<8x1x128xf32> to vector<8x128xf32>
    %136 = vector.shape_cast %133 : vector<8x128xf32> to vector<8x1x128xf32>
    tpu.vector_store %arg15[%c0_110, %c6, %c0_111], %136 {strides = array<i32>} : memref<8x16x128xf32, #tpu.memory_space<vmem>>, vector<8x1x128xf32>,
    %137 = vector.extract_strided_slice %101 {offsets = [7, 0, 0], sizes = [1, 8, 128], strides = [1, 1, 1]} : vector<16x8x128xf32> to vector<1x8x128xf32>
    %138 = vector.shape_cast %137 : vector<1x8x128xf32> to vector<8x128xf32>
    %c0_112 = arith.constant 0 : index
    %c7 = arith.constant 7 : index
    %c0_113 = arith.constant 0 : index
    %139 = vector.load %arg15[%c0_112, %c7, %c0_113] : memref<8x16x128xf32, #tpu.memory_space<vmem>>, vector<8x1x128xf32>
    %140 = vector.shape_cast %139 : vector<8x1x128xf32> to vector<8x128xf32>
    %141 = vector.shape_cast %138 : vector<8x128xf32> to vector<8x1x128xf32>
    tpu.vector_store %arg15[%c0_112, %c7, %c0_113], %141 {strides = array<i32>} : memref<8x16x128xf32, #tpu.memory_space<vmem>>, vector<8x1x128xf32>,
    %142 = vector.extract_strided_slice %101 {offsets = [8, 0, 0], sizes = [1, 8, 128], strides = [1, 1, 1]} : vector<16x8x128xf32> to vector<1x8x128xf32>
    %143 = vector.shape_cast %142 : vector<1x8x128xf32> to vector<8x128xf32>
    %c0_114 = arith.constant 0 : index
    %c8 = arith.constant 8 : index
    %c0_115 = arith.constant 0 : index
    %144 = vector.load %arg15[%c0_114, %c8, %c0_115] : memref<8x16x128xf32, #tpu.memory_space<vmem>>, vector<8x1x128xf32>
    %145 = vector.shape_cast %144 : vector<8x1x128xf32> to vector<8x128xf32>
    %146 = vector.shape_cast %143 : vector<8x128xf32> to vector<8x1x128xf32>
    tpu.vector_store %arg15[%c0_114, %c8, %c0_115], %146 {strides = array<i32>} : memref<8x16x128xf32, #tpu.memory_space<vmem>>, vector<8x1x128xf32>,
    %147 = vector.extract_strided_slice %101 {offsets = [9, 0, 0], sizes = [1, 8, 128], strides = [1, 1, 1]} : vector<16x8x128xf32> to vector<1x8x128xf32>
    %148 = vector.shape_cast %147 : vector<1x8x128xf32> to vector<8x128xf32>
    %c0_116 = arith.constant 0 : index
    %c9 = arith.constant 9 : index
    %c0_117 = arith.constant 0 : index
    %149 = vector.load %arg15[%c0_116, %c9, %c0_117] : memref<8x16x128xf32, #tpu.memory_space<vmem>>, vector<8x1x128xf32>
    %150 = vector.shape_cast %149 : vector<8x1x128xf32> to vector<8x128xf32>
    %151 = vector.shape_cast %148 : vector<8x128xf32> to vector<8x1x128xf32>
    tpu.vector_store %arg15[%c0_116, %c9, %c0_117], %151 {strides = array<i32>} : memref<8x16x128xf32, #tpu.memory_space<vmem>>, vector<8x1x128xf32>,
    %152 = vector.extract_strided_slice %101 {offsets = [10, 0, 0], sizes = [1, 8, 128], strides = [1, 1, 1]} : vector<16x8x128xf32> to vector<1x8x128xf32>
    %153 = vector.shape_cast %152 : vector<1x8x128xf32> to vector<8x128xf32>
    %c0_118 = arith.constant 0 : index
    %c10 = arith.constant 10 : index
    %c0_119 = arith.constant 0 : index
    %154 = vector.load %arg15[%c0_118, %c10, %c0_119] : memref<8x16x128xf32, #tpu.memory_space<vmem>>, vector<8x1x128xf32>
    %155 = vector.shape_cast %154 : vector<8x1x128xf32> to vector<8x128xf32>
    %156 = vector.shape_cast %153 : vector<8x128xf32> to vector<8x1x128xf32>
    tpu.vector_store %arg15[%c0_118, %c10, %c0_119], %156 {strides = array<i32>} : memref<8x16x128xf32, #tpu.memory_space<vmem>>, vector<8x1x128xf32>,
    %157 = vector.extract_strided_slice %101 {offsets = [11, 0, 0], sizes = [1, 8, 128], strides = [1, 1, 1]} : vector<16x8x128xf32> to vector<1x8x128xf32>
    %158 = vector.shape_cast %157 : vector<1x8x128xf32> to vector<8x128xf32>
    %c0_120 = arith.constant 0 : index
    %c11 = arith.constant 11 : index
    %c0_121 = arith.constant 0 : index
    %159 = vector.load %arg15[%c0_120, %c11, %c0_121] : memref<8x16x128xf32, #tpu.memory_space<vmem>>, vector<8x1x128xf32>
    %160 = vector.shape_cast %159 : vector<8x1x128xf32> to vector<8x128xf32>
    %161 = vector.shape_cast %158 : vector<8x128xf32> to vector<8x1x128xf32>
    tpu.vector_store %arg15[%c0_120, %c11, %c0_121], %161 {strides = array<i32>} : memref<8x16x128xf32, #tpu.memory_space<vmem>>, vector<8x1x128xf32>,
    %162 = vector.extract_strided_slice %101 {offsets = [12, 0, 0], sizes = [1, 8, 128], strides = [1, 1, 1]} : vector<16x8x128xf32> to vector<1x8x128xf32>
    %163 = vector.shape_cast %162 : vector<1x8x128xf32> to vector<8x128xf32>
    %c0_122 = arith.constant 0 : index
    %c12 = arith.constant 12 : index
    %c0_123 = arith.constant 0 : index
    %164 = vector.load %arg15[%c0_122, %c12, %c0_123] : memref<8x16x128xf32, #tpu.memory_space<vmem>>, vector<8x1x128xf32>
    %165 = vector.shape_cast %164 : vector<8x1x128xf32> to vector<8x128xf32>
    %166 = vector.shape_cast %163 : vector<8x128xf32> to vector<8x1x128xf32>
    tpu.vector_store %arg15[%c0_122, %c12, %c0_123], %166 {strides = array<i32>} : memref<8x16x128xf32, #tpu.memory_space<vmem>>, vector<8x1x128xf32>,
    %167 = vector.extract_strided_slice %101 {offsets = [13, 0, 0], sizes = [1, 8, 128], strides = [1, 1, 1]} : vector<16x8x128xf32> to vector<1x8x128xf32>
    %168 = vector.shape_cast %167 : vector<1x8x128xf32> to vector<8x128xf32>
    %c0_124 = arith.constant 0 : index
    %c13 = arith.constant 13 : index
    %c0_125 = arith.constant 0 : index
    %169 = vector.load %arg15[%c0_124, %c13, %c0_125] : memref<8x16x128xf32, #tpu.memory_space<vmem>>, vector<8x1x128xf32>
    %170 = vector.shape_cast %169 : vector<8x1x128xf32> to vector<8x128xf32>
    %171 = vector.shape_cast %168 : vector<8x128xf32> to vector<8x1x128xf32>
    tpu.vector_store %arg15[%c0_124, %c13, %c0_125], %171 {strides = array<i32>} : memref<8x16x128xf32, #tpu.memory_space<vmem>>, vector<8x1x128xf32>,
    %172 = vector.extract_strided_slice %101 {offsets = [14, 0, 0], sizes = [1, 8, 128], strides = [1, 1, 1]} : vector<16x8x128xf32> to vector<1x8x128xf32>
    %173 = vector.shape_cast %172 : vector<1x8x128xf32> to vector<8x128xf32>
    %c0_126 = arith.constant 0 : index
    %c14 = arith.constant 14 : index
    %c0_127 = arith.constant 0 : index
    %174 = vector.load %arg15[%c0_126, %c14, %c0_127] : memref<8x16x128xf32, #tpu.memory_space<vmem>>, vector<8x1x128xf32>
    %175 = vector.shape_cast %174 : vector<8x1x128xf32> to vector<8x128xf32>
    %176 = vector.shape_cast %173 : vector<8x128xf32> to vector<8x1x128xf32>
    tpu.vector_store %arg15[%c0_126, %c14, %c0_127], %176 {strides = array<i32>} : memref<8x16x128xf32, #tpu.memory_space<vmem>>, vector<8x1x128xf32>,
    %177 = vector.extract_strided_slice %101 {offsets = [15, 0, 0], sizes = [1, 8, 128], strides = [1, 1, 1]} : vector<16x8x128xf32> to vector<1x8x128xf32>
    %178 = vector.shape_cast %177 : vector<1x8x128xf32> to vector<8x128xf32>
    %c0_128 = arith.constant 0 : index
    %c15 = arith.constant 15 : index
    %c0_129 = arith.constant 0 : index
    %179 = vector.load %arg15[%c0_128, %c15, %c0_129] : memref<8x16x128xf32, #tpu.memory_space<vmem>>, vector<8x1x128xf32>
    %180 = vector.shape_cast %179 : vector<8x1x128xf32> to vector<8x128xf32>
    %181 = vector.shape_cast %178 : vector<8x128xf32> to vector<8x1x128xf32>
    tpu.vector_store %arg15[%c0_128, %c15, %c0_129], %181 {strides = array<i32>} : memref<8x16x128xf32, #tpu.memory_space<vmem>>, vector<8x1x128xf32>,
    %c0_130 = arith.constant 0 : index
    %c0_131 = arith.constant 0 : index
    %c0_132 = arith.constant 0 : index
    %182 = vector.load %arg15[%c0_130, %c0_131, %c0_132] : memref<8x16x128xf32, #tpu.memory_space<vmem>>, vector<8x16x128xf32>
    %c0_133 = arith.constant 0 : index
    %c0_134 = arith.constant 0 : index
    %c0_135 = arith.constant 0 : index
    %c0_136 = arith.constant 0 : index
    %183 = vector.load %arg3[%c0_133, %c0_134, %c0_135, %c0_136] : memref<1x8x16x128xf32, #tpu.memory_space<vmem>>, vector<1x8x16x128xf32>
    %184 = vector.shape_cast %183 : vector<1x8x16x128xf32> to vector<8x16x128xf32>
    %cst_137 = arith.constant 0.000000e+00 : bf16
    %185 = vector.broadcast %cst_137 : bf16 to vector<2x16x256xbf16>
    %c0_138 = arith.constant 0 : index
    %c0_139 = arith.constant 0 : index
    %c0_140 = arith.constant 0 : index
    %186 = vector.load %arg14[%c0_138, %c0_139, %c0_140] : memref<12x16x256xbf16, #tpu.memory_space<vmem>>, vector<2x16x256xbf16>
    tpu.vector_store %arg14[%c0_138, %c0_139, %c0_140], %185 {strides = array<i32>} : memref<12x16x256xbf16, #tpu.memory_space<vmem>>, vector<2x16x256xbf16>,
    %c10_141 = arith.constant 10 : index
    %c0_142 = arith.constant 0 : index
    %c0_143 = arith.constant 0 : index
    %187 = vector.load %arg14[%c10_141, %c0_142, %c0_143] : memref<12x16x256xbf16, #tpu.memory_space<vmem>>, vector<2x16x256xbf16>
    tpu.vector_store %arg14[%c10_141, %c0_142, %c0_143], %185 {strides = array<i32>} : memref<12x16x256xbf16, #tpu.memory_space<vmem>>, vector<2x16x256xbf16>,
    %188 = arith.truncf %182 : vector<8x16x128xf32> to vector<8x16x128xbf16>
    %c2_144 = arith.constant 2 : index
    %c0_145 = arith.constant 0 : index
    %c0_146 = arith.constant 0 : index
    %189 = vector.load %arg14[%c2_144, %c0_145, %c0_146] : memref<12x16x256xbf16, #tpu.memory_space<vmem>>, vector<8x16x128xbf16>
    tpu.vector_store %arg14[%c2_144, %c0_145, %c0_146], %188 {strides = array<i32>} : memref<12x16x256xbf16, #tpu.memory_space<vmem>>, vector<8x16x128xbf16>,
    %190 = arith.truncf %184 : vector<8x16x128xf32> to vector<8x16x128xbf16>
    %c2_147 = arith.constant 2 : index
    %c0_148 = arith.constant 0 : index
    %c128_149 = arith.constant 128 : index
    %191 = vector.load %arg14[%c2_147, %c0_148, %c128_149] : memref<12x16x256xbf16, #tpu.memory_space<vmem>>, vector<8x16x128xbf16>
    tpu.vector_store %arg14[%c2_147, %c0_148, %c128_149], %190 {strides = array<i32>} : memref<12x16x256xbf16, #tpu.memory_space<vmem>>, vector<8x16x128xbf16>,
    %cst_150 = arith.constant 0.000000e+00 : f32
    %192 = vector.broadcast %cst_150 : f32 to vector<128x256xf32>
    %c0_151 = arith.constant 0 : index
    %c0_152 = arith.constant 0 : index
    %c0_153 = arith.constant 0 : index
    %193 = vector.load %arg14[%c0_151, %c0_152, %c0_153] : memref<12x16x256xbf16, #tpu.memory_space<vmem>>, vector<8x16x256xbf16>
    %194 = vector.shape_cast %193 : vector<8x16x256xbf16> to vector<128x256xbf16>
    %c0_154 = arith.constant 0 : index
    %c0_155 = arith.constant 0 : index
    %c0_156 = arith.constant 0 : index
    %195 = vector.load %arg8[%c0_154, %c0_155, %c0_156] : memref<5x256x256xbf16, #tpu.memory_space<vmem>>, vector<1x256x256xbf16>
    %196 = vector.shape_cast %195 : vector<1x256x256xbf16> to vector<256x256xbf16>
    %cst_157 = arith.constant dense<0.000000e+00> : vector<128x256xf32>
    %197 = tpu.matmul %194, %196, %cst_157 {dimension_numbers = #tpu.dot_dimension_numbers<[1], [0], [0], [1], [0, 0, 1, 1], [], []>} : vector<128x256xbf16>, vector<256x256xbf16>, vector<128x256xf32> -> vector<128x256xf32>
    %198 = arith.addf %192, %197 : vector<128x256xf32>
    %c1_158 = arith.constant 1 : index
    %c0_159 = arith.constant 0 : index
    %c0_160 = arith.constant 0 : index
    %199 = vector.load %arg14[%c1_158, %c0_159, %c0_160] : memref<12x16x256xbf16, #tpu.memory_space<vmem>>, vector<8x16x256xbf16>
    %200 = vector.shape_cast %199 : vector<8x16x256xbf16> to vector<128x256xbf16>
    %c1_161 = arith.constant 1 : index
    %c0_162 = arith.constant 0 : index
    %c0_163 = arith.constant 0 : index
    %201 = vector.load %arg8[%c1_161, %c0_162, %c0_163] : memref<5x256x256xbf16, #tpu.memory_space<vmem>>, vector<1x256x256xbf16>
    %202 = vector.shape_cast %201 : vector<1x256x256xbf16> to vector<256x256xbf16>
    %cst_164 = arith.constant dense<0.000000e+00> : vector<128x256xf32>
    %203 = tpu.matmul %200, %202, %cst_164 {dimension_numbers = #tpu.dot_dimension_numbers<[1], [0], [0], [1], [0, 0, 1, 1], [], []>} : vector<128x256xbf16>, vector<256x256xbf16>, vector<128x256xf32> -> vector<128x256xf32>
    %204 = arith.addf %198, %203 : vector<128x256xf32>
    %c2_165 = arith.constant 2 : index
    %c0_166 = arith.constant 0 : index
    %c0_167 = arith.constant 0 : index
    %205 = vector.load %arg14[%c2_165, %c0_166, %c0_167] : memref<12x16x256xbf16, #tpu.memory_space<vmem>>, vector<8x16x256xbf16>
    %206 = vector.shape_cast %205 : vector<8x16x256xbf16> to vector<128x256xbf16>
    %c2_168 = arith.constant 2 : index
    %c0_169 = arith.constant 0 : index
    %c0_170 = arith.constant 0 : index
    %207 = vector.load %arg8[%c2_168, %c0_169, %c0_170] : memref<5x256x256xbf16, #tpu.memory_space<vmem>>, vector<1x256x256xbf16>
    %208 = vector.shape_cast %207 : vector<1x256x256xbf16> to vector<256x256xbf16>
    %cst_171 = arith.constant dense<0.000000e+00> : vector<128x256xf32>
    %209 = tpu.matmul %206, %208, %cst_171 {dimension_numbers = #tpu.dot_dimension_numbers<[1], [0], [0], [1], [0, 0, 1, 1], [], []>} : vector<128x256xbf16>, vector<256x256xbf16>, vector<128x256xf32> -> vector<128x256xf32>
    %210 = arith.addf %204, %209 : vector<128x256xf32>
    %c3_172 = arith.constant 3 : index
    %c0_173 = arith.constant 0 : index
    %c0_174 = arith.constant 0 : index
    %211 = vector.load %arg14[%c3_172, %c0_173, %c0_174] : memref<12x16x256xbf16, #tpu.memory_space<vmem>>, vector<8x16x256xbf16>
    %212 = vector.shape_cast %211 : vector<8x16x256xbf16> to vector<128x256xbf16>
    %c3_175 = arith.constant 3 : index
    %c0_176 = arith.constant 0 : index
    %c0_177 = arith.constant 0 : index
    %213 = vector.load %arg8[%c3_175, %c0_176, %c0_177] : memref<5x256x256xbf16, #tpu.memory_space<vmem>>, vector<1x256x256xbf16>
    %214 = vector.shape_cast %213 : vector<1x256x256xbf16> to vector<256x256xbf16>
    %cst_178 = arith.constant dense<0.000000e+00> : vector<128x256xf32>
    %215 = tpu.matmul %212, %214, %cst_178 {dimension_numbers = #tpu.dot_dimension_numbers<[1], [0], [0], [1], [0, 0, 1, 1], [], []>} : vector<128x256xbf16>, vector<256x256xbf16>, vector<128x256xf32> -> vector<128x256xf32>
    %216 = arith.addf %210, %215 : vector<128x256xf32>
    %c4_179 = arith.constant 4 : index
    %c0_180 = arith.constant 0 : index
    %c0_181 = arith.constant 0 : index
    %217 = vector.load %arg14[%c4_179, %c0_180, %c0_181] : memref<12x16x256xbf16, #tpu.memory_space<vmem>>, vector<8x16x256xbf16>
    %218 = vector.shape_cast %217 : vector<8x16x256xbf16> to vector<128x256xbf16>
    %c4_182 = arith.constant 4 : index
    %c0_183 = arith.constant 0 : index
    %c0_184 = arith.constant 0 : index
    %219 = vector.load %arg8[%c4_182, %c0_183, %c0_184] : memref<5x256x256xbf16, #tpu.memory_space<vmem>>, vector<1x256x256xbf16>
    %220 = vector.shape_cast %219 : vector<1x256x256xbf16> to vector<256x256xbf16>
    %cst_185 = arith.constant dense<0.000000e+00> : vector<128x256xf32>
    %221 = tpu.matmul %218, %220, %cst_185 {dimension_numbers = #tpu.dot_dimension_numbers<[1], [0], [0], [1], [0, 0, 1, 1], [], []>} : vector<128x256xbf16>, vector<256x256xbf16>, vector<128x256xf32> -> vector<128x256xf32>
    %222 = arith.addf %216, %221 : vector<128x256xf32>
    %c0_186 = arith.constant 0 : index
    %c0_187 = arith.constant 0 : index
    %223 = vector.load %arg9[%c0_186, %c0_187] : memref<1x256xf32, #tpu.memory_space<vmem>>, vector<1x256xf32>
    %224 = vector.broadcast %223 : vector<1x256xf32> to vector<128x256xf32>
    %225 = arith.addf %222, %224 : vector<128x256xf32>
    %226 = arith.negf %225 : vector<128x256xf32>
    %227 = math.exp %226 : vector<128x256xf32>
    %cst_188 = arith.constant 1.000000e+00 : f32
    %228 = vector.broadcast %cst_188 : f32 to vector<128x256xf32>
    %229 = arith.addf %228, %227 : vector<128x256xf32>
    %230 = arith.divf %228, %229 : vector<128x256xf32>
    %231 = vector.shape_cast %230 : vector<128x256xf32> to vector<8x16x256xf32>
    %232 = vector.extract_strided_slice %231 {offsets = [0, 0, 0], sizes = [8, 16, 128], strides = [1, 1, 1]} : vector<8x16x256xf32> to vector<8x16x128xf32>
    %233 = vector.extract_strided_slice %231 {offsets = [0, 0, 128], sizes = [8, 16, 128], strides = [1, 1, 1]} : vector<8x16x256xf32> to vector<8x16x128xf32>
    %234 = arith.mulf %233, %182 : vector<8x16x128xf32>
    %235 = arith.truncf %234 : vector<8x16x128xf32> to vector<8x16x128xbf16>
    %c2_189 = arith.constant 2 : index
    %c0_190 = arith.constant 0 : index
    %c0_191 = arith.constant 0 : index
    %236 = vector.load %arg14[%c2_189, %c0_190, %c0_191] : memref<12x16x256xbf16, #tpu.memory_space<vmem>>, vector<8x16x128xbf16>
    tpu.vector_store %arg14[%c2_189, %c0_190, %c0_191], %235 {strides = array<i32>} : memref<12x16x256xbf16, #tpu.memory_space<vmem>>, vector<8x16x128xbf16>,
    %cst_192 = arith.constant 0.000000e+00 : f32
    %237 = vector.broadcast %cst_192 : f32 to vector<128x128xf32>
    %c0_193 = arith.constant 0 : index
    %c0_194 = arith.constant 0 : index
    %c0_195 = arith.constant 0 : index
    %238 = vector.load %arg14[%c0_193, %c0_194, %c0_195] : memref<12x16x256xbf16, #tpu.memory_space<vmem>>, vector<8x16x256xbf16>
    %239 = vector.shape_cast %238 : vector<8x16x256xbf16> to vector<128x256xbf16>
    %c0_196 = arith.constant 0 : index
    %c0_197 = arith.constant 0 : index
    %c0_198 = arith.constant 0 : index
    %240 = vector.load %arg10[%c0_196, %c0_197, %c0_198] : memref<5x256x128xbf16, #tpu.memory_space<vmem>>, vector<1x256x128xbf16>
    %241 = vector.shape_cast %240 : vector<1x256x128xbf16> to vector<256x128xbf16>
    %cst_199 = arith.constant dense<0.000000e+00> : vector<128x128xf32>
    %242 = tpu.matmul %239, %241, %cst_199 {dimension_numbers = #tpu.dot_dimension_numbers<[1], [0], [0], [1], [0, 0, 1, 1], [], []>} : vector<128x256xbf16>, vector<256x128xbf16>, vector<128x128xf32> -> vector<128x128xf32>
    %243 = arith.addf %237, %242 : vector<128x128xf32>
    %c1_200 = arith.constant 1 : index
    %c0_201 = arith.constant 0 : index
    %c0_202 = arith.constant 0 : index
    %244 = vector.load %arg14[%c1_200, %c0_201, %c0_202] : memref<12x16x256xbf16, #tpu.memory_space<vmem>>, vector<8x16x256xbf16>
    %245 = vector.shape_cast %244 : vector<8x16x256xbf16> to vector<128x256xbf16>
    %c1_203 = arith.constant 1 : index
    %c0_204 = arith.constant 0 : index
    %c0_205 = arith.constant 0 : index
    %246 = vector.load %arg10[%c1_203, %c0_204, %c0_205] : memref<5x256x128xbf16, #tpu.memory_space<vmem>>, vector<1x256x128xbf16>
    %247 = vector.shape_cast %246 : vector<1x256x128xbf16> to vector<256x128xbf16>
    %cst_206 = arith.constant dense<0.000000e+00> : vector<128x128xf32>
    %248 = tpu.matmul %245, %247, %cst_206 {dimension_numbers = #tpu.dot_dimension_numbers<[1], [0], [0], [1], [0, 0, 1, 1], [], []>} : vector<128x256xbf16>, vector<256x128xbf16>, vector<128x128xf32> -> vector<128x128xf32>
    %249 = arith.addf %243, %248 : vector<128x128xf32>
    %c2_207 = arith.constant 2 : index
    %c0_208 = arith.constant 0 : index
    %c0_209 = arith.constant 0 : index
    %250 = vector.load %arg14[%c2_207, %c0_208, %c0_209] : memref<12x16x256xbf16, #tpu.memory_space<vmem>>, vector<8x16x256xbf16>
    %251 = vector.shape_cast %250 : vector<8x16x256xbf16> to vector<128x256xbf16>
    %c2_210 = arith.constant 2 : index
    %c0_211 = arith.constant 0 : index
    %c0_212 = arith.constant 0 : index
    %252 = vector.load %arg10[%c2_210, %c0_211, %c0_212] : memref<5x256x128xbf16, #tpu.memory_space<vmem>>, vector<1x256x128xbf16>
    %253 = vector.shape_cast %252 : vector<1x256x128xbf16> to vector<256x128xbf16>
    %cst_213 = arith.constant dense<0.000000e+00> : vector<128x128xf32>
    %254 = tpu.matmul %251, %253, %cst_213 {dimension_numbers = #tpu.dot_dimension_numbers<[1], [0], [0], [1], [0, 0, 1, 1], [], []>} : vector<128x256xbf16>, vector<256x128xbf16>, vector<128x128xf32> -> vector<128x128xf32>
    %255 = arith.addf %249, %254 : vector<128x128xf32>
    %c3_214 = arith.constant 3 : index
    %c0_215 = arith.constant 0 : index
    %c0_216 = arith.constant 0 : index
    %256 = vector.load %arg14[%c3_214, %c0_215, %c0_216] : memref<12x16x256xbf16, #tpu.memory_space<vmem>>, vector<8x16x256xbf16>
    %257 = vector.shape_cast %256 : vector<8x16x256xbf16> to vector<128x256xbf16>
    %c3_217 = arith.constant 3 : index
    %c0_218 = arith.constant 0 : index
    %c0_219 = arith.constant 0 : index
    %258 = vector.load %arg10[%c3_217, %c0_218, %c0_219] : memref<5x256x128xbf16, #tpu.memory_space<vmem>>, vector<1x256x128xbf16>
    %259 = vector.shape_cast %258 : vector<1x256x128xbf16> to vector<256x128xbf16>
    %cst_220 = arith.constant dense<0.000000e+00> : vector<128x128xf32>
    %260 = tpu.matmul %257, %259, %cst_220 {dimension_numbers = #tpu.dot_dimension_numbers<[1], [0], [0], [1], [0, 0, 1, 1], [], []>} : vector<128x256xbf16>, vector<256x128xbf16>, vector<128x128xf32> -> vector<128x128xf32>
    %261 = arith.addf %255, %260 : vector<128x128xf32>
    %c4_221 = arith.constant 4 : index
    %c0_222 = arith.constant 0 : index
    %c0_223 = arith.constant 0 : index
    %262 = vector.load %arg14[%c4_221, %c0_222, %c0_223] : memref<12x16x256xbf16, #tpu.memory_space<vmem>>, vector<8x16x256xbf16>
    %263 = vector.shape_cast %262 : vector<8x16x256xbf16> to vector<128x256xbf16>
    %c4_224 = arith.constant 4 : index
    %c0_225 = arith.constant 0 : index
    %c0_226 = arith.constant 0 : index
    %264 = vector.load %arg10[%c4_224, %c0_225, %c0_226] : memref<5x256x128xbf16, #tpu.memory_space<vmem>>, vector<1x256x128xbf16>
    %265 = vector.shape_cast %264 : vector<1x256x128xbf16> to vector<256x128xbf16>
    %cst_227 = arith.constant dense<0.000000e+00> : vector<128x128xf32>
    %266 = tpu.matmul %263, %265, %cst_227 {dimension_numbers = #tpu.dot_dimension_numbers<[1], [0], [0], [1], [0, 0, 1, 1], [], []>} : vector<128x256xbf16>, vector<256x128xbf16>, vector<128x128xf32> -> vector<128x128xf32>
    %267 = arith.addf %261, %266 : vector<128x128xf32>
    %c0_228 = arith.constant 0 : index
    %c0_229 = arith.constant 0 : index
    %268 = vector.load %arg11[%c0_228, %c0_229] : memref<1x128xf32, #tpu.memory_space<vmem>>, vector<1x128xf32>
    %269 = vector.broadcast %268 : vector<1x128xf32> to vector<128x128xf32>
    %270 = arith.addf %267, %269 : vector<128x128xf32>
    %271 = math.tanh %270 : vector<128x128xf32>
    %272 = vector.shape_cast %271 : vector<128x128xf32> to vector<8x16x128xf32>
    %273 = arith.subf %272, %182 : vector<8x16x128xf32>
    %274 = arith.mulf %232, %273 : vector<8x16x128xf32>
    %275 = arith.addf %182, %274 : vector<8x16x128xf32>
    %c0_230 = arith.constant 0 : index
    %c0_231 = arith.constant 0 : index
    %c0_232 = arith.constant 0 : index
    %c0_233 = arith.constant 0 : index
    %276 = vector.load %arg12[%c0_230, %c0_231, %c0_232, %c0_233] : memref<1x8x16x128xf32, #tpu.memory_space<vmem>>, vector<1x8x16x128xf32>
    %277 = vector.shape_cast %276 : vector<1x8x16x128xf32> to vector<8x16x128xf32>
    %278 = vector.shape_cast %275 : vector<8x16x128xf32> to vector<1x8x16x128xf32>
    tpu.vector_store %arg12[%c0_230, %c0_231, %c0_232, %c0_233], %278 {strides = array<i32>} : memref<1x8x16x128xf32, #tpu.memory_space<vmem>>, vector<1x8x16x128xf32>,
    return
  }
  func.func @transform_0(%arg0: i32) -> (i32, i32, i32, i32) {
    %c0_i32 = arith.constant 0 : i32
    %c0_i32_0 = arith.constant 0 : i32
    %c0_i32_1 = arith.constant 0 : i32
    %c0_i32_2 = arith.constant 0 : i32
    return %arg0, %c0_i32, %c0_i32_0, %c0_i32_1 : i32, i32, i32, i32
  }
  func.func @transform_1(%arg0: i32) -> (i32, i32, i32, i32) {
    %c0_i32 = arith.constant 0 : i32
    %c0_i32_0 = arith.constant 0 : i32
    %c0_i32_1 = arith.constant 0 : i32
    %c0_i32_2 = arith.constant 0 : i32
    return %arg0, %c0_i32, %c0_i32_0, %c0_i32_1 : i32, i32, i32, i32
  }
  func.func @transform_2(%arg0: i32) -> (i32, i32, i32, i32) {
    %c0_i32 = arith.constant 0 : i32
    %c0_i32_0 = arith.constant 0 : i32
    %c0_i32_1 = arith.constant 0 : i32
    %c0_i32_2 = arith.constant 0 : i32
    return %arg0, %c0_i32, %c0_i32_0, %c0_i32_1 : i32, i32, i32, i32
  }
  func.func @transform_3(%arg0: i32) -> (i32, i32, i32) {
    %c0_i32 = arith.constant 0 : i32
    %c0_i32_0 = arith.constant 0 : i32
    %c0_i32_1 = arith.constant 0 : i32
    %c0_i32_2 = arith.constant 0 : i32
    return %c0_i32, %c0_i32_0, %c0_i32_1 : i32, i32, i32
  }
  func.func @transform_4(%arg0: i32) -> (i32, i32) {
    %c0_i32 = arith.constant 0 : i32
    %c0_i32_0 = arith.constant 0 : i32
    %c0_i32_1 = arith.constant 0 : i32
    return %c0_i32, %c0_i32_0 : i32, i32
  }
  func.func @transform_5(%arg0: i32) -> (i32, i32, i32) {
    %c0_i32 = arith.constant 0 : i32
    %c0_i32_0 = arith.constant 0 : i32
    %c0_i32_1 = arith.constant 0 : i32
    %c0_i32_2 = arith.constant 0 : i32
    return %c0_i32, %c0_i32_0, %c0_i32_1 : i32, i32, i32
  }
  func.func @transform_6(%arg0: i32) -> (i32, i32) {
    %c0_i32 = arith.constant 0 : i32
    %c0_i32_0 = arith.constant 0 : i32
    %c0_i32_1 = arith.constant 0 : i32
    return %c0_i32, %c0_i32_0 : i32, i32
  }
  func.func @transform_7(%arg0: i32) -> (i32, i32, i32) {
    %c0_i32 = arith.constant 0 : i32
    %c0_i32_0 = arith.constant 0 : i32
    %c0_i32_1 = arith.constant 0 : i32
    %c0_i32_2 = arith.constant 0 : i32
    return %c0_i32, %c0_i32_0, %c0_i32_1 : i32, i32, i32
  }
  func.func @transform_8(%arg0: i32) -> (i32, i32) {
    %c0_i32 = arith.constant 0 : i32
    %c0_i32_0 = arith.constant 0 : i32
    %c0_i32_1 = arith.constant 0 : i32
    return %c0_i32, %c0_i32_0 : i32, i32
  }
  func.func @transform_9(%arg0: i32) -> (i32, i32, i32) {
    %c0_i32 = arith.constant 0 : i32
    %c0_i32_0 = arith.constant 0 : i32
    %c0_i32_1 = arith.constant 0 : i32
    %c0_i32_2 = arith.constant 0 : i32
    return %c0_i32, %c0_i32_0, %c0_i32_1 : i32, i32, i32
  }
  func.func @transform_10(%arg0: i32) -> (i32, i32) {
    %c0_i32 = arith.constant 0 : i32
    %c0_i32_0 = arith.constant 0 : i32
    %c0_i32_1 = arith.constant 0 : i32
    return %c0_i32, %c0_i32_0 : i32, i32
  }
  func.func @transform_11(%arg0: i32) -> (i32, i32, i32, i32) {
    %c0_i32 = arith.constant 0 : i32
    %c0_i32_0 = arith.constant 0 : i32
    %c0_i32_1 = arith.constant 0 : i32
    %c0_i32_2 = arith.constant 0 : i32
    return %arg0, %c0_i32, %c0_i32_0, %c0_i32_1 : i32, i32, i32, i32
  }
}

</mosaic_0001>

<llo_original>
// kernel: tpu_custom_call.1
$region0: #{tpu_custom_call.1}
  #allocation0 [shape = 'u32[]', space=smem, size = 0x4, offset = 0x4, fixed_abs, tag = 'smem constant byte address 0x4 - core index']
  #allocation1 [shape = 'u32[144,128]{1,0:T(1,128)}', space=vmem, size = 0x12000, scoped, tag = 'internal scratch']
  #allocation2 [shape = 'f32[20,8,256]{2,1,0:T(8,128)}', space=vmem, size = 0x28000, scoped, tag = 'scratch operand']
  #allocation3 [shape = 'bf16[12,16,256]{2,1,0:T(8,128)(2,1)}', space=vmem, size = 0x18000, scoped, tag = 'scratch operand']
  #allocation4 [shape = 'f32[8,16,128]{2,1,0:T(8,128)}', space=vmem, size = 0x10000, scoped, tag = 'scratch operand']
  %s0 = inlined_call_operand.hbm [shape: f32[2,16,8,128], index: 0, kind: input, shape index: {}]
  %s1 = inlined_call_operand.hbm [shape: f32[2,16,8,128], index: 1, kind: input, shape index: {}]
  %s2 = inlined_call_operand.hbm [shape: f32[2,8,16,128], index: 2, kind: input, shape index: {}]
  %s3 = inlined_call_operand.hbm [shape: bf16[5,256,256], index: 3, kind: input, shape index: {}]
  %s4 = inlined_call_operand.vmem [shape: f32[1,256], index: 4, kind: input, shape index: {}]
  %s5 = inlined_call_operand.hbm [shape: bf16[5,256,128], index: 5, kind: input, shape index: {}]
  %s6 = inlined_call_operand.vmem [shape: f32[1,128], index: 6, kind: input, shape index: {}]
  %s7 = inlined_call_operand.hbm [shape: bf16[5,256,256], index: 7, kind: input, shape index: {}]
  %s8 = inlined_call_operand.vmem [shape: f32[1,256], index: 8, kind: input, shape index: {}]
  %s9 = inlined_call_operand.hbm [shape: bf16[5,256,128], index: 9, kind: input, shape index: {}]
  %s10 = inlined_call_operand.vmem [shape: f32[1,128], index: 10, kind: input, shape index: {}]
  %s11 = inlined_call_operand.hbm [shape: f32[2,8,16,128], index: 11, kind: output, shape index: {}]
  %s12 = sld [smem:[#allocation0]]
  $region105: #{tpu_custom_call.1} parent=0
    _
  %s14 = ssub.s32 1, %s12
  %s15 = scalar_select 0, %s14, %s12
  $region1: #{tpu_custom_call.1} parent=0
    #allocation5 [shape = 'u8[131072]{0}', space=vmem, size = 0x20000, scoped, tag = 'input window, operand 0']
    #allocation6 [shape = 's32[2]{0}', space=sflag, size = 0x8, scoped, tag = 'scoped memory for tpu_custom_call.1']
    #allocation7 [shape = 's32[2]{0}', space=sflag, size = 0x8, scoped, tag = 'scoped memory for tpu_custom_call.1']
    #allocation8 [shape = 'u8[131072]{0}', space=vmem, size = 0x20000, scoped, tag = 'input window, operand 1']
    #allocation9 [shape = 's32[2]{0}', space=sflag, size = 0x8, scoped, tag = 'scoped memory for tpu_custom_call.1']
    #allocation10 [shape = 'u8[131072]{0}', space=vmem, size = 0x20000, scoped, tag = 'input window, operand 2']
    #allocation11 [shape = 'u8[655360]{0}', space=vmem, size = 0xa0000, scoped, tag = 'input window, operand 3, single buffered']
    #allocation12 [shape = 's32[1]{0}', space=sflag, size = 0x4, scoped, tag = 'scoped memory for tpu_custom_call.1']
    #allocation13 [shape = 'u8[327680]{0}', space=vmem, size = 0x50000, scoped, tag = 'input window, operand 5, single buffered']
    #allocation14 [shape = 'u8[655360]{0}', space=vmem, size = 0xa0000, scoped, tag = 'input window, operand 7, single buffered']
    #allocation15 [shape = 's32[1]{0}', space=sflag, size = 0x4, scoped, tag = 'scoped memory for tpu_custom_call.1']
    #allocation16 [shape = 'u8[327680]{0}', space=vmem, size = 0x50000, scoped, tag = 'input window, operand 9, single buffered']
    #allocation17 [shape = 'u8[131072]{0}', space=vmem, size = 0x20000, scoped, tag = 'output window, operand 0']
    %16 = vsyncpa [#allocation6], 0
    %s17 = scalar_lea.sflag [#allocation6], 1
    %18 = vsyncpa %s17, 0
    %19 = vsyncpa [#allocation9], 0
    %s20 = scalar_lea.sflag [#allocation9], 1
    %21 = vsyncpa %s20, 0
    %22 = vsyncpa [#allocation12], 0
    %23 = vsyncpa [#allocation15], 0
    %24 = vsyncpa [#allocation7], 0
    %s25 = scalar_lea.sflag [#allocation7], 1
    %26 = vsyncpa %s25, 0
    loop: start=0, step=1, limit=4
    $region2: #{tpu_custom_call.1} parent=1 // loop_pre_header
      _
    $region3: #{tpu_custom_call.1} parent=1 // loop_header
      %s28 = sphi 0, %s32
      %p29 = scmp.ge.s32.totalorder %s28, 4
      %s38 = sphi 0, %s40
      %s41 = sphi 0, %s38
      %s42 = sphi 0, %s41
      %s58 = sphi 0, %s42
      %s64 = sphi 0, %s66
      %s67 = sphi 0, %s64
      %s68 = sphi 0, %s67
      %s84 = sphi 0, %s68
      %s90 = sphi 0, %s92
      %s93 = sphi 0, %s90
      %s94 = sphi 0, %s93
      %s110 = sphi 0, %s94
      %s114 = sphi 0, %s114
      %s116 = sphi 0, %s114
      %s117 = sphi 0, %s116
      %s131 = sphi 0, %s117
      %s135 = sphi 0, %s135
      %s137 = sphi 0, %s135
      %s138 = sphi 0, %s137
      %s152 = sphi 0, %s138
      %s156 = sphi 0, %s156
      %s158 = sphi 0, %s156
      %s159 = sphi 0, %s158
      %s173 = sphi 0, %s159
      %s177 = sphi 0, %s177
      %s179 = sphi 0, %s177
      %s180 = sphi 0, %s179
      %s194 = sphi 0, %s180
      %s198 = sphi 0, %s198
      %s200 = sphi 0, %s198
      %s201 = sphi 0, %s200
      %s215 = sphi 0, %s201
      %s219 = sphi 0, %s219
      %s221 = sphi 0, %s219
      %s222 = sphi 0, %s221
      %s236 = sphi 0, %s222
      %s240 = sphi 0, %s240
      %s242 = sphi 0, %s240
      %s243 = sphi 0, %s242
      %s257 = sphi 0, %s243
      %s261 = sphi 0, %s261
      %s263 = sphi 0, %s261
      %s264 = sphi 0, %s263
      %s278 = sphi 0, %s264
      %s284 = sphi 0, %s286
      %s287 = sphi 0, %s284
      %s288 = sphi 0, %s287
      %s304 = sphi 0, %s288
    $region4: #{tpu_custom_call.1} parent=1 // loop_header_branch
      %31 = sbr.rel (%p29) target = $region8
    $region5: #{tpu_custom_call.1} parent=1 // loop_body
      %s33 = ssub.s32 %s28, 1
      %s34 = ssub.s32 %s28, 2
      %s35 = sadd.s32 %s28, 1
      %s36 = ssub.s32 %s28, %s35
      %p37 = scmp.eq.s32.totalorder %s36, 0
      %s39 = sadd.s32 %s38, 1
      %s40 = scalar_select %p37, %s38, %s39
      %p43 = pneg %p37
      %p44 = scmp.eq.s32.totalorder %s28, 1
      %p45 = por %p43, %p44
      %p46 = scmp.ne.s32.totalorder %s38, %s41
      %p47 = scmp.eq.s32.totalorder %s28, 0
      %p48 = por %p46, %p47
      %p49 = scmp.ne.s32.totalorder %s38, %s41
      %p50 = scmp.eq.s32.totalorder %s33, 1
      %p51 = por %p49, %p50
      %p52 = scmp.ne.s32.totalorder %s41, %s42
      %p53 = scmp.eq.s32.totalorder %s33, 0
      %p54 = por %p52, %p53
      %p55 = scmp.ne.s32.totalorder %s41, %s42
      %p56 = scmp.eq.s32.totalorder %s34, 1
      %p57 = por %p55, %p56
      %p59 = scmp.ne.s32.totalorder %s42, %s58
      %p60 = scmp.eq.s32.totalorder %s34, 0
      %p61 = por %p59, %p60
      %s62 = ssub.s32 %s28, %s35
      %p63 = scmp.eq.s32.totalorder %s62, 0
      %s65 = sadd.s32 %s64, 1
      %s66 = scalar_select %p63, %s64, %s65
      %p69 = pneg %p63
      %p70 = scmp.eq.s32.totalorder %s28, 1
      %p71 = por %p69, %p70
      %p72 = scmp.ne.s32.totalorder %s64, %s67
      %p73 = scmp.eq.s32.totalorder %s28, 0
      %p74 = por %p72, %p73
      %p75 = scmp.ne.s32.totalorder %s64, %s67
      %p76 = scmp.eq.s32.totalorder %s33, 1
      %p77 = por %p75, %p76
      %p78 = scmp.ne.s32.totalorder %s67, %s68
      %p79 = scmp.eq.s32.totalorder %s33, 0
      %p80 = por %p78, %p79
      %p81 = scmp.ne.s32.totalorder %s67, %s68
      %p82 = scmp.eq.s32.totalorder %s34, 1
      %p83 = por %p81, %p82
      %p85 = scmp.ne.s32.totalorder %s68, %s84
      %p86 = scmp.eq.s32.totalorder %s34, 0
      %p87 = por %p85, %p86
      %s88 = ssub.s32 %s28, %s35
      %p89 = scmp.eq.s32.totalorder %s88, 0
      %s91 = sadd.s32 %s90, 1
      %s92 = scalar_select %p89, %s90, %s91
      %p95 = pneg %p89
      %p96 = scmp.eq.s32.totalorder %s28, 1
      %p97 = por %p95, %p96
      %p98 = scmp.ne.s32.totalorder %s90, %s93
      %p99 = scmp.eq.s32.totalorder %s28, 0
      %p100 = por %p98, %p99
      %p101 = scmp.ne.s32.totalorder %s90, %s93
      %p102 = scmp.eq.s32.totalorder %s33, 1
      %p103 = por %p101, %p102
      %p104 = scmp.ne.s32.totalorder %s93, %s94
      %p105 = scmp.eq.s32.totalorder %s33, 0
      %p106 = por %p104, %p105
      %p107 = scmp.ne.s32.totalorder %s93, %s94
      %p108 = scmp.eq.s32.totalorder %s34, 1
      %p109 = por %p107, %p108
      %p111 = scmp.ne.s32.totalorder %s94, %s110
      %p112 = scmp.eq.s32.totalorder %s34, 0
      %p113 = por %p111, %p112
      %s115 = sadd.s32 %s114, 1
      %p118 = scmp.eq.s32.totalorder %s28, 1
      %p119 = scmp.ne.s32.totalorder %s114, %s116
      %p120 = scmp.eq.s32.totalorder %s28, 0
      %p121 = por %p119, %p120
      %p122 = scmp.ne.s32.totalorder %s114, %s116
      %p123 = scmp.eq.s32.totalorder %s33, 1
      %p124 = por %p122, %p123
      %p125 = scmp.ne.s32.totalorder %s116, %s117
      %p126 = scmp.eq.s32.totalorder %s33, 0
      %p127 = por %p125, %p126
      %p128 = scmp.ne.s32.totalorder %s116, %s117
      %p129 = scmp.eq.s32.totalorder %s34, 1
      %p130 = por %p128, %p129
      %p132 = scmp.ne.s32.totalorder %s117, %s131
      %p133 = scmp.eq.s32.totalorder %s34, 0
      %p134 = por %p132, %p133
      %s136 = sadd.s32 %s135, 1
      %p139 = scmp.eq.s32.totalorder %s28, 1
      %p140 = scmp.ne.s32.totalorder %s135, %s137
      %p141 = scmp.eq.s32.totalorder %s28, 0
      %p142 = por %p140, %p141
      %p143 = scmp.ne.s32.totalorder %s135, %s137
      %p144 = scmp.eq.s32.totalorder %s33, 1
      %p145 = por %p143, %p144
      %p146 = scmp.ne.s32.totalorder %s137, %s138
      %p147 = scmp.eq.s32.totalorder %s33, 0
      %p148 = por %p146, %p147
      %p149 = scmp.ne.s32.totalorder %s137, %s138
      %p150 = scmp.eq.s32.totalorder %s34, 1
      %p151 = por %p149, %p150
      %p153 = scmp.ne.s32.totalorder %s138, %s152
      %p154 = scmp.eq.s32.totalorder %s34, 0
      %p155 = por %p153, %p154
      %s157 = sadd.s32 %s156, 1
      %p160 = scmp.eq.s32.totalorder %s28, 1
      %p161 = scmp.ne.s32.totalorder %s156, %s158
      %p162 = scmp.eq.s32.totalorder %s28, 0
      %p163 = por %p161, %p162
      %p164 = scmp.ne.s32.totalorder %s156, %s158
      %p165 = scmp.eq.s32.totalorder %s33, 1
      %p166 = por %p164, %p165
      %p167 = scmp.ne.s32.totalorder %s158, %s159
      %p168 = scmp.eq.s32.totalorder %s33, 0
      %p169 = por %p167, %p168
      %p170 = scmp.ne.s32.totalorder %s158, %s159
      %p171 = scmp.eq.s32.totalorder %s34, 1
      %p172 = por %p170, %p171
      %p174 = scmp.ne.s32.totalorder %s159, %s173
      %p175 = scmp.eq.s32.totalorder %s34, 0
      %p176 = por %p174, %p175
      %s178 = sadd.s32 %s177, 1
      %p181 = scmp.eq.s32.totalorder %s28, 1
      %p182 = scmp.ne.s32.totalorder %s177, %s179
      %p183 = scmp.eq.s32.totalorder %s28, 0
      %p184 = por %p182, %p183
      %p185 = scmp.ne.s32.totalorder %s177, %s179
      %p186 = scmp.eq.s32.totalorder %s33, 1
      %p187 = por %p185, %p186
      %p188 = scmp.ne.s32.totalorder %s179, %s180
      %p189 = scmp.eq.s32.totalorder %s33, 0
      %p190 = por %p188, %p189
      %p191 = scmp.ne.s32.totalorder %s179, %s180
      %p192 = scmp.eq.s32.totalorder %s34, 1
      %p193 = por %p191, %p192
      %p195 = scmp.ne.s32.totalorder %s180, %s194
      %p196 = scmp.eq.s32.totalorder %s34, 0
      %p197 = por %p195, %p196
      %s199 = sadd.s32 %s198, 1
      %p202 = scmp.eq.s32.totalorder %s28, 1
      %p203 = scmp.ne.s32.totalorder %s198, %s200
      %p204 = scmp.eq.s32.totalorder %s28, 0
      %p205 = por %p203, %p204
      %p206 = scmp.ne.s32.totalorder %s198, %s200
      %p207 = scmp.eq.s32.totalorder %s33, 1
      %p208 = por %p206, %p207
      %p209 = scmp.ne.s32.totalorder %s200, %s201
      %p210 = scmp.eq.s32.totalorder %s33, 0
      %p211 = por %p209, %p210
      %p212 = scmp.ne.s32.totalorder %s200, %s201
      %p213 = scmp.eq.s32.totalorder %s34, 1
      %p214 = por %p212, %p213
      %p216 = scmp.ne.s32.totalorder %s201, %s215
      %p217 = scmp.eq.s32.totalorder %s34, 0
      %p218 = por %p216, %p217
      %s220 = sadd.s32 %s219, 1
      %p223 = scmp.eq.s32.totalorder %s28, 1
      %p224 = scmp.ne.s32.totalorder %s219, %s221
      %p225 = scmp.eq.s32.totalorder %s28, 0
      %p226 = por %p224, %p225
      %p227 = scmp.ne.s32.totalorder %s219, %s221
      %p228 = scmp.eq.s32.totalorder %s33, 1
      %p229 = por %p227, %p228
      %p230 = scmp.ne.s32.totalorder %s221, %s222
      %p231 = scmp.eq.s32.totalorder %s33, 0
      %p232 = por %p230, %p231
      %p233 = scmp.ne.s32.totalorder %s221, %s222
      %p234 = scmp.eq.s32.totalorder %s34, 1
      %p235 = por %p233, %p234
      %p237 = scmp.ne.s32.totalorder %s222, %s236
      %p238 = scmp.eq.s32.totalorder %s34, 0
      %p239 = por %p237, %p238
      %s241 = sadd.s32 %s240, 1
      %p244 = scmp.eq.s32.totalorder %s28, 1
      %p245 = scmp.ne.s32.totalorder %s240, %s242
      %p246 = scmp.eq.s32.totalorder %s28, 0
      %p247 = por %p245, %p246
      %p248 = scmp.ne.s32.totalorder %s240, %s242
      %p249 = scmp.eq.s32.totalorder %s33, 1
      %p250 = por %p248, %p249
      %p251 = scmp.ne.s32.totalorder %s242, %s243
      %p252 = scmp.eq.s32.totalorder %s33, 0
      %p253 = por %p251, %p252
      %p254 = scmp.ne.s32.totalorder %s242, %s243
      %p255 = scmp.eq.s32.totalorder %s34, 1
      %p256 = por %p254, %p255
      %p258 = scmp.ne.s32.totalorder %s243, %s257
      %p259 = scmp.eq.s32.totalorder %s34, 0
      %p260 = por %p258, %p259
      %s262 = sadd.s32 %s261, 1
      %p265 = scmp.eq.s32.totalorder %s28, 1
      %p266 = scmp.ne.s32.totalorder %s261, %s263
      %p267 = scmp.eq.s32.totalorder %s28, 0
      %p268 = por %p266, %p267
      %p269 = scmp.ne.s32.totalorder %s261, %s263
      %p270 = scmp.eq.s32.totalorder %s33, 1
      %p271 = por %p269, %p270
      %p272 = scmp.ne.s32.totalorder %s263, %s264
      %p273 = scmp.eq.s32.totalorder %s33, 0
      %p274 = por %p272, %p273
      %p275 = scmp.ne.s32.totalorder %s263, %s264
      %p276 = scmp.eq.s32.totalorder %s34, 1
      %p277 = por %p275, %p276
      %p279 = scmp.ne.s32.totalorder %s264, %s278
      %p280 = scmp.eq.s32.totalorder %s34, 0
      %p281 = por %p279, %p280
      %s282 = ssub.s32 %s28, %s35
      %p283 = scmp.eq.s32.totalorder %s282, 0
      %s285 = sadd.s32 %s284, 1
      %s286 = scalar_select %p283, %s284, %s285
      %p289 = pneg %p283
      %p290 = scmp.eq.s32.totalorder %s28, 1
      %p291 = por %p289, %p290
      %p292 = scmp.ne.s32.totalorder %s284, %s287
      %p293 = scmp.eq.s32.totalorder %s28, 0
      %p294 = por %p292, %p293
      %p295 = scmp.ne.s32.totalorder %s284, %s287
      %p296 = scmp.eq.s32.totalorder %s33, 1
      %p297 = por %p295, %p296
      %p298 = scmp.ne.s32.totalorder %s287, %s288
      %p299 = scmp.eq.s32.totalorder %s33, 0
      %p300 = por %p298, %p299
      %p301 = scmp.ne.s32.totalorder %s287, %s288
      %p302 = scmp.eq.s32.totalorder %s34, 1
      %p303 = por %p301, %p302
      %p305 = scmp.ne.s32.totalorder %s288, %s304
      %p306 = scmp.eq.s32.totalorder %s34, 0
      %p307 = por %p305, %p306
      %p308 = scmp.le.s32.totalorder 1, %s28
      %p309 = scmp.lt.s32.totalorder %s28, 3
      %p310 = pnand %p308, %p309
      %p311 = pneg %p310
      // Predicated region
      $region9: #{tpu_custom_call.1} parent=5 // pred_check
        _
      $region10: #{tpu_custom_call.1} parent=5 // pred_check_branch
        %313 = sbr.rel (%p310) target = $region12
      $region11: #{tpu_custom_call.1} parent=5 // pred_region
        %s314 = ssub.s32 %s28, 1
        // Predicated region
        $region13: #{tpu_custom_call.1} parent=11 // pred_check
          %p315 = pneg %p127
        $region14: #{tpu_custom_call.1} parent=11 // pred_check_branch
          %317 = sbr.rel (%p315) target = $region16
        $region15: #{tpu_custom_call.1} parent=11 // pred_region
          %s319 = ssub.s32 20480, 20480
          %320 = vsyncadd [#allocation12], %s319
          %s321 = sshll.u32 [#allocation11], 4
          %s322 = int_to_ptr.vmem [resolvable:$true] %s321
          %327 = dma.hbm_to_vmem [thread:$0]  %s3, 20480, %s322, [#allocation12], 128, 128, 8
        $region16: #{tpu_custom_call.1} parent=11 // pred_fallthru
          _
        // Predicated region
        $region17: #{tpu_custom_call.1} parent=11 // pred_check
          %p328 = pneg %p148
        $region18: #{tpu_custom_call.1} parent=11 // pred_check_branch
          %330 = sbr.rel (%p328) target = $region20
        $region19: #{tpu_custom_call.1} parent=11 // pred_region
          _
        $region20: #{tpu_custom_call.1} parent=11 // pred_fallthru
          _
        // Predicated region
        $region21: #{tpu_custom_call.1} parent=11 // pred_check
          %p331 = pneg %p169
        $region22: #{tpu_custom_call.1} parent=11 // pred_check_branch
          %333 = sbr.rel (%p331) target = $region24
        $region23: #{tpu_custom_call.1} parent=11 // pred_region
          %s335 = ssub.s32 10240, 10240
          %336 = vsyncadd [#allocation12], %s335
          %s337 = sshll.u32 [#allocation13], 4
          %s338 = int_to_ptr.vmem [resolvable:$true] %s337
          %343 = dma.hbm_to_vmem [thread:$0]  %s5, 10240, %s338, [#allocation12], 64, 64, 4
        $region24: #{tpu_custom_call.1} parent=11 // pred_fallthru
          _
        // Predicated region
        $region25: #{tpu_custom_call.1} parent=11 // pred_check
          %p344 = pneg %p190
        $region26: #{tpu_custom_call.1} parent=11 // pred_check_branch
          %346 = sbr.rel (%p344) target = $region28
        $region27: #{tpu_custom_call.1} parent=11 // pred_region
          _
        $region28: #{tpu_custom_call.1} parent=11 // pred_fallthru
          _
        // Predicated region
        $region29: #{tpu_custom_call.1} parent=11 // pred_check
          %p347 = pneg %p211
        $region30: #{tpu_custom_call.1} parent=11 // pred_check_branch
          %349 = sbr.rel (%p347) target = $region32
        $region31: #{tpu_custom_call.1} parent=11 // pred_region
          %s351 = ssub.s32 20480, 20480
          %352 = vsyncadd [#allocation15], %s351
          %s353 = sshll.u32 [#allocation14], 4
          %s354 = int_to_ptr.vmem [resolvable:$true] %s353
          %359 = dma.hbm_to_vmem [thread:$0]  %s7, 20480, %s354, [#allocation15], 128, 128, 8
        $region32: #{tpu_custom_call.1} parent=11 // pred_fallthru
          _
        // Predicated region
        $region33: #{tpu_custom_call.1} parent=11 // pred_check
          %p360 = pneg %p232
        $region34: #{tpu_custom_call.1} parent=11 // pred_check_branch
          %362 = sbr.rel (%p360) target = $region36
        $region35: #{tpu_custom_call.1} parent=11 // pred_region
          _
        $region36: #{tpu_custom_call.1} parent=11 // pred_fallthru
          _
        // Predicated region
        $region37: #{tpu_custom_call.1} parent=11 // pred_check
          %p363 = pneg %p253
        $region38: #{tpu_custom_call.1} parent=11 // pred_check_branch
          %365 = sbr.rel (%p363) target = $region40
        $region39: #{tpu_custom_call.1} parent=11 // pred_region
          %s367 = ssub.s32 10240, 10240
          %368 = vsyncadd [#allocation15], %s367
          %s369 = sshll.u32 [#allocation16], 4
          %s370 = int_to_ptr.vmem [resolvable:$true] %s369
          %375 = dma.hbm_to_vmem [thread:$0]  %s9, 10240, %s370, [#allocation15], 64, 64, 4
        $region40: #{tpu_custom_call.1} parent=11 // pred_fallthru
          _
        // Predicated region
        $region41: #{tpu_custom_call.1} parent=11 // pred_check
          %p376 = pneg %p274
        $region42: #{tpu_custom_call.1} parent=11 // pred_check_branch
          %378 = sbr.rel (%p376) target = $region44
        $region43: #{tpu_custom_call.1} parent=11 // pred_region
          _
        $region44: #{tpu_custom_call.1} parent=11 // pred_fallthru
          _
      $region12: #{tpu_custom_call.1} parent=5 // pred_fallthru
        _
      %p379 = scmp.lt.s32.totalorder %s28, 2
      // Predicated region
      $region45: #{tpu_custom_call.1} parent=5 // pred_check
        %p380 = pneg %p379
      $region46: #{tpu_custom_call.1} parent=5 // pred_check_branch
        %382 = sbr.rel (%p380) target = $region48
      $region47: #{tpu_custom_call.1} parent=5 // pred_region
        // Predicated region
        $region49: #{tpu_custom_call.1} parent=47 // pred_check
          %p383 = pneg %p48
        $region50: #{tpu_custom_call.1} parent=47 // pred_check_branch
          %385 = sbr.rel (%p383) target = $region52
        $region51: #{tpu_custom_call.1} parent=47 // pred_region
          %s386 = sand.u32 %s38, 1
          %s387 = scalar_lea.sflag [#allocation6], %s386
          %s388 = sand.u32 %s38, 1
          %s389 = smul.addr %s388, 128
          %s390 = scalar_lea.vmem [#allocation5], %s389
          %s392 = ssub.s32 2048, 2048
          %393 = vsyncadd %s387, %s392
          %s394 = smul.addr %s28, 16
          %s395 = smul.addr %s394, 128
          %s396 = scalar_lea.hbm %s0, %s395
          %s397 = sshll.u32 %s390, 4
          %s398 = int_to_ptr.vmem [resolvable:$true] %s397
          %403 = dma.hbm_to_vmem [thread:$0]  %s396, 2048, %s398, %s387, 128, 128, 8
        $region52: #{tpu_custom_call.1} parent=47 // pred_fallthru
          _
        // Predicated region
        $region53: #{tpu_custom_call.1} parent=47 // pred_check
          %p404 = pneg %p74
        $region54: #{tpu_custom_call.1} parent=47 // pred_check_branch
          %406 = sbr.rel (%p404) target = $region56
        $region55: #{tpu_custom_call.1} parent=47 // pred_region
          %s407 = sand.u32 %s28, 1
          %s408 = scalar_lea.sflag [#allocation9], %s407
          %s409 = sand.u32 %s64, 1
          %s410 = smul.addr %s409, 128
          %s411 = scalar_lea.vmem [#allocation8], %s410
          %s413 = ssub.s32 2048, 2048
          %414 = vsyncadd %s408, %s413
          %s415 = smul.addr %s28, 16
          %s416 = smul.addr %s415, 128
          %s417 = scalar_lea.hbm %s1, %s416
          %s418 = sshll.u32 %s411, 4
          %s419 = int_to_ptr.vmem [resolvable:$true] %s418
          %424 = dma.hbm_to_vmem [thread:$0]  %s417, 2048, %s419, %s408, 128, 128, 8
        $region56: #{tpu_custom_call.1} parent=47 // pred_fallthru
          _
        // Predicated region
        $region57: #{tpu_custom_call.1} parent=47 // pred_check
          %p425 = pneg %p100
        $region58: #{tpu_custom_call.1} parent=47 // pred_check_branch
          %427 = sbr.rel (%p425) target = $region60
        $region59: #{tpu_custom_call.1} parent=47 // pred_region
          %s428 = sand.u32 %s28, 1
          %s429 = scalar_lea.sflag [#allocation9], %s428
          %s430 = sand.u32 %s90, 1
          %s431 = smul.addr %s430, 128
          %s432 = scalar_lea.vmem [#allocation10], %s431
          %s434 = ssub.s32 2048, 2048
          %435 = vsyncadd %s429, %s434
          %s436 = smul.addr %s28, 16
          %s437 = smul.addr %s436, 128
          %s438 = scalar_lea.hbm %s2, %s437
          %s439 = sshll.u32 %s432, 4
          %s440 = int_to_ptr.vmem [resolvable:$true] %s439
          %445 = dma.hbm_to_vmem [thread:$0]  %s438, 2048, %s440, %s429, 128, 128, 8
        $region60: #{tpu_custom_call.1} parent=47 // pred_fallthru
          _
      $region48: #{tpu_custom_call.1} parent=5 // pred_fallthru
        _
      %p446 = scmp.le.s32.totalorder 1, %s28
      %p447 = scmp.lt.s32.totalorder %s28, 3
      %p448 = pnand %p446, %p447
      %p449 = pneg %p448
      // Predicated region
      $region61: #{tpu_custom_call.1} parent=5 // pred_check
        _
      $region62: #{tpu_custom_call.1} parent=5 // pred_check_branch
        %451 = sbr.rel (%p448) target = $region64
      $region63: #{tpu_custom_call.1} parent=5 // pred_region
        %s452 = ssub.s32 %s28, 1
        %s453 = sand.u32 %s41, 1
        %s454 = scalar_lea.sflag [#allocation6], %s453
        %s455 = sand.u32 %s41, 1
        %s456 = smul.addr %s455, 128
        %s457 = scalar_lea.vmem [#allocation5], %s456
        // Predicated region
        $region65: #{tpu_custom_call.1} parent=63 // pred_check
          %p458 = pneg %p54
        $region66: #{tpu_custom_call.1} parent=63 // pred_check_branch
          %460 = sbr.rel (%p458) target = $region68
        $region67: #{tpu_custom_call.1} parent=63 // pred_region
          %461 = dma.done %s454, 2048
        $region68: #{tpu_custom_call.1} parent=63 // pred_fallthru
          _
        %s462 = sand.u32 %s33, 1
        %s463 = scalar_lea.sflag [#allocation9], %s462
        %s464 = sand.u32 %s67, 1
        %s465 = smul.addr %s464, 128
        %s466 = scalar_lea.vmem [#allocation8], %s465
        // Predicated region
        $region69: #{tpu_custom_call.1} parent=63 // pred_check
          %p467 = pneg %p80
        $region70: #{tpu_custom_call.1} parent=63 // pred_check_branch
          %469 = sbr.rel (%p467) target = $region72
        $region71: #{tpu_custom_call.1} parent=63 // pred_region
          %470 = dma.done %s463, 2048
        $region72: #{tpu_custom_call.1} parent=63 // pred_fallthru
          _
        %s471 = sand.u32 %s33, 1
        %s472 = scalar_lea.sflag [#allocation9], %s471
        %s473 = sand.u32 %s93, 1
        %s474 = smul.addr %s473, 128
        %s475 = scalar_lea.vmem [#allocation10], %s474
        // Predicated region
        $region73: #{tpu_custom_call.1} parent=63 // pred_check
          %p476 = pneg %p106
        $region74: #{tpu_custom_call.1} parent=63 // pred_check_branch
          %478 = sbr.rel (%p476) target = $region76
        $region75: #{tpu_custom_call.1} parent=63 // pred_region
          %479 = dma.done %s472, 2048
        $region76: #{tpu_custom_call.1} parent=63 // pred_fallthru
          _
        // Predicated region
        $region77: #{tpu_custom_call.1} parent=63 // pred_check
          %p480 = pneg %p127
        $region78: #{tpu_custom_call.1} parent=63 // pred_check_branch
          %482 = sbr.rel (%p480) target = $region80
        $region79: #{tpu_custom_call.1} parent=63 // pred_region
          %483 = dma.done [#allocation12], 20480
        $region80: #{tpu_custom_call.1} parent=63 // pred_fallthru
          _
        // Predicated region
        $region81: #{tpu_custom_call.1} parent=63 // pred_check
          %p484 = pneg %p169
        $region82: #{tpu_custom_call.1} parent=63 // pred_check_branch
          %486 = sbr.rel (%p484) target = $region84
        $region83: #{tpu_custom_call.1} parent=63 // pred_region
          %487 = dma.done [#allocation12], 10240
        $region84: #{tpu_custom_call.1} parent=63 // pred_fallthru
          _
        // Predicated region
        $region85: #{tpu_custom_call.1} parent=63 // pred_check
          %p488 = pneg %p211
        $region86: #{tpu_custom_call.1} parent=63 // pred_check_branch
          %490 = sbr.rel (%p488) target = $region88
        $region87: #{tpu_custom_call.1} parent=63 // pred_region
          %491 = dma.done [#allocation15], 20480
        $region88: #{tpu_custom_call.1} parent=63 // pred_fallthru
          _
        // Predicated region
        $region89: #{tpu_custom_call.1} parent=63 // pred_check
          %p492 = pneg %p253
        $region90: #{tpu_custom_call.1} parent=63 // pred_check_branch
          %494 = sbr.rel (%p492) target = $region92
        $region91: #{tpu_custom_call.1} parent=63 // pred_region
          %495 = dma.done [#allocation15], 10240
        $region92: #{tpu_custom_call.1} parent=63 // pred_fallthru
          _
        %s496 = sand.u32 %s41, 1
        %s497 = scalar_lea.sflag [#allocation6], %s496
        %s498 = sand.u32 %s41, 1
        %s499 = smul.addr %s498, 128
        %s500 = scalar_lea.vmem [#allocation5], %s499
        %p501 = pneg %p54
        %p502 = pneg %p51
        %s503 = sand.u32 %s33, 1
        %s504 = scalar_lea.sflag [#allocation9], %s503
        %s505 = sand.u32 %s67, 1
        %s506 = smul.addr %s505, 128
        %s507 = scalar_lea.vmem [#allocation8], %s506
        %p508 = pneg %p80
        %p509 = pneg %p77
        %s510 = sand.u32 %s33, 1
        %s511 = scalar_lea.sflag [#allocation9], %s510
        %s512 = sand.u32 %s93, 1
        %s513 = smul.addr %s512, 128
        %s514 = scalar_lea.vmem [#allocation10], %s513
        %p515 = pneg %p106
        %p516 = pneg %p103
        %p517 = pneg %p127
        %p518 = pneg %p124
        %p519 = pneg %p148
        %p520 = pneg %p145
        %p521 = pneg %p169
        %p522 = pneg %p166
        %p523 = pneg %p190
        %p524 = pneg %p187
        %p525 = pneg %p211
        %p526 = pneg %p208
        %p527 = pneg %p232
        %p528 = pneg %p229
        %p529 = pneg %p253
        %p530 = pneg %p250
        %p531 = pneg %p274
        %p532 = pneg %p271
        %p533 = pneg %p300
        %p534 = pneg %p297
        %s535 = sand.u32 %s287, 1
        %s536 = scalar_lea.sflag [#allocation7], %s535
        %s537 = sand.u32 %s287, 1
        %s538 = smul.addr %s537, 128
        %s539 = scalar_lea.vmem [#allocation17], %s538
        %v541 = vld [vmem:[%s457] sm:$0xff]
        %v542 = vld [vmem:[%s457 + $0x8] sm:$0xff]
        %v543 = vld [vmem:[%s457 + $0x10] sm:$0xff]
        %v544 = vld [vmem:[%s457 + $0x18] sm:$0xff]
        %v545 = vld [vmem:[%s457 + $0x20] sm:$0xff]
        %v546 = vld [vmem:[%s457 + $0x28] sm:$0xff]
        %v547 = vld [vmem:[%s457 + $0x30] sm:$0xff]
        %v548 = vld [vmem:[%s457 + $0x38] sm:$0xff]
        %v549 = vld [vmem:[%s457 + $0x40] sm:$0xff]
        %v550 = vld [vmem:[%s457 + $0x48] sm:$0xff]
        %v551 = vld [vmem:[%s457 + $0x50] sm:$0xff]
        %v552 = vld [vmem:[%s457 + $0x58] sm:$0xff]
        %v553 = vld [vmem:[%s457 + $0x60] sm:$0xff]
        %v554 = vld [vmem:[%s457 + $0x68] sm:$0xff]
        %v555 = vld [vmem:[%s457 + $0x70] sm:$0xff]
        %v556 = vld [vmem:[%s457 + $0x78] sm:$0xff]
        %v557 = vld [vmem:[%s466] sm:$0xff]
        %v558 = vld [vmem:[%s466 + $0x8] sm:$0xff]
        %v559 = vld [vmem:[%s466 + $0x10] sm:$0xff]
        %v560 = vld [vmem:[%s466 + $0x18] sm:$0xff]
        %v561 = vld [vmem:[%s466 + $0x20] sm:$0xff]
        %v562 = vld [vmem:[%s466 + $0x28] sm:$0xff]
        %v563 = vld [vmem:[%s466 + $0x30] sm:$0xff]
        %v564 = vld [vmem:[%s466 + $0x38] sm:$0xff]
        %v565 = vld [vmem:[%s466 + $0x40] sm:$0xff]
        %v566 = vld [vmem:[%s466 + $0x48] sm:$0xff]
        %v567 = vld [vmem:[%s466 + $0x50] sm:$0xff]
        %v568 = vld [vmem:[%s466 + $0x58] sm:$0xff]
        %v569 = vld [vmem:[%s466 + $0x60] sm:$0xff]
        %v570 = vld [vmem:[%s466 + $0x68] sm:$0xff]
        %v571 = vld [vmem:[%s466 + $0x70] sm:$0xff]
        %v572 = vld [vmem:[%s466 + $0x78] sm:$0xff]
        %573 = vst [vmem:[#allocation2] sm:$0xff] 0.0
        %574 = vst [vmem:[#allocation2 + $0x8] sm:$0xff] 0.0
        %575 = vst [vmem:[#allocation2 + $0x10] sm:$0xff] 0.0
        %576 = vst [vmem:[#allocation2 + $0x18] sm:$0xff] 0.0
        %s577 = scalar_lea.vmem [#allocation2], 288
        %578 = vst [vmem:[%s577] sm:$0xff] 0.0
        %579 = vst [vmem:[%s577 + $0x8] sm:$0xff] 0.0
        %580 = vst [vmem:[%s577 + $0x10] sm:$0xff] 0.0
        %581 = vst [vmem:[%s577 + $0x18] sm:$0xff] 0.0
        %s582 = scalar_lea.vmem [#allocation2], 32
        %583 = vst [vmem:[%s582] sm:$0xff] %v541
        %584 = vst [vmem:[%s582 + $0x10] sm:$0xff] %v542
        %585 = vst [vmem:[%s582 + $0x20] sm:$0xff] %v543
        %586 = vst [vmem:[%s582 + $0x30] sm:$0xff] %v544
        %587 = vst [vmem:[%s582 + $0x40] sm:$0xff] %v545
        %588 = vst [vmem:[%s582 + $0x50] sm:$0xff] %v546
        %589 = vst [vmem:[%s582 + $0x60] sm:$0xff] %v547
        %590 = vst [vmem:[%s582 + $0x70] sm:$0xff] %v548
        %591 = vst [vmem:[%s582 + $0x80] sm:$0xff] %v549
        %592 = vst [vmem:[%s582 + $0x90] sm:$0xff] %v550
        %593 = vst [vmem:[%s582 + $0xa0] sm:$0xff] %v551
        %594 = vst [vmem:[%s582 + $0xb0] sm:$0xff] %v552
        %595 = vst [vmem:[%s582 + $0xc0] sm:$0xff] %v553
        %596 = vst [vmem:[%s582 + $0xd0] sm:$0xff] %v554
        %597 = vst [vmem:[%s582 + $0xe0] sm:$0xff] %v555
        %598 = vst [vmem:[%s582 + $0xf0] sm:$0xff] %v556
        %599 = vst [vmem:[%s582 + $0x8] sm:$0xff] %v557
        %600 = vst [vmem:[%s582 + $0x18] sm:$0xff] %v558
        %601 = vst [vmem:[%s582 + $0x28] sm:$0xff] %v559
        %602 = vst [vmem:[%s582 + $0x38] sm:$0xff] %v560
        %603 = vst [vmem:[%s582 + $0x48] sm:$0xff] %v561
        %604 = vst [vmem:[%s582 + $0x58] sm:$0xff] %v562
        %605 = vst [vmem:[%s582 + $0x68] sm:$0xff] %v563
        %606 = vst [vmem:[%s582 + $0x78] sm:$0xff] %v564
        %607 = vst [vmem:[%s582 + $0x88] sm:$0xff] %v565
        %608 = vst [vmem:[%s582 + $0x98] sm:$0xff] %v566
        %609 = vst [vmem:[%s582 + $0xa8] sm:$0xff] %v567
        %610 = vst [vmem:[%s582 + $0xb8] sm:$0xff] %v568
        %611 = vst [vmem:[%s582 + $0xc8] sm:$0xff] %v569
        %612 = vst [vmem:[%s582 + $0xd8] sm:$0xff] %v570
        %613 = vst [vmem:[%s582 + $0xe8] sm:$0xff] %v571
        %614 = vst [vmem:[%s582 + $0xf8] sm:$0xff] %v572
        %v615 = vld [vmem:[#allocation2] sm:$0xff]
        %v616 = vld [vmem:[#allocation2 + $0x8] sm:$0xff]
        %v617 = vld [vmem:[#allocation2 + $0x10] sm:$0xff]
        %v618 = vld [vmem:[#allocation2 + $0x18] sm:$0xff]
        %v619 = vld [vmem:[#allocation2 + $0x20] sm:$0xff]
        %v620 = vld [vmem:[#allocation2 + $0x28] sm:$0xff]
        %v621 = vld [vmem:[#allocation2 + $0x30] sm:$0xff]
        %v622 = vld [vmem:[#allocation2 + $0x38] sm:$0xff]
        %v623 = vld [vmem:[#allocation2 + $0x40] sm:$0xff]
        %v624 = vld [vmem:[#allocation2 + $0x48] sm:$0xff]
        %v625 = vld [vmem:[#allocation2 + $0x50] sm:$0xff]
        %v626 = vld [vmem:[#allocation2 + $0x58] sm:$0xff]
        %v627 = vld [vmem:[#allocation2 + $0x60] sm:$0xff]
        %v628 = vld [vmem:[#allocation2 + $0x68] sm:$0xff]
        %v629 = vld [vmem:[#allocation2 + $0x70] sm:$0xff]
        %v630 = vld [vmem:[#allocation2 + $0x78] sm:$0xff]
        %v631 = vld [vmem:[#allocation2 + $0x80] sm:$0xff]
        %v632 = vld [vmem:[#allocation2 + $0x88] sm:$0xff]
        %v633 = vld [vmem:[#allocation2 + $0x90] sm:$0xff]
        %v634 = vld [vmem:[#allocation2 + $0x98] sm:$0xff]
        %v635 = vld [vmem:[#allocation2 + $0xa0] sm:$0xff]
        %v636 = vld [vmem:[#allocation2 + $0xa8] sm:$0xff]
        %v637 = vld [vmem:[#allocation2 + $0xb0] sm:$0xff]
        %v638 = vld [vmem:[#allocation2 + $0xb8] sm:$0xff]
        %v639 = vld [vmem:[#allocation2 + $0xc0] sm:$0xff]
        %v640 = vld [vmem:[#allocation2 + $0xc8] sm:$0xff]
        %v641 = vld [vmem:[#allocation2 + $0xd0] sm:$0xff]
        %v642 = vld [vmem:[#allocation2 + $0xd8] sm:$0xff]
        %v643 = vld [vmem:[#allocation2 + $0xe0] sm:$0xff]
        %v644 = vld [vmem:[#allocation2 + $0xe8] sm:$0xff]
        %v645 = vld [vmem:[#allocation2 + $0xf0] sm:$0xff]
        %v646 = vld [vmem:[#allocation2 + $0xf8] sm:$0xff]
        %v647 = vpack.c.bf16 %v617, %v615
        %v648 = vpack.c.bf16 %v618, %v616
        %v649 = vpack.c.bf16 %v621, %v619
        %v650 = vpack.c.bf16 %v622, %v620
        %v651 = vpack.c.bf16 %v625, %v623
        %v652 = vpack.c.bf16 %v626, %v624
        %v653 = vpack.c.bf16 %v629, %v627
        %v654 = vpack.c.bf16 %v630, %v628
        %v655 = vpack.c.bf16 %v633, %v631
        %v656 = vpack.c.bf16 %v634, %v632
        %v657 = vpack.c.bf16 %v637, %v635
        %v658 = vpack.c.bf16 %v638, %v636
        %v659 = vpack.c.bf16 %v641, %v639
        %v660 = vpack.c.bf16 %v642, %v640
        %v661 = vpack.c.bf16 %v645, %v643
        %v662 = vpack.c.bf16 %v646, %v644
        %v663 = vld [vmem:[#allocation11] sm:$0xff]
        %v664 = vld [vmem:[#allocation11 + $0x8] sm:$0xff]
        %v665 = vld [vmem:[#allocation11 + $0x10] sm:$0xff]
        %v666 = vld [vmem:[#allocation11 + $0x18] sm:$0xff]
        %v667 = vld [vmem:[#allocation11 + $0x20] sm:$0xff]
        %v668 = vld [vmem:[#allocation11 + $0x28] sm:$0xff]
        %v669 = vld [vmem:[#allocation11 + $0x30] sm:$0xff]
        %v670 = vld [vmem:[#allocation11 + $0x38] sm:$0xff]
        %v671 = vld [vmem:[#allocation11 + $0x40] sm:$0xff]
        %v672 = vld [vmem:[#allocation11 + $0x48] sm:$0xff]
        %v673 = vld [vmem:[#allocation11 + $0x50] sm:$0xff]
        %v674 = vld [vmem:[#allocation11 + $0x58] sm:$0xff]
        %v675 = vld [vmem:[#allocation11 + $0x60] sm:$0xff]
        %v676 = vld [vmem:[#allocation11 + $0x68] sm:$0xff]
        %v677 = vld [vmem:[#allocation11 + $0x70] sm:$0xff]
        %v678 = vld [vmem:[#allocation11 + $0x78] sm:$0xff]
        %v679 = vld [vmem:[#allocation11 + $0x80] sm:$0xff]
        %v680 = vld [vmem:[#allocation11 + $0x88] sm:$0xff]
        %v681 = vld [vmem:[#allocation11 + $0x90] sm:$0xff]
        %v682 = vld [vmem:[#allocation11 + $0x98] sm:$0xff]
        %v683 = vld [vmem:[#allocation11 + $0xa0] sm:$0xff]
        %v684 = vld [vmem:[#allocation11 + $0xa8] sm:$0xff]
        %v685 = vld [vmem:[#allocation11 + $0xb0] sm:$0xff]
        %v686 = vld [vmem:[#allocation11 + $0xb8] sm:$0xff]
        %v687 = vld [vmem:[#allocation11 + $0xc0] sm:$0xff]
        %v688 = vld [vmem:[#allocation11 + $0xc8] sm:$0xff]
        %v689 = vld [vmem:[#allocation11 + $0xd0] sm:$0xff]
        %v690 = vld [vmem:[#allocation11 + $0xd8] sm:$0xff]
        %v691 = vld [vmem:[#allocation11 + $0xe0] sm:$0xff]
        %v692 = vld [vmem:[#allocation11 + $0xe8] sm:$0xff]
        %v693 = vld [vmem:[#allocation11 + $0xf0] sm:$0xff]
        %v694 = vld [vmem:[#allocation11 + $0xf8] sm:$0xff]
        %s695 = scalar_lea.vmem [#allocation2], 16
        %v696 = vld [vmem:[%s695] sm:$0xff]
        %v697 = vld [vmem:[%s695 + $0x8] sm:$0xff]
        %v698 = vld [vmem:[%s695 + $0x10] sm:$0xff]
        %v699 = vld [vmem:[%s695 + $0x18] sm:$0xff]
        %v700 = vld [vmem:[%s695 + $0x20] sm:$0xff]
        %v701 = vld [vmem:[%s695 + $0x28] sm:$0xff]
        %v702 = vld [vmem:[%s695 + $0x30] sm:$0xff]
        %v703 = vld [vmem:[%s695 + $0x38] sm:$0xff]
        %v704 = vld [vmem:[%s695 + $0x40] sm:$0xff]
        %v705 = vld [vmem:[%s695 + $0x48] sm:$0xff]
        %v706 = vld [vmem:[%s695 + $0x50] sm:$0xff]
        %v707 = vld [vmem:[%s695 + $0x58] sm:$0xff]
        %v708 = vld [vmem:[%s695 + $0x60] sm:$0xff]
        %v709 = vld [vmem:[%s695 + $0x68] sm:$0xff]
        %v710 = vld [vmem:[%s695 + $0x70] sm:$0xff]
        %v711 = vld [vmem:[%s695 + $0x78] sm:$0xff]
        %v712 = vld [vmem:[%s695 + $0x80] sm:$0xff]
        %v713 = vld [vmem:[%s695 + $0x88] sm:$0xff]
        %v714 = vld [vmem:[%s695 + $0x90] sm:$0xff]
        %v715 = vld [vmem:[%s695 + $0x98] sm:$0xff]
        %v716 = vld [vmem:[%s695 + $0xa0] sm:$0xff]
        %v717 = vld [vmem:[%s695 + $0xa8] sm:$0xff]
        %v718 = vld [vmem:[%s695 + $0xb0] sm:$0xff]
        %v719 = vld [vmem:[%s695 + $0xb8] sm:$0xff]
        %v720 = vld [vmem:[%s695 + $0xc0] sm:$0xff]
        %v721 = vld [vmem:[%s695 + $0xc8] sm:$0xff]
        %v722 = vld [vmem:[%s695 + $0xd0] sm:$0xff]
        %v723 = vld [vmem:[%s695 + $0xd8] sm:$0xff]
        %v724 = vld [vmem:[%s695 + $0xe0] sm:$0xff]
        %v725 = vld [vmem:[%s695 + $0xe8] sm:$0xff]
        %v726 = vld [vmem:[%s695 + $0xf0] sm:$0xff]
        %v727 = vld [vmem:[%s695 + $0xf8] sm:$0xff]
        %v728 = vpack.c.bf16 %v698, %v696
        %v729 = vpack.c.bf16 %v699, %v697
        %v730 = vpack.c.bf16 %v702, %v700
        %v731 = vpack.c.bf16 %v703, %v701
        %v732 = vpack.c.bf16 %v706, %v704
        %v733 = vpack.c.bf16 %v707, %v705
        %v734 = vpack.c.bf16 %v710, %v708
        %v735 = vpack.c.bf16 %v711, %v709
        %v736 = vpack.c.bf16 %v714, %v712
        %v737 = vpack.c.bf16 %v715, %v713
        %v738 = vpack.c.bf16 %v718, %v716
        %v739 = vpack.c.bf16 %v719, %v717
        %v740 = vpack.c.bf16 %v722, %v720
        %v741 = vpack.c.bf16 %v723, %v721
        %v742 = vpack.c.bf16 %v726, %v724
        %v743 = vpack.c.bf16 %v727, %v725
        %s744 = scalar_lea.vmem [#allocation11], 256
        %v745 = vld [vmem:[%s744] sm:$0xff]
        %v746 = vld [vmem:[%s744 + $0x8] sm:$0xff]
        %v747 = vld [vmem:[%s744 + $0x10] sm:$0xff]
        %v748 = vld [vmem:[%s744 + $0x18] sm:$0xff]
        %v749 = vld [vmem:[%s744 + $0x20] sm:$0xff]
        %v750 = vld [vmem:[%s744 + $0x28] sm:$0xff]
        %v751 = vld [vmem:[%s744 + $0x30] sm:$0xff]
        %v752 = vld [vmem:[%s744 + $0x38] sm:$0xff]
        %v753 = vld [vmem:[%s744 + $0x40] sm:$0xff]
        %v754 = vld [vmem:[%s744 + $0x48] sm:$0xff]
        %v755 = vld [vmem:[%s744 + $0x50] sm:$0xff]
        %v756 = vld [vmem:[%s744 + $0x58] sm:$0xff]
        %v757 = vld [vmem:[%s744 + $0x60] sm:$0xff]
        %v758 = vld [vmem:[%s744 + $0x68] sm:$0xff]
        %v759 = vld [vmem:[%s744 + $0x70] sm:$0xff]
        %v760 = vld [vmem:[%s744 + $0x78] sm:$0xff]
        %v761 = vld [vmem:[%s744 + $0x80] sm:$0xff]
        %v762 = vld [vmem:[%s744 + $0x88] sm:$0xff]
        %v763 = vld [vmem:[%s744 + $0x90] sm:$0xff]
        %v764 = vld [vmem:[%s744 + $0x98] sm:$0xff]
        %v765 = vld [vmem:[%s744 + $0xa0] sm:$0xff]
        %v766 = vld [vmem:[%s744 + $0xa8] sm:$0xff]
        %v767 = vld [vmem:[%s744 + $0xb0] sm:$0xff]
        %v768 = vld [vmem:[%s744 + $0xb8] sm:$0xff]
        %v769 = vld [vmem:[%s744 + $0xc0] sm:$0xff]
        %v770 = vld [vmem:[%s744 + $0xc8] sm:$0xff]
        %v771 = vld [vmem:[%s744 + $0xd0] sm:$0xff]
        %v772 = vld [vmem:[%s744 + $0xd8] sm:$0xff]
        %v773 = vld [vmem:[%s744 + $0xe0] sm:$0xff]
        %v774 = vld [vmem:[%s744 + $0xe8] sm:$0xff]
        %v775 = vld [vmem:[%s744 + $0xf0] sm:$0xff]
        %v776 = vld [vmem:[%s744 + $0xf8] sm:$0xff]
        %v809 = vunpack.c.l.b16 %v745
        %v810 = vunpack.c.h.b16 %v745
        %v811 = vunpack.c.l.b16 %v746
        %v812 = vunpack.c.h.b16 %v746
        %v813 = vunpack.c.l.b16 %v747
        %v814 = vunpack.c.h.b16 %v747
        %v815 = vunpack.c.l.b16 %v748
        %v816 = vunpack.c.h.b16 %v748
        %v817 = vunpack.c.l.b16 %v749
        %v818 = vunpack.c.h.b16 %v749
        %v819 = vunpack.c.l.b16 %v750
        %v820 = vunpack.c.h.b16 %v750
        %v821 = vunpack.c.l.b16 %v751
        %v822 = vunpack.c.h.b16 %v751
        %v823 = vunpack.c.l.b16 %v752
        %v824 = vunpack.c.h.b16 %v752
        %v825 = vunpack.c.l.b16 %v753
        %v826 = vunpack.c.h.b16 %v753
        %v827 = vunpack.c.l.b16 %v754
        %v828 = vunpack.c.h.b16 %v754
        %v829 = vunpack.c.l.b16 %v755
        %v830 = vunpack.c.h.b16 %v755
        %v831 = vunpack.c.l.b16 %v756
        %v832 = vunpack.c.h.b16 %v756
        %v833 = vunpack.c.l.b16 %v757
        %v834 = vunpack.c.h.b16 %v757
        %v835 = vunpack.c.l.b16 %v758
        %v836 = vunpack.c.h.b16 %v758
        %v837 = vunpack.c.l.b16 %v759
        %v838 = vunpack.c.h.b16 %v759
        %v839 = vunpack.c.l.b16 %v760
        %v840 = vunpack.c.h.b16 %v760
        %v841 = vunpack.c.l.b16 %v761
        %v842 = vunpack.c.h.b16 %v761
        %v843 = vunpack.c.l.b16 %v762
        %v844 = vunpack.c.h.b16 %v762
        %v845 = vunpack.c.l.b16 %v763
        %v846 = vunpack.c.h.b16 %v763
        %v847 = vunpack.c.l.b16 %v764
        %v848 = vunpack.c.h.b16 %v764
        %v849 = vunpack.c.l.b16 %v765
        %v850 = vunpack.c.h.b16 %v765
        %v851 = vunpack.c.l.b16 %v766
        %v852 = vunpack.c.h.b16 %v766
        %v853 = vunpack.c.l.b16 %v767
        %v854 = vunpack.c.h.b16 %v767
        %v855 = vunpack.c.l.b16 %v768
        %v856 = vunpack.c.h.b16 %v768
        %v857 = vunpack.c.l.b16 %v769
        %v858 = vunpack.c.h.b16 %v769
        %v859 = vunpack.c.l.b16 %v770
        %v860 = vunpack.c.h.b16 %v770
        %v861 = vunpack.c.l.b16 %v771
        %v862 = vunpack.c.h.b16 %v771
        %v863 = vunpack.c.l.b16 %v772
        %v864 = vunpack.c.h.b16 %v772
        %v865 = vunpack.c.l.b16 %v773
        %v866 = vunpack.c.h.b16 %v773
        %v867 = vunpack.c.l.b16 %v774
        %v868 = vunpack.c.h.b16 %v774
        %v869 = vunpack.c.l.b16 %v775
        %v870 = vunpack.c.h.b16 %v775
        %v871 = vunpack.c.l.b16 %v776
        %v872 = vunpack.c.h.b16 %v776
        %v873 = vpack.c.b16 %v811, %v809
        %v874 = vpack.c.b16 %v812, %v810
        %v875 = vpack.c.b16 %v815, %v813
        %v876 = vpack.c.b16 %v816, %v814
        %v877 = vpack.c.b16 %v819, %v817
        %v878 = vpack.c.b16 %v820, %v818
        %v879 = vpack.c.b16 %v823, %v821
        %v880 = vpack.c.b16 %v824, %v822
        %v881 = vpack.c.b16 %v827, %v825
        %v882 = vpack.c.b16 %v828, %v826
        %v883 = vpack.c.b16 %v831, %v829
        %v884 = vpack.c.b16 %v832, %v830
        %v885 = vpack.c.b16 %v835, %v833
        %v886 = vpack.c.b16 %v836, %v834
        %v887 = vpack.c.b16 %v839, %v837
        %v888 = vpack.c.b16 %v840, %v838
        %v889 = vpack.c.b16 %v843, %v841
        %v890 = vpack.c.b16 %v844, %v842
        %v891 = vpack.c.b16 %v847, %v845
        %v892 = vpack.c.b16 %v848, %v846
        %v893 = vpack.c.b16 %v851, %v849
        %v894 = vpack.c.b16 %v852, %v850
        %v895 = vpack.c.b16 %v855, %v853
        %v896 = vpack.c.b16 %v856, %v854
        %v897 = vpack.c.b16 %v859, %v857
        %v898 = vpack.c.b16 %v860, %v858
        %v899 = vpack.c.b16 %v863, %v861
        %v900 = vpack.c.b16 %v864, %v862
        %v901 = vpack.c.b16 %v867, %v865
        %v902 = vpack.c.b16 %v868, %v866
        %v903 = vpack.c.b16 %v871, %v869
        %v904 = vpack.c.b16 %v872, %v870
        %937 = vmatprep.subr.bf16.mxu0 %v888
        %938 = vmatpush1.bf16.msra.mxu0 %v887
        %939 = vmatprep.subr.bf16.mxu0 %v886
        %940 = vmatpush1.bf16.msra.mxu0 %v885
        %941 = vmatprep.subr.bf16.mxu0 %v884
        %942 = vmatpush1.bf16.msra.mxu0 %v883
        %943 = vmatprep.subr.bf16.mxu0 %v882
        %944 = vmatpush1.bf16.msra.mxu0 %v881
        %945 = vmatprep.subr.bf16.mxu0 %v880
        %946 = vmatpush1.bf16.msra.mxu0 %v879
        %947 = vmatprep.subr.bf16.mxu0 %v878
        %948 = vmatpush1.bf16.msra.mxu0 %v877
        %949 = vmatprep.subr.bf16.mxu0 %v876
        %950 = vmatpush1.bf16.msra.mxu0 %v875
        %951 = vmatprep.subr.bf16.mxu0 %v874
        %952 = vmatpush1.bf16.msra.mxu0 %v873
        %953 = vmatprep.subr.bf16.mxu0 %v904
        %954 = vmatpush2.bf16.msra.mxu0 %v903
        %955 = vmatprep.subr.bf16.mxu0 %v902
        %956 = vmatpush2.bf16.msra.mxu0 %v901
        %957 = vmatprep.subr.bf16.mxu0 %v900
        %958 = vmatpush2.bf16.msra.mxu0 %v899
        %959 = vmatprep.subr.bf16.mxu0 %v898
        %960 = vmatpush2.bf16.msra.mxu0 %v897
        %961 = vmatprep.subr.bf16.mxu0 %v896
        %962 = vmatpush2.bf16.msra.mxu0 %v895
        %963 = vmatprep.subr.bf16.mxu0 %v894
        %964 = vmatpush2.bf16.msra.mxu0 %v893
        %965 = vmatprep.subr.bf16.mxu0 %v892
        %966 = vmatpush2.bf16.msra.mxu0 %v891
        %967 = vmatprep.subr.bf16.mxu0 %v890
        %968 = vmatpush2.bf16.msra.mxu0 %v889
        %969 = vmatprep.mubr.bf16.mxu0 %v729
        %970 = vmatmul.mubr.bf16.gmra.mxu0 %v728
        %v971 = vpop.f32.mrf.mxu0
        %v972 = vadd.f32 0.0, %v971
        %v973 = vpop.f32.mrf.mxu0
        %v974 = vadd.f32 0.0, %v973
        %v975 = vpop.f32.mrf.mxu0
        %v976 = vadd.f32 0.0, %v975
        %v977 = vpop.f32.mrf.mxu0
        %v978 = vadd.f32 0.0, %v977
        %979 = vmatprep.mubr.bf16.mxu0 %v731
        %980 = vmatmul.mubr.bf16.gmra.mxu0 %v730
        %v981 = vpop.f32.mrf.mxu0
        %v982 = vadd.f32 0.0, %v981
        %v983 = vpop.f32.mrf.mxu0
        %v984 = vadd.f32 0.0, %v983
        %v985 = vpop.f32.mrf.mxu0
        %v986 = vadd.f32 0.0, %v985
        %v987 = vpop.f32.mrf.mxu0
        %v988 = vadd.f32 0.0, %v987
        %989 = vmatprep.mubr.bf16.mxu0 %v733
        %990 = vmatmul.mubr.bf16.gmra.mxu0 %v732
        %v991 = vpop.f32.mrf.mxu0
        %v992 = vadd.f32 0.0, %v991
        %v993 = vpop.f32.mrf.mxu0
        %v994 = vadd.f32 0.0, %v993
        %v995 = vpop.f32.mrf.mxu0
        %v996 = vadd.f32 0.0, %v995
        %v997 = vpop.f32.mrf.mxu0
        %v998 = vadd.f32 0.0, %v997
        %999 = vmatprep.mubr.bf16.mxu0 %v735
        %1000 = vmatmul.mubr.bf16.gmra.mxu0 %v734
        %v1001 = vpop.f32.mrf.mxu0
        %v1002 = vadd.f32 0.0, %v1001
        %v1003 = vpop.f32.mrf.mxu0
        %v1004 = vadd.f32 0.0, %v1003
        %v1005 = vpop.f32.mrf.mxu0
        %v1006 = vadd.f32 0.0, %v1005
        %v1007 = vpop.f32.mrf.mxu0
        %v1008 = vadd.f32 0.0, %v1007
        %1009 = vmatprep.mubr.bf16.mxu0 %v737
        %1010 = vmatmul.mubr.bf16.gmra.mxu0 %v736
        %v1011 = vpop.f32.mrf.mxu0
        %v1012 = vadd.f32 0.0, %v1011
        %v1013 = vpop.f32.mrf.mxu0
        %v1014 = vadd.f32 0.0, %v1013
        %v1015 = vpop.f32.mrf.mxu0
        %v1016 = vadd.f32 0.0, %v1015
        %v1017 = vpop.f32.mrf.mxu0
        %v1018 = vadd.f32 0.0, %v1017
        %1019 = vmatprep.mubr.bf16.mxu0 %v739
        %1020 = vmatmul.mubr.bf16.gmra.mxu0 %v738
        %v1021 = vpop.f32.mrf.mxu0
        %v1022 = vadd.f32 0.0, %v1021
        %v1023 = vpop.f32.mrf.mxu0
        %v1024 = vadd.f32 0.0, %v1023
        %v1025 = vpop.f32.mrf.mxu0
        %v1026 = vadd.f32 0.0, %v1025
        %v1027 = vpop.f32.mrf.mxu0
        %v1028 = vadd.f32 0.0, %v1027
        %1029 = vmatprep.mubr.bf16.mxu0 %v741
        %1030 = vmatmul.mubr.bf16.gmra.mxu0 %v740
        %v1031 = vpop.f32.mrf.mxu0
        %v1032 = vadd.f32 0.0, %v1031
        %v1033 = vpop.f32.mrf.mxu0
        %v1034 = vadd.f32 0.0, %v1033
        %v1035 = vpop.f32.mrf.mxu0
        %v1036 = vadd.f32 0.0, %v1035
        %v1037 = vpop.f32.mrf.mxu0
        %v1038 = vadd.f32 0.0, %v1037
        %1039 = vmatprep.mubr.bf16.mxu0 %v743
        %1040 = vmatmul.mubr.bf16.gmra.mxu0 %v742
        %v1041 = vpop.f32.mrf.mxu0
        %v1042 = vadd.f32 0.0, %v1041
        %v1043 = vpop.f32.mrf.mxu0
        %v1044 = vadd.f32 0.0, %v1043
        %v1045 = vpop.f32.mrf.mxu0
        %v1046 = vadd.f32 0.0, %v1045
        %v1047 = vpop.f32.mrf.mxu0
        %v1048 = vadd.f32 0.0, %v1047
        %1049 = vdwg.mxu0
        %v1082 = vunpack.c.l.b16 %v663
        %v1083 = vunpack.c.h.b16 %v663
        %v1084 = vunpack.c.l.b16 %v664
        %v1085 = vunpack.c.h.b16 %v664
        %v1086 = vunpack.c.l.b16 %v665
        %v1087 = vunpack.c.h.b16 %v665
        %v1088 = vunpack.c.l.b16 %v666
        %v1089 = vunpack.c.h.b16 %v666
        %v1090 = vunpack.c.l.b16 %v667
        %v1091 = vunpack.c.h.b16 %v667
        %v1092 = vunpack.c.l.b16 %v668
        %v1093 = vunpack.c.h.b16 %v668
        %v1094 = vunpack.c.l.b16 %v669
        %v1095 = vunpack.c.h.b16 %v669
        %v1096 = vunpack.c.l.b16 %v670
        %v1097 = vunpack.c.h.b16 %v670
        %v1098 = vunpack.c.l.b16 %v671
        %v1099 = vunpack.c.h.b16 %v671
        %v1100 = vunpack.c.l.b16 %v672
        %v1101 = vunpack.c.h.b16 %v672
        %v1102 = vunpack.c.l.b16 %v673
        %v1103 = vunpack.c.h.b16 %v673
        %v1104 = vunpack.c.l.b16 %v674
        %v1105 = vunpack.c.h.b16 %v674
        %v1106 = vunpack.c.l.b16 %v675
        %v1107 = vunpack.c.h.b16 %v675
        %v1108 = vunpack.c.l.b16 %v676
        %v1109 = vunpack.c.h.b16 %v676
        %v1110 = vunpack.c.l.b16 %v677
        %v1111 = vunpack.c.h.b16 %v677
        %v1112 = vunpack.c.l.b16 %v678
        %v1113 = vunpack.c.h.b16 %v678
        %v1114 = vunpack.c.l.b16 %v679
        %v1115 = vunpack.c.h.b16 %v679
        %v1116 = vunpack.c.l.b16 %v680
        %v1117 = vunpack.c.h.b16 %v680
        %v1118 = vunpack.c.l.b16 %v681
        %v1119 = vunpack.c.h.b16 %v681
        %v1120 = vunpack.c.l.b16 %v682
        %v1121 = vunpack.c.h.b16 %v682
        %v1122 = vunpack.c.l.b16 %v683
        %v1123 = vunpack.c.h.b16 %v683
        %v1124 = vunpack.c.l.b16 %v684
        %v1125 = vunpack.c.h.b16 %v684
        %v1126 = vunpack.c.l.b16 %v685
        %v1127 = vunpack.c.h.b16 %v685
        %v1128 = vunpack.c.l.b16 %v686
        %v1129 = vunpack.c.h.b16 %v686
        %v1130 = vunpack.c.l.b16 %v687
        %v1131 = vunpack.c.h.b16 %v687
        %v1132 = vunpack.c.l.b16 %v688
        %v1133 = vunpack.c.h.b16 %v688
        %v1134 = vunpack.c.l.b16 %v689
        %v1135 = vunpack.c.h.b16 %v689
        %v1136 = vunpack.c.l.b16 %v690
        %v1137 = vunpack.c.h.b16 %v690
        %v1138 = vunpack.c.l.b16 %v691
        %v1139 = vunpack.c.h.b16 %v691
        %v1140 = vunpack.c.l.b16 %v692
        %v1141 = vunpack.c.h.b16 %v692
        %v1142 = vunpack.c.l.b16 %v693
        %v1143 = vunpack.c.h.b16 %v693
        %v1144 = vunpack.c.l.b16 %v694
        %v1145 = vunpack.c.h.b16 %v694
        %v1146 = vpack.c.b16 %v1084, %v1082
        %v1147 = vpack.c.b16 %v1085, %v1083
        %v1148 = vpack.c.b16 %v1088, %v1086
        %v1149 = vpack.c.b16 %v1089, %v1087
        %v1150 = vpack.c.b16 %v1092, %v1090
        %v1151 = vpack.c.b16 %v1093, %v1091
        %v1152 = vpack.c.b16 %v1096, %v1094
        %v1153 = vpack.c.b16 %v1097, %v1095
        %v1154 = vpack.c.b16 %v1100, %v1098
        %v1155 = vpack.c.b16 %v1101, %v1099
        %v1156 = vpack.c.b16 %v1104, %v1102
        %v1157 = vpack.c.b16 %v1105, %v1103
        %v1158 = vpack.c.b16 %v1108, %v1106
        %v1159 = vpack.c.b16 %v1109, %v1107
        %v1160 = vpack.c.b16 %v1112, %v1110
        %v1161 = vpack.c.b16 %v1113, %v1111
        %v1162 = vpack.c.b16 %v1116, %v1114
        %v1163 = vpack.c.b16 %v1117, %v1115
        %v1164 = vpack.c.b16 %v1120, %v1118
        %v1165 = vpack.c.b16 %v1121, %v1119
        %v1166 = vpack.c.b16 %v1124, %v1122
        %v1167 = vpack.c.b16 %v1125, %v1123
        %v1168 = vpack.c.b16 %v1128, %v1126
        %v1169 = vpack.c.b16 %v1129, %v1127
        %v1170 = vpack.c.b16 %v1132, %v1130
        %v1171 = vpack.c.b16 %v1133, %v1131
        %v1172 = vpack.c.b16 %v1136, %v1134
        %v1173 = vpack.c.b16 %v1137, %v1135
        %v1174 = vpack.c.b16 %v1140, %v1138
        %v1175 = vpack.c.b16 %v1141, %v1139
        %v1176 = vpack.c.b16 %v1144, %v1142
        %v1177 = vpack.c.b16 %v1145, %v1143
        %1210 = vmatprep.subr.bf16.mxu0 %v1161
        %1211 = vmatpush1.bf16.msra.mxu0 %v1160
        %1212 = vmatprep.subr.bf16.mxu0 %v1159
        %1213 = vmatpush1.bf16.msra.mxu0 %v1158
        %1214 = vmatprep.subr.bf16.mxu0 %v1157
        %1215 = vmatpush1.bf16.msra.mxu0 %v1156
        %1216 = vmatprep.subr.bf16.mxu0 %v1155
        %1217 = vmatpush1.bf16.msra.mxu0 %v1154
        %1218 = vmatprep.subr.bf16.mxu0 %v1153
        %1219 = vmatpush1.bf16.msra.mxu0 %v1152
        %1220 = vmatprep.subr.bf16.mxu0 %v1151
        %1221 = vmatpush1.bf16.msra.mxu0 %v1150
        %1222 = vmatprep.subr.bf16.mxu0 %v1149
        %1223 = vmatpush1.bf16.msra.mxu0 %v1148
        %1224 = vmatprep.subr.bf16.mxu0 %v1147
        %1225 = vmatpush1.bf16.msra.mxu0 %v1146
        %1226 = vmatprep.subr.bf16.mxu0 %v1177
        %1227 = vmatpush2.bf16.msra.mxu0 %v1176
        %1228 = vmatprep.subr.bf16.mxu0 %v1175
        %1229 = vmatpush2.bf16.msra.mxu0 %v1174
        %1230 = vmatprep.subr.bf16.mxu0 %v1173
        %1231 = vmatpush2.bf16.msra.mxu0 %v1172
        %1232 = vmatprep.subr.bf16.mxu0 %v1171
        %1233 = vmatpush2.bf16.msra.mxu0 %v1170
        %1234 = vmatprep.subr.bf16.mxu0 %v1169
        %1235 = vmatpush2.bf16.msra.mxu0 %v1168
        %1236 = vmatprep.subr.bf16.mxu0 %v1167
        %1237 = vmatpush2.bf16.msra.mxu0 %v1166
        %1238 = vmatprep.subr.bf16.mxu0 %v1165
        %1239 = vmatpush2.bf16.msra.mxu0 %v1164
        %1240 = vmatprep.subr.bf16.mxu0 %v1163
        %1241 = vmatpush2.bf16.msra.mxu0 %v1162
        %1242 = vmatprep.mubr.bf16.mxu0 %v648
        %1243 = vmatmul.mubr.bf16.gmra.mxu0 %v647
        %v1244 = vpop.f32.mrf.mxu0
        %v1245 = vadd.f32 %v972, %v1244
        %v1246 = vpop.f32.mrf.mxu0
        %v1247 = vadd.f32 %v974, %v1246
        %v1248 = vpop.f32.mrf.mxu0
        %v1249 = vadd.f32 %v976, %v1248
        %v1250 = vpop.f32.mrf.mxu0
        %v1251 = vadd.f32 %v978, %v1250
        %1252 = vmatprep.mubr.bf16.mxu0 %v650
        %1253 = vmatmul.mubr.bf16.gmra.mxu0 %v649
        %v1254 = vpop.f32.mrf.mxu0
        %v1255 = vadd.f32 %v982, %v1254
        %v1256 = vpop.f32.mrf.mxu0
        %v1257 = vadd.f32 %v984, %v1256
        %v1258 = vpop.f32.mrf.mxu0
        %v1259 = vadd.f32 %v986, %v1258
        %v1260 = vpop.f32.mrf.mxu0
        %v1261 = vadd.f32 %v988, %v1260
        %1262 = vmatprep.mubr.bf16.mxu0 %v652
        %1263 = vmatmul.mubr.bf16.gmra.mxu0 %v651
        %v1264 = vpop.f32.mrf.mxu0
        %v1265 = vadd.f32 %v992, %v1264
        %v1266 = vpop.f32.mrf.mxu0
        %v1267 = vadd.f32 %v994, %v1266
        %v1268 = vpop.f32.mrf.mxu0
        %v1269 = vadd.f32 %v996, %v1268
        %v1270 = vpop.f32.mrf.mxu0
        %v1271 = vadd.f32 %v998, %v1270
        %1272 = vmatprep.mubr.bf16.mxu0 %v654
        %1273 = vmatmul.mubr.bf16.gmra.mxu0 %v653
        %v1274 = vpop.f32.mrf.mxu0
        %v1275 = vadd.f32 %v1002, %v1274
        %v1276 = vpop.f32.mrf.mxu0
        %v1277 = vadd.f32 %v1004, %v1276
        %v1278 = vpop.f32.mrf.mxu0
        %v1279 = vadd.f32 %v1006, %v1278
        %v1280 = vpop.f32.mrf.mxu0
        %v1281 = vadd.f32 %v1008, %v1280
        %1282 = vmatprep.mubr.bf16.mxu0 %v656
        %1283 = vmatmul.mubr.bf16.gmra.mxu0 %v655
        %v1284 = vpop.f32.mrf.mxu0
        %v1285 = vadd.f32 %v1012, %v1284
        %v1286 = vpop.f32.mrf.mxu0
        %v1287 = vadd.f32 %v1014, %v1286
        %v1288 = vpop.f32.mrf.mxu0
        %v1289 = vadd.f32 %v1016, %v1288
        %v1290 = vpop.f32.mrf.mxu0
        %v1291 = vadd.f32 %v1018, %v1290
        %1292 = vmatprep.mubr.bf16.mxu0 %v658
        %1293 = vmatmul.mubr.bf16.gmra.mxu0 %v657
        %v1294 = vpop.f32.mrf.mxu0
        %v1295 = vadd.f32 %v1022, %v1294
        %v1296 = vpop.f32.mrf.mxu0
        %v1297 = vadd.f32 %v1024, %v1296
        %v1298 = vpop.f32.mrf.mxu0
        %v1299 = vadd.f32 %v1026, %v1298
        %v1300 = vpop.f32.mrf.mxu0
        %v1301 = vadd.f32 %v1028, %v1300
        %1302 = vmatprep.mubr.bf16.mxu0 %v660
        %1303 = vmatmul.mubr.bf16.gmra.mxu0 %v659
        %v1304 = vpop.f32.mrf.mxu0
        %v1305 = vadd.f32 %v1032, %v1304
        %v1306 = vpop.f32.mrf.mxu0
        %v1307 = vadd.f32 %v1034, %v1306
        %v1308 = vpop.f32.mrf.mxu0
        %v1309 = vadd.f32 %v1036, %v1308
        %v1310 = vpop.f32.mrf.mxu0
        %v1311 = vadd.f32 %v1038, %v1310
        %1312 = vmatprep.mubr.bf16.mxu0 %v662
        %1313 = vmatmul.mubr.bf16.gmra.mxu0 %v661
        %v1314 = vpop.f32.mrf.mxu0
        %v1315 = vadd.f32 %v1042, %v1314
        %v1316 = vpop.f32.mrf.mxu0
        %v1317 = vadd.f32 %v1044, %v1316
        %v1318 = vpop.f32.mrf.mxu0
        %v1319 = vadd.f32 %v1046, %v1318
        %v1320 = vpop.f32.mrf.mxu0
        %v1321 = vadd.f32 %v1048, %v1320
        %1322 = vdwg.mxu0
        %v1323 = vld [vmem:[%s582] sm:$0xff]
        %v1324 = vld [vmem:[%s582 + $0x8] sm:$0xff]
        %v1325 = vld [vmem:[%s582 + $0x10] sm:$0xff]
        %v1326 = vld [vmem:[%s582 + $0x18] sm:$0xff]
        %v1327 = vld [vmem:[%s582 + $0x20] sm:$0xff]
        %v1328 = vld [vmem:[%s582 + $0x28] sm:$0xff]
        %v1329 = vld [vmem:[%s582 + $0x30] sm:$0xff]
        %v1330 = vld [vmem:[%s582 + $0x38] sm:$0xff]
        %v1331 = vld [vmem:[%s582 + $0x40] sm:$0xff]
        %v1332 = vld [vmem:[%s582 + $0x48] sm:$0xff]
        %v1333 = vld [vmem:[%s582 + $0x50] sm:$0xff]
        %v1334 = vld [vmem:[%s582 + $0x58] sm:$0xff]
        %v1335 = vld [vmem:[%s582 + $0x60] sm:$0xff]
        %v1336 = vld [vmem:[%s582 + $0x68] sm:$0xff]
        %v1337 = vld [vmem:[%s582 + $0x70] sm:$0xff]
        %v1338 = vld [vmem:[%s582 + $0x78] sm:$0xff]
        %v1339 = vld [vmem:[%s582 + $0x80] sm:$0xff]
        %v1340 = vld [vmem:[%s582 + $0x88] sm:$0xff]
        %v1341 = vld [vmem:[%s582 + $0x90] sm:$0xff]
        %v1342 = vld [vmem:[%s582 + $0x98] sm:$0xff]
        %v1343 = vld [vmem:[%s582 + $0xa0] sm:$0xff]
        %v1344 = vld [vmem:[%s582 + $0xa8] sm:$0xff]
        %v1345 = vld [vmem:[%s582 + $0xb0] sm:$0xff]
        %v1346 = vld [vmem:[%s582 + $0xb8] sm:$0xff]
        %v1347 = vld [vmem:[%s582 + $0xc0] sm:$0xff]
        %v1348 = vld [vmem:[%s582 + $0xc8] sm:$0xff]
        %v1349 = vld [vmem:[%s582 + $0xd0] sm:$0xff]
        %v1350 = vld [vmem:[%s582 + $0xd8] sm:$0xff]
        %v1351 = vld [vmem:[%s582 + $0xe0] sm:$0xff]
        %v1352 = vld [vmem:[%s582 + $0xe8] sm:$0xff]
        %v1353 = vld [vmem:[%s582 + $0xf0] sm:$0xff]
        %v1354 = vld [vmem:[%s582 + $0xf8] sm:$0xff]
        %v1355 = vpack.c.bf16 %v1325, %v1323
        %v1356 = vpack.c.bf16 %v1326, %v1324
        %v1357 = vpack.c.bf16 %v1329, %v1327
        %v1358 = vpack.c.bf16 %v1330, %v1328
        %v1359 = vpack.c.bf16 %v1333, %v1331
        %v1360 = vpack.c.bf16 %v1334, %v1332
        %v1361 = vpack.c.bf16 %v1337, %v1335
        %v1362 = vpack.c.bf16 %v1338, %v1336
        %v1363 = vpack.c.bf16 %v1341, %v1339
        %v1364 = vpack.c.bf16 %v1342, %v1340
        %v1365 = vpack.c.bf16 %v1345, %v1343
        %v1366 = vpack.c.bf16 %v1346, %v1344
        %v1367 = vpack.c.bf16 %v1349, %v1347
        %v1368 = vpack.c.bf16 %v1350, %v1348
        %v1369 = vpack.c.bf16 %v1353, %v1351
        %v1370 = vpack.c.bf16 %v1354, %v1352
        %s1371 = scalar_lea.vmem [#allocation11], 512
        %v1372 = vld [vmem:[%s1371] sm:$0xff]
        %v1373 = vld [vmem:[%s1371 + $0x8] sm:$0xff]
        %v1374 = vld [vmem:[%s1371 + $0x10] sm:$0xff]
        %v1375 = vld [vmem:[%s1371 + $0x18] sm:$0xff]
        %v1376 = vld [vmem:[%s1371 + $0x20] sm:$0xff]
        %v1377 = vld [vmem:[%s1371 + $0x28] sm:$0xff]
        %v1378 = vld [vmem:[%s1371 + $0x30] sm:$0xff]
        %v1379 = vld [vmem:[%s1371 + $0x38] sm:$0xff]
        %v1380 = vld [vmem:[%s1371 + $0x40] sm:$0xff]
        %v1381 = vld [vmem:[%s1371 + $0x48] sm:$0xff]
        %v1382 = vld [vmem:[%s1371 + $0x50] sm:$0xff]
        %v1383 = vld [vmem:[%s1371 + $0x58] sm:$0xff]
        %v1384 = vld [vmem:[%s1371 + $0x60] sm:$0xff]
        %v1385 = vld [vmem:[%s1371 + $0x68] sm:$0xff]
        %v1386 = vld [vmem:[%s1371 + $0x70] sm:$0xff]
        %v1387 = vld [vmem:[%s1371 + $0x78] sm:$0xff]
        %v1388 = vld [vmem:[%s1371 + $0x80] sm:$0xff]
        %v1389 = vld [vmem:[%s1371 + $0x88] sm:$0xff]
        %v1390 = vld [vmem:[%s1371 + $0x90] sm:$0xff]
        %v1391 = vld [vmem:[%s1371 + $0x98] sm:$0xff]
        %v1392 = vld [vmem:[%s1371 + $0xa0] sm:$0xff]
        %v1393 = vld [vmem:[%s1371 + $0xa8] sm:$0xff]
        %v1394 = vld [vmem:[%s1371 + $0xb0] sm:$0xff]
        %v1395 = vld [vmem:[%s1371 + $0xb8] sm:$0xff]
        %v1396 = vld [vmem:[%s1371 + $0xc0] sm:$0xff]
        %v1397 = vld [vmem:[%s1371 + $0xc8] sm:$0xff]
        %v1398 = vld [vmem:[%s1371 + $0xd0] sm:$0xff]
        %v1399 = vld [vmem:[%s1371 + $0xd8] sm:$0xff]
        %v1400 = vld [vmem:[%s1371 + $0xe0] sm:$0xff]
        %v1401 = vld [vmem:[%s1371 + $0xe8] sm:$0xff]
        %v1402 = vld [vmem:[%s1371 + $0xf0] sm:$0xff]
        %v1403 = vld [vmem:[%s1371 + $0xf8] sm:$0xff]
        %v1436 = vunpack.c.l.b16 %v1372
        %v1437 = vunpack.c.h.b16 %v1372
        %v1438 = vunpack.c.l.b16 %v1373
        %v1439 = vunpack.c.h.b16 %v1373
        %v1440 = vunpack.c.l.b16 %v1374
        %v1441 = vunpack.c.h.b16 %v1374
        %v1442 = vunpack.c.l.b16 %v1375
        %v1443 = vunpack.c.h.b16 %v1375
        %v1444 = vunpack.c.l.b16 %v1376
        %v1445 = vunpack.c.h.b16 %v1376
        %v1446 = vunpack.c.l.b16 %v1377
        %v1447 = vunpack.c.h.b16 %v1377
        %v1448 = vunpack.c.l.b16 %v1378
        %v1449 = vunpack.c.h.b16 %v1378
        %v1450 = vunpack.c.l.b16 %v1379
        %v1451 = vunpack.c.h.b16 %v1379
        %v1452 = vunpack.c.l.b16 %v1380
        %v1453 = vunpack.c.h.b16 %v1380
        %v1454 = vunpack.c.l.b16 %v1381
        %v1455 = vunpack.c.h.b16 %v1381
        %v1456 = vunpack.c.l.b16 %v1382
        %v1457 = vunpack.c.h.b16 %v1382
        %v1458 = vunpack.c.l.b16 %v1383
        %v1459 = vunpack.c.h.b16 %v1383
        %v1460 = vunpack.c.l.b16 %v1384
        %v1461 = vunpack.c.h.b16 %v1384
        %v1462 = vunpack.c.l.b16 %v1385
        %v1463 = vunpack.c.h.b16 %v1385
        %v1464 = vunpack.c.l.b16 %v1386
        %v1465 = vunpack.c.h.b16 %v1386
        %v1466 = vunpack.c.l.b16 %v1387
        %v1467 = vunpack.c.h.b16 %v1387
        %v1468 = vunpack.c.l.b16 %v1388
        %v1469 = vunpack.c.h.b16 %v1388
        %v1470 = vunpack.c.l.b16 %v1389
        %v1471 = vunpack.c.h.b16 %v1389
        %v1472 = vunpack.c.l.b16 %v1390
        %v1473 = vunpack.c.h.b16 %v1390
        %v1474 = vunpack.c.l.b16 %v1391
        %v1475 = vunpack.c.h.b16 %v1391
        %v1476 = vunpack.c.l.b16 %v1392
        %v1477 = vunpack.c.h.b16 %v1392
        %v1478 = vunpack.c.l.b16 %v1393
        %v1479 = vunpack.c.h.b16 %v1393
        %v1480 = vunpack.c.l.b16 %v1394
        %v1481 = vunpack.c.h.b16 %v1394
        %v1482 = vunpack.c.l.b16 %v1395
        %v1483 = vunpack.c.h.b16 %v1395
        %v1484 = vunpack.c.l.b16 %v1396
        %v1485 = vunpack.c.h.b16 %v1396
        %v1486 = vunpack.c.l.b16 %v1397
        %v1487 = vunpack.c.h.b16 %v1397
        %v1488 = vunpack.c.l.b16 %v1398
        %v1489 = vunpack.c.h.b16 %v1398
        %v1490 = vunpack.c.l.b16 %v1399
        %v1491 = vunpack.c.h.b16 %v1399
        %v1492 = vunpack.c.l.b16 %v1400
        %v1493 = vunpack.c.h.b16 %v1400
        %v1494 = vunpack.c.l.b16 %v1401
        %v1495 = vunpack.c.h.b16 %v1401
        %v1496 = vunpack.c.l.b16 %v1402
        %v1497 = vunpack.c.h.b16 %v1402
        %v1498 = vunpack.c.l.b16 %v1403
        %v1499 = vunpack.c.h.b16 %v1403
        %v1500 = vpack.c.b16 %v1438, %v1436
        %v1501 = vpack.c.b16 %v1439, %v1437
        %v1502 = vpack.c.b16 %v1442, %v1440
        %v1503 = vpack.c.b16 %v1443, %v1441
        %v1504 = vpack.c.b16 %v1446, %v1444
        %v1505 = vpack.c.b16 %v1447, %v1445
        %v1506 = vpack.c.b16 %v1450, %v1448
        %v1507 = vpack.c.b16 %v1451, %v1449
        %v1508 = vpack.c.b16 %v1454, %v1452
        %v1509 = vpack.c.b16 %v1455, %v1453
        %v1510 = vpack.c.b16 %v1458, %v1456
        %v1511 = vpack.c.b16 %v1459, %v1457
        %v1512 = vpack.c.b16 %v1462, %v1460
        %v1513 = vpack.c.b16 %v1463, %v1461
        %v1514 = vpack.c.b16 %v1466, %v1464
        %v1515 = vpack.c.b16 %v1467, %v1465
        %v1516 = vpack.c.b16 %v1470, %v1468
        %v1517 = vpack.c.b16 %v1471, %v1469
        %v1518 = vpack.c.b16 %v1474, %v1472
        %v1519 = vpack.c.b16 %v1475, %v1473
        %v1520 = vpack.c.b16 %v1478, %v1476
        %v1521 = vpack.c.b16 %v1479, %v1477
        %v1522 = vpack.c.b16 %v1482, %v1480
        %v1523 = vpack.c.b16 %v1483, %v1481
        %v1524 = vpack.c.b16 %v1486, %v1484
        %v1525 = vpack.c.b16 %v1487, %v1485
        %v1526 = vpack.c.b16 %v1490, %v1488
        %v1527 = vpack.c.b16 %v1491, %v1489
        %v1528 = vpack.c.b16 %v1494, %v1492
        %v1529 = vpack.c.b16 %v1495, %v1493
        %v1530 = vpack.c.b16 %v1498, %v1496
        %v1531 = vpack.c.b16 %v1499, %v1497
        %1564 = vmatprep.subr.bf16.mxu0 %v1515
        %1565 = vmatpush1.bf16.msra.mxu0 %v1514
        %1566 = vmatprep.subr.bf16.mxu0 %v1513
        %1567 = vmatpush1.bf16.msra.mxu0 %v1512
        %1568 = vmatprep.subr.bf16.mxu0 %v1511
        %1569 = vmatpush1.bf16.msra.mxu0 %v1510
        %1570 = vmatprep.subr.bf16.mxu0 %v1509
        %1571 = vmatpush1.bf16.msra.mxu0 %v1508
        %1572 = vmatprep.subr.bf16.mxu0 %v1507
        %1573 = vmatpush1.bf16.msra.mxu0 %v1506
        %1574 = vmatprep.subr.bf16.mxu0 %v1505
        %1575 = vmatpush1.bf16.msra.mxu0 %v1504
        %1576 = vmatprep.subr.bf16.mxu0 %v1503
        %1577 = vmatpush1.bf16.msra.mxu0 %v1502
        %1578 = vmatprep.subr.bf16.mxu0 %v1501
        %1579 = vmatpush1.bf16.msra.mxu0 %v1500
        %1580 = vmatprep.subr.bf16.mxu0 %v1531
        %1581 = vmatpush2.bf16.msra.mxu0 %v1530
        %1582 = vmatprep.subr.bf16.mxu0 %v1529
        %1583 = vmatpush2.bf16.msra.mxu0 %v1528
        %1584 = vmatprep.subr.bf16.mxu0 %v1527
        %1585 = vmatpush2.bf16.msra.mxu0 %v1526
        %1586 = vmatprep.subr.bf16.mxu0 %v1525
        %1587 = vmatpush2.bf16.msra.mxu0 %v1524
        %1588 = vmatprep.subr.bf16.mxu0 %v1523
        %1589 = vmatpush2.bf16.msra.mxu0 %v1522
        %1590 = vmatprep.subr.bf16.mxu0 %v1521
        %1591 = vmatpush2.bf16.msra.mxu0 %v1520
        %1592 = vmatprep.subr.bf16.mxu0 %v1519
        %1593 = vmatpush2.bf16.msra.mxu0 %v1518
        %1594 = vmatprep.subr.bf16.mxu0 %v1517
        %1595 = vmatpush2.bf16.msra.mxu0 %v1516
        %1596 = vmatprep.mubr.bf16.mxu0 %v1356
        %1597 = vmatmul.mubr.bf16.gmra.mxu0 %v1355
        %v1598 = vpop.f32.mrf.mxu0
        %v1599 = vadd.f32 0.0, %v1598
        %v1600 = vpop.f32.mrf.mxu0
        %v1601 = vadd.f32 0.0, %v1600
        %v1602 = vpop.f32.mrf.mxu0
        %v1603 = vadd.f32 0.0, %v1602
        %v1604 = vpop.f32.mrf.mxu0
        %v1605 = vadd.f32 0.0, %v1604
        %1606 = vmatprep.mubr.bf16.mxu0 %v1358
        %1607 = vmatmul.mubr.bf16.gmra.mxu0 %v1357
        %v1608 = vpop.f32.mrf.mxu0
        %v1609 = vadd.f32 0.0, %v1608
        %v1610 = vpop.f32.mrf.mxu0
        %v1611 = vadd.f32 0.0, %v1610
        %v1612 = vpop.f32.mrf.mxu0
        %v1613 = vadd.f32 0.0, %v1612
        %v1614 = vpop.f32.mrf.mxu0
        %v1615 = vadd.f32 0.0, %v1614
        %1616 = vmatprep.mubr.bf16.mxu0 %v1360
        %1617 = vmatmul.mubr.bf16.gmra.mxu0 %v1359
        %v1618 = vpop.f32.mrf.mxu0
        %v1619 = vadd.f32 0.0, %v1618
        %v1620 = vpop.f32.mrf.mxu0
        %v1621 = vadd.f32 0.0, %v1620
        %v1622 = vpop.f32.mrf.mxu0
        %v1623 = vadd.f32 0.0, %v1622
        %v1624 = vpop.f32.mrf.mxu0
        %v1625 = vadd.f32 0.0, %v1624
        %1626 = vmatprep.mubr.bf16.mxu0 %v1362
        %1627 = vmatmul.mubr.bf16.gmra.mxu0 %v1361
        %v1628 = vpop.f32.mrf.mxu0
        %v1629 = vadd.f32 0.0, %v1628
        %v1630 = vpop.f32.mrf.mxu0
        %v1631 = vadd.f32 0.0, %v1630
        %v1632 = vpop.f32.mrf.mxu0
        %v1633 = vadd.f32 0.0, %v1632
        %v1634 = vpop.f32.mrf.mxu0
        %v1635 = vadd.f32 0.0, %v1634
        %1636 = vmatprep.mubr.bf16.mxu0 %v1364
        %1637 = vmatmul.mubr.bf16.gmra.mxu0 %v1363
        %v1638 = vpop.f32.mrf.mxu0
        %v1639 = vadd.f32 0.0, %v1638
        %v1640 = vpop.f32.mrf.mxu0
        %v1641 = vadd.f32 0.0, %v1640
        %v1642 = vpop.f32.mrf.mxu0
        %v1643 = vadd.f32 0.0, %v1642
        %v1644 = vpop.f32.mrf.mxu0
        %v1645 = vadd.f32 0.0, %v1644
        %1646 = vmatprep.mubr.bf16.mxu0 %v1366
        %1647 = vmatmul.mubr.bf16.gmra.mxu0 %v1365
        %v1648 = vpop.f32.mrf.mxu0
        %v1649 = vadd.f32 0.0, %v1648
        %v1650 = vpop.f32.mrf.mxu0
        %v1651 = vadd.f32 0.0, %v1650
        %v1652 = vpop.f32.mrf.mxu0
        %v1653 = vadd.f32 0.0, %v1652
        %v1654 = vpop.f32.mrf.mxu0
        %v1655 = vadd.f32 0.0, %v1654
        %1656 = vmatprep.mubr.bf16.mxu0 %v1368
        %1657 = vmatmul.mubr.bf16.gmra.mxu0 %v1367
        %v1658 = vpop.f32.mrf.mxu0
        %v1659 = vadd.f32 0.0, %v1658
        %v1660 = vpop.f32.mrf.mxu0
        %v1661 = vadd.f32 0.0, %v1660
        %v1662 = vpop.f32.mrf.mxu0
        %v1663 = vadd.f32 0.0, %v1662
        %v1664 = vpop.f32.mrf.mxu0
        %v1665 = vadd.f32 0.0, %v1664
        %1666 = vmatprep.mubr.bf16.mxu0 %v1370
        %1667 = vmatmul.mubr.bf16.gmra.mxu0 %v1369
        %v1668 = vpop.f32.mrf.mxu0
        %v1669 = vadd.f32 0.0, %v1668
        %v1670 = vpop.f32.mrf.mxu0
        %v1671 = vadd.f32 0.0, %v1670
        %v1672 = vpop.f32.mrf.mxu0
        %v1673 = vadd.f32 0.0, %v1672
        %v1674 = vpop.f32.mrf.mxu0
        %v1675 = vadd.f32 0.0, %v1674
        %1676 = vdwg.mxu0
        %v1677 = vadd.f32 %v1245, %v1599
        %v1678 = vadd.f32 %v1247, %v1601
        %v1679 = vadd.f32 %v1249, %v1603
        %v1680 = vadd.f32 %v1251, %v1605
        %v1681 = vadd.f32 %v1255, %v1609
        %v1682 = vadd.f32 %v1257, %v1611
        %v1683 = vadd.f32 %v1259, %v1613
        %v1684 = vadd.f32 %v1261, %v1615
        %v1685 = vadd.f32 %v1265, %v1619
        %v1686 = vadd.f32 %v1267, %v1621
        %v1687 = vadd.f32 %v1269, %v1623
        %v1688 = vadd.f32 %v1271, %v1625
        %v1689 = vadd.f32 %v1275, %v1629
        %v1690 = vadd.f32 %v1277, %v1631
        %v1691 = vadd.f32 %v1279, %v1633
        %v1692 = vadd.f32 %v1281, %v1635
        %v1693 = vadd.f32 %v1285, %v1639
        %v1694 = vadd.f32 %v1287, %v1641
        %v1695 = vadd.f32 %v1289, %v1643
        %v1696 = vadd.f32 %v1291, %v1645
        %v1697 = vadd.f32 %v1295, %v1649
        %v1698 = vadd.f32 %v1297, %v1651
        %v1699 = vadd.f32 %v1299, %v1653
        %v1700 = vadd.f32 %v1301, %v1655
        %v1701 = vadd.f32 %v1305, %v1659
        %v1702 = vadd.f32 %v1307, %v1661
        %v1703 = vadd.f32 %v1309, %v1663
        %v1704 = vadd.f32 %v1311, %v1665
        %v1705 = vadd.f32 %v1315, %v1669
        %v1706 = vadd.f32 %v1317, %v1671
        %v1707 = vadd.f32 %v1319, %v1673
        %v1708 = vadd.f32 %v1321, %v1675
        %s1709 = scalar_lea.vmem [#allocation2], 48
        %v1710 = vld [vmem:[%s1709] sm:$0xff]
        %v1711 = vld [vmem:[%s1709 + $0x8] sm:$0xff]
        %v1712 = vld [vmem:[%s1709 + $0x10] sm:$0xff]
        %v1713 = vld [vmem:[%s1709 + $0x18] sm:$0xff]
        %v1714 = vld [vmem:[%s1709 + $0x20] sm:$0xff]
        %v1715 = vld [vmem:[%s1709 + $0x28] sm:$0xff]
        %v1716 = vld [vmem:[%s1709 + $0x30] sm:$0xff]
        %v1717 = vld [vmem:[%s1709 + $0x38] sm:$0xff]
        %v1718 = vld [vmem:[%s1709 + $0x40] sm:$0xff]
        %v1719 = vld [vmem:[%s1709 + $0x48] sm:$0xff]
        %v1720 = vld [vmem:[%s1709 + $0x50] sm:$0xff]
        %v1721 = vld [vmem:[%s1709 + $0x58] sm:$0xff]
        %v1722 = vld [vmem:[%s1709 + $0x60] sm:$0xff]
        %v1723 = vld [vmem:[%s1709 + $0x68] sm:$0xff]
        %v1724 = vld [vmem:[%s1709 + $0x70] sm:$0xff]
        %v1725 = vld [vmem:[%s1709 + $0x78] sm:$0xff]
        %v1726 = vld [vmem:[%s1709 + $0x80] sm:$0xff]
        %v1727 = vld [vmem:[%s1709 + $0x88] sm:$0xff]
        %v1728 = vld [vmem:[%s1709 + $0x90] sm:$0xff]
        %v1729 = vld [vmem:[%s1709 + $0x98] sm:$0xff]
        %v1730 = vld [vmem:[%s1709 + $0xa0] sm:$0xff]
        %v1731 = vld [vmem:[%s1709 + $0xa8] sm:$0xff]
        %v1732 = vld [vmem:[%s1709 + $0xb0] sm:$0xff]
        %v1733 = vld [vmem:[%s1709 + $0xb8] sm:$0xff]
        %v1734 = vld [vmem:[%s1709 + $0xc0] sm:$0xff]
        %v1735 = vld [vmem:[%s1709 + $0xc8] sm:$0xff]
        %v1736 = vld [vmem:[%s1709 + $0xd0] sm:$0xff]
        %v1737 = vld [vmem:[%s1709 + $0xd8] sm:$0xff]
        %v1738 = vld [vmem:[%s1709 + $0xe0] sm:$0xff]
        %v1739 = vld [vmem:[%s1709 + $0xe8] sm:$0xff]
        %v1740 = vld [vmem:[%s1709 + $0xf0] sm:$0xff]
        %v1741 = vld [vmem:[%s1709 + $0xf8] sm:$0xff]
        %v1742 = vpack.c.bf16 %v1712, %v1710
        %v1743 = vpack.c.bf16 %v1713, %v1711
        %v1744 = vpack.c.bf16 %v1716, %v1714
        %v1745 = vpack.c.bf16 %v1717, %v1715
        %v1746 = vpack.c.bf16 %v1720, %v1718
        %v1747 = vpack.c.bf16 %v1721, %v1719
        %v1748 = vpack.c.bf16 %v1724, %v1722
        %v1749 = vpack.c.bf16 %v1725, %v1723
        %v1750 = vpack.c.bf16 %v1728, %v1726
        %v1751 = vpack.c.bf16 %v1729, %v1727
        %v1752 = vpack.c.bf16 %v1732, %v1730
        %v1753 = vpack.c.bf16 %v1733, %v1731
        %v1754 = vpack.c.bf16 %v1736, %v1734
        %v1755 = vpack.c.bf16 %v1737, %v1735
        %v1756 = vpack.c.bf16 %v1740, %v1738
        %v1757 = vpack.c.bf16 %v1741, %v1739
        %s1758 = scalar_lea.vmem [#allocation11], 768
        %v1759 = vld [vmem:[%s1758] sm:$0xff]
        %v1760 = vld [vmem:[%s1758 + $0x8] sm:$0xff]
        %v1761 = vld [vmem:[%s1758 + $0x10] sm:$0xff]
        %v1762 = vld [vmem:[%s1758 + $0x18] sm:$0xff]
        %v1763 = vld [vmem:[%s1758 + $0x20] sm:$0xff]
        %v1764 = vld [vmem:[%s1758 + $0x28] sm:$0xff]
        %v1765 = vld [vmem:[%s1758 + $0x30] sm:$0xff]
        %v1766 = vld [vmem:[%s1758 + $0x38] sm:$0xff]
        %v1767 = vld [vmem:[%s1758 + $0x40] sm:$0xff]
        %v1768 = vld [vmem:[%s1758 + $0x48] sm:$0xff]
        %v1769 = vld [vmem:[%s1758 + $0x50] sm:$0xff]
        %v1770 = vld [vmem:[%s1758 + $0x58] sm:$0xff]
        %v1771 = vld [vmem:[%s1758 + $0x60] sm:$0xff]
        %v1772 = vld [vmem:[%s1758 + $0x68] sm:$0xff]
        %v1773 = vld [vmem:[%s1758 + $0x70] sm:$0xff]
        %v1774 = vld [vmem:[%s1758 + $0x78] sm:$0xff]
        %v1775 = vld [vmem:[%s1758 + $0x80] sm:$0xff]
        %v1776 = vld [vmem:[%s1758 + $0x88] sm:$0xff]
        %v1777 = vld [vmem:[%s1758 + $0x90] sm:$0xff]
        %v1778 = vld [vmem:[%s1758 + $0x98] sm:$0xff]
        %v1779 = vld [vmem:[%s1758 + $0xa0] sm:$0xff]
        %v1780 = vld [vmem:[%s1758 + $0xa8] sm:$0xff]
        %v1781 = vld [vmem:[%s1758 + $0xb0] sm:$0xff]
        %v1782 = vld [vmem:[%s1758 + $0xb8] sm:$0xff]
        %v1783 = vld [vmem:[%s1758 + $0xc0] sm:$0xff]
        %v1784 = vld [vmem:[%s1758 + $0xc8] sm:$0xff]
        %v1785 = vld [vmem:[%s1758 + $0xd0] sm:$0xff]
        %v1786 = vld [vmem:[%s1758 + $0xd8] sm:$0xff]
        %v1787 = vld [vmem:[%s1758 + $0xe0] sm:$0xff]
        %v1788 = vld [vmem:[%s1758 + $0xe8] sm:$0xff]
        %v1789 = vld [vmem:[%s1758 + $0xf0] sm:$0xff]
        %v1790 = vld [vmem:[%s1758 + $0xf8] sm:$0xff]
        %v1823 = vunpack.c.l.b16 %v1759
        %v1824 = vunpack.c.h.b16 %v1759
        %v1825 = vunpack.c.l.b16 %v1760
        %v1826 = vunpack.c.h.b16 %v1760
        %v1827 = vunpack.c.l.b16 %v1761
        %v1828 = vunpack.c.h.b16 %v1761
        %v1829 = vunpack.c.l.b16 %v1762
        %v1830 = vunpack.c.h.b16 %v1762
        %v1831 = vunpack.c.l.b16 %v1763
        %v1832 = vunpack.c.h.b16 %v1763
        %v1833 = vunpack.c.l.b16 %v1764
        %v1834 = vunpack.c.h.b16 %v1764
        %v1835 = vunpack.c.l.b16 %v1765
        %v1836 = vunpack.c.h.b16 %v1765
        %v1837 = vunpack.c.l.b16 %v1766
        %v1838 = vunpack.c.h.b16 %v1766
        %v1839 = vunpack.c.l.b16 %v1767
        %v1840 = vunpack.c.h.b16 %v1767
        %v1841 = vunpack.c.l.b16 %v1768
        %v1842 = vunpack.c.h.b16 %v1768
        %v1843 = vunpack.c.l.b16 %v1769
        %v1844 = vunpack.c.h.b16 %v1769
        %v1845 = vunpack.c.l.b16 %v1770
        %v1846 = vunpack.c.h.b16 %v1770
        %v1847 = vunpack.c.l.b16 %v1771
        %v1848 = vunpack.c.h.b16 %v1771
        %v1849 = vunpack.c.l.b16 %v1772
        %v1850 = vunpack.c.h.b16 %v1772
        %v1851 = vunpack.c.l.b16 %v1773
        %v1852 = vunpack.c.h.b16 %v1773
        %v1853 = vunpack.c.l.b16 %v1774
        %v1854 = vunpack.c.h.b16 %v1774
        %v1855 = vunpack.c.l.b16 %v1775
        %v1856 = vunpack.c.h.b16 %v1775
        %v1857 = vunpack.c.l.b16 %v1776
        %v1858 = vunpack.c.h.b16 %v1776
        %v1859 = vunpack.c.l.b16 %v1777
        %v1860 = vunpack.c.h.b16 %v1777
        %v1861 = vunpack.c.l.b16 %v1778
        %v1862 = vunpack.c.h.b16 %v1778
        %v1863 = vunpack.c.l.b16 %v1779
        %v1864 = vunpack.c.h.b16 %v1779
        %v1865 = vunpack.c.l.b16 %v1780
        %v1866 = vunpack.c.h.b16 %v1780
        %v1867 = vunpack.c.l.b16 %v1781
        %v1868 = vunpack.c.h.b16 %v1781
        %v1869 = vunpack.c.l.b16 %v1782
        %v1870 = vunpack.c.h.b16 %v1782
        %v1871 = vunpack.c.l.b16 %v1783
        %v1872 = vunpack.c.h.b16 %v1783
        %v1873 = vunpack.c.l.b16 %v1784
        %v1874 = vunpack.c.h.b16 %v1784
        %v1875 = vunpack.c.l.b16 %v1785
        %v1876 = vunpack.c.h.b16 %v1785
        %v1877 = vunpack.c.l.b16 %v1786
        %v1878 = vunpack.c.h.b16 %v1786
        %v1879 = vunpack.c.l.b16 %v1787
        %v1880 = vunpack.c.h.b16 %v1787
        %v1881 = vunpack.c.l.b16 %v1788
        %v1882 = vunpack.c.h.b16 %v1788
        %v1883 = vunpack.c.l.b16 %v1789
        %v1884 = vunpack.c.h.b16 %v1789
        %v1885 = vunpack.c.l.b16 %v1790
        %v1886 = vunpack.c.h.b16 %v1790
        %v1887 = vpack.c.b16 %v1825, %v1823
        %v1888 = vpack.c.b16 %v1826, %v1824
        %v1889 = vpack.c.b16 %v1829, %v1827
        %v1890 = vpack.c.b16 %v1830, %v1828
        %v1891 = vpack.c.b16 %v1833, %v1831
        %v1892 = vpack.c.b16 %v1834, %v1832
        %v1893 = vpack.c.b16 %v1837, %v1835
        %v1894 = vpack.c.b16 %v1838, %v1836
        %v1895 = vpack.c.b16 %v1841, %v1839
        %v1896 = vpack.c.b16 %v1842, %v1840
        %v1897 = vpack.c.b16 %v1845, %v1843
        %v1898 = vpack.c.b16 %v1846, %v1844
        %v1899 = vpack.c.b16 %v1849, %v1847
        %v1900 = vpack.c.b16 %v1850, %v1848
        %v1901 = vpack.c.b16 %v1853, %v1851
        %v1902 = vpack.c.b16 %v1854, %v1852
        %v1903 = vpack.c.b16 %v1857, %v1855
        %v1904 = vpack.c.b16 %v1858, %v1856
        %v1905 = vpack.c.b16 %v1861, %v1859
        %v1906 = vpack.c.b16 %v1862, %v1860
        %v1907 = vpack.c.b16 %v1865, %v1863
        %v1908 = vpack.c.b16 %v1866, %v1864
        %v1909 = vpack.c.b16 %v1869, %v1867
        %v1910 = vpack.c.b16 %v1870, %v1868
        %v1911 = vpack.c.b16 %v1873, %v1871
        %v1912 = vpack.c.b16 %v1874, %v1872
        %v1913 = vpack.c.b16 %v1877, %v1875
        %v1914 = vpack.c.b16 %v1878, %v1876
        %v1915 = vpack.c.b16 %v1881, %v1879
        %v1916 = vpack.c.b16 %v1882, %v1880
        %v1917 = vpack.c.b16 %v1885, %v1883
        %v1918 = vpack.c.b16 %v1886, %v1884
        %1951 = vmatprep.subr.bf16.mxu0 %v1902
        %1952 = vmatpush1.bf16.msra.mxu0 %v1901
        %1953 = vmatprep.subr.bf16.mxu0 %v1900
        %1954 = vmatpush1.bf16.msra.mxu0 %v1899
        %1955 = vmatprep.subr.bf16.mxu0 %v1898
        %1956 = vmatpush1.bf16.msra.mxu0 %v1897
        %1957 = vmatprep.subr.bf16.mxu0 %v1896
        %1958 = vmatpush1.bf16.msra.mxu0 %v1895
        %1959 = vmatprep.subr.bf16.mxu0 %v1894
        %1960 = vmatpush1.bf16.msra.mxu0 %v1893
        %1961 = vmatprep.subr.bf16.mxu0 %v1892
        %1962 = vmatpush1.bf16.msra.mxu0 %v1891
        %1963 = vmatprep.subr.bf16.mxu0 %v1890
        %1964 = vmatpush1.bf16.msra.mxu0 %v1889
        %1965 = vmatprep.subr.bf16.mxu0 %v1888
        %1966 = vmatpush1.bf16.msra.mxu0 %v1887
        %1967 = vmatprep.subr.bf16.mxu0 %v1918
        %1968 = vmatpush2.bf16.msra.mxu0 %v1917
        %1969 = vmatprep.subr.bf16.mxu0 %v1916
        %1970 = vmatpush2.bf16.msra.mxu0 %v1915
        %1971 = vmatprep.subr.bf16.mxu0 %v1914
        %1972 = vmatpush2.bf16.msra.mxu0 %v1913
        %1973 = vmatprep.subr.bf16.mxu0 %v1912
        %1974 = vmatpush2.bf16.msra.mxu0 %v1911
        %1975 = vmatprep.subr.bf16.mxu0 %v1910
        %1976 = vmatpush2.bf16.msra.mxu0 %v1909
        %1977 = vmatprep.subr.bf16.mxu0 %v1908
        %1978 = vmatpush2.bf16.msra.mxu0 %v1907
        %1979 = vmatprep.subr.bf16.mxu0 %v1906
        %1980 = vmatpush2.bf16.msra.mxu0 %v1905
        %1981 = vmatprep.subr.bf16.mxu0 %v1904
        %1982 = vmatpush2.bf16.msra.mxu0 %v1903
        %1983 = vmatprep.mubr.bf16.mxu0 %v1743
        %1984 = vmatmul.mubr.bf16.gmra.mxu0 %v1742
        %v1985 = vpop.f32.mrf.mxu0
        %v1986 = vadd.f32 0.0, %v1985
        %v1987 = vpop.f32.mrf.mxu0
        %v1988 = vadd.f32 0.0, %v1987
        %v1989 = vpop.f32.mrf.mxu0
        %v1990 = vadd.f32 0.0, %v1989
        %v1991 = vpop.f32.mrf.mxu0
        %v1992 = vadd.f32 0.0, %v1991
        %1993 = vmatprep.mubr.bf16.mxu0 %v1745
        %1994 = vmatmul.mubr.bf16.gmra.mxu0 %v1744
        %v1995 = vpop.f32.mrf.mxu0
        %v1996 = vadd.f32 0.0, %v1995
        %v1997 = vpop.f32.mrf.mxu0
        %v1998 = vadd.f32 0.0, %v1997
        %v1999 = vpop.f32.mrf.mxu0
        %v2000 = vadd.f32 0.0, %v1999
        %v2001 = vpop.f32.mrf.mxu0
        %v2002 = vadd.f32 0.0, %v2001
        %2003 = vmatprep.mubr.bf16.mxu0 %v1747
        %2004 = vmatmul.mubr.bf16.gmra.mxu0 %v1746
        %v2005 = vpop.f32.mrf.mxu0
        %v2006 = vadd.f32 0.0, %v2005
        %v2007 = vpop.f32.mrf.mxu0
        %v2008 = vadd.f32 0.0, %v2007
        %v2009 = vpop.f32.mrf.mxu0
        %v2010 = vadd.f32 0.0, %v2009
        %v2011 = vpop.f32.mrf.mxu0
        %v2012 = vadd.f32 0.0, %v2011
        %2013 = vmatprep.mubr.bf16.mxu0 %v1749
        %2014 = vmatmul.mubr.bf16.gmra.mxu0 %v1748
        %v2015 = vpop.f32.mrf.mxu0
        %v2016 = vadd.f32 0.0, %v2015
        %v2017 = vpop.f32.mrf.mxu0
        %v2018 = vadd.f32 0.0, %v2017
        %v2019 = vpop.f32.mrf.mxu0
        %v2020 = vadd.f32 0.0, %v2019
        %v2021 = vpop.f32.mrf.mxu0
        %v2022 = vadd.f32 0.0, %v2021
        %2023 = vmatprep.mubr.bf16.mxu0 %v1751
        %2024 = vmatmul.mubr.bf16.gmra.mxu0 %v1750
        %v2025 = vpop.f32.mrf.mxu0
        %v2026 = vadd.f32 0.0, %v2025
        %v2027 = vpop.f32.mrf.mxu0
        %v2028 = vadd.f32 0.0, %v2027
        %v2029 = vpop.f32.mrf.mxu0
        %v2030 = vadd.f32 0.0, %v2029
        %v2031 = vpop.f32.mrf.mxu0
        %v2032 = vadd.f32 0.0, %v2031
        %2033 = vmatprep.mubr.bf16.mxu0 %v1753
        %2034 = vmatmul.mubr.bf16.gmra.mxu0 %v1752
        %v2035 = vpop.f32.mrf.mxu0
        %v2036 = vadd.f32 0.0, %v2035
        %v2037 = vpop.f32.mrf.mxu0
        %v2038 = vadd.f32 0.0, %v2037
        %v2039 = vpop.f32.mrf.mxu0
        %v2040 = vadd.f32 0.0, %v2039
        %v2041 = vpop.f32.mrf.mxu0
        %v2042 = vadd.f32 0.0, %v2041
        %2043 = vmatprep.mubr.bf16.mxu0 %v1755
        %2044 = vmatmul.mubr.bf16.gmra.mxu0 %v1754
        %v2045 = vpop.f32.mrf.mxu0
        %v2046 = vadd.f32 0.0, %v2045
        %v2047 = vpop.f32.mrf.mxu0
        %v2048 = vadd.f32 0.0, %v2047
        %v2049 = vpop.f32.mrf.mxu0
        %v2050 = vadd.f32 0.0, %v2049
        %v2051 = vpop.f32.mrf.mxu0
        %v2052 = vadd.f32 0.0, %v2051
        %2053 = vmatprep.mubr.bf16.mxu0 %v1757
        %2054 = vmatmul.mubr.bf16.gmra.mxu0 %v1756
        %v2055 = vpop.f32.mrf.mxu0
        %v2056 = vadd.f32 0.0, %v2055
        %v2057 = vpop.f32.mrf.mxu0
        %v2058 = vadd.f32 0.0, %v2057
        %v2059 = vpop.f32.mrf.mxu0
        %v2060 = vadd.f32 0.0, %v2059
        %v2061 = vpop.f32.mrf.mxu0
        %v2062 = vadd.f32 0.0, %v2061
        %2063 = vdwg.mxu0
        %v2064 = vadd.f32 %v1677, %v1986
        %v2065 = vadd.f32 %v1678, %v1988
        %v2066 = vadd.f32 %v1679, %v1990
        %v2067 = vadd.f32 %v1680, %v1992
        %v2068 = vadd.f32 %v1681, %v1996
        %v2069 = vadd.f32 %v1682, %v1998
        %v2070 = vadd.f32 %v1683, %v2000
        %v2071 = vadd.f32 %v1684, %v2002
        %v2072 = vadd.f32 %v1685, %v2006
        %v2073 = vadd.f32 %v1686, %v2008
        %v2074 = vadd.f32 %v1687, %v2010
        %v2075 = vadd.f32 %v1688, %v2012
        %v2076 = vadd.f32 %v1689, %v2016
        %v2077 = vadd.f32 %v1690, %v2018
        %v2078 = vadd.f32 %v1691, %v2020
        %v2079 = vadd.f32 %v1692, %v2022
        %v2080 = vadd.f32 %v1693, %v2026
        %v2081 = vadd.f32 %v1694, %v2028
        %v2082 = vadd.f32 %v1695, %v2030
        %v2083 = vadd.f32 %v1696, %v2032
        %v2084 = vadd.f32 %v1697, %v2036
        %v2085 = vadd.f32 %v1698, %v2038
        %v2086 = vadd.f32 %v1699, %v2040
        %v2087 = vadd.f32 %v1700, %v2042
        %v2088 = vadd.f32 %v1701, %v2046
        %v2089 = vadd.f32 %v1702, %v2048
        %v2090 = vadd.f32 %v1703, %v2050
        %v2091 = vadd.f32 %v1704, %v2052
        %v2092 = vadd.f32 %v1705, %v2056
        %v2093 = vadd.f32 %v1706, %v2058
        %v2094 = vadd.f32 %v1707, %v2060
        %v2095 = vadd.f32 %v1708, %v2062
        %s2096 = scalar_lea.vmem [#allocation2], 64
        %v2097 = vld [vmem:[%s2096] sm:$0xff]
        %v2098 = vld [vmem:[%s2096 + $0x8] sm:$0xff]
        %v2099 = vld [vmem:[%s2096 + $0x10] sm:$0xff]
        %v2100 = vld [vmem:[%s2096 + $0x18] sm:$0xff]
        %v2101 = vld [vmem:[%s2096 + $0x20] sm:$0xff]
        %v2102 = vld [vmem:[%s2096 + $0x28] sm:$0xff]
        %v2103 = vld [vmem:[%s2096 + $0x30] sm:$0xff]
        %v2104 = vld [vmem:[%s2096 + $0x38] sm:$0xff]
        %v2105 = vld [vmem:[%s2096 + $0x40] sm:$0xff]
        %v2106 = vld [vmem:[%s2096 + $0x48] sm:$0xff]
        %v2107 = vld [vmem:[%s2096 + $0x50] sm:$0xff]
        %v2108 = vld [vmem:[%s2096 + $0x58] sm:$0xff]
        %v2109 = vld [vmem:[%s2096 + $0x60] sm:$0xff]
        %v2110 = vld [vmem:[%s2096 + $0x68] sm:$0xff]
        %v2111 = vld [vmem:[%s2096 + $0x70] sm:$0xff]
        %v2112 = vld [vmem:[%s2096 + $0x78] sm:$0xff]
        %v2113 = vld [vmem:[%s2096 + $0x80] sm:$0xff]
        %v2114 = vld [vmem:[%s2096 + $0x88] sm:$0xff]
        %v2115 = vld [vmem:[%s2096 + $0x90] sm:$0xff]
        %v2116 = vld [vmem:[%s2096 + $0x98] sm:$0xff]
        %v2117 = vld [vmem:[%s2096 + $0xa0] sm:$0xff]
        %v2118 = vld [vmem:[%s2096 + $0xa8] sm:$0xff]
        %v2119 = vld [vmem:[%s2096 + $0xb0] sm:$0xff]
        %v2120 = vld [vmem:[%s2096 + $0xb8] sm:$0xff]
        %v2121 = vld [vmem:[%s2096 + $0xc0] sm:$0xff]
        %v2122 = vld [vmem:[%s2096 + $0xc8] sm:$0xff]
        %v2123 = vld [vmem:[%s2096 + $0xd0] sm:$0xff]
        %v2124 = vld [vmem:[%s2096 + $0xd8] sm:$0xff]
        %v2125 = vld [vmem:[%s2096 + $0xe0] sm:$0xff]
        %v2126 = vld [vmem:[%s2096 + $0xe8] sm:$0xff]
        %v2127 = vld [vmem:[%s2096 + $0xf0] sm:$0xff]
        %v2128 = vld [vmem:[%s2096 + $0xf8] sm:$0xff]
        %v2129 = vpack.c.bf16 %v2099, %v2097
        %v2130 = vpack.c.bf16 %v2100, %v2098
        %v2131 = vpack.c.bf16 %v2103, %v2101
        %v2132 = vpack.c.bf16 %v2104, %v2102
        %v2133 = vpack.c.bf16 %v2107, %v2105
        %v2134 = vpack.c.bf16 %v2108, %v2106
        %v2135 = vpack.c.bf16 %v2111, %v2109
        %v2136 = vpack.c.bf16 %v2112, %v2110
        %v2137 = vpack.c.bf16 %v2115, %v2113
        %v2138 = vpack.c.bf16 %v2116, %v2114
        %v2139 = vpack.c.bf16 %v2119, %v2117
        %v2140 = vpack.c.bf16 %v2120, %v2118
        %v2141 = vpack.c.bf16 %v2123, %v2121
        %v2142 = vpack.c.bf16 %v2124, %v2122
        %v2143 = vpack.c.bf16 %v2127, %v2125
        %v2144 = vpack.c.bf16 %v2128, %v2126
        %s2145 = scalar_lea.vmem [#allocation11], 1024
        %v2146 = vld [vmem:[%s2145] sm:$0xff]
        %v2147 = vld [vmem:[%s2145 + $0x8] sm:$0xff]
        %v2148 = vld [vmem:[%s2145 + $0x10] sm:$0xff]
        %v2149 = vld [vmem:[%s2145 + $0x18] sm:$0xff]
        %v2150 = vld [vmem:[%s2145 + $0x20] sm:$0xff]
        %v2151 = vld [vmem:[%s2145 + $0x28] sm:$0xff]
        %v2152 = vld [vmem:[%s2145 + $0x30] sm:$0xff]
        %v2153 = vld [vmem:[%s2145 + $0x38] sm:$0xff]
        %v2154 = vld [vmem:[%s2145 + $0x40] sm:$0xff]
        %v2155 = vld [vmem:[%s2145 + $0x48] sm:$0xff]
        %v2156 = vld [vmem:[%s2145 + $0x50] sm:$0xff]
        %v2157 = vld [vmem:[%s2145 + $0x58] sm:$0xff]
        %v2158 = vld [vmem:[%s2145 + $0x60] sm:$0xff]
        %v2159 = vld [vmem:[%s2145 + $0x68] sm:$0xff]
        %v2160 = vld [vmem:[%s2145 + $0x70] sm:$0xff]
        %v2161 = vld [vmem:[%s2145 + $0x78] sm:$0xff]
        %v2162 = vld [vmem:[%s2145 + $0x80] sm:$0xff]
        %v2163 = vld [vmem:[%s2145 + $0x88] sm:$0xff]
        %v2164 = vld [vmem:[%s2145 + $0x90] sm:$0xff]
        %v2165 = vld [vmem:[%s2145 + $0x98] sm:$0xff]
        %v2166 = vld [vmem:[%s2145 + $0xa0] sm:$0xff]
        %v2167 = vld [vmem:[%s2145 + $0xa8] sm:$0xff]
        %v2168 = vld [vmem:[%s2145 + $0xb0] sm:$0xff]
        %v2169 = vld [vmem:[%s2145 + $0xb8] sm:$0xff]
        %v2170 = vld [vmem:[%s2145 + $0xc0] sm:$0xff]
        %v2171 = vld [vmem:[%s2145 + $0xc8] sm:$0xff]
        %v2172 = vld [vmem:[%s2145 + $0xd0] sm:$0xff]
        %v2173 = vld [vmem:[%s2145 + $0xd8] sm:$0xff]
        %v2174 = vld [vmem:[%s2145 + $0xe0] sm:$0xff]
        %v2175 = vld [vmem:[%s2145 + $0xe8] sm:$0xff]
        %v2176 = vld [vmem:[%s2145 + $0xf0] sm:$0xff]
        %v2177 = vld [vmem:[%s2145 + $0xf8] sm:$0xff]
        %v2210 = vunpack.c.l.b16 %v2146
        %v2211 = vunpack.c.h.b16 %v2146
        %v2212 = vunpack.c.l.b16 %v2147
        %v2213 = vunpack.c.h.b16 %v2147
        %v2214 = vunpack.c.l.b16 %v2148
        %v2215 = vunpack.c.h.b16 %v2148
        %v2216 = vunpack.c.l.b16 %v2149
        %v2217 = vunpack.c.h.b16 %v2149
        %v2218 = vunpack.c.l.b16 %v2150
        %v2219 = vunpack.c.h.b16 %v2150
        %v2220 = vunpack.c.l.b16 %v2151
        %v2221 = vunpack.c.h.b16 %v2151
        %v2222 = vunpack.c.l.b16 %v2152
        %v2223 = vunpack.c.h.b16 %v2152
        %v2224 = vunpack.c.l.b16 %v2153
        %v2225 = vunpack.c.h.b16 %v2153
        %v2226 = vunpack.c.l.b16 %v2154
        %v2227 = vunpack.c.h.b16 %v2154
        %v2228 = vunpack.c.l.b16 %v2155
        %v2229 = vunpack.c.h.b16 %v2155
        %v2230 = vunpack.c.l.b16 %v2156
        %v2231 = vunpack.c.h.b16 %v2156
        %v2232 = vunpack.c.l.b16 %v2157
        %v2233 = vunpack.c.h.b16 %v2157
        %v2234 = vunpack.c.l.b16 %v2158
        %v2235 = vunpack.c.h.b16 %v2158
        %v2236 = vunpack.c.l.b16 %v2159
        %v2237 = vunpack.c.h.b16 %v2159
        %v2238 = vunpack.c.l.b16 %v2160
        %v2239 = vunpack.c.h.b16 %v2160
        %v2240 = vunpack.c.l.b16 %v2161
        %v2241 = vunpack.c.h.b16 %v2161
        %v2242 = vunpack.c.l.b16 %v2162
        %v2243 = vunpack.c.h.b16 %v2162
        %v2244 = vunpack.c.l.b16 %v2163
        %v2245 = vunpack.c.h.b16 %v2163
        %v2246 = vunpack.c.l.b16 %v2164
        %v2247 = vunpack.c.h.b16 %v2164
        %v2248 = vunpack.c.l.b16 %v2165
        %v2249 = vunpack.c.h.b16 %v2165
        %v2250 = vunpack.c.l.b16 %v2166
        %v2251 = vunpack.c.h.b16 %v2166
        %v2252 = vunpack.c.l.b16 %v2167
        %v2253 = vunpack.c.h.b16 %v2167
        %v2254 = vunpack.c.l.b16 %v2168
        %v2255 = vunpack.c.h.b16 %v2168
        %v2256 = vunpack.c.l.b16 %v2169
        %v2257 = vunpack.c.h.b16 %v2169
        %v2258 = vunpack.c.l.b16 %v2170
        %v2259 = vunpack.c.h.b16 %v2170
        %v2260 = vunpack.c.l.b16 %v2171
        %v2261 = vunpack.c.h.b16 %v2171
        %v2262 = vunpack.c.l.b16 %v2172
        %v2263 = vunpack.c.h.b16 %v2172
        %v2264 = vunpack.c.l.b16 %v2173
        %v2265 = vunpack.c.h.b16 %v2173
        %v2266 = vunpack.c.l.b16 %v2174
        %v2267 = vunpack.c.h.b16 %v2174
        %v2268 = vunpack.c.l.b16 %v2175
        %v2269 = vunpack.c.h.b16 %v2175
        %v2270 = vunpack.c.l.b16 %v2176
        %v2271 = vunpack.c.h.b16 %v2176
        %v2272 = vunpack.c.l.b16 %v2177
        %v2273 = vunpack.c.h.b16 %v2177
        %v2274 = vpack.c.b16 %v2212, %v2210
        %v2275 = vpack.c.b16 %v2213, %v2211
        %v2276 = vpack.c.b16 %v2216, %v2214
        %v2277 = vpack.c.b16 %v2217, %v2215
        %v2278 = vpack.c.b16 %v2220, %v2218
        %v2279 = vpack.c.b16 %v2221, %v2219
        %v2280 = vpack.c.b16 %v2224, %v2222
        %v2281 = vpack.c.b16 %v2225, %v2223
        %v2282 = vpack.c.b16 %v2228, %v2226
        %v2283 = vpack.c.b16 %v2229, %v2227
        %v2284 = vpack.c.b16 %v2232, %v2230
        %v2285 = vpack.c.b16 %v2233, %v2231
        %v2286 = vpack.c.b16 %v2236, %v2234
        %v2287 = vpack.c.b16 %v2237, %v2235
        %v2288 = vpack.c.b16 %v2240, %v2238
        %v2289 = vpack.c.b16 %v2241, %v2239
        %v2290 = vpack.c.b16 %v2244, %v2242
        %v2291 = vpack.c.b16 %v2245, %v2243
        %v2292 = vpack.c.b16 %v2248, %v2246
        %v2293 = vpack.c.b16 %v2249, %v2247
        %v2294 = vpack.c.b16 %v2252, %v2250
        %v2295 = vpack.c.b16 %v2253, %v2251
        %v2296 = vpack.c.b16 %v2256, %v2254
        %v2297 = vpack.c.b16 %v2257, %v2255
        %v2298 = vpack.c.b16 %v2260, %v2258
        %v2299 = vpack.c.b16 %v2261, %v2259
        %v2300 = vpack.c.b16 %v2264, %v2262
        %v2301 = vpack.c.b16 %v2265, %v2263
        %v2302 = vpack.c.b16 %v2268, %v2266
        %v2303 = vpack.c.b16 %v2269, %v2267
        %v2304 = vpack.c.b16 %v2272, %v2270
        %v2305 = vpack.c.b16 %v2273, %v2271
        %2338 = vmatprep.subr.bf16.mxu0 %v2289
        %2339 = vmatpush1.bf16.msra.mxu0 %v2288
        %2340 = vmatprep.subr.bf16.mxu0 %v2287
        %2341 = vmatpush1.bf16.msra.mxu0 %v2286
        %2342 = vmatprep.subr.bf16.mxu0 %v2285
        %2343 = vmatpush1.bf16.msra.mxu0 %v2284
        %2344 = vmatprep.subr.bf16.mxu0 %v2283
        %2345 = vmatpush1.bf16.msra.mxu0 %v2282
        %2346 = vmatprep.subr.bf16.mxu0 %v2281
        %2347 = vmatpush1.bf16.msra.mxu0 %v2280
        %2348 = vmatprep.subr.bf16.mxu0 %v2279
        %2349 = vmatpush1.bf16.msra.mxu0 %v2278
        %2350 = vmatprep.subr.bf16.mxu0 %v2277
        %2351 = vmatpush1.bf16.msra.mxu0 %v2276
        %2352 = vmatprep.subr.bf16.mxu0 %v2275
        %2353 = vmatpush1.bf16.msra.mxu0 %v2274
        %2354 = vmatprep.subr.bf16.mxu0 %v2305
        %2355 = vmatpush2.bf16.msra.mxu0 %v2304
        %2356 = vmatprep.subr.bf16.mxu0 %v2303
        %2357 = vmatpush2.bf16.msra.mxu0 %v2302
        %2358 = vmatprep.subr.bf16.mxu0 %v2301
        %2359 = vmatpush2.bf16.msra.mxu0 %v2300
        %2360 = vmatprep.subr.bf16.mxu0 %v2299
        %2361 = vmatpush2.bf16.msra.mxu0 %v2298
        %2362 = vmatprep.subr.bf16.mxu0 %v2297
        %2363 = vmatpush2.bf16.msra.mxu0 %v2296
        %2364 = vmatprep.subr.bf16.mxu0 %v2295
        %2365 = vmatpush2.bf16.msra.mxu0 %v2294
        %2366 = vmatprep.subr.bf16.mxu0 %v2293
        %2367 = vmatpush2.bf16.msra.mxu0 %v2292
        %2368 = vmatprep.subr.bf16.mxu0 %v2291
        %2369 = vmatpush2.bf16.msra.mxu0 %v2290
        %2370 = vmatprep.mubr.bf16.mxu0 %v2130
        %2371 = vmatmul.mubr.bf16.gmra.mxu0 %v2129
        %v2372 = vpop.f32.mrf.mxu0
        %v2373 = vadd.f32 0.0, %v2372
        %v2374 = vpop.f32.mrf.mxu0
        %v2375 = vadd.f32 0.0, %v2374
        %v2376 = vpop.f32.mrf.mxu0
        %v2377 = vadd.f32 0.0, %v2376
        %v2378 = vpop.f32.mrf.mxu0
        %v2379 = vadd.f32 0.0, %v2378
        %2380 = vmatprep.mubr.bf16.mxu0 %v2132
        %2381 = vmatmul.mubr.bf16.gmra.mxu0 %v2131
        %v2382 = vpop.f32.mrf.mxu0
        %v2383 = vadd.f32 0.0, %v2382
        %v2384 = vpop.f32.mrf.mxu0
        %v2385 = vadd.f32 0.0, %v2384
        %v2386 = vpop.f32.mrf.mxu0
        %v2387 = vadd.f32 0.0, %v2386
        %v2388 = vpop.f32.mrf.mxu0
        %v2389 = vadd.f32 0.0, %v2388
        %2390 = vmatprep.mubr.bf16.mxu0 %v2134
        %2391 = vmatmul.mubr.bf16.gmra.mxu0 %v2133
        %v2392 = vpop.f32.mrf.mxu0
        %v2393 = vadd.f32 0.0, %v2392
        %v2394 = vpop.f32.mrf.mxu0
        %v2395 = vadd.f32 0.0, %v2394
        %v2396 = vpop.f32.mrf.mxu0
        %v2397 = vadd.f32 0.0, %v2396
        %v2398 = vpop.f32.mrf.mxu0
        %v2399 = vadd.f32 0.0, %v2398
        %2400 = vmatprep.mubr.bf16.mxu0 %v2136
        %2401 = vmatmul.mubr.bf16.gmra.mxu0 %v2135
        %v2402 = vpop.f32.mrf.mxu0
        %v2403 = vadd.f32 0.0, %v2402
        %v2404 = vpop.f32.mrf.mxu0
        %v2405 = vadd.f32 0.0, %v2404
        %v2406 = vpop.f32.mrf.mxu0
        %v2407 = vadd.f32 0.0, %v2406
        %v2408 = vpop.f32.mrf.mxu0
        %v2409 = vadd.f32 0.0, %v2408
        %2410 = vmatprep.mubr.bf16.mxu0 %v2138
        %2411 = vmatmul.mubr.bf16.gmra.mxu0 %v2137
        %v2412 = vpop.f32.mrf.mxu0
        %v2413 = vadd.f32 0.0, %v2412
        %v2414 = vpop.f32.mrf.mxu0
        %v2415 = vadd.f32 0.0, %v2414
        %v2416 = vpop.f32.mrf.mxu0
        %v2417 = vadd.f32 0.0, %v2416
        %v2418 = vpop.f32.mrf.mxu0
        %v2419 = vadd.f32 0.0, %v2418
        %2420 = vmatprep.mubr.bf16.mxu0 %v2140
        %2421 = vmatmul.mubr.bf16.gmra.mxu0 %v2139
        %v2422 = vpop.f32.mrf.mxu0
        %v2423 = vadd.f32 0.0, %v2422
        %v2424 = vpop.f32.mrf.mxu0
        %v2425 = vadd.f32 0.0, %v2424
        %v2426 = vpop.f32.mrf.mxu0
        %v2427 = vadd.f32 0.0, %v2426
        %v2428 = vpop.f32.mrf.mxu0
        %v2429 = vadd.f32 0.0, %v2428
        %2430 = vmatprep.mubr.bf16.mxu0 %v2142
        %2431 = vmatmul.mubr.bf16.gmra.mxu0 %v2141
        %v2432 = vpop.f32.mrf.mxu0
        %v2433 = vadd.f32 0.0, %v2432
        %v2434 = vpop.f32.mrf.mxu0
        %v2435 = vadd.f32 0.0, %v2434
        %v2436 = vpop.f32.mrf.mxu0
        %v2437 = vadd.f32 0.0, %v2436
        %v2438 = vpop.f32.mrf.mxu0
        %v2439 = vadd.f32 0.0, %v2438
        %2440 = vmatprep.mubr.bf16.mxu0 %v2144
        %2441 = vmatmul.mubr.bf16.gmra.mxu0 %v2143
        %v2442 = vpop.f32.mrf.mxu0
        %v2443 = vadd.f32 0.0, %v2442
        %v2444 = vpop.f32.mrf.mxu0
        %v2445 = vadd.f32 0.0, %v2444
        %v2446 = vpop.f32.mrf.mxu0
        %v2447 = vadd.f32 0.0, %v2446
        %v2448 = vpop.f32.mrf.mxu0
        %v2449 = vadd.f32 0.0, %v2448
        %2450 = vdwg.mxu0
        %v2451 = vadd.f32 %v2064, %v2373
        %v2452 = vadd.f32 %v2065, %v2375
        %v2453 = vadd.f32 %v2066, %v2377
        %v2454 = vadd.f32 %v2067, %v2379
        %v2455 = vadd.f32 %v2068, %v2383
        %v2456 = vadd.f32 %v2069, %v2385
        %v2457 = vadd.f32 %v2070, %v2387
        %v2458 = vadd.f32 %v2071, %v2389
        %v2459 = vadd.f32 %v2072, %v2393
        %v2460 = vadd.f32 %v2073, %v2395
        %v2461 = vadd.f32 %v2074, %v2397
        %v2462 = vadd.f32 %v2075, %v2399
        %v2463 = vadd.f32 %v2076, %v2403
        %v2464 = vadd.f32 %v2077, %v2405
        %v2465 = vadd.f32 %v2078, %v2407
        %v2466 = vadd.f32 %v2079, %v2409
        %v2467 = vadd.f32 %v2080, %v2413
        %v2468 = vadd.f32 %v2081, %v2415
        %v2469 = vadd.f32 %v2082, %v2417
        %v2470 = vadd.f32 %v2083, %v2419
        %v2471 = vadd.f32 %v2084, %v2423
        %v2472 = vadd.f32 %v2085, %v2425
        %v2473 = vadd.f32 %v2086, %v2427
        %v2474 = vadd.f32 %v2087, %v2429
        %v2475 = vadd.f32 %v2088, %v2433
        %v2476 = vadd.f32 %v2089, %v2435
        %v2477 = vadd.f32 %v2090, %v2437
        %v2478 = vadd.f32 %v2091, %v2439
        %v2479 = vadd.f32 %v2092, %v2443
        %v2480 = vadd.f32 %v2093, %v2445
        %v2481 = vadd.f32 %v2094, %v2447
        %v2482 = vadd.f32 %v2095, %v2449
        %v2483 = vld [vmem:[%s4] sm:$0x3]
        %v2485 = vlaneseq
        %v2486 = vshrl.u32 %v2485, 7
        %v2487 = vsub.s32 0, %v2486
        %v2488 = vrot.slane %v2483, %v2487
        %v2489 = vlaneseq
        %v2490 = vshrl.u32 %v2489, 7
        %v2491 = vsub.s32 1, %v2490
        %v2492 = vrot.slane %v2483, %v2491
        %v2495 = vadd.f32 %v2451, %v2488
        %v2496 = vadd.f32 %v2452, %v2492
        %v2497 = vadd.f32 %v2453, %v2488
        %v2498 = vadd.f32 %v2454, %v2492
        %v2499 = vadd.f32 %v2455, %v2488
        %v2500 = vadd.f32 %v2456, %v2492
        %v2501 = vadd.f32 %v2457, %v2488
        %v2502 = vadd.f32 %v2458, %v2492
        %v2503 = vadd.f32 %v2459, %v2488
        %v2504 = vadd.f32 %v2460, %v2492
        %v2505 = vadd.f32 %v2461, %v2488
        %v2506 = vadd.f32 %v2462, %v2492
        %v2507 = vadd.f32 %v2463, %v2488
        %v2508 = vadd.f32 %v2464, %v2492
        %v2509 = vadd.f32 %v2465, %v2488
        %v2510 = vadd.f32 %v2466, %v2492
        %v2511 = vadd.f32 %v2467, %v2488
        %v2512 = vadd.f32 %v2468, %v2492
        %v2513 = vadd.f32 %v2469, %v2488
        %v2514 = vadd.f32 %v2470, %v2492
        %v2515 = vadd.f32 %v2471, %v2488
        %v2516 = vadd.f32 %v2472, %v2492
        %v2517 = vadd.f32 %v2473, %v2488
        %v2518 = vadd.f32 %v2474, %v2492
        %v2519 = vadd.f32 %v2475, %v2488
        %v2520 = vadd.f32 %v2476, %v2492
        %v2521 = vadd.f32 %v2477, %v2488
        %v2522 = vadd.f32 %v2478, %v2492
        %v2523 = vadd.f32 %v2479, %v2488
        %v2524 = vadd.f32 %v2480, %v2492
        %v2525 = vadd.f32 %v2481, %v2488
        %v2526 = vadd.f32 %v2482, %v2492
        %v2527 = vxor.u32 %v2495, 2147483648
        %v2528 = vxor.u32 %v2496, 2147483648
        %v2529 = vxor.u32 %v2497, 2147483648
        %v2530 = vxor.u32 %v2498, 2147483648
        %v2531 = vxor.u32 %v2499, 2147483648
        %v2532 = vxor.u32 %v2500, 2147483648
        %v2533 = vxor.u32 %v2501, 2147483648
        %v2534 = vxor.u32 %v2502, 2147483648
        %v2535 = vxor.u32 %v2503, 2147483648
        %v2536 = vxor.u32 %v2504, 2147483648
        %v2537 = vxor.u32 %v2505, 2147483648
        %v2538 = vxor.u32 %v2506, 2147483648
        %v2539 = vxor.u32 %v2507, 2147483648
        %v2540 = vxor.u32 %v2508, 2147483648
        %v2541 = vxor.u32 %v2509, 2147483648
        %v2542 = vxor.u32 %v2510, 2147483648
        %v2543 = vxor.u32 %v2511, 2147483648
        %v2544 = vxor.u32 %v2512, 2147483648
        %v2545 = vxor.u32 %v2513, 2147483648
        %v2546 = vxor.u32 %v2514, 2147483648
        %v2547 = vxor.u32 %v2515, 2147483648
        %v2548 = vxor.u32 %v2516, 2147483648
        %v2549 = vxor.u32 %v2517, 2147483648
        %v2550 = vxor.u32 %v2518, 2147483648
        %v2551 = vxor.u32 %v2519, 2147483648
        %v2552 = vxor.u32 %v2520, 2147483648
        %v2553 = vxor.u32 %v2521, 2147483648
        %v2554 = vxor.u32 %v2522, 2147483648
        %v2555 = vxor.u32 %v2523, 2147483648
        %v2556 = vxor.u32 %v2524, 2147483648
        %v2557 = vxor.u32 %v2525, 2147483648
        %v2558 = vxor.u32 %v2526, 2147483648
        %v2559 = vmul.f32 %v2527, 1.442695
        %v2560 = vpow.pop %v2559
        %v2561 = vmul.f32 %v2528, 1.442695
        %v2562 = vpow.pop %v2561
        %v2563 = vmul.f32 %v2529, 1.442695
        %v2564 = vpow.pop %v2563
        %v2565 = vmul.f32 %v2530, 1.442695
        %v2566 = vpow.pop %v2565
        %v2567 = vmul.f32 %v2531, 1.442695
        %v2568 = vpow.pop %v2567
        %v2569 = vmul.f32 %v2532, 1.442695
        %v2570 = vpow.pop %v2569
        %v2571 = vmul.f32 %v2533, 1.442695
        %v2572 = vpow.pop %v2571
        %v2573 = vmul.f32 %v2534, 1.442695
        %v2574 = vpow.pop %v2573
        %v2575 = vmul.f32 %v2535, 1.442695
        %v2576 = vpow.pop %v2575
        %v2577 = vmul.f32 %v2536, 1.442695
        %v2578 = vpow.pop %v2577
        %v2579 = vmul.f32 %v2537, 1.442695
        %v2580 = vpow.pop %v2579
        %v2581 = vmul.f32 %v2538, 1.442695
        %v2582 = vpow.pop %v2581
        %v2583 = vmul.f32 %v2539, 1.442695
        %v2584 = vpow.pop %v2583
        %v2585 = vmul.f32 %v2540, 1.442695
        %v2586 = vpow.pop %v2585
        %v2587 = vmul.f32 %v2541, 1.442695
        %v2588 = vpow.pop %v2587
        %v2589 = vmul.f32 %v2542, 1.442695
        %v2590 = vpow.pop %v2589
        %v2591 = vmul.f32 %v2543, 1.442695
        %v2592 = vpow.pop %v2591
        %v2593 = vmul.f32 %v2544, 1.442695
        %v2594 = vpow.pop %v2593
        %v2595 = vmul.f32 %v2545, 1.442695
        %v2596 = vpow.pop %v2595
        %v2597 = vmul.f32 %v2546, 1.442695
        %v2598 = vpow.pop %v2597
        %v2599 = vmul.f32 %v2547, 1.442695
        %v2600 = vpow.pop %v2599
        %v2601 = vmul.f32 %v2548, 1.442695
        %v2602 = vpow.pop %v2601
        %v2603 = vmul.f32 %v2549, 1.442695
        %v2604 = vpow.pop %v2603
        %v2605 = vmul.f32 %v2550, 1.442695
        %v2606 = vpow.pop %v2605
        %v2607 = vmul.f32 %v2551, 1.442695
        %v2608 = vpow.pop %v2607
        %v2609 = vmul.f32 %v2552, 1.442695
        %v2610 = vpow.pop %v2609
        %v2611 = vmul.f32 %v2553, 1.442695
        %v2612 = vpow.pop %v2611
        %v2613 = vmul.f32 %v2554, 1.442695
        %v2614 = vpow.pop %v2613
        %v2615 = vmul.f32 %v2555, 1.442695
        %v2616 = vpow.pop %v2615
        %v2617 = vmul.f32 %v2556, 1.442695
        %v2618 = vpow.pop %v2617
        %v2619 = vmul.f32 %v2557, 1.442695
        %v2620 = vpow.pop %v2619
        %v2621 = vmul.f32 %v2558, 1.442695
        %v2622 = vpow.pop %v2621
        %v2623 = vadd.f32 %v2560, 1.0
        %v2624 = vadd.f32 %v2562, 1.0
        %v2625 = vadd.f32 %v2564, 1.0
        %v2626 = vadd.f32 %v2566, 1.0
        %v2627 = vadd.f32 %v2568, 1.0
        %v2628 = vadd.f32 %v2570, 1.0
        %v2629 = vadd.f32 %v2572, 1.0
        %v2630 = vadd.f32 %v2574, 1.0
        %v2631 = vadd.f32 %v2576, 1.0
        %v2632 = vadd.f32 %v2578, 1.0
        %v2633 = vadd.f32 %v2580, 1.0
        %v2634 = vadd.f32 %v2582, 1.0
        %v2635 = vadd.f32 %v2584, 1.0
        %v2636 = vadd.f32 %v2586, 1.0
        %v2637 = vadd.f32 %v2588, 1.0
        %v2638 = vadd.f32 %v2590, 1.0
        %v2639 = vadd.f32 %v2592, 1.0
        %v2640 = vadd.f32 %v2594, 1.0
        %v2641 = vadd.f32 %v2596, 1.0
        %v2642 = vadd.f32 %v2598, 1.0
        %v2643 = vadd.f32 %v2600, 1.0
        %v2644 = vadd.f32 %v2602, 1.0
        %v2645 = vadd.f32 %v2604, 1.0
        %v2646 = vadd.f32 %v2606, 1.0
        %v2647 = vadd.f32 %v2608, 1.0
        %v2648 = vadd.f32 %v2610, 1.0
        %v2649 = vadd.f32 %v2612, 1.0
        %v2650 = vadd.f32 %v2614, 1.0
        %v2651 = vadd.f32 %v2616, 1.0
        %v2652 = vadd.f32 %v2618, 1.0
        %v2653 = vadd.f32 %v2620, 1.0
        %v2654 = vadd.f32 %v2622, 1.0
        %v2655 = vrcp.pop %v2623
        %v2656 = vmul.f32 1.0, %v2655
        %v2657 = vrcp.pop %v2624
        %v2658 = vmul.f32 1.0, %v2657
        %v2659 = vrcp.pop %v2625
        %v2660 = vmul.f32 1.0, %v2659
        %v2661 = vrcp.pop %v2626
        %v2662 = vmul.f32 1.0, %v2661
        %v2663 = vrcp.pop %v2627
        %v2664 = vmul.f32 1.0, %v2663
        %v2665 = vrcp.pop %v2628
        %v2666 = vmul.f32 1.0, %v2665
        %v2667 = vrcp.pop %v2629
        %v2668 = vmul.f32 1.0, %v2667
        %v2669 = vrcp.pop %v2630
        %v2670 = vmul.f32 1.0, %v2669
        %v2671 = vrcp.pop %v2631
        %v2672 = vmul.f32 1.0, %v2671
        %v2673 = vrcp.pop %v2632
        %v2674 = vmul.f32 1.0, %v2673
        %v2675 = vrcp.pop %v2633
        %v2676 = vmul.f32 1.0, %v2675
        %v2677 = vrcp.pop %v2634
        %v2678 = vmul.f32 1.0, %v2677
        %v2679 = vrcp.pop %v2635
        %v2680 = vmul.f32 1.0, %v2679
        %v2681 = vrcp.pop %v2636
        %v2682 = vmul.f32 1.0, %v2681
        %v2683 = vrcp.pop %v2637
        %v2684 = vmul.f32 1.0, %v2683
        %v2685 = vrcp.pop %v2638
        %v2686 = vmul.f32 1.0, %v2685
        %v2687 = vrcp.pop %v2639
        %v2688 = vmul.f32 1.0, %v2687
        %v2689 = vrcp.pop %v2640
        %v2690 = vmul.f32 1.0, %v2689
        %v2691 = vrcp.pop %v2641
        %v2692 = vmul.f32 1.0, %v2691
        %v2693 = vrcp.pop %v2642
        %v2694 = vmul.f32 1.0, %v2693
        %v2695 = vrcp.pop %v2643
        %v2696 = vmul.f32 1.0, %v2695
        %v2697 = vrcp.pop %v2644
        %v2698 = vmul.f32 1.0, %v2697
        %v2699 = vrcp.pop %v2645
        %v2700 = vmul.f32 1.0, %v2699
        %v2701 = vrcp.pop %v2646
        %v2702 = vmul.f32 1.0, %v2701
        %v2703 = vrcp.pop %v2647
        %v2704 = vmul.f32 1.0, %v2703
        %v2705 = vrcp.pop %v2648
        %v2706 = vmul.f32 1.0, %v2705
        %v2707 = vrcp.pop %v2649
        %v2708 = vmul.f32 1.0, %v2707
        %v2709 = vrcp.pop %v2650
        %v2710 = vmul.f32 1.0, %v2709
        %v2711 = vrcp.pop %v2651
        %v2712 = vmul.f32 1.0, %v2711
        %v2713 = vrcp.pop %v2652
        %v2714 = vmul.f32 1.0, %v2713
        %v2715 = vrcp.pop %v2653
        %v2716 = vmul.f32 1.0, %v2715
        %v2717 = vrcp.pop %v2654
        %v2718 = vmul.f32 1.0, %v2717
        %v2719 = vmul.f32 %v2658, %v541
        %v2720 = vmul.f32 %v2662, %v542
        %v2721 = vmul.f32 %v2666, %v543
        %v2722 = vmul.f32 %v2670, %v544
        %v2723 = vmul.f32 %v2674, %v545
        %v2724 = vmul.f32 %v2678, %v546
        %v2725 = vmul.f32 %v2682, %v547
        %v2726 = vmul.f32 %v2686, %v548
        %v2727 = vmul.f32 %v2690, %v549
        %v2728 = vmul.f32 %v2694, %v550
        %v2729 = vmul.f32 %v2698, %v551
        %v2730 = vmul.f32 %v2702, %v552
        %v2731 = vmul.f32 %v2706, %v553
        %v2732 = vmul.f32 %v2710, %v554
        %v2733 = vmul.f32 %v2714, %v555
        %v2734 = vmul.f32 %v2718, %v556
        %2735 = vst [vmem:[%s582] sm:$0xff] %v2719
        %2736 = vst [vmem:[%s582 + $0x10] sm:$0xff] %v2720
        %2737 = vst [vmem:[%s582 + $0x20] sm:$0xff] %v2721
        %2738 = vst [vmem:[%s582 + $0x30] sm:$0xff] %v2722
        %2739 = vst [vmem:[%s582 + $0x40] sm:$0xff] %v2723
        %2740 = vst [vmem:[%s582 + $0x50] sm:$0xff] %v2724
        %2741 = vst [vmem:[%s582 + $0x60] sm:$0xff] %v2725
        %2742 = vst [vmem:[%s582 + $0x70] sm:$0xff] %v2726
        %2743 = vst [vmem:[%s582 + $0x80] sm:$0xff] %v2727
        %2744 = vst [vmem:[%s582 + $0x90] sm:$0xff] %v2728
        %2745 = vst [vmem:[%s582 + $0xa0] sm:$0xff] %v2729
        %2746 = vst [vmem:[%s582 + $0xb0] sm:$0xff] %v2730
        %2747 = vst [vmem:[%s582 + $0xc0] sm:$0xff] %v2731
        %2748 = vst [vmem:[%s582 + $0xd0] sm:$0xff] %v2732
        %2749 = vst [vmem:[%s582 + $0xe0] sm:$0xff] %v2733
        %2750 = vst [vmem:[%s582 + $0xf0] sm:$0xff] %v2734
        %v2751 = vld [vmem:[#allocation2] sm:$0xff]
        %v2752 = vld [vmem:[#allocation2 + $0x8] sm:$0xff]
        %v2753 = vld [vmem:[#allocation2 + $0x10] sm:$0xff]
        %v2754 = vld [vmem:[#allocation2 + $0x18] sm:$0xff]
        %v2755 = vld [vmem:[#allocation2 + $0x20] sm:$0xff]
        %v2756 = vld [vmem:[#allocation2 + $0x28] sm:$0xff]
        %v2757 = vld [vmem:[#allocation2 + $0x30] sm:$0xff]
        %v2758 = vld [vmem:[#allocation2 + $0x38] sm:$0xff]
        %v2759 = vld [vmem:[#allocation2 + $0x40] sm:$0xff]
        %v2760 = vld [vmem:[#allocation2 + $0x48] sm:$0xff]
        %v2761 = vld [vmem:[#allocation2 + $0x50] sm:$0xff]
        %v2762 = vld [vmem:[#allocation2 + $0x58] sm:$0xff]
        %v2763 = vld [vmem:[#allocation2 + $0x60] sm:$0xff]
        %v2764 = vld [vmem:[#allocation2 + $0x68] sm:$0xff]
        %v2765 = vld [vmem:[#allocation2 + $0x70] sm:$0xff]
        %v2766 = vld [vmem:[#allocation2 + $0x78] sm:$0xff]
        %v2767 = vld [vmem:[#allocation2 + $0x80] sm:$0xff]
        %v2768 = vld [vmem:[#allocation2 + $0x88] sm:$0xff]
        %v2769 = vld [vmem:[#allocation2 + $0x90] sm:$0xff]
        %v2770 = vld [vmem:[#allocation2 + $0x98] sm:$0xff]
        %v2771 = vld [vmem:[#allocation2 + $0xa0] sm:$0xff]
        %v2772 = vld [vmem:[#allocation2 + $0xa8] sm:$0xff]
        %v2773 = vld [vmem:[#allocation2 + $0xb0] sm:$0xff]
        %v2774 = vld [vmem:[#allocation2 + $0xb8] sm:$0xff]
        %v2775 = vld [vmem:[#allocation2 + $0xc0] sm:$0xff]
        %v2776 = vld [vmem:[#allocation2 + $0xc8] sm:$0xff]
        %v2777 = vld [vmem:[#allocation2 + $0xd0] sm:$0xff]
        %v2778 = vld [vmem:[#allocation2 + $0xd8] sm:$0xff]
        %v2779 = vld [vmem:[#allocation2 + $0xe0] sm:$0xff]
        %v2780 = vld [vmem:[#allocation2 + $0xe8] sm:$0xff]
        %v2781 = vld [vmem:[#allocation2 + $0xf0] sm:$0xff]
        %v2782 = vld [vmem:[#allocation2 + $0xf8] sm:$0xff]
        %v2783 = vpack.c.bf16 %v2753, %v2751
        %v2784 = vpack.c.bf16 %v2754, %v2752
        %v2785 = vpack.c.bf16 %v2757, %v2755
        %v2786 = vpack.c.bf16 %v2758, %v2756
        %v2787 = vpack.c.bf16 %v2761, %v2759
        %v2788 = vpack.c.bf16 %v2762, %v2760
        %v2789 = vpack.c.bf16 %v2765, %v2763
        %v2790 = vpack.c.bf16 %v2766, %v2764
        %v2791 = vpack.c.bf16 %v2769, %v2767
        %v2792 = vpack.c.bf16 %v2770, %v2768
        %v2793 = vpack.c.bf16 %v2773, %v2771
        %v2794 = vpack.c.bf16 %v2774, %v2772
        %v2795 = vpack.c.bf16 %v2777, %v2775
        %v2796 = vpack.c.bf16 %v2778, %v2776
        %v2797 = vpack.c.bf16 %v2781, %v2779
        %v2798 = vpack.c.bf16 %v2782, %v2780
        %v2799 = vld [vmem:[#allocation13] sm:$0xf]
        %v2800 = vld [vmem:[#allocation13 + $0x4] sm:$0xf]
        %v2801 = vld [vmem:[#allocation13 + $0x8] sm:$0xf]
        %v2802 = vld [vmem:[#allocation13 + $0xc] sm:$0xf]
        %v2803 = vld [vmem:[#allocation13 + $0x10] sm:$0xf]
        %v2804 = vld [vmem:[#allocation13 + $0x14] sm:$0xf]
        %v2805 = vld [vmem:[#allocation13 + $0x18] sm:$0xf]
        %v2806 = vld [vmem:[#allocation13 + $0x1c] sm:$0xf]
        %v2807 = vld [vmem:[#allocation13 + $0x20] sm:$0xf]
        %v2808 = vld [vmem:[#allocation13 + $0x24] sm:$0xf]
        %v2809 = vld [vmem:[#allocation13 + $0x28] sm:$0xf]
        %v2810 = vld [vmem:[#allocation13 + $0x2c] sm:$0xf]
        %v2811 = vld [vmem:[#allocation13 + $0x30] sm:$0xf]
        %v2812 = vld [vmem:[#allocation13 + $0x34] sm:$0xf]
        %v2813 = vld [vmem:[#allocation13 + $0x38] sm:$0xf]
        %v2814 = vld [vmem:[#allocation13 + $0x3c] sm:$0xf]
        %v2815 = vld [vmem:[#allocation13 + $0x40] sm:$0xf]
        %v2816 = vld [vmem:[#allocation13 + $0x44] sm:$0xf]
        %v2817 = vld [vmem:[#allocation13 + $0x48] sm:$0xf]
        %v2818 = vld [vmem:[#allocation13 + $0x4c] sm:$0xf]
        %v2819 = vld [vmem:[#allocation13 + $0x50] sm:$0xf]
        %v2820 = vld [vmem:[#allocation13 + $0x54] sm:$0xf]
        %v2821 = vld [vmem:[#allocation13 + $0x58] sm:$0xf]
        %v2822 = vld [vmem:[#allocation13 + $0x5c] sm:$0xf]
        %v2823 = vld [vmem:[#allocation13 + $0x60] sm:$0xf]
        %v2824 = vld [vmem:[#allocation13 + $0x64] sm:$0xf]
        %v2825 = vld [vmem:[#allocation13 + $0x68] sm:$0xf]
        %v2826 = vld [vmem:[#allocation13 + $0x6c] sm:$0xf]
        %v2827 = vld [vmem:[#allocation13 + $0x70] sm:$0xf]
        %v2828 = vld [vmem:[#allocation13 + $0x74] sm:$0xf]
        %v2829 = vld [vmem:[#allocation13 + $0x78] sm:$0xf]
        %v2830 = vld [vmem:[#allocation13 + $0x7c] sm:$0xf]
        %v2831 = vld [vmem:[%s695] sm:$0xff]
        %v2832 = vld [vmem:[%s695 + $0x8] sm:$0xff]
        %v2833 = vld [vmem:[%s695 + $0x10] sm:$0xff]
        %v2834 = vld [vmem:[%s695 + $0x18] sm:$0xff]
        %v2835 = vld [vmem:[%s695 + $0x20] sm:$0xff]
        %v2836 = vld [vmem:[%s695 + $0x28] sm:$0xff]
        %v2837 = vld [vmem:[%s695 + $0x30] sm:$0xff]
        %v2838 = vld [vmem:[%s695 + $0x38] sm:$0xff]
        %v2839 = vld [vmem:[%s695 + $0x40] sm:$0xff]
        %v2840 = vld [vmem:[%s695 + $0x48] sm:$0xff]
        %v2841 = vld [vmem:[%s695 + $0x50] sm:$0xff]
        %v2842 = vld [vmem:[%s695 + $0x58] sm:$0xff]
        %v2843 = vld [vmem:[%s695 + $0x60] sm:$0xff]
        %v2844 = vld [vmem:[%s695 + $0x68] sm:$0xff]
        %v2845 = vld [vmem:[%s695 + $0x70] sm:$0xff]
        %v2846 = vld [vmem:[%s695 + $0x78] sm:$0xff]
        %v2847 = vld [vmem:[%s695 + $0x80] sm:$0xff]
        %v2848 = vld [vmem:[%s695 + $0x88] sm:$0xff]
        %v2849 = vld [vmem:[%s695 + $0x90] sm:$0xff]
        %v2850 = vld [vmem:[%s695 + $0x98] sm:$0xff]
        %v2851 = vld [vmem:[%s695 + $0xa0] sm:$0xff]
        %v2852 = vld [vmem:[%s695 + $0xa8] sm:$0xff]
        %v2853 = vld [vmem:[%s695 + $0xb0] sm:$0xff]
        %v2854 = vld [vmem:[%s695 + $0xb8] sm:$0xff]
        %v2855 = vld [vmem:[%s695 + $0xc0] sm:$0xff]
        %v2856 = vld [vmem:[%s695 + $0xc8] sm:$0xff]
        %v2857 = vld [vmem:[%s695 + $0xd0] sm:$0xff]
        %v2858 = vld [vmem:[%s695 + $0xd8] sm:$0xff]
        %v2859 = vld [vmem:[%s695 + $0xe0] sm:$0xff]
        %v2860 = vld [vmem:[%s695 + $0xe8] sm:$0xff]
        %v2861 = vld [vmem:[%s695 + $0xf0] sm:$0xff]
        %v2862 = vld [vmem:[%s695 + $0xf8] sm:$0xff]
        %v2863 = vpack.c.bf16 %v2833, %v2831
        %v2864 = vpack.c.bf16 %v2834, %v2832
        %v2865 = vpack.c.bf16 %v2837, %v2835
        %v2866 = vpack.c.bf16 %v2838, %v2836
        %v2867 = vpack.c.bf16 %v2841, %v2839
        %v2868 = vpack.c.bf16 %v2842, %v2840
        %v2869 = vpack.c.bf16 %v2845, %v2843
        %v2870 = vpack.c.bf16 %v2846, %v2844
        %v2871 = vpack.c.bf16 %v2849, %v2847
        %v2872 = vpack.c.bf16 %v2850, %v2848
        %v2873 = vpack.c.bf16 %v2853, %v2851
        %v2874 = vpack.c.bf16 %v2854, %v2852
        %v2875 = vpack.c.bf16 %v2857, %v2855
        %v2876 = vpack.c.bf16 %v2858, %v2856
        %v2877 = vpack.c.bf16 %v2861, %v2859
        %v2878 = vpack.c.bf16 %v2862, %v2860
        %s2879 = scalar_lea.vmem [#allocation13], 128
        %v2880 = vld [vmem:[%s2879] sm:$0xf]
        %v2881 = vld [vmem:[%s2879 + $0x4] sm:$0xf]
        %v2882 = vld [vmem:[%s2879 + $0x8] sm:$0xf]
        %v2883 = vld [vmem:[%s2879 + $0xc] sm:$0xf]
        %v2884 = vld [vmem:[%s2879 + $0x10] sm:$0xf]
        %v2885 = vld [vmem:[%s2879 + $0x14] sm:$0xf]
        %v2886 = vld [vmem:[%s2879 + $0x18] sm:$0xf]
        %v2887 = vld [vmem:[%s2879 + $0x1c] sm:$0xf]
        %v2888 = vld [vmem:[%s2879 + $0x20] sm:$0xf]
        %v2889 = vld [vmem:[%s2879 + $0x24] sm:$0xf]
        %v2890 = vld [vmem:[%s2879 + $0x28] sm:$0xf]
        %v2891 = vld [vmem:[%s2879 + $0x2c] sm:$0xf]
        %v2892 = vld [vmem:[%s2879 + $0x30] sm:$0xf]
        %v2893 = vld [vmem:[%s2879 + $0x34] sm:$0xf]
        %v2894 = vld [vmem:[%s2879 + $0x38] sm:$0xf]
        %v2895 = vld [vmem:[%s2879 + $0x3c] sm:$0xf]
        %v2896 = vld [vmem:[%s2879 + $0x40] sm:$0xf]
        %v2897 = vld [vmem:[%s2879 + $0x44] sm:$0xf]
        %v2898 = vld [vmem:[%s2879 + $0x48] sm:$0xf]
        %v2899 = vld [vmem:[%s2879 + $0x4c] sm:$0xf]
        %v2900 = vld [vmem:[%s2879 + $0x50] sm:$0xf]
        %v2901 = vld [vmem:[%s2879 + $0x54] sm:$0xf]
        %v2902 = vld [vmem:[%s2879 + $0x58] sm:$0xf]
        %v2903 = vld [vmem:[%s2879 + $0x5c] sm:$0xf]
        %v2904 = vld [vmem:[%s2879 + $0x60] sm:$0xf]
        %v2905 = vld [vmem:[%s2879 + $0x64] sm:$0xf]
        %v2906 = vld [vmem:[%s2879 + $0x68] sm:$0xf]
        %v2907 = vld [vmem:[%s2879 + $0x6c] sm:$0xf]
        %v2908 = vld [vmem:[%s2879 + $0x70] sm:$0xf]
        %v2909 = vld [vmem:[%s2879 + $0x74] sm:$0xf]
        %v2910 = vld [vmem:[%s2879 + $0x78] sm:$0xf]
        %v2911 = vld [vmem:[%s2879 + $0x7c] sm:$0xf]
        %v2944 = vunpack.c.l.b16 %v2880
        %v2945 = vunpack.c.l.b16 %v2881
        %v2946 = vunpack.c.l.b16 %v2882
        %v2947 = vunpack.c.l.b16 %v2883
        %v2948 = vunpack.c.l.b16 %v2884
        %v2949 = vunpack.c.l.b16 %v2885
        %v2950 = vunpack.c.l.b16 %v2886
        %v2951 = vunpack.c.l.b16 %v2887
        %v2952 = vunpack.c.l.b16 %v2888
        %v2953 = vunpack.c.l.b16 %v2889
        %v2954 = vunpack.c.l.b16 %v2890
        %v2955 = vunpack.c.l.b16 %v2891
        %v2956 = vunpack.c.l.b16 %v2892
        %v2957 = vunpack.c.l.b16 %v2893
        %v2958 = vunpack.c.l.b16 %v2894
        %v2959 = vunpack.c.l.b16 %v2895
        %v2960 = vunpack.c.l.b16 %v2896
        %v2961 = vunpack.c.l.b16 %v2897
        %v2962 = vunpack.c.l.b16 %v2898
        %v2963 = vunpack.c.l.b16 %v2899
        %v2964 = vunpack.c.l.b16 %v2900
        %v2965 = vunpack.c.l.b16 %v2901
        %v2966 = vunpack.c.l.b16 %v2902
        %v2967 = vunpack.c.l.b16 %v2903
        %v2968 = vunpack.c.l.b16 %v2904
        %v2969 = vunpack.c.l.b16 %v2905
        %v2970 = vunpack.c.l.b16 %v2906
        %v2971 = vunpack.c.l.b16 %v2907
        %v2972 = vunpack.c.l.b16 %v2908
        %v2973 = vunpack.c.l.b16 %v2909
        %v2974 = vunpack.c.l.b16 %v2910
        %v2975 = vunpack.c.l.b16 %v2911
        %v2976 = vpack.c.b16 %v2945, %v2944
        %v2977 = vpack.c.b16 %v2947, %v2946
        %v2978 = vpack.c.b16 %v2949, %v2948
        %v2979 = vpack.c.b16 %v2951, %v2950
        %v2980 = vpack.c.b16 %v2953, %v2952
        %v2981 = vpack.c.b16 %v2955, %v2954
        %v2982 = vpack.c.b16 %v2957, %v2956
        %v2983 = vpack.c.b16 %v2959, %v2958
        %v2984 = vpack.c.b16 %v2961, %v2960
        %v2985 = vpack.c.b16 %v2963, %v2962
        %v2986 = vpack.c.b16 %v2965, %v2964
        %v2987 = vpack.c.b16 %v2967, %v2966
        %v2988 = vpack.c.b16 %v2969, %v2968
        %v2989 = vpack.c.b16 %v2971, %v2970
        %v2990 = vpack.c.b16 %v2973, %v2972
        %v2991 = vpack.c.b16 %v2975, %v2974
        %3008 = vmatprep.subr.bf16.mxu0 0
        %3009 = vmatpush1.bf16.msra.mxu0 %v2983
        %3010 = vmatprep.subr.bf16.mxu0 0
        %3011 = vmatpush1.bf16.msra.mxu0 %v2982
        %3012 = vmatprep.subr.bf16.mxu0 0
        %3013 = vmatpush1.bf16.msra.mxu0 %v2981
        %3014 = vmatprep.subr.bf16.mxu0 0
        %3015 = vmatpush1.bf16.msra.mxu0 %v2980
        %3016 = vmatprep.subr.bf16.mxu0 0
        %3017 = vmatpush1.bf16.msra.mxu0 %v2979
        %3018 = vmatprep.subr.bf16.mxu0 0
        %3019 = vmatpush1.bf16.msra.mxu0 %v2978
        %3020 = vmatprep.subr.bf16.mxu0 0
        %3021 = vmatpush1.bf16.msra.mxu0 %v2977
        %3022 = vmatprep.subr.bf16.mxu0 0
        %3023 = vmatpush1.bf16.msra.mxu0 %v2976
        %3024 = vmatprep.subr.bf16.mxu0 0
        %3025 = vmatpush2.bf16.msra.mxu0 %v2991
        %3026 = vmatprep.subr.bf16.mxu0 0
        %3027 = vmatpush2.bf16.msra.mxu0 %v2990
        %3028 = vmatprep.subr.bf16.mxu0 0
        %3029 = vmatpush2.bf16.msra.mxu0 %v2989
        %3030 = vmatprep.subr.bf16.mxu0 0
        %3031 = vmatpush2.bf16.msra.mxu0 %v2988
        %3032 = vmatprep.subr.bf16.mxu0 0
        %3033 = vmatpush2.bf16.msra.mxu0 %v2987
        %3034 = vmatprep.subr.bf16.mxu0 0
        %3035 = vmatpush2.bf16.msra.mxu0 %v2986
        %3036 = vmatprep.subr.bf16.mxu0 0
        %3037 = vmatpush2.bf16.msra.mxu0 %v2985
        %3038 = vmatprep.subr.bf16.mxu0 0
        %3039 = vmatpush2.bf16.msra.mxu0 %v2984
        %3040 = vmatprep.mubr.bf16.mxu0 %v2864
        %3041 = vmatmul.mubr.bf16.gmra.mxu0 %v2863
        %v3042 = vpop.f32.mrf.mxu0
        %v3043 = vadd.f32 0.0, %v3042
        %v3044 = vpop.f32.mrf.mxu0
        %v3045 = vpop.f32.mrf.mxu0
        %v3046 = vadd.f32 0.0, %v3045
        %v3047 = vpop.f32.mrf.mxu0
        %3048 = vmatprep.mubr.bf16.mxu0 %v2866
        %3049 = vmatmul.mubr.bf16.gmra.mxu0 %v2865
        %v3050 = vpop.f32.mrf.mxu0
        %v3051 = vadd.f32 0.0, %v3050
        %v3052 = vpop.f32.mrf.mxu0
        %v3053 = vpop.f32.mrf.mxu0
        %v3054 = vadd.f32 0.0, %v3053
        %v3055 = vpop.f32.mrf.mxu0
        %3056 = vmatprep.mubr.bf16.mxu0 %v2868
        %3057 = vmatmul.mubr.bf16.gmra.mxu0 %v2867
        %v3058 = vpop.f32.mrf.mxu0
        %v3059 = vadd.f32 0.0, %v3058
        %v3060 = vpop.f32.mrf.mxu0
        %v3061 = vpop.f32.mrf.mxu0
        %v3062 = vadd.f32 0.0, %v3061
        %v3063 = vpop.f32.mrf.mxu0
        %3064 = vmatprep.mubr.bf16.mxu0 %v2870
        %3065 = vmatmul.mubr.bf16.gmra.mxu0 %v2869
        %v3066 = vpop.f32.mrf.mxu0
        %v3067 = vadd.f32 0.0, %v3066
        %v3068 = vpop.f32.mrf.mxu0
        %v3069 = vpop.f32.mrf.mxu0
        %v3070 = vadd.f32 0.0, %v3069
        %v3071 = vpop.f32.mrf.mxu0
        %3072 = vmatprep.mubr.bf16.mxu0 %v2872
        %3073 = vmatmul.mubr.bf16.gmra.mxu0 %v2871
        %v3074 = vpop.f32.mrf.mxu0
        %v3075 = vadd.f32 0.0, %v3074
        %v3076 = vpop.f32.mrf.mxu0
        %v3077 = vpop.f32.mrf.mxu0
        %v3078 = vadd.f32 0.0, %v3077
        %v3079 = vpop.f32.mrf.mxu0
        %3080 = vmatprep.mubr.bf16.mxu0 %v2874
        %3081 = vmatmul.mubr.bf16.gmra.mxu0 %v2873
        %v3082 = vpop.f32.mrf.mxu0
        %v3083 = vadd.f32 0.0, %v3082
        %v3084 = vpop.f32.mrf.mxu0
        %v3085 = vpop.f32.mrf.mxu0
        %v3086 = vadd.f32 0.0, %v3085
        %v3087 = vpop.f32.mrf.mxu0
        %3088 = vmatprep.mubr.bf16.mxu0 %v2876
        %3089 = vmatmul.mubr.bf16.gmra.mxu0 %v2875
        %v3090 = vpop.f32.mrf.mxu0
        %v3091 = vadd.f32 0.0, %v3090
        %v3092 = vpop.f32.mrf.mxu0
        %v3093 = vpop.f32.mrf.mxu0
        %v3094 = vadd.f32 0.0, %v3093
        %v3095 = vpop.f32.mrf.mxu0
        %3096 = vmatprep.mubr.bf16.mxu0 %v2878
        %3097 = vmatmul.mubr.bf16.gmra.mxu0 %v2877
        %v3098 = vpop.f32.mrf.mxu0
        %v3099 = vadd.f32 0.0, %v3098
        %v3100 = vpop.f32.mrf.mxu0
        %v3101 = vpop.f32.mrf.mxu0
        %v3102 = vadd.f32 0.0, %v3101
        %v3103 = vpop.f32.mrf.mxu0
        %3104 = vdwg.mxu0
        %v3137 = vunpack.c.l.b16 %v2799
        %v3138 = vunpack.c.l.b16 %v2800
        %v3139 = vunpack.c.l.b16 %v2801
        %v3140 = vunpack.c.l.b16 %v2802
        %v3141 = vunpack.c.l.b16 %v2803
        %v3142 = vunpack.c.l.b16 %v2804
        %v3143 = vunpack.c.l.b16 %v2805
        %v3144 = vunpack.c.l.b16 %v2806
        %v3145 = vunpack.c.l.b16 %v2807
        %v3146 = vunpack.c.l.b16 %v2808
        %v3147 = vunpack.c.l.b16 %v2809
        %v3148 = vunpack.c.l.b16 %v2810
        %v3149 = vunpack.c.l.b16 %v2811
        %v3150 = vunpack.c.l.b16 %v2812
        %v3151 = vunpack.c.l.b16 %v2813
        %v3152 = vunpack.c.l.b16 %v2814
        %v3153 = vunpack.c.l.b16 %v2815
        %v3154 = vunpack.c.l.b16 %v2816
        %v3155 = vunpack.c.l.b16 %v2817
        %v3156 = vunpack.c.l.b16 %v2818
        %v3157 = vunpack.c.l.b16 %v2819
        %v3158 = vunpack.c.l.b16 %v2820
        %v3159 = vunpack.c.l.b16 %v2821
        %v3160 = vunpack.c.l.b16 %v2822
        %v3161 = vunpack.c.l.b16 %v2823
        %v3162 = vunpack.c.l.b16 %v2824
        %v3163 = vunpack.c.l.b16 %v2825
        %v3164 = vunpack.c.l.b16 %v2826
        %v3165 = vunpack.c.l.b16 %v2827
        %v3166 = vunpack.c.l.b16 %v2828
        %v3167 = vunpack.c.l.b16 %v2829
        %v3168 = vunpack.c.l.b16 %v2830
        %v3169 = vpack.c.b16 %v3138, %v3137
        %v3170 = vpack.c.b16 %v3140, %v3139
        %v3171 = vpack.c.b16 %v3142, %v3141
        %v3172 = vpack.c.b16 %v3144, %v3143
        %v3173 = vpack.c.b16 %v3146, %v3145
        %v3174 = vpack.c.b16 %v3148, %v3147
        %v3175 = vpack.c.b16 %v3150, %v3149
        %v3176 = vpack.c.b16 %v3152, %v3151
        %v3177 = vpack.c.b16 %v3154, %v3153
        %v3178 = vpack.c.b16 %v3156, %v3155
        %v3179 = vpack.c.b16 %v3158, %v3157
        %v3180 = vpack.c.b16 %v3160, %v3159
        %v3181 = vpack.c.b16 %v3162, %v3161
        %v3182 = vpack.c.b16 %v3164, %v3163
        %v3183 = vpack.c.b16 %v3166, %v3165
        %v3184 = vpack.c.b16 %v3168, %v3167
        %3201 = vmatprep.subr.bf16.mxu0 0
        %3202 = vmatpush1.bf16.msra.mxu0 %v3176
        %3203 = vmatprep.subr.bf16.mxu0 0
        %3204 = vmatpush1.bf16.msra.mxu0 %v3175
        %3205 = vmatprep.subr.bf16.mxu0 0
        %3206 = vmatpush1.bf16.msra.mxu0 %v3174
        %3207 = vmatprep.subr.bf16.mxu0 0
        %3208 = vmatpush1.bf16.msra.mxu0 %v3173
        %3209 = vmatprep.subr.bf16.mxu0 0
        %3210 = vmatpush1.bf16.msra.mxu0 %v3172
        %3211 = vmatprep.subr.bf16.mxu0 0
        %3212 = vmatpush1.bf16.msra.mxu0 %v3171
        %3213 = vmatprep.subr.bf16.mxu0 0
        %3214 = vmatpush1.bf16.msra.mxu0 %v3170
        %3215 = vmatprep.subr.bf16.mxu0 0
        %3216 = vmatpush1.bf16.msra.mxu0 %v3169
        %3217 = vmatprep.subr.bf16.mxu0 0
        %3218 = vmatpush2.bf16.msra.mxu0 %v3184
        %3219 = vmatprep.subr.bf16.mxu0 0
        %3220 = vmatpush2.bf16.msra.mxu0 %v3183
        %3221 = vmatprep.subr.bf16.mxu0 0
        %3222 = vmatpush2.bf16.msra.mxu0 %v3182
        %3223 = vmatprep.subr.bf16.mxu0 0
        %3224 = vmatpush2.bf16.msra.mxu0 %v3181
        %3225 = vmatprep.subr.bf16.mxu0 0
        %3226 = vmatpush2.bf16.msra.mxu0 %v3180
        %3227 = vmatprep.subr.bf16.mxu0 0
        %3228 = vmatpush2.bf16.msra.mxu0 %v3179
        %3229 = vmatprep.subr.bf16.mxu0 0
        %3230 = vmatpush2.bf16.msra.mxu0 %v3178
        %3231 = vmatprep.subr.bf16.mxu0 0
        %3232 = vmatpush2.bf16.msra.mxu0 %v3177
        %3233 = vmatprep.mubr.bf16.mxu0 %v2784
        %3234 = vmatmul.mubr.bf16.gmra.mxu0 %v2783
        %v3235 = vpop.f32.mrf.mxu0
        %v3236 = vadd.f32 %v3043, %v3235
        %v3237 = vpop.f32.mrf.mxu0
        %v3238 = vpop.f32.mrf.mxu0
        %v3239 = vadd.f32 %v3046, %v3238
        %v3240 = vpop.f32.mrf.mxu0
        %3241 = vmatprep.mubr.bf16.mxu0 %v2786
        %3242 = vmatmul.mubr.bf16.gmra.mxu0 %v2785
        %v3243 = vpop.f32.mrf.mxu0
        %v3244 = vadd.f32 %v3051, %v3243
        %v3245 = vpop.f32.mrf.mxu0
        %v3246 = vpop.f32.mrf.mxu0
        %v3247 = vadd.f32 %v3054, %v3246
        %v3248 = vpop.f32.mrf.mxu0
        %3249 = vmatprep.mubr.bf16.mxu0 %v2788
        %3250 = vmatmul.mubr.bf16.gmra.mxu0 %v2787
        %v3251 = vpop.f32.mrf.mxu0
        %v3252 = vadd.f32 %v3059, %v3251
        %v3253 = vpop.f32.mrf.mxu0
        %v3254 = vpop.f32.mrf.mxu0
        %v3255 = vadd.f32 %v3062, %v3254
        %v3256 = vpop.f32.mrf.mxu0
        %3257 = vmatprep.mubr.bf16.mxu0 %v2790
        %3258 = vmatmul.mubr.bf16.gmra.mxu0 %v2789
        %v3259 = vpop.f32.mrf.mxu0
        %v3260 = vadd.f32 %v3067, %v3259
        %v3261 = vpop.f32.mrf.mxu0
        %v3262 = vpop.f32.mrf.mxu0
        %v3263 = vadd.f32 %v3070, %v3262
        %v3264 = vpop.f32.mrf.mxu0
        %3265 = vmatprep.mubr.bf16.mxu0 %v2792
        %3266 = vmatmul.mubr.bf16.gmra.mxu0 %v2791
        %v3267 = vpop.f32.mrf.mxu0
        %v3268 = vadd.f32 %v3075, %v3267
        %v3269 = vpop.f32.mrf.mxu0
        %v3270 = vpop.f32.mrf.mxu0
        %v3271 = vadd.f32 %v3078, %v3270
        %v3272 = vpop.f32.mrf.mxu0
        %3273 = vmatprep.mubr.bf16.mxu0 %v2794
        %3274 = vmatmul.mubr.bf16.gmra.mxu0 %v2793
        %v3275 = vpop.f32.mrf.mxu0
        %v3276 = vadd.f32 %v3083, %v3275
        %v3277 = vpop.f32.mrf.mxu0
        %v3278 = vpop.f32.mrf.mxu0
        %v3279 = vadd.f32 %v3086, %v3278
        %v3280 = vpop.f32.mrf.mxu0
        %3281 = vmatprep.mubr.bf16.mxu0 %v2796
        %3282 = vmatmul.mubr.bf16.gmra.mxu0 %v2795
        %v3283 = vpop.f32.mrf.mxu0
        %v3284 = vadd.f32 %v3091, %v3283
        %v3285 = vpop.f32.mrf.mxu0
        %v3286 = vpop.f32.mrf.mxu0
        %v3287 = vadd.f32 %v3094, %v3286
        %v3288 = vpop.f32.mrf.mxu0
        %3289 = vmatprep.mubr.bf16.mxu0 %v2798
        %3290 = vmatmul.mubr.bf16.gmra.mxu0 %v2797
        %v3291 = vpop.f32.mrf.mxu0
        %v3292 = vadd.f32 %v3099, %v3291
        %v3293 = vpop.f32.mrf.mxu0
        %v3294 = vpop.f32.mrf.mxu0
        %v3295 = vadd.f32 %v3102, %v3294
        %v3296 = vpop.f32.mrf.mxu0
        %3297 = vdwg.mxu0
        %v3298 = vld [vmem:[%s582] sm:$0xff]
        %v3299 = vld [vmem:[%s582 + $0x8] sm:$0xff]
        %v3300 = vld [vmem:[%s582 + $0x10] sm:$0xff]
        %v3301 = vld [vmem:[%s582 + $0x18] sm:$0xff]
        %v3302 = vld [vmem:[%s582 + $0x20] sm:$0xff]
        %v3303 = vld [vmem:[%s582 + $0x28] sm:$0xff]
        %v3304 = vld [vmem:[%s582 + $0x30] sm:$0xff]
        %v3305 = vld [vmem:[%s582 + $0x38] sm:$0xff]
        %v3306 = vld [vmem:[%s582 + $0x40] sm:$0xff]
        %v3307 = vld [vmem:[%s582 + $0x48] sm:$0xff]
        %v3308 = vld [vmem:[%s582 + $0x50] sm:$0xff]
        %v3309 = vld [vmem:[%s582 + $0x58] sm:$0xff]
        %v3310 = vld [vmem:[%s582 + $0x60] sm:$0xff]
        %v3311 = vld [vmem:[%s582 + $0x68] sm:$0xff]
        %v3312 = vld [vmem:[%s582 + $0x70] sm:$0xff]
        %v3313 = vld [vmem:[%s582 + $0x78] sm:$0xff]
        %v3314 = vld [vmem:[%s582 + $0x80] sm:$0xff]
        %v3315 = vld [vmem:[%s582 + $0x88] sm:$0xff]
        %v3316 = vld [vmem:[%s582 + $0x90] sm:$0xff]
        %v3317 = vld [vmem:[%s582 + $0x98] sm:$0xff]
        %v3318 = vld [vmem:[%s582 + $0xa0] sm:$0xff]
        %v3319 = vld [vmem:[%s582 + $0xa8] sm:$0xff]
        %v3320 = vld [vmem:[%s582 + $0xb0] sm:$0xff]
        %v3321 = vld [vmem:[%s582 + $0xb8] sm:$0xff]
        %v3322 = vld [vmem:[%s582 + $0xc0] sm:$0xff]
        %v3323 = vld [vmem:[%s582 + $0xc8] sm:$0xff]
        %v3324 = vld [vmem:[%s582 + $0xd0] sm:$0xff]
        %v3325 = vld [vmem:[%s582 + $0xd8] sm:$0xff]
        %v3326 = vld [vmem:[%s582 + $0xe0] sm:$0xff]
        %v3327 = vld [vmem:[%s582 + $0xe8] sm:$0xff]
        %v3328 = vld [vmem:[%s582 + $0xf0] sm:$0xff]
        %v3329 = vld [vmem:[%s582 + $0xf8] sm:$0xff]
        %v3330 = vpack.c.bf16 %v3300, %v3298
        %v3331 = vpack.c.bf16 %v3301, %v3299
        %v3332 = vpack.c.bf16 %v3304, %v3302
        %v3333 = vpack.c.bf16 %v3305, %v3303
        %v3334 = vpack.c.bf16 %v3308, %v3306
        %v3335 = vpack.c.bf16 %v3309, %v3307
        %v3336 = vpack.c.bf16 %v3312, %v3310
        %v3337 = vpack.c.bf16 %v3313, %v3311
        %v3338 = vpack.c.bf16 %v3316, %v3314
        %v3339 = vpack.c.bf16 %v3317, %v3315
        %v3340 = vpack.c.bf16 %v3320, %v3318
        %v3341 = vpack.c.bf16 %v3321, %v3319
        %v3342 = vpack.c.bf16 %v3324, %v3322
        %v3343 = vpack.c.bf16 %v3325, %v3323
        %v3344 = vpack.c.bf16 %v3328, %v3326
        %v3345 = vpack.c.bf16 %v3329, %v3327
        %s3346 = scalar_lea.vmem [#allocation13], 256
        %v3347 = vld [vmem:[%s3346] sm:$0xf]
        %v3348 = vld [vmem:[%s3346 + $0x4] sm:$0xf]
        %v3349 = vld [vmem:[%s3346 + $0x8] sm:$0xf]
        %v3350 = vld [vmem:[%s3346 + $0xc] sm:$0xf]
        %v3351 = vld [vmem:[%s3346 + $0x10] sm:$0xf]
        %v3352 = vld [vmem:[%s3346 + $0x14] sm:$0xf]
        %v3353 = vld [vmem:[%s3346 + $0x18] sm:$0xf]
        %v3354 = vld [vmem:[%s3346 + $0x1c] sm:$0xf]
        %v3355 = vld [vmem:[%s3346 + $0x20] sm:$0xf]
        %v3356 = vld [vmem:[%s3346 + $0x24] sm:$0xf]
        %v3357 = vld [vmem:[%s3346 + $0x28] sm:$0xf]
        %v3358 = vld [vmem:[%s3346 + $0x2c] sm:$0xf]
        %v3359 = vld [vmem:[%s3346 + $0x30] sm:$0xf]
        %v3360 = vld [vmem:[%s3346 + $0x34] sm:$0xf]
        %v3361 = vld [vmem:[%s3346 + $0x38] sm:$0xf]
        %v3362 = vld [vmem:[%s3346 + $0x3c] sm:$0xf]
        %v3363 = vld [vmem:[%s3346 + $0x40] sm:$0xf]
        %v3364 = vld [vmem:[%s3346 + $0x44] sm:$0xf]
        %v3365 = vld [vmem:[%s3346 + $0x48] sm:$0xf]
        %v3366 = vld [vmem:[%s3346 + $0x4c] sm:$0xf]
        %v3367 = vld [vmem:[%s3346 + $0x50] sm:$0xf]
        %v3368 = vld [vmem:[%s3346 + $0x54] sm:$0xf]
        %v3369 = vld [vmem:[%s3346 + $0x58] sm:$0xf]
        %v3370 = vld [vmem:[%s3346 + $0x5c] sm:$0xf]
        %v3371 = vld [vmem:[%s3346 + $0x60] sm:$0xf]
        %v3372 = vld [vmem:[%s3346 + $0x64] sm:$0xf]
        %v3373 = vld [vmem:[%s3346 + $0x68] sm:$0xf]
        %v3374 = vld [vmem:[%s3346 + $0x6c] sm:$0xf]
        %v3375 = vld [vmem:[%s3346 + $0x70] sm:$0xf]
        %v3376 = vld [vmem:[%s3346 + $0x74] sm:$0xf]
        %v3377 = vld [vmem:[%s3346 + $0x78] sm:$0xf]
        %v3378 = vld [vmem:[%s3346 + $0x7c] sm:$0xf]
        %v3411 = vunpack.c.l.b16 %v3347
        %v3412 = vunpack.c.l.b16 %v3348
        %v3413 = vunpack.c.l.b16 %v3349
        %v3414 = vunpack.c.l.b16 %v3350
        %v3415 = vunpack.c.l.b16 %v3351
        %v3416 = vunpack.c.l.b16 %v3352
        %v3417 = vunpack.c.l.b16 %v3353
        %v3418 = vunpack.c.l.b16 %v3354
        %v3419 = vunpack.c.l.b16 %v3355
        %v3420 = vunpack.c.l.b16 %v3356
        %v3421 = vunpack.c.l.b16 %v3357
        %v3422 = vunpack.c.l.b16 %v3358
        %v3423 = vunpack.c.l.b16 %v3359
        %v3424 = vunpack.c.l.b16 %v3360
        %v3425 = vunpack.c.l.b16 %v3361
        %v3426 = vunpack.c.l.b16 %v3362
        %v3427 = vunpack.c.l.b16 %v3363
        %v3428 = vunpack.c.l.b16 %v3364
        %v3429 = vunpack.c.l.b16 %v3365
        %v3430 = vunpack.c.l.b16 %v3366
        %v3431 = vunpack.c.l.b16 %v3367
        %v3432 = vunpack.c.l.b16 %v3368
        %v3433 = vunpack.c.l.b16 %v3369
        %v3434 = vunpack.c.l.b16 %v3370
        %v3435 = vunpack.c.l.b16 %v3371
        %v3436 = vunpack.c.l.b16 %v3372
        %v3437 = vunpack.c.l.b16 %v3373
        %v3438 = vunpack.c.l.b16 %v3374
        %v3439 = vunpack.c.l.b16 %v3375
        %v3440 = vunpack.c.l.b16 %v3376
        %v3441 = vunpack.c.l.b16 %v3377
        %v3442 = vunpack.c.l.b16 %v3378
        %v3443 = vpack.c.b16 %v3412, %v3411
        %v3444 = vpack.c.b16 %v3414, %v3413
        %v3445 = vpack.c.b16 %v3416, %v3415
        %v3446 = vpack.c.b16 %v3418, %v3417
        %v3447 = vpack.c.b16 %v3420, %v3419
        %v3448 = vpack.c.b16 %v3422, %v3421
        %v3449 = vpack.c.b16 %v3424, %v3423
        %v3450 = vpack.c.b16 %v3426, %v3425
        %v3451 = vpack.c.b16 %v3428, %v3427
        %v3452 = vpack.c.b16 %v3430, %v3429
        %v3453 = vpack.c.b16 %v3432, %v3431
        %v3454 = vpack.c.b16 %v3434, %v3433
        %v3455 = vpack.c.b16 %v3436, %v3435
        %v3456 = vpack.c.b16 %v3438, %v3437
        %v3457 = vpack.c.b16 %v3440, %v3439
        %v3458 = vpack.c.b16 %v3442, %v3441
        %3475 = vmatprep.subr.bf16.mxu0 0
        %3476 = vmatpush1.bf16.msra.mxu0 %v3450
        %3477 = vmatprep.subr.bf16.mxu0 0
        %3478 = vmatpush1.bf16.msra.mxu0 %v3449
        %3479 = vmatprep.subr.bf16.mxu0 0
        %3480 = vmatpush1.bf16.msra.mxu0 %v3448
        %3481 = vmatprep.subr.bf16.mxu0 0
        %3482 = vmatpush1.bf16.msra.mxu0 %v3447
        %3483 = vmatprep.subr.bf16.mxu0 0
        %3484 = vmatpush1.bf16.msra.mxu0 %v3446
        %3485 = vmatprep.subr.bf16.mxu0 0
        %3486 = vmatpush1.bf16.msra.mxu0 %v3445
        %3487 = vmatprep.subr.bf16.mxu0 0
        %3488 = vmatpush1.bf16.msra.mxu0 %v3444
        %3489 = vmatprep.subr.bf16.mxu0 0
        %3490 = vmatpush1.bf16.msra.mxu0 %v3443
        %3491 = vmatprep.subr.bf16.mxu0 0
        %3492 = vmatpush2.bf16.msra.mxu0 %v3458
        %3493 = vmatprep.subr.bf16.mxu0 0
        %3494 = vmatpush2.bf16.msra.mxu0 %v3457
        %3495 = vmatprep.subr.bf16.mxu0 0
        %3496 = vmatpush2.bf16.msra.mxu0 %v3456
        %3497 = vmatprep.subr.bf16.mxu0 0
        %3498 = vmatpush2.bf16.msra.mxu0 %v3455
        %3499 = vmatprep.subr.bf16.mxu0 0
        %3500 = vmatpush2.bf16.msra.mxu0 %v3454
        %3501 = vmatprep.subr.bf16.mxu0 0
        %3502 = vmatpush2.bf16.msra.mxu0 %v3453
        %3503 = vmatprep.subr.bf16.mxu0 0
        %3504 = vmatpush2.bf16.msra.mxu0 %v3452
        %3505 = vmatprep.subr.bf16.mxu0 0
        %3506 = vmatpush2.bf16.msra.mxu0 %v3451
        %3507 = vmatprep.mubr.bf16.mxu0 %v3331
        %3508 = vmatmul.mubr.bf16.gmra.mxu0 %v3330
        %v3509 = vpop.f32.mrf.mxu0
        %v3510 = vadd.f32 0.0, %v3509
        %v3511 = vpop.f32.mrf.mxu0
        %v3512 = vpop.f32.mrf.mxu0
        %v3513 = vadd.f32 0.0, %v3512
        %v3514 = vpop.f32.mrf.mxu0
        %3515 = vmatprep.mubr.bf16.mxu0 %v3333
        %3516 = vmatmul.mubr.bf16.gmra.mxu0 %v3332
        %v3517 = vpop.f32.mrf.mxu0
        %v3518 = vadd.f32 0.0, %v3517
        %v3519 = vpop.f32.mrf.mxu0
        %v3520 = vpop.f32.mrf.mxu0
        %v3521 = vadd.f32 0.0, %v3520
        %v3522 = vpop.f32.mrf.mxu0
        %3523 = vmatprep.mubr.bf16.mxu0 %v3335
        %3524 = vmatmul.mubr.bf16.gmra.mxu0 %v3334
        %v3525 = vpop.f32.mrf.mxu0
        %v3526 = vadd.f32 0.0, %v3525
        %v3527 = vpop.f32.mrf.mxu0
        %v3528 = vpop.f32.mrf.mxu0
        %v3529 = vadd.f32 0.0, %v3528
        %v3530 = vpop.f32.mrf.mxu0
        %3531 = vmatprep.mubr.bf16.mxu0 %v3337
        %3532 = vmatmul.mubr.bf16.gmra.mxu0 %v3336
        %v3533 = vpop.f32.mrf.mxu0
        %v3534 = vadd.f32 0.0, %v3533
        %v3535 = vpop.f32.mrf.mxu0
        %v3536 = vpop.f32.mrf.mxu0
        %v3537 = vadd.f32 0.0, %v3536
        %v3538 = vpop.f32.mrf.mxu0
        %3539 = vmatprep.mubr.bf16.mxu0 %v3339
        %3540 = vmatmul.mubr.bf16.gmra.mxu0 %v3338
        %v3541 = vpop.f32.mrf.mxu0
        %v3542 = vadd.f32 0.0, %v3541
        %v3543 = vpop.f32.mrf.mxu0
        %v3544 = vpop.f32.mrf.mxu0
        %v3545 = vadd.f32 0.0, %v3544
        %v3546 = vpop.f32.mrf.mxu0
        %3547 = vmatprep.mubr.bf16.mxu0 %v3341
        %3548 = vmatmul.mubr.bf16.gmra.mxu0 %v3340
        %v3549 = vpop.f32.mrf.mxu0
        %v3550 = vadd.f32 0.0, %v3549
        %v3551 = vpop.f32.mrf.mxu0
        %v3552 = vpop.f32.mrf.mxu0
        %v3553 = vadd.f32 0.0, %v3552
        %v3554 = vpop.f32.mrf.mxu0
        %3555 = vmatprep.mubr.bf16.mxu0 %v3343
        %3556 = vmatmul.mubr.bf16.gmra.mxu0 %v3342
        %v3557 = vpop.f32.mrf.mxu0
        %v3558 = vadd.f32 0.0, %v3557
        %v3559 = vpop.f32.mrf.mxu0
        %v3560 = vpop.f32.mrf.mxu0
        %v3561 = vadd.f32 0.0, %v3560
        %v3562 = vpop.f32.mrf.mxu0
        %3563 = vmatprep.mubr.bf16.mxu0 %v3345
        %3564 = vmatmul.mubr.bf16.gmra.mxu0 %v3344
        %v3565 = vpop.f32.mrf.mxu0
        %v3566 = vadd.f32 0.0, %v3565
        %v3567 = vpop.f32.mrf.mxu0
        %v3568 = vpop.f32.mrf.mxu0
        %v3569 = vadd.f32 0.0, %v3568
        %v3570 = vpop.f32.mrf.mxu0
        %3571 = vdwg.mxu0
        %v3572 = vadd.f32 %v3236, %v3510
        %v3573 = vadd.f32 %v3239, %v3513
        %v3574 = vadd.f32 %v3244, %v3518
        %v3575 = vadd.f32 %v3247, %v3521
        %v3576 = vadd.f32 %v3252, %v3526
        %v3577 = vadd.f32 %v3255, %v3529
        %v3578 = vadd.f32 %v3260, %v3534
        %v3579 = vadd.f32 %v3263, %v3537
        %v3580 = vadd.f32 %v3268, %v3542
        %v3581 = vadd.f32 %v3271, %v3545
        %v3582 = vadd.f32 %v3276, %v3550
        %v3583 = vadd.f32 %v3279, %v3553
        %v3584 = vadd.f32 %v3284, %v3558
        %v3585 = vadd.f32 %v3287, %v3561
        %v3586 = vadd.f32 %v3292, %v3566
        %v3587 = vadd.f32 %v3295, %v3569
        %v3588 = vld [vmem:[%s1709] sm:$0xff]
        %v3589 = vld [vmem:[%s1709 + $0x8] sm:$0xff]
        %v3590 = vld [vmem:[%s1709 + $0x10] sm:$0xff]
        %v3591 = vld [vmem:[%s1709 + $0x18] sm:$0xff]
        %v3592 = vld [vmem:[%s1709 + $0x20] sm:$0xff]
        %v3593 = vld [vmem:[%s1709 + $0x28] sm:$0xff]
        %v3594 = vld [vmem:[%s1709 + $0x30] sm:$0xff]
        %v3595 = vld [vmem:[%s1709 + $0x38] sm:$0xff]
        %v3596 = vld [vmem:[%s1709 + $0x40] sm:$0xff]
        %v3597 = vld [vmem:[%s1709 + $0x48] sm:$0xff]
        %v3598 = vld [vmem:[%s1709 + $0x50] sm:$0xff]
        %v3599 = vld [vmem:[%s1709 + $0x58] sm:$0xff]
        %v3600 = vld [vmem:[%s1709 + $0x60] sm:$0xff]
        %v3601 = vld [vmem:[%s1709 + $0x68] sm:$0xff]
        %v3602 = vld [vmem:[%s1709 + $0x70] sm:$0xff]
        %v3603 = vld [vmem:[%s1709 + $0x78] sm:$0xff]
        %v3604 = vld [vmem:[%s1709 + $0x80] sm:$0xff]
        %v3605 = vld [vmem:[%s1709 + $0x88] sm:$0xff]
        %v3606 = vld [vmem:[%s1709 + $0x90] sm:$0xff]
        %v3607 = vld [vmem:[%s1709 + $0x98] sm:$0xff]
        %v3608 = vld [vmem:[%s1709 + $0xa0] sm:$0xff]
        %v3609 = vld [vmem:[%s1709 + $0xa8] sm:$0xff]
        %v3610 = vld [vmem:[%s1709 + $0xb0] sm:$0xff]
        %v3611 = vld [vmem:[%s1709 + $0xb8] sm:$0xff]
        %v3612 = vld [vmem:[%s1709 + $0xc0] sm:$0xff]
        %v3613 = vld [vmem:[%s1709 + $0xc8] sm:$0xff]
        %v3614 = vld [vmem:[%s1709 + $0xd0] sm:$0xff]
        %v3615 = vld [vmem:[%s1709 + $0xd8] sm:$0xff]
        %v3616 = vld [vmem:[%s1709 + $0xe0] sm:$0xff]
        %v3617 = vld [vmem:[%s1709 + $0xe8] sm:$0xff]
        %v3618 = vld [vmem:[%s1709 + $0xf0] sm:$0xff]
        %v3619 = vld [vmem:[%s1709 + $0xf8] sm:$0xff]
        %v3620 = vpack.c.bf16 %v3590, %v3588
        %v3621 = vpack.c.bf16 %v3591, %v3589
        %v3622 = vpack.c.bf16 %v3594, %v3592
        %v3623 = vpack.c.bf16 %v3595, %v3593
        %v3624 = vpack.c.bf16 %v3598, %v3596
        %v3625 = vpack.c.bf16 %v3599, %v3597
        %v3626 = vpack.c.bf16 %v3602, %v3600
        %v3627 = vpack.c.bf16 %v3603, %v3601
        %v3628 = vpack.c.bf16 %v3606, %v3604
        %v3629 = vpack.c.bf16 %v3607, %v3605
        %v3630 = vpack.c.bf16 %v3610, %v3608
        %v3631 = vpack.c.bf16 %v3611, %v3609
        %v3632 = vpack.c.bf16 %v3614, %v3612
        %v3633 = vpack.c.bf16 %v3615, %v3613
        %v3634 = vpack.c.bf16 %v3618, %v3616
        %v3635 = vpack.c.bf16 %v3619, %v3617
        %s3636 = scalar_lea.vmem [#allocation13], 384
        %v3637 = vld [vmem:[%s3636] sm:$0xf]
        %v3638 = vld [vmem:[%s3636 + $0x4] sm:$0xf]
        %v3639 = vld [vmem:[%s3636 + $0x8] sm:$0xf]
        %v3640 = vld [vmem:[%s3636 + $0xc] sm:$0xf]
        %v3641 = vld [vmem:[%s3636 + $0x10] sm:$0xf]
        %v3642 = vld [vmem:[%s3636 + $0x14] sm:$0xf]
        %v3643 = vld [vmem:[%s3636 + $0x18] sm:$0xf]
        %v3644 = vld [vmem:[%s3636 + $0x1c] sm:$0xf]
        %v3645 = vld [vmem:[%s3636 + $0x20] sm:$0xf]
        %v3646 = vld [vmem:[%s3636 + $0x24] sm:$0xf]
        %v3647 = vld [vmem:[%s3636 + $0x28] sm:$0xf]
        %v3648 = vld [vmem:[%s3636 + $0x2c] sm:$0xf]
        %v3649 = vld [vmem:[%s3636 + $0x30] sm:$0xf]
        %v3650 = vld [vmem:[%s3636 + $0x34] sm:$0xf]
        %v3651 = vld [vmem:[%s3636 + $0x38] sm:$0xf]
        %v3652 = vld [vmem:[%s3636 + $0x3c] sm:$0xf]
        %v3653 = vld [vmem:[%s3636 + $0x40] sm:$0xf]
        %v3654 = vld [vmem:[%s3636 + $0x44] sm:$0xf]
        %v3655 = vld [vmem:[%s3636 + $0x48] sm:$0xf]
        %v3656 = vld [vmem:[%s3636 + $0x4c] sm:$0xf]
        %v3657 = vld [vmem:[%s3636 + $0x50] sm:$0xf]
        %v3658 = vld [vmem:[%s3636 + $0x54] sm:$0xf]
        %v3659 = vld [vmem:[%s3636 + $0x58] sm:$0xf]
        %v3660 = vld [vmem:[%s3636 + $0x5c] sm:$0xf]
        %v3661 = vld [vmem:[%s3636 + $0x60] sm:$0xf]
        %v3662 = vld [vmem:[%s3636 + $0x64] sm:$0xf]
        %v3663 = vld [vmem:[%s3636 + $0x68] sm:$0xf]
        %v3664 = vld [vmem:[%s3636 + $0x6c] sm:$0xf]
        %v3665 = vld [vmem:[%s3636 + $0x70] sm:$0xf]
        %v3666 = vld [vmem:[%s3636 + $0x74] sm:$0xf]
        %v3667 = vld [vmem:[%s3636 + $0x78] sm:$0xf]
        %v3668 = vld [vmem:[%s3636 + $0x7c] sm:$0xf]
        %v3701 = vunpack.c.l.b16 %v3637
        %v3702 = vunpack.c.l.b16 %v3638
        %v3703 = vunpack.c.l.b16 %v3639
        %v3704 = vunpack.c.l.b16 %v3640
        %v3705 = vunpack.c.l.b16 %v3641
        %v3706 = vunpack.c.l.b16 %v3642
        %v3707 = vunpack.c.l.b16 %v3643
        %v3708 = vunpack.c.l.b16 %v3644
        %v3709 = vunpack.c.l.b16 %v3645
        %v3710 = vunpack.c.l.b16 %v3646
        %v3711 = vunpack.c.l.b16 %v3647
        %v3712 = vunpack.c.l.b16 %v3648
        %v3713 = vunpack.c.l.b16 %v3649
        %v3714 = vunpack.c.l.b16 %v3650
        %v3715 = vunpack.c.l.b16 %v3651
        %v3716 = vunpack.c.l.b16 %v3652
        %v3717 = vunpack.c.l.b16 %v3653
        %v3718 = vunpack.c.l.b16 %v3654
        %v3719 = vunpack.c.l.b16 %v3655
        %v3720 = vunpack.c.l.b16 %v3656
        %v3721 = vunpack.c.l.b16 %v3657
        %v3722 = vunpack.c.l.b16 %v3658
        %v3723 = vunpack.c.l.b16 %v3659
        %v3724 = vunpack.c.l.b16 %v3660
        %v3725 = vunpack.c.l.b16 %v3661
        %v3726 = vunpack.c.l.b16 %v3662
        %v3727 = vunpack.c.l.b16 %v3663
        %v3728 = vunpack.c.l.b16 %v3664
        %v3729 = vunpack.c.l.b16 %v3665
        %v3730 = vunpack.c.l.b16 %v3666
        %v3731 = vunpack.c.l.b16 %v3667
        %v3732 = vunpack.c.l.b16 %v3668
        %v3733 = vpack.c.b16 %v3702, %v3701
        %v3734 = vpack.c.b16 %v3704, %v3703
        %v3735 = vpack.c.b16 %v3706, %v3705
        %v3736 = vpack.c.b16 %v3708, %v3707
        %v3737 = vpack.c.b16 %v3710, %v3709
        %v3738 = vpack.c.b16 %v3712, %v3711
        %v3739 = vpack.c.b16 %v3714, %v3713
        %v3740 = vpack.c.b16 %v3716, %v3715
        %v3741 = vpack.c.b16 %v3718, %v3717
        %v3742 = vpack.c.b16 %v3720, %v3719
        %v3743 = vpack.c.b16 %v3722, %v3721
        %v3744 = vpack.c.b16 %v3724, %v3723
        %v3745 = vpack.c.b16 %v3726, %v3725
        %v3746 = vpack.c.b16 %v3728, %v3727
        %v3747 = vpack.c.b16 %v3730, %v3729
        %v3748 = vpack.c.b16 %v3732, %v3731
        %3765 = vmatprep.subr.bf16.mxu0 0
        %3766 = vmatpush1.bf16.msra.mxu0 %v3740
        %3767 = vmatprep.subr.bf16.mxu0 0
        %3768 = vmatpush1.bf16.msra.mxu0 %v3739
        %3769 = vmatprep.subr.bf16.mxu0 0
        %3770 = vmatpush1.bf16.msra.mxu0 %v3738
        %3771 = vmatprep.subr.bf16.mxu0 0
        %3772 = vmatpush1.bf16.msra.mxu0 %v3737
        %3773 = vmatprep.subr.bf16.mxu0 0
        %3774 = vmatpush1.bf16.msra.mxu0 %v3736
        %3775 = vmatprep.subr.bf16.mxu0 0
        %3776 = vmatpush1.bf16.msra.mxu0 %v3735
        %3777 = vmatprep.subr.bf16.mxu0 0
        %3778 = vmatpush1.bf16.msra.mxu0 %v3734
        %3779 = vmatprep.subr.bf16.mxu0 0
        %3780 = vmatpush1.bf16.msra.mxu0 %v3733
        %3781 = vmatprep.subr.bf16.mxu0 0
        %3782 = vmatpush2.bf16.msra.mxu0 %v3748
        %3783 = vmatprep.subr.bf16.mxu0 0
        %3784 = vmatpush2.bf16.msra.mxu0 %v3747
        %3785 = vmatprep.subr.bf16.mxu0 0
        %3786 = vmatpush2.bf16.msra.mxu0 %v3746
        %3787 = vmatprep.subr.bf16.mxu0 0
        %3788 = vmatpush2.bf16.msra.mxu0 %v3745
        %3789 = vmatprep.subr.bf16.mxu0 0
        %3790 = vmatpush2.bf16.msra.mxu0 %v3744
        %3791 = vmatprep.subr.bf16.mxu0 0
        %3792 = vmatpush2.bf16.msra.mxu0 %v3743
        %3793 = vmatprep.subr.bf16.mxu0 0
        %3794 = vmatpush2.bf16.msra.mxu0 %v3742
        %3795 = vmatprep.subr.bf16.mxu0 0
        %3796 = vmatpush2.bf16.msra.mxu0 %v3741
        %3797 = vmatprep.mubr.bf16.mxu0 %v3621
        %3798 = vmatmul.mubr.bf16.gmra.mxu0 %v3620
        %v3799 = vpop.f32.mrf.mxu0
        %v3800 = vadd.f32 0.0, %v3799
        %v3801 = vpop.f32.mrf.mxu0
        %v3802 = vpop.f32.mrf.mxu0
        %v3803 = vadd.f32 0.0, %v3802
        %v3804 = vpop.f32.mrf.mxu0
        %3805 = vmatprep.mubr.bf16.mxu0 %v3623
        %3806 = vmatmul.mubr.bf16.gmra.mxu0 %v3622
        %v3807 = vpop.f32.mrf.mxu0
        %v3808 = vadd.f32 0.0, %v3807
        %v3809 = vpop.f32.mrf.mxu0
        %v3810 = vpop.f32.mrf.mxu0
        %v3811 = vadd.f32 0.0, %v3810
        %v3812 = vpop.f32.mrf.mxu0
        %3813 = vmatprep.mubr.bf16.mxu0 %v3625
        %3814 = vmatmul.mubr.bf16.gmra.mxu0 %v3624
        %v3815 = vpop.f32.mrf.mxu0
        %v3816 = vadd.f32 0.0, %v3815
        %v3817 = vpop.f32.mrf.mxu0
        %v3818 = vpop.f32.mrf.mxu0
        %v3819 = vadd.f32 0.0, %v3818
        %v3820 = vpop.f32.mrf.mxu0
        %3821 = vmatprep.mubr.bf16.mxu0 %v3627
        %3822 = vmatmul.mubr.bf16.gmra.mxu0 %v3626
        %v3823 = vpop.f32.mrf.mxu0
        %v3824 = vadd.f32 0.0, %v3823
        %v3825 = vpop.f32.mrf.mxu0
        %v3826 = vpop.f32.mrf.mxu0
        %v3827 = vadd.f32 0.0, %v3826
        %v3828 = vpop.f32.mrf.mxu0
        %3829 = vmatprep.mubr.bf16.mxu0 %v3629
        %3830 = vmatmul.mubr.bf16.gmra.mxu0 %v3628
        %v3831 = vpop.f32.mrf.mxu0
        %v3832 = vadd.f32 0.0, %v3831
        %v3833 = vpop.f32.mrf.mxu0
        %v3834 = vpop.f32.mrf.mxu0
        %v3835 = vadd.f32 0.0, %v3834
        %v3836 = vpop.f32.mrf.mxu0
        %3837 = vmatprep.mubr.bf16.mxu0 %v3631
        %3838 = vmatmul.mubr.bf16.gmra.mxu0 %v3630
        %v3839 = vpop.f32.mrf.mxu0
        %v3840 = vadd.f32 0.0, %v3839
        %v3841 = vpop.f32.mrf.mxu0
        %v3842 = vpop.f32.mrf.mxu0
        %v3843 = vadd.f32 0.0, %v3842
        %v3844 = vpop.f32.mrf.mxu0
        %3845 = vmatprep.mubr.bf16.mxu0 %v3633
        %3846 = vmatmul.mubr.bf16.gmra.mxu0 %v3632
        %v3847 = vpop.f32.mrf.mxu0
        %v3848 = vadd.f32 0.0, %v3847
        %v3849 = vpop.f32.mrf.mxu0
        %v3850 = vpop.f32.mrf.mxu0
        %v3851 = vadd.f32 0.0, %v3850
        %v3852 = vpop.f32.mrf.mxu0
        %3853 = vmatprep.mubr.bf16.mxu0 %v3635
        %3854 = vmatmul.mubr.bf16.gmra.mxu0 %v3634
        %v3855 = vpop.f32.mrf.mxu0
        %v3856 = vadd.f32 0.0, %v3855
        %v3857 = vpop.f32.mrf.mxu0
        %v3858 = vpop.f32.mrf.mxu0
        %v3859 = vadd.f32 0.0, %v3858
        %v3860 = vpop.f32.mrf.mxu0
        %3861 = vdwg.mxu0
        %v3862 = vadd.f32 %v3572, %v3800
        %v3863 = vadd.f32 %v3573, %v3803
        %v3864 = vadd.f32 %v3574, %v3808
        %v3865 = vadd.f32 %v3575, %v3811
        %v3866 = vadd.f32 %v3576, %v3816
        %v3867 = vadd.f32 %v3577, %v3819
        %v3868 = vadd.f32 %v3578, %v3824
        %v3869 = vadd.f32 %v3579, %v3827
        %v3870 = vadd.f32 %v3580, %v3832
        %v3871 = vadd.f32 %v3581, %v3835
        %v3872 = vadd.f32 %v3582, %v3840
        %v3873 = vadd.f32 %v3583, %v3843
        %v3874 = vadd.f32 %v3584, %v3848
        %v3875 = vadd.f32 %v3585, %v3851
        %v3876 = vadd.f32 %v3586, %v3856
        %v3877 = vadd.f32 %v3587, %v3859
        %v3878 = vld [vmem:[%s2096] sm:$0xff]
        %v3879 = vld [vmem:[%s2096 + $0x8] sm:$0xff]
        %v3880 = vld [vmem:[%s2096 + $0x10] sm:$0xff]
        %v3881 = vld [vmem:[%s2096 + $0x18] sm:$0xff]
        %v3882 = vld [vmem:[%s2096 + $0x20] sm:$0xff]
        %v3883 = vld [vmem:[%s2096 + $0x28] sm:$0xff]
        %v3884 = vld [vmem:[%s2096 + $0x30] sm:$0xff]
        %v3885 = vld [vmem:[%s2096 + $0x38] sm:$0xff]
        %v3886 = vld [vmem:[%s2096 + $0x40] sm:$0xff]
        %v3887 = vld [vmem:[%s2096 + $0x48] sm:$0xff]
        %v3888 = vld [vmem:[%s2096 + $0x50] sm:$0xff]
        %v3889 = vld [vmem:[%s2096 + $0x58] sm:$0xff]
        %v3890 = vld [vmem:[%s2096 + $0x60] sm:$0xff]
        %v3891 = vld [vmem:[%s2096 + $0x68] sm:$0xff]
        %v3892 = vld [vmem:[%s2096 + $0x70] sm:$0xff]
        %v3893 = vld [vmem:[%s2096 + $0x78] sm:$0xff]
        %v3894 = vld [vmem:[%s2096 + $0x80] sm:$0xff]
        %v3895 = vld [vmem:[%s2096 + $0x88] sm:$0xff]
        %v3896 = vld [vmem:[%s2096 + $0x90] sm:$0xff]
        %v3897 = vld [vmem:[%s2096 + $0x98] sm:$0xff]
        %v3898 = vld [vmem:[%s2096 + $0xa0] sm:$0xff]
        %v3899 = vld [vmem:[%s2096 + $0xa8] sm:$0xff]
        %v3900 = vld [vmem:[%s2096 + $0xb0] sm:$0xff]
        %v3901 = vld [vmem:[%s2096 + $0xb8] sm:$0xff]
        %v3902 = vld [vmem:[%s2096 + $0xc0] sm:$0xff]
        %v3903 = vld [vmem:[%s2096 + $0xc8] sm:$0xff]
        %v3904 = vld [vmem:[%s2096 + $0xd0] sm:$0xff]
        %v3905 = vld [vmem:[%s2096 + $0xd8] sm:$0xff]
        %v3906 = vld [vmem:[%s2096 + $0xe0] sm:$0xff]
        %v3907 = vld [vmem:[%s2096 + $0xe8] sm:$0xff]
        %v3908 = vld [vmem:[%s2096 + $0xf0] sm:$0xff]
        %v3909 = vld [vmem:[%s2096 + $0xf8] sm:$0xff]
        %v3910 = vpack.c.bf16 %v3880, %v3878
        %v3911 = vpack.c.bf16 %v3881, %v3879
        %v3912 = vpack.c.bf16 %v3884, %v3882
        %v3913 = vpack.c.bf16 %v3885, %v3883
        %v3914 = vpack.c.bf16 %v3888, %v3886
        %v3915 = vpack.c.bf16 %v3889, %v3887
        %v3916 = vpack.c.bf16 %v3892, %v3890
        %v3917 = vpack.c.bf16 %v3893, %v3891
        %v3918 = vpack.c.bf16 %v3896, %v3894
        %v3919 = vpack.c.bf16 %v3897, %v3895
        %v3920 = vpack.c.bf16 %v3900, %v3898
        %v3921 = vpack.c.bf16 %v3901, %v3899
        %v3922 = vpack.c.bf16 %v3904, %v3902
        %v3923 = vpack.c.bf16 %v3905, %v3903
        %v3924 = vpack.c.bf16 %v3908, %v3906
        %v3925 = vpack.c.bf16 %v3909, %v3907
        %s3926 = scalar_lea.vmem [#allocation13], 512
        %v3927 = vld [vmem:[%s3926] sm:$0xf]
        %v3928 = vld [vmem:[%s3926 + $0x4] sm:$0xf]
        %v3929 = vld [vmem:[%s3926 + $0x8] sm:$0xf]
        %v3930 = vld [vmem:[%s3926 + $0xc] sm:$0xf]
        %v3931 = vld [vmem:[%s3926 + $0x10] sm:$0xf]
        %v3932 = vld [vmem:[%s3926 + $0x14] sm:$0xf]
        %v3933 = vld [vmem:[%s3926 + $0x18] sm:$0xf]
        %v3934 = vld [vmem:[%s3926 + $0x1c] sm:$0xf]
        %v3935 = vld [vmem:[%s3926 + $0x20] sm:$0xf]
        %v3936 = vld [vmem:[%s3926 + $0x24] sm:$0xf]
        %v3937 = vld [vmem:[%s3926 + $0x28] sm:$0xf]
        %v3938 = vld [vmem:[%s3926 + $0x2c] sm:$0xf]
        %v3939 = vld [vmem:[%s3926 + $0x30] sm:$0xf]
        %v3940 = vld [vmem:[%s3926 + $0x34] sm:$0xf]
        %v3941 = vld [vmem:[%s3926 + $0x38] sm:$0xf]
        %v3942 = vld [vmem:[%s3926 + $0x3c] sm:$0xf]
        %v3943 = vld [vmem:[%s3926 + $0x40] sm:$0xf]
        %v3944 = vld [vmem:[%s3926 + $0x44] sm:$0xf]
        %v3945 = vld [vmem:[%s3926 + $0x48] sm:$0xf]
        %v3946 = vld [vmem:[%s3926 + $0x4c] sm:$0xf]
        %v3947 = vld [vmem:[%s3926 + $0x50] sm:$0xf]
        %v3948 = vld [vmem:[%s3926 + $0x54] sm:$0xf]
        %v3949 = vld [vmem:[%s3926 + $0x58] sm:$0xf]
        %v3950 = vld [vmem:[%s3926 + $0x5c] sm:$0xf]
        %v3951 = vld [vmem:[%s3926 + $0x60] sm:$0xf]
        %v3952 = vld [vmem:[%s3926 + $0x64] sm:$0xf]
        %v3953 = vld [vmem:[%s3926 + $0x68] sm:$0xf]
        %v3954 = vld [vmem:[%s3926 + $0x6c] sm:$0xf]
        %v3955 = vld [vmem:[%s3926 + $0x70] sm:$0xf]
        %v3956 = vld [vmem:[%s3926 + $0x74] sm:$0xf]
        %v3957 = vld [vmem:[%s3926 + $0x78] sm:$0xf]
        %v3958 = vld [vmem:[%s3926 + $0x7c] sm:$0xf]
        %v3991 = vunpack.c.l.b16 %v3927
        %v3992 = vunpack.c.l.b16 %v3928
        %v3993 = vunpack.c.l.b16 %v3929
        %v3994 = vunpack.c.l.b16 %v3930
        %v3995 = vunpack.c.l.b16 %v3931
        %v3996 = vunpack.c.l.b16 %v3932
        %v3997 = vunpack.c.l.b16 %v3933
        %v3998 = vunpack.c.l.b16 %v3934
        %v3999 = vunpack.c.l.b16 %v3935
        %v4000 = vunpack.c.l.b16 %v3936
        %v4001 = vunpack.c.l.b16 %v3937
        %v4002 = vunpack.c.l.b16 %v3938
        %v4003 = vunpack.c.l.b16 %v3939
        %v4004 = vunpack.c.l.b16 %v3940
        %v4005 = vunpack.c.l.b16 %v3941
        %v4006 = vunpack.c.l.b16 %v3942
        %v4007 = vunpack.c.l.b16 %v3943
        %v4008 = vunpack.c.l.b16 %v3944
        %v4009 = vunpack.c.l.b16 %v3945
        %v4010 = vunpack.c.l.b16 %v3946
        %v4011 = vunpack.c.l.b16 %v3947
        %v4012 = vunpack.c.l.b16 %v3948
        %v4013 = vunpack.c.l.b16 %v3949
        %v4014 = vunpack.c.l.b16 %v3950
        %v4015 = vunpack.c.l.b16 %v3951
        %v4016 = vunpack.c.l.b16 %v3952
        %v4017 = vunpack.c.l.b16 %v3953
        %v4018 = vunpack.c.l.b16 %v3954
        %v4019 = vunpack.c.l.b16 %v3955
        %v4020 = vunpack.c.l.b16 %v3956
        %v4021 = vunpack.c.l.b16 %v3957
        %v4022 = vunpack.c.l.b16 %v3958
        %v4023 = vpack.c.b16 %v3992, %v3991
        %v4024 = vpack.c.b16 %v3994, %v3993
        %v4025 = vpack.c.b16 %v3996, %v3995
        %v4026 = vpack.c.b16 %v3998, %v3997
        %v4027 = vpack.c.b16 %v4000, %v3999
        %v4028 = vpack.c.b16 %v4002, %v4001
        %v4029 = vpack.c.b16 %v4004, %v4003
        %v4030 = vpack.c.b16 %v4006, %v4005
        %v4031 = vpack.c.b16 %v4008, %v4007
        %v4032 = vpack.c.b16 %v4010, %v4009
        %v4033 = vpack.c.b16 %v4012, %v4011
        %v4034 = vpack.c.b16 %v4014, %v4013
        %v4035 = vpack.c.b16 %v4016, %v4015
        %v4036 = vpack.c.b16 %v4018, %v4017
        %v4037 = vpack.c.b16 %v4020, %v4019
        %v4038 = vpack.c.b16 %v4022, %v4021
        %4055 = vmatprep.subr.bf16.mxu0 0
        %4056 = vmatpush1.bf16.msra.mxu0 %v4030
        %4057 = vmatprep.subr.bf16.mxu0 0
        %4058 = vmatpush1.bf16.msra.mxu0 %v4029
        %4059 = vmatprep.subr.bf16.mxu0 0
        %4060 = vmatpush1.bf16.msra.mxu0 %v4028
        %4061 = vmatprep.subr.bf16.mxu0 0
        %4062 = vmatpush1.bf16.msra.mxu0 %v4027
        %4063 = vmatprep.subr.bf16.mxu0 0
        %4064 = vmatpush1.bf16.msra.mxu0 %v4026
        %4065 = vmatprep.subr.bf16.mxu0 0
        %4066 = vmatpush1.bf16.msra.mxu0 %v4025
        %4067 = vmatprep.subr.bf16.mxu0 0
        %4068 = vmatpush1.bf16.msra.mxu0 %v4024
        %4069 = vmatprep.subr.bf16.mxu0 0
        %4070 = vmatpush1.bf16.msra.mxu0 %v4023
        %4071 = vmatprep.subr.bf16.mxu0 0
        %4072 = vmatpush2.bf16.msra.mxu0 %v4038
        %4073 = vmatprep.subr.bf16.mxu0 0
        %4074 = vmatpush2.bf16.msra.mxu0 %v4037
        %4075 = vmatprep.subr.bf16.mxu0 0
        %4076 = vmatpush2.bf16.msra.mxu0 %v4036
        %4077 = vmatprep.subr.bf16.mxu0 0
        %4078 = vmatpush2.bf16.msra.mxu0 %v4035
        %4079 = vmatprep.subr.bf16.mxu0 0
        %4080 = vmatpush2.bf16.msra.mxu0 %v4034
        %4081 = vmatprep.subr.bf16.mxu0 0
        %4082 = vmatpush2.bf16.msra.mxu0 %v4033
        %4083 = vmatprep.subr.bf16.mxu0 0
        %4084 = vmatpush2.bf16.msra.mxu0 %v4032
        %4085 = vmatprep.subr.bf16.mxu0 0
        %4086 = vmatpush2.bf16.msra.mxu0 %v4031
        %4087 = vmatprep.mubr.bf16.mxu0 %v3911
        %4088 = vmatmul.mubr.bf16.gmra.mxu0 %v3910
        %v4089 = vpop.f32.mrf.mxu0
        %v4090 = vadd.f32 0.0, %v4089
        %v4091 = vpop.f32.mrf.mxu0
        %v4092 = vpop.f32.mrf.mxu0
        %v4093 = vadd.f32 0.0, %v4092
        %v4094 = vpop.f32.mrf.mxu0
        %4095 = vmatprep.mubr.bf16.mxu0 %v3913
        %4096 = vmatmul.mubr.bf16.gmra.mxu0 %v3912
        %v4097 = vpop.f32.mrf.mxu0
        %v4098 = vadd.f32 0.0, %v4097
        %v4099 = vpop.f32.mrf.mxu0
        %v4100 = vpop.f32.mrf.mxu0
        %v4101 = vadd.f32 0.0, %v4100
        %v4102 = vpop.f32.mrf.mxu0
        %4103 = vmatprep.mubr.bf16.mxu0 %v3915
        %4104 = vmatmul.mubr.bf16.gmra.mxu0 %v3914
        %v4105 = vpop.f32.mrf.mxu0
        %v4106 = vadd.f32 0.0, %v4105
        %v4107 = vpop.f32.mrf.mxu0
        %v4108 = vpop.f32.mrf.mxu0
        %v4109 = vadd.f32 0.0, %v4108
        %v4110 = vpop.f32.mrf.mxu0
        %4111 = vmatprep.mubr.bf16.mxu0 %v3917
        %4112 = vmatmul.mubr.bf16.gmra.mxu0 %v3916
        %v4113 = vpop.f32.mrf.mxu0
        %v4114 = vadd.f32 0.0, %v4113
        %v4115 = vpop.f32.mrf.mxu0
        %v4116 = vpop.f32.mrf.mxu0
        %v4117 = vadd.f32 0.0, %v4116
        %v4118 = vpop.f32.mrf.mxu0
        %4119 = vmatprep.mubr.bf16.mxu0 %v3919
        %4120 = vmatmul.mubr.bf16.gmra.mxu0 %v3918
        %v4121 = vpop.f32.mrf.mxu0
        %v4122 = vadd.f32 0.0, %v4121
        %v4123 = vpop.f32.mrf.mxu0
        %v4124 = vpop.f32.mrf.mxu0
        %v4125 = vadd.f32 0.0, %v4124
        %v4126 = vpop.f32.mrf.mxu0
        %4127 = vmatprep.mubr.bf16.mxu0 %v3921
        %4128 = vmatmul.mubr.bf16.gmra.mxu0 %v3920
        %v4129 = vpop.f32.mrf.mxu0
        %v4130 = vadd.f32 0.0, %v4129
        %v4131 = vpop.f32.mrf.mxu0
        %v4132 = vpop.f32.mrf.mxu0
        %v4133 = vadd.f32 0.0, %v4132
        %v4134 = vpop.f32.mrf.mxu0
        %4135 = vmatprep.mubr.bf16.mxu0 %v3923
        %4136 = vmatmul.mubr.bf16.gmra.mxu0 %v3922
        %v4137 = vpop.f32.mrf.mxu0
        %v4138 = vadd.f32 0.0, %v4137
        %v4139 = vpop.f32.mrf.mxu0
        %v4140 = vpop.f32.mrf.mxu0
        %v4141 = vadd.f32 0.0, %v4140
        %v4142 = vpop.f32.mrf.mxu0
        %4143 = vmatprep.mubr.bf16.mxu0 %v3925
        %4144 = vmatmul.mubr.bf16.gmra.mxu0 %v3924
        %v4145 = vpop.f32.mrf.mxu0
        %v4146 = vadd.f32 0.0, %v4145
        %v4147 = vpop.f32.mrf.mxu0
        %v4148 = vpop.f32.mrf.mxu0
        %v4149 = vadd.f32 0.0, %v4148
        %v4150 = vpop.f32.mrf.mxu0
        %4151 = vdwg.mxu0
        %v4152 = vadd.f32 %v3862, %v4090
        %v4153 = vadd.f32 %v3863, %v4093
        %v4154 = vadd.f32 %v3864, %v4098
        %v4155 = vadd.f32 %v3865, %v4101
        %v4156 = vadd.f32 %v3866, %v4106
        %v4157 = vadd.f32 %v3867, %v4109
        %v4158 = vadd.f32 %v3868, %v4114
        %v4159 = vadd.f32 %v3869, %v4117
        %v4160 = vadd.f32 %v3870, %v4122
        %v4161 = vadd.f32 %v3871, %v4125
        %v4162 = vadd.f32 %v3872, %v4130
        %v4163 = vadd.f32 %v3873, %v4133
        %v4164 = vadd.f32 %v3874, %v4138
        %v4165 = vadd.f32 %v3875, %v4141
        %v4166 = vadd.f32 %v3876, %v4146
        %v4167 = vadd.f32 %v3877, %v4149
        %v4168 = vld [vmem:[%s6] sm:$0x1]
        %v4170 = vlaneseq
        %v4171 = vshrl.u32 %v4170, 7
        %v4172 = vsub.s32 0, %v4171
        %v4173 = vrot.slane %v4168, %v4172
        %v4175 = vadd.f32 %v4152, %v4173
        %v4176 = vadd.f32 %v4153, %v4173
        %v4177 = vadd.f32 %v4154, %v4173
        %v4178 = vadd.f32 %v4155, %v4173
        %v4179 = vadd.f32 %v4156, %v4173
        %v4180 = vadd.f32 %v4157, %v4173
        %v4181 = vadd.f32 %v4158, %v4173
        %v4182 = vadd.f32 %v4159, %v4173
        %v4183 = vadd.f32 %v4160, %v4173
        %v4184 = vadd.f32 %v4161, %v4173
        %v4185 = vadd.f32 %v4162, %v4173
        %v4186 = vadd.f32 %v4163, %v4173
        %v4187 = vadd.f32 %v4164, %v4173
        %v4188 = vadd.f32 %v4165, %v4173
        %v4189 = vadd.f32 %v4166, %v4173
        %v4190 = vadd.f32 %v4167, %v4173
        %v4191 = vtanh.pop %v4175
        %v4192 = vtanh.pop %v4176
        %v4193 = vtanh.pop %v4177
        %v4194 = vtanh.pop %v4178
        %v4195 = vtanh.pop %v4179
        %v4196 = vtanh.pop %v4180
        %v4197 = vtanh.pop %v4181
        %v4198 = vtanh.pop %v4182
        %v4199 = vtanh.pop %v4183
        %v4200 = vtanh.pop %v4184
        %v4201 = vtanh.pop %v4185
        %v4202 = vtanh.pop %v4186
        %v4203 = vtanh.pop %v4187
        %v4204 = vtanh.pop %v4188
        %v4205 = vtanh.pop %v4189
        %v4206 = vtanh.pop %v4190
        %v4207 = vsub.f32 %v4191, %v541
        %v4208 = vsub.f32 %v4192, %v542
        %v4209 = vsub.f32 %v4193, %v543
        %v4210 = vsub.f32 %v4194, %v544
        %v4211 = vsub.f32 %v4195, %v545
        %v4212 = vsub.f32 %v4196, %v546
        %v4213 = vsub.f32 %v4197, %v547
        %v4214 = vsub.f32 %v4198, %v548
        %v4215 = vsub.f32 %v4199, %v549
        %v4216 = vsub.f32 %v4200, %v550
        %v4217 = vsub.f32 %v4201, %v551
        %v4218 = vsub.f32 %v4202, %v552
        %v4219 = vsub.f32 %v4203, %v553
        %v4220 = vsub.f32 %v4204, %v554
        %v4221 = vsub.f32 %v4205, %v555
        %v4222 = vsub.f32 %v4206, %v556
        %v4223 = vmul.f32 %v2656, %v4207
        %v4224 = vmul.f32 %v2660, %v4208
        %v4225 = vmul.f32 %v2664, %v4209
        %v4226 = vmul.f32 %v2668, %v4210
        %v4227 = vmul.f32 %v2672, %v4211
        %v4228 = vmul.f32 %v2676, %v4212
        %v4229 = vmul.f32 %v2680, %v4213
        %v4230 = vmul.f32 %v2684, %v4214
        %v4231 = vmul.f32 %v2688, %v4215
        %v4232 = vmul.f32 %v2692, %v4216
        %v4233 = vmul.f32 %v2696, %v4217
        %v4234 = vmul.f32 %v2700, %v4218
        %v4235 = vmul.f32 %v2704, %v4219
        %v4236 = vmul.f32 %v2708, %v4220
        %v4237 = vmul.f32 %v2712, %v4221
        %v4238 = vmul.f32 %v2716, %v4222
        %v4239 = vadd.f32 %v541, %v4223
        %v4240 = vadd.f32 %v542, %v4224
        %v4241 = vadd.f32 %v543, %v4225
        %v4242 = vadd.f32 %v544, %v4226
        %v4243 = vadd.f32 %v545, %v4227
        %v4244 = vadd.f32 %v546, %v4228
        %v4245 = vadd.f32 %v547, %v4229
        %v4246 = vadd.f32 %v548, %v4230
        %v4247 = vadd.f32 %v549, %v4231
        %v4248 = vadd.f32 %v550, %v4232
        %v4249 = vadd.f32 %v551, %v4233
        %v4250 = vadd.f32 %v552, %v4234
        %v4251 = vadd.f32 %v553, %v4235
        %v4252 = vadd.f32 %v554, %v4236
        %v4253 = vadd.f32 %v555, %v4237
        %v4254 = vadd.f32 %v556, %v4238
        %v4256 = vcombine.high %v4239, %v4239
        %v4258 = vunpack.c.l.s4 1966171168
        %v4259 = vunpack.c.0.s8 %v4258
        %v4260 = vlaneseq
        %v4261 = vshrl.u32 %v4260, 7
        %v4262 = vsub.s32 %v4259, %v4261
        %v4263 = vrot.slane %v4239, %v4262
        %v4265 = vunpack.c.l.s4 1966171168
        %v4266 = vunpack.c.0.s8 %v4265
        %v4267 = vlaneseq
        %v4268 = vshrl.u32 %v4267, 7
        %v4269 = vsub.s32 %v4266, %v4268
        %v4270 = vrot.slane %v4256, %v4269
        %v4271 = vcombine.high %v4263, %v4263
        %v4272 = vcombine.high %v4270, %v4270
        %v4274 = vunpack.c.l.s4 1966171168
        %v4275 = vunpack.c.0.s8 %v4274
        %v4276 = vlaneseq
        %v4277 = vshrl.u32 %v4276, 7
        %v4278 = vsub.s32 %v4275, %v4277
        %v4279 = vrot.slane %v4263, %v4278
        %v4281 = vunpack.c.l.s4 1966171168
        %v4282 = vunpack.c.0.s8 %v4281
        %v4283 = vlaneseq
        %v4284 = vshrl.u32 %v4283, 7
        %v4285 = vsub.s32 %v4282, %v4284
        %v4286 = vrot.slane %v4270, %v4285
        %v4288 = vunpack.c.l.s4 1966171168
        %v4289 = vunpack.c.0.s8 %v4288
        %v4290 = vlaneseq
        %v4291 = vshrl.u32 %v4290, 7
        %v4292 = vsub.s32 %v4289, %v4291
        %v4293 = vrot.slane %v4271, %v4292
        %v4295 = vunpack.c.l.s4 1966171168
        %v4296 = vunpack.c.0.s8 %v4295
        %v4297 = vlaneseq
        %v4298 = vshrl.u32 %v4297, 7
        %v4299 = vsub.s32 %v4296, %v4298
        %v4300 = vrot.slane %v4272, %v4299
        %v4301 = vcombine.high %v4279, %v4279
        %v4302 = vcombine.high %v4286, %v4286
        %v4303 = vcombine.high %v4293, %v4293
        %v4304 = vcombine.high %v4300, %v4300
        %4313 = vst [vmem:[#allocation4] sm:$0x1] %v4279
        %4314 = vst [vmem:[#allocation4 + $0x10] sm:$0x1] %v4293
        %4315 = vst [vmem:[#allocation4 + $0x20] sm:$0x1] %v4301
        %4316 = vst [vmem:[#allocation4 + $0x30] sm:$0x1] %v4303
        %4317 = vst [vmem:[#allocation4 + $0x40] sm:$0x1] %v4286
        %4318 = vst [vmem:[#allocation4 + $0x50] sm:$0x1] %v4300
        %4319 = vst [vmem:[#allocation4 + $0x60] sm:$0x1] %v4302
        %4320 = vst [vmem:[#allocation4 + $0x70] sm:$0x1] %v4304
        %v4322 = vcombine.high %v4240, %v4240
        %v4324 = vunpack.c.l.s4 1966171168
        %v4325 = vunpack.c.0.s8 %v4324
        %v4326 = vlaneseq
        %v4327 = vshrl.u32 %v4326, 7
        %v4328 = vsub.s32 %v4325, %v4327
        %v4329 = vrot.slane %v4240, %v4328
        %v4331 = vunpack.c.l.s4 1966171168
        %v4332 = vunpack.c.0.s8 %v4331
        %v4333 = vlaneseq
        %v4334 = vshrl.u32 %v4333, 7
        %v4335 = vsub.s32 %v4332, %v4334
        %v4336 = vrot.slane %v4322, %v4335
        %v4337 = vcombine.high %v4329, %v4329
        %v4338 = vcombine.high %v4336, %v4336
        %v4340 = vunpack.c.l.s4 1966171168
        %v4341 = vunpack.c.0.s8 %v4340
        %v4342 = vlaneseq
        %v4343 = vshrl.u32 %v4342, 7
        %v4344 = vsub.s32 %v4341, %v4343
        %v4345 = vrot.slane %v4329, %v4344
        %v4347 = vunpack.c.l.s4 1966171168
        %v4348 = vunpack.c.0.s8 %v4347
        %v4349 = vlaneseq
        %v4350 = vshrl.u32 %v4349, 7
        %v4351 = vsub.s32 %v4348, %v4350
        %v4352 = vrot.slane %v4336, %v4351
        %v4354 = vunpack.c.l.s4 1966171168
        %v4355 = vunpack.c.0.s8 %v4354
        %v4356 = vlaneseq
        %v4357 = vshrl.u32 %v4356, 7
        %v4358 = vsub.s32 %v4355, %v4357
        %v4359 = vrot.slane %v4337, %v4358
        %v4361 = vunpack.c.l.s4 1966171168
        %v4362 = vunpack.c.0.s8 %v4361
        %v4363 = vlaneseq
        %v4364 = vshrl.u32 %v4363, 7
        %v4365 = vsub.s32 %v4362, %v4364
        %v4366 = vrot.slane %v4338, %v4365
        %v4367 = vcombine.high %v4345, %v4345
        %v4368 = vcombine.high %v4352, %v4352
        %v4369 = vcombine.high %v4359, %v4359
        %v4370 = vcombine.high %v4366, %v4366
        %4379 = vst [vmem:[#allocation4 + $0x1] sm:$0x1] %v4345
        %4380 = vst [vmem:[#allocation4 + $0x11] sm:$0x1] %v4359
        %4381 = vst [vmem:[#allocation4 + $0x21] sm:$0x1] %v4367
        %4382 = vst [vmem:[#allocation4 + $0x31] sm:$0x1] %v4369
        %4383 = vst [vmem:[#allocation4 + $0x41] sm:$0x1] %v4352
        %4384 = vst [vmem:[#allocation4 + $0x51] sm:$0x1] %v4366
        %4385 = vst [vmem:[#allocation4 + $0x61] sm:$0x1] %v4368
        %4386 = vst [vmem:[#allocation4 + $0x71] sm:$0x1] %v4370
        %v4388 = vcombine.high %v4241, %v4241
        %v4390 = vunpack.c.l.s4 1966171168
        %v4391 = vunpack.c.0.s8 %v4390
        %v4392 = vlaneseq
        %v4393 = vshrl.u32 %v4392, 7
        %v4394 = vsub.s32 %v4391, %v4393
        %v4395 = vrot.slane %v4241, %v4394
        %v4397 = vunpack.c.l.s4 1966171168
        %v4398 = vunpack.c.0.s8 %v4397
        %v4399 = vlaneseq
        %v4400 = vshrl.u32 %v4399, 7
        %v4401 = vsub.s32 %v4398, %v4400
        %v4402 = vrot.slane %v4388, %v4401
        %v4403 = vcombine.high %v4395, %v4395
        %v4404 = vcombine.high %v4402, %v4402
        %v4406 = vunpack.c.l.s4 1966171168
        %v4407 = vunpack.c.0.s8 %v4406
        %v4408 = vlaneseq
        %v4409 = vshrl.u32 %v4408, 7
        %v4410 = vsub.s32 %v4407, %v4409
        %v4411 = vrot.slane %v4395, %v4410
        %v4413 = vunpack.c.l.s4 1966171168
        %v4414 = vunpack.c.0.s8 %v4413
        %v4415 = vlaneseq
        %v4416 = vshrl.u32 %v4415, 7
        %v4417 = vsub.s32 %v4414, %v4416
        %v4418 = vrot.slane %v4402, %v4417
        %v4420 = vunpack.c.l.s4 1966171168
        %v4421 = vunpack.c.0.s8 %v4420
        %v4422 = vlaneseq
        %v4423 = vshrl.u32 %v4422, 7
        %v4424 = vsub.s32 %v4421, %v4423
        %v4425 = vrot.slane %v4403, %v4424
        %v4427 = vunpack.c.l.s4 1966171168
        %v4428 = vunpack.c.0.s8 %v4427
        %v4429 = vlaneseq
        %v4430 = vshrl.u32 %v4429, 7
        %v4431 = vsub.s32 %v4428, %v4430
        %v4432 = vrot.slane %v4404, %v4431
        %v4433 = vcombine.high %v4411, %v4411
        %v4434 = vcombine.high %v4418, %v4418
        %v4435 = vcombine.high %v4425, %v4425
        %v4436 = vcombine.high %v4432, %v4432
        %4445 = vst [vmem:[#allocation4 + $0x2] sm:$0x1] %v4411
        %4446 = vst [vmem:[#allocation4 + $0x12] sm:$0x1] %v4425
        %4447 = vst [vmem:[#allocation4 + $0x22] sm:$0x1] %v4433
        %4448 = vst [vmem:[#allocation4 + $0x32] sm:$0x1] %v4435
        %4449 = vst [vmem:[#allocation4 + $0x42] sm:$0x1] %v4418
        %4450 = vst [vmem:[#allocation4 + $0x52] sm:$0x1] %v4432
        %4451 = vst [vmem:[#allocation4 + $0x62] sm:$0x1] %v4434
        %4452 = vst [vmem:[#allocation4 + $0x72] sm:$0x1] %v4436
        %v4454 = vcombine.high %v4242, %v4242
        %v4456 = vunpack.c.l.s4 1966171168
        %v4457 = vunpack.c.0.s8 %v4456
        %v4458 = vlaneseq
        %v4459 = vshrl.u32 %v4458, 7
        %v4460 = vsub.s32 %v4457, %v4459
        %v4461 = vrot.slane %v4242, %v4460
        %v4463 = vunpack.c.l.s4 1966171168
        %v4464 = vunpack.c.0.s8 %v4463
        %v4465 = vlaneseq
        %v4466 = vshrl.u32 %v4465, 7
        %v4467 = vsub.s32 %v4464, %v4466
        %v4468 = vrot.slane %v4454, %v4467
        %v4469 = vcombine.high %v4461, %v4461
        %v4470 = vcombine.high %v4468, %v4468
        %v4472 = vunpack.c.l.s4 1966171168
        %v4473 = vunpack.c.0.s8 %v4472
        %v4474 = vlaneseq
        %v4475 = vshrl.u32 %v4474, 7
        %v4476 = vsub.s32 %v4473, %v4475
        %v4477 = vrot.slane %v4461, %v4476
        %v4479 = vunpack.c.l.s4 1966171168
        %v4480 = vunpack.c.0.s8 %v4479
        %v4481 = vlaneseq
        %v4482 = vshrl.u32 %v4481, 7
        %v4483 = vsub.s32 %v4480, %v4482
        %v4484 = vrot.slane %v4468, %v4483
        %v4486 = vunpack.c.l.s4 1966171168
        %v4487 = vunpack.c.0.s8 %v4486
        %v4488 = vlaneseq
        %v4489 = vshrl.u32 %v4488, 7
        %v4490 = vsub.s32 %v4487, %v4489
        %v4491 = vrot.slane %v4469, %v4490
        %v4493 = vunpack.c.l.s4 1966171168
        %v4494 = vunpack.c.0.s8 %v4493
        %v4495 = vlaneseq
        %v4496 = vshrl.u32 %v4495, 7
        %v4497 = vsub.s32 %v4494, %v4496
        %v4498 = vrot.slane %v4470, %v4497
        %v4499 = vcombine.high %v4477, %v4477
        %v4500 = vcombine.high %v4484, %v4484
        %v4501 = vcombine.high %v4491, %v4491
        %v4502 = vcombine.high %v4498, %v4498
        %4511 = vst [vmem:[#allocation4 + $0x3] sm:$0x1] %v4477
        %4512 = vst [vmem:[#allocation4 + $0x13] sm:$0x1] %v4491
        %4513 = vst [vmem:[#allocation4 + $0x23] sm:$0x1] %v4499
        %4514 = vst [vmem:[#allocation4 + $0x33] sm:$0x1] %v4501
        %4515 = vst [vmem:[#allocation4 + $0x43] sm:$0x1] %v4484
        %4516 = vst [vmem:[#allocation4 + $0x53] sm:$0x1] %v4498
        %4517 = vst [vmem:[#allocation4 + $0x63] sm:$0x1] %v4500
        %4518 = vst [vmem:[#allocation4 + $0x73] sm:$0x1] %v4502
        %v4520 = vcombine.high %v4243, %v4243
        %v4522 = vunpack.c.l.s4 1966171168
        %v4523 = vunpack.c.0.s8 %v4522
        %v4524 = vlaneseq
        %v4525 = vshrl.u32 %v4524, 7
        %v4526 = vsub.s32 %v4523, %v4525
        %v4527 = vrot.slane %v4243, %v4526
        %v4529 = vunpack.c.l.s4 1966171168
        %v4530 = vunpack.c.0.s8 %v4529
        %v4531 = vlaneseq
        %v4532 = vshrl.u32 %v4531, 7
        %v4533 = vsub.s32 %v4530, %v4532
        %v4534 = vrot.slane %v4520, %v4533
        %v4535 = vcombine.high %v4527, %v4527
        %v4536 = vcombine.high %v4534, %v4534
        %v4538 = vunpack.c.l.s4 1966171168
        %v4539 = vunpack.c.0.s8 %v4538
        %v4540 = vlaneseq
        %v4541 = vshrl.u32 %v4540, 7
        %v4542 = vsub.s32 %v4539, %v4541
        %v4543 = vrot.slane %v4527, %v4542
        %v4545 = vunpack.c.l.s4 1966171168
        %v4546 = vunpack.c.0.s8 %v4545
        %v4547 = vlaneseq
        %v4548 = vshrl.u32 %v4547, 7
        %v4549 = vsub.s32 %v4546, %v4548
        %v4550 = vrot.slane %v4534, %v4549
        %v4552 = vunpack.c.l.s4 1966171168
        %v4553 = vunpack.c.0.s8 %v4552
        %v4554 = vlaneseq
        %v4555 = vshrl.u32 %v4554, 7
        %v4556 = vsub.s32 %v4553, %v4555
        %v4557 = vrot.slane %v4535, %v4556
        %v4559 = vunpack.c.l.s4 1966171168
        %v4560 = vunpack.c.0.s8 %v4559
        %v4561 = vlaneseq
        %v4562 = vshrl.u32 %v4561, 7
        %v4563 = vsub.s32 %v4560, %v4562
        %v4564 = vrot.slane %v4536, %v4563
        %v4565 = vcombine.high %v4543, %v4543
        %v4566 = vcombine.high %v4550, %v4550
        %v4567 = vcombine.high %v4557, %v4557
        %v4568 = vcombine.high %v4564, %v4564
        %4577 = vst [vmem:[#allocation4 + $0x4] sm:$0x1] %v4543
        %4578 = vst [vmem:[#allocation4 + $0x14] sm:$0x1] %v4557
        %4579 = vst [vmem:[#allocation4 + $0x24] sm:$0x1] %v4565
        %4580 = vst [vmem:[#allocation4 + $0x34] sm:$0x1] %v4567
        %4581 = vst [vmem:[#allocation4 + $0x44] sm:$0x1] %v4550
        %4582 = vst [vmem:[#allocation4 + $0x54] sm:$0x1] %v4564
        %4583 = vst [vmem:[#allocation4 + $0x64] sm:$0x1] %v4566
        %4584 = vst [vmem:[#allocation4 + $0x74] sm:$0x1] %v4568
        %v4586 = vcombine.high %v4244, %v4244
        %v4588 = vunpack.c.l.s4 1966171168
        %v4589 = vunpack.c.0.s8 %v4588
        %v4590 = vlaneseq
        %v4591 = vshrl.u32 %v4590, 7
        %v4592 = vsub.s32 %v4589, %v4591
        %v4593 = vrot.slane %v4244, %v4592
        %v4595 = vunpack.c.l.s4 1966171168
        %v4596 = vunpack.c.0.s8 %v4595
        %v4597 = vlaneseq
        %v4598 = vshrl.u32 %v4597, 7
        %v4599 = vsub.s32 %v4596, %v4598
        %v4600 = vrot.slane %v4586, %v4599
        %v4601 = vcombine.high %v4593, %v4593
        %v4602 = vcombine.high %v4600, %v4600
        %v4604 = vunpack.c.l.s4 1966171168
        %v4605 = vunpack.c.0.s8 %v4604
        %v4606 = vlaneseq
        %v4607 = vshrl.u32 %v4606, 7
        %v4608 = vsub.s32 %v4605, %v4607
        %v4609 = vrot.slane %v4593, %v4608
        %v4611 = vunpack.c.l.s4 1966171168
        %v4612 = vunpack.c.0.s8 %v4611
        %v4613 = vlaneseq
        %v4614 = vshrl.u32 %v4613, 7
        %v4615 = vsub.s32 %v4612, %v4614
        %v4616 = vrot.slane %v4600, %v4615
        %v4618 = vunpack.c.l.s4 1966171168
        %v4619 = vunpack.c.0.s8 %v4618
        %v4620 = vlaneseq
        %v4621 = vshrl.u32 %v4620, 7
        %v4622 = vsub.s32 %v4619, %v4621
        %v4623 = vrot.slane %v4601, %v4622
        %v4625 = vunpack.c.l.s4 1966171168
        %v4626 = vunpack.c.0.s8 %v4625
        %v4627 = vlaneseq
        %v4628 = vshrl.u32 %v4627, 7
        %v4629 = vsub.s32 %v4626, %v4628
        %v4630 = vrot.slane %v4602, %v4629
        %v4631 = vcombine.high %v4609, %v4609
        %v4632 = vcombine.high %v4616, %v4616
        %v4633 = vcombine.high %v4623, %v4623
        %v4634 = vcombine.high %v4630, %v4630
        %4643 = vst [vmem:[#allocation4 + $0x5] sm:$0x1] %v4609
        %4644 = vst [vmem:[#allocation4 + $0x15] sm:$0x1] %v4623
        %4645 = vst [vmem:[#allocation4 + $0x25] sm:$0x1] %v4631
        %4646 = vst [vmem:[#allocation4 + $0x35] sm:$0x1] %v4633
        %4647 = vst [vmem:[#allocation4 + $0x45] sm:$0x1] %v4616
        %4648 = vst [vmem:[#allocation4 + $0x55] sm:$0x1] %v4630
        %4649 = vst [vmem:[#allocation4 + $0x65] sm:$0x1] %v4632
        %4650 = vst [vmem:[#allocation4 + $0x75] sm:$0x1] %v4634
        %v4652 = vcombine.high %v4245, %v4245
        %v4654 = vunpack.c.l.s4 1966171168
        %v4655 = vunpack.c.0.s8 %v4654
        %v4656 = vlaneseq
        %v4657 = vshrl.u32 %v4656, 7
        %v4658 = vsub.s32 %v4655, %v4657
        %v4659 = vrot.slane %v4245, %v4658
        %v4661 = vunpack.c.l.s4 1966171168
        %v4662 = vunpack.c.0.s8 %v4661
        %v4663 = vlaneseq
        %v4664 = vshrl.u32 %v4663, 7
        %v4665 = vsub.s32 %v4662, %v4664
        %v4666 = vrot.slane %v4652, %v4665
        %v4667 = vcombine.high %v4659, %v4659
        %v4668 = vcombine.high %v4666, %v4666
        %v4670 = vunpack.c.l.s4 1966171168
        %v4671 = vunpack.c.0.s8 %v4670
        %v4672 = vlaneseq
        %v4673 = vshrl.u32 %v4672, 7
        %v4674 = vsub.s32 %v4671, %v4673
        %v4675 = vrot.slane %v4659, %v4674
        %v4677 = vunpack.c.l.s4 1966171168
        %v4678 = vunpack.c.0.s8 %v4677
        %v4679 = vlaneseq
        %v4680 = vshrl.u32 %v4679, 7
        %v4681 = vsub.s32 %v4678, %v4680
        %v4682 = vrot.slane %v4666, %v4681
        %v4684 = vunpack.c.l.s4 1966171168
        %v4685 = vunpack.c.0.s8 %v4684
        %v4686 = vlaneseq
        %v4687 = vshrl.u32 %v4686, 7
        %v4688 = vsub.s32 %v4685, %v4687
        %v4689 = vrot.slane %v4667, %v4688
        %v4691 = vunpack.c.l.s4 1966171168
        %v4692 = vunpack.c.0.s8 %v4691
        %v4693 = vlaneseq
        %v4694 = vshrl.u32 %v4693, 7
        %v4695 = vsub.s32 %v4692, %v4694
        %v4696 = vrot.slane %v4668, %v4695
        %v4697 = vcombine.high %v4675, %v4675
        %v4698 = vcombine.high %v4682, %v4682
        %v4699 = vcombine.high %v4689, %v4689
        %v4700 = vcombine.high %v4696, %v4696
        %4709 = vst [vmem:[#allocation4 + $0x6] sm:$0x1] %v4675
        %4710 = vst [vmem:[#allocation4 + $0x16] sm:$0x1] %v4689
        %4711 = vst [vmem:[#allocation4 + $0x26] sm:$0x1] %v4697
        %4712 = vst [vmem:[#allocation4 + $0x36] sm:$0x1] %v4699
        %4713 = vst [vmem:[#allocation4 + $0x46] sm:$0x1] %v4682
        %4714 = vst [vmem:[#allocation4 + $0x56] sm:$0x1] %v4696
        %4715 = vst [vmem:[#allocation4 + $0x66] sm:$0x1] %v4698
        %4716 = vst [vmem:[#allocation4 + $0x76] sm:$0x1] %v4700
        %v4718 = vcombine.high %v4246, %v4246
        %v4720 = vunpack.c.l.s4 1966171168
        %v4721 = vunpack.c.0.s8 %v4720
        %v4722 = vlaneseq
        %v4723 = vshrl.u32 %v4722, 7
        %v4724 = vsub.s32 %v4721, %v4723
        %v4725 = vrot.slane %v4246, %v4724
        %v4727 = vunpack.c.l.s4 1966171168
        %v4728 = vunpack.c.0.s8 %v4727
        %v4729 = vlaneseq
        %v4730 = vshrl.u32 %v4729, 7
        %v4731 = vsub.s32 %v4728, %v4730
        %v4732 = vrot.slane %v4718, %v4731
        %v4733 = vcombine.high %v4725, %v4725
        %v4734 = vcombine.high %v4732, %v4732
        %v4736 = vunpack.c.l.s4 1966171168
        %v4737 = vunpack.c.0.s8 %v4736
        %v4738 = vlaneseq
        %v4739 = vshrl.u32 %v4738, 7
        %v4740 = vsub.s32 %v4737, %v4739
        %v4741 = vrot.slane %v4725, %v4740
        %v4743 = vunpack.c.l.s4 1966171168
        %v4744 = vunpack.c.0.s8 %v4743
        %v4745 = vlaneseq
        %v4746 = vshrl.u32 %v4745, 7
        %v4747 = vsub.s32 %v4744, %v4746
        %v4748 = vrot.slane %v4732, %v4747
        %v4750 = vunpack.c.l.s4 1966171168
        %v4751 = vunpack.c.0.s8 %v4750
        %v4752 = vlaneseq
        %v4753 = vshrl.u32 %v4752, 7
        %v4754 = vsub.s32 %v4751, %v4753
        %v4755 = vrot.slane %v4733, %v4754
        %v4757 = vunpack.c.l.s4 1966171168
        %v4758 = vunpack.c.0.s8 %v4757
        %v4759 = vlaneseq
        %v4760 = vshrl.u32 %v4759, 7
        %v4761 = vsub.s32 %v4758, %v4760
        %v4762 = vrot.slane %v4734, %v4761
        %v4763 = vcombine.high %v4741, %v4741
        %v4764 = vcombine.high %v4748, %v4748
        %v4765 = vcombine.high %v4755, %v4755
        %v4766 = vcombine.high %v4762, %v4762
        %4775 = vst [vmem:[#allocation4 + $0x7] sm:$0x1] %v4741
        %4776 = vst [vmem:[#allocation4 + $0x17] sm:$0x1] %v4755
        %4777 = vst [vmem:[#allocation4 + $0x27] sm:$0x1] %v4763
        %4778 = vst [vmem:[#allocation4 + $0x37] sm:$0x1] %v4765
        %4779 = vst [vmem:[#allocation4 + $0x47] sm:$0x1] %v4748
        %4780 = vst [vmem:[#allocation4 + $0x57] sm:$0x1] %v4762
        %4781 = vst [vmem:[#allocation4 + $0x67] sm:$0x1] %v4764
        %4782 = vst [vmem:[#allocation4 + $0x77] sm:$0x1] %v4766
        %v4784 = vcombine.high %v4247, %v4247
        %v4786 = vunpack.c.l.s4 1966171168
        %v4787 = vunpack.c.0.s8 %v4786
        %v4788 = vlaneseq
        %v4789 = vshrl.u32 %v4788, 7
        %v4790 = vsub.s32 %v4787, %v4789
        %v4791 = vrot.slane %v4247, %v4790
        %v4793 = vunpack.c.l.s4 1966171168
        %v4794 = vunpack.c.0.s8 %v4793
        %v4795 = vlaneseq
        %v4796 = vshrl.u32 %v4795, 7
        %v4797 = vsub.s32 %v4794, %v4796
        %v4798 = vrot.slane %v4784, %v4797
        %v4799 = vcombine.high %v4791, %v4791
        %v4800 = vcombine.high %v4798, %v4798
        %v4802 = vunpack.c.l.s4 1966171168
        %v4803 = vunpack.c.0.s8 %v4802
        %v4804 = vlaneseq
        %v4805 = vshrl.u32 %v4804, 7
        %v4806 = vsub.s32 %v4803, %v4805
        %v4807 = vrot.slane %v4791, %v4806
        %v4809 = vunpack.c.l.s4 1966171168
        %v4810 = vunpack.c.0.s8 %v4809
        %v4811 = vlaneseq
        %v4812 = vshrl.u32 %v4811, 7
        %v4813 = vsub.s32 %v4810, %v4812
        %v4814 = vrot.slane %v4798, %v4813
        %v4816 = vunpack.c.l.s4 1966171168
        %v4817 = vunpack.c.0.s8 %v4816
        %v4818 = vlaneseq
        %v4819 = vshrl.u32 %v4818, 7
        %v4820 = vsub.s32 %v4817, %v4819
        %v4821 = vrot.slane %v4799, %v4820
        %v4823 = vunpack.c.l.s4 1966171168
        %v4824 = vunpack.c.0.s8 %v4823
        %v4825 = vlaneseq
        %v4826 = vshrl.u32 %v4825, 7
        %v4827 = vsub.s32 %v4824, %v4826
        %v4828 = vrot.slane %v4800, %v4827
        %v4829 = vcombine.high %v4807, %v4807
        %v4830 = vcombine.high %v4814, %v4814
        %v4831 = vcombine.high %v4821, %v4821
        %v4832 = vcombine.high %v4828, %v4828
        %4841 = vst [vmem:[#allocation4 + $0x8] sm:$0x1] %v4807
        %4842 = vst [vmem:[#allocation4 + $0x18] sm:$0x1] %v4821
        %4843 = vst [vmem:[#allocation4 + $0x28] sm:$0x1] %v4829
        %4844 = vst [vmem:[#allocation4 + $0x38] sm:$0x1] %v4831
        %4845 = vst [vmem:[#allocation4 + $0x48] sm:$0x1] %v4814
        %4846 = vst [vmem:[#allocation4 + $0x58] sm:$0x1] %v4828
        %4847 = vst [vmem:[#allocation4 + $0x68] sm:$0x1] %v4830
        %4848 = vst [vmem:[#allocation4 + $0x78] sm:$0x1] %v4832
        %v4850 = vcombine.high %v4248, %v4248
        %v4852 = vunpack.c.l.s4 1966171168
        %v4853 = vunpack.c.0.s8 %v4852
        %v4854 = vlaneseq
        %v4855 = vshrl.u32 %v4854, 7
        %v4856 = vsub.s32 %v4853, %v4855
        %v4857 = vrot.slane %v4248, %v4856
        %v4859 = vunpack.c.l.s4 1966171168
        %v4860 = vunpack.c.0.s8 %v4859
        %v4861 = vlaneseq
        %v4862 = vshrl.u32 %v4861, 7
        %v4863 = vsub.s32 %v4860, %v4862
        %v4864 = vrot.slane %v4850, %v4863
        %v4865 = vcombine.high %v4857, %v4857
        %v4866 = vcombine.high %v4864, %v4864
        %v4868 = vunpack.c.l.s4 1966171168
        %v4869 = vunpack.c.0.s8 %v4868
        %v4870 = vlaneseq
        %v4871 = vshrl.u32 %v4870, 7
        %v4872 = vsub.s32 %v4869, %v4871
        %v4873 = vrot.slane %v4857, %v4872
        %v4875 = vunpack.c.l.s4 1966171168
        %v4876 = vunpack.c.0.s8 %v4875
        %v4877 = vlaneseq
        %v4878 = vshrl.u32 %v4877, 7
        %v4879 = vsub.s32 %v4876, %v4878
        %v4880 = vrot.slane %v4864, %v4879
        %v4882 = vunpack.c.l.s4 1966171168
        %v4883 = vunpack.c.0.s8 %v4882
        %v4884 = vlaneseq
        %v4885 = vshrl.u32 %v4884, 7
        %v4886 = vsub.s32 %v4883, %v4885
        %v4887 = vrot.slane %v4865, %v4886
        %v4889 = vunpack.c.l.s4 1966171168
        %v4890 = vunpack.c.0.s8 %v4889
        %v4891 = vlaneseq
        %v4892 = vshrl.u32 %v4891, 7
        %v4893 = vsub.s32 %v4890, %v4892
        %v4894 = vrot.slane %v4866, %v4893
        %v4895 = vcombine.high %v4873, %v4873
        %v4896 = vcombine.high %v4880, %v4880
        %v4897 = vcombine.high %v4887, %v4887
        %v4898 = vcombine.high %v4894, %v4894
        %4907 = vst [vmem:[#allocation4 + $0x9] sm:$0x1] %v4873
        %4908 = vst [vmem:[#allocation4 + $0x19] sm:$0x1] %v4887
        %4909 = vst [vmem:[#allocation4 + $0x29] sm:$0x1] %v4895
        %4910 = vst [vmem:[#allocation4 + $0x39] sm:$0x1] %v4897
        %4911 = vst [vmem:[#allocation4 + $0x49] sm:$0x1] %v4880
        %4912 = vst [vmem:[#allocation4 + $0x59] sm:$0x1] %v4894
        %4913 = vst [vmem:[#allocation4 + $0x69] sm:$0x1] %v4896
        %4914 = vst [vmem:[#allocation4 + $0x79] sm:$0x1] %v4898
        %v4916 = vcombine.high %v4249, %v4249
        %v4918 = vunpack.c.l.s4 1966171168
        %v4919 = vunpack.c.0.s8 %v4918
        %v4920 = vlaneseq
        %v4921 = vshrl.u32 %v4920, 7
        %v4922 = vsub.s32 %v4919, %v4921
        %v4923 = vrot.slane %v4249, %v4922
        %v4925 = vunpack.c.l.s4 1966171168
        %v4926 = vunpack.c.0.s8 %v4925
        %v4927 = vlaneseq
        %v4928 = vshrl.u32 %v4927, 7
        %v4929 = vsub.s32 %v4926, %v4928
        %v4930 = vrot.slane %v4916, %v4929
        %v4931 = vcombine.high %v4923, %v4923
        %v4932 = vcombine.high %v4930, %v4930
        %v4934 = vunpack.c.l.s4 1966171168
        %v4935 = vunpack.c.0.s8 %v4934
        %v4936 = vlaneseq
        %v4937 = vshrl.u32 %v4936, 7
        %v4938 = vsub.s32 %v4935, %v4937
        %v4939 = vrot.slane %v4923, %v4938
        %v4941 = vunpack.c.l.s4 1966171168
        %v4942 = vunpack.c.0.s8 %v4941
        %v4943 = vlaneseq
        %v4944 = vshrl.u32 %v4943, 7
        %v4945 = vsub.s32 %v4942, %v4944
        %v4946 = vrot.slane %v4930, %v4945
        %v4948 = vunpack.c.l.s4 1966171168
        %v4949 = vunpack.c.0.s8 %v4948
        %v4950 = vlaneseq
        %v4951 = vshrl.u32 %v4950, 7
        %v4952 = vsub.s32 %v4949, %v4951
        %v4953 = vrot.slane %v4931, %v4952
        %v4955 = vunpack.c.l.s4 1966171168
        %v4956 = vunpack.c.0.s8 %v4955
        %v4957 = vlaneseq
        %v4958 = vshrl.u32 %v4957, 7
        %v4959 = vsub.s32 %v4956, %v4958
        %v4960 = vrot.slane %v4932, %v4959
        %v4961 = vcombine.high %v4939, %v4939
        %v4962 = vcombine.high %v4946, %v4946
        %v4963 = vcombine.high %v4953, %v4953
        %v4964 = vcombine.high %v4960, %v4960
        %4973 = vst [vmem:[#allocation4 + $0xa] sm:$0x1] %v4939
        %4974 = vst [vmem:[#allocation4 + $0x1a] sm:$0x1] %v4953
        %4975 = vst [vmem:[#allocation4 + $0x2a] sm:$0x1] %v4961
        %4976 = vst [vmem:[#allocation4 + $0x3a] sm:$0x1] %v4963
        %4977 = vst [vmem:[#allocation4 + $0x4a] sm:$0x1] %v4946
        %4978 = vst [vmem:[#allocation4 + $0x5a] sm:$0x1] %v4960
        %4979 = vst [vmem:[#allocation4 + $0x6a] sm:$0x1] %v4962
        %4980 = vst [vmem:[#allocation4 + $0x7a] sm:$0x1] %v4964
        %v4982 = vcombine.high %v4250, %v4250
        %v4984 = vunpack.c.l.s4 1966171168
        %v4985 = vunpack.c.0.s8 %v4984
        %v4986 = vlaneseq
        %v4987 = vshrl.u32 %v4986, 7
        %v4988 = vsub.s32 %v4985, %v4987
        %v4989 = vrot.slane %v4250, %v4988
        %v4991 = vunpack.c.l.s4 1966171168
        %v4992 = vunpack.c.0.s8 %v4991
        %v4993 = vlaneseq
        %v4994 = vshrl.u32 %v4993, 7
        %v4995 = vsub.s32 %v4992, %v4994
        %v4996 = vrot.slane %v4982, %v4995
        %v4997 = vcombine.high %v4989, %v4989
        %v4998 = vcombine.high %v4996, %v4996
        %v5000 = vunpack.c.l.s4 1966171168
        %v5001 = vunpack.c.0.s8 %v5000
        %v5002 = vlaneseq
        %v5003 = vshrl.u32 %v5002, 7
        %v5004 = vsub.s32 %v5001, %v5003
        %v5005 = vrot.slane %v4989, %v5004
        %v5007 = vunpack.c.l.s4 1966171168
        %v5008 = vunpack.c.0.s8 %v5007
        %v5009 = vlaneseq
        %v5010 = vshrl.u32 %v5009, 7
        %v5011 = vsub.s32 %v5008, %v5010
        %v5012 = vrot.slane %v4996, %v5011
        %v5014 = vunpack.c.l.s4 1966171168
        %v5015 = vunpack.c.0.s8 %v5014
        %v5016 = vlaneseq
        %v5017 = vshrl.u32 %v5016, 7
        %v5018 = vsub.s32 %v5015, %v5017
        %v5019 = vrot.slane %v4997, %v5018
        %v5021 = vunpack.c.l.s4 1966171168
        %v5022 = vunpack.c.0.s8 %v5021
        %v5023 = vlaneseq
        %v5024 = vshrl.u32 %v5023, 7
        %v5025 = vsub.s32 %v5022, %v5024
        %v5026 = vrot.slane %v4998, %v5025
        %v5027 = vcombine.high %v5005, %v5005
        %v5028 = vcombine.high %v5012, %v5012
        %v5029 = vcombine.high %v5019, %v5019
        %v5030 = vcombine.high %v5026, %v5026
        %5039 = vst [vmem:[#allocation4 + $0xb] sm:$0x1] %v5005
        %5040 = vst [vmem:[#allocation4 + $0x1b] sm:$0x1] %v5019
        %5041 = vst [vmem:[#allocation4 + $0x2b] sm:$0x1] %v5027
        %5042 = vst [vmem:[#allocation4 + $0x3b] sm:$0x1] %v5029
        %5043 = vst [vmem:[#allocation4 + $0x4b] sm:$0x1] %v5012
        %5044 = vst [vmem:[#allocation4 + $0x5b] sm:$0x1] %v5026
        %5045 = vst [vmem:[#allocation4 + $0x6b] sm:$0x1] %v5028
        %5046 = vst [vmem:[#allocation4 + $0x7b] sm:$0x1] %v5030
        %v5048 = vcombine.high %v4251, %v4251
        %v5050 = vunpack.c.l.s4 1966171168
        %v5051 = vunpack.c.0.s8 %v5050
        %v5052 = vlaneseq
        %v5053 = vshrl.u32 %v5052, 7
        %v5054 = vsub.s32 %v5051, %v5053
        %v5055 = vrot.slane %v4251, %v5054
        %v5057 = vunpack.c.l.s4 1966171168
        %v5058 = vunpack.c.0.s8 %v5057
        %v5059 = vlaneseq
        %v5060 = vshrl.u32 %v5059, 7
        %v5061 = vsub.s32 %v5058, %v5060
        %v5062 = vrot.slane %v5048, %v5061
        %v5063 = vcombine.high %v5055, %v5055
        %v5064 = vcombine.high %v5062, %v5062
        %v5066 = vunpack.c.l.s4 1966171168
        %v5067 = vunpack.c.0.s8 %v5066
        %v5068 = vlaneseq
        %v5069 = vshrl.u32 %v5068, 7
        %v5070 = vsub.s32 %v5067, %v5069
        %v5071 = vrot.slane %v5055, %v5070
        %v5073 = vunpack.c.l.s4 1966171168
        %v5074 = vunpack.c.0.s8 %v5073
        %v5075 = vlaneseq
        %v5076 = vshrl.u32 %v5075, 7
        %v5077 = vsub.s32 %v5074, %v5076
        %v5078 = vrot.slane %v5062, %v5077
        %v5080 = vunpack.c.l.s4 1966171168
        %v5081 = vunpack.c.0.s8 %v5080
        %v5082 = vlaneseq
        %v5083 = vshrl.u32 %v5082, 7
        %v5084 = vsub.s32 %v5081, %v5083
        %v5085 = vrot.slane %v5063, %v5084
        %v5087 = vunpack.c.l.s4 1966171168
        %v5088 = vunpack.c.0.s8 %v5087
        %v5089 = vlaneseq
        %v5090 = vshrl.u32 %v5089, 7
        %v5091 = vsub.s32 %v5088, %v5090
        %v5092 = vrot.slane %v5064, %v5091
        %v5093 = vcombine.high %v5071, %v5071
        %v5094 = vcombine.high %v5078, %v5078
        %v5095 = vcombine.high %v5085, %v5085
        %v5096 = vcombine.high %v5092, %v5092
        %5105 = vst [vmem:[#allocation4 + $0xc] sm:$0x1] %v5071
        %5106 = vst [vmem:[#allocation4 + $0x1c] sm:$0x1] %v5085
        %5107 = vst [vmem:[#allocation4 + $0x2c] sm:$0x1] %v5093
        %5108 = vst [vmem:[#allocation4 + $0x3c] sm:$0x1] %v5095
        %5109 = vst [vmem:[#allocation4 + $0x4c] sm:$0x1] %v5078
        %5110 = vst [vmem:[#allocation4 + $0x5c] sm:$0x1] %v5092
        %5111 = vst [vmem:[#allocation4 + $0x6c] sm:$0x1] %v5094
        %5112 = vst [vmem:[#allocation4 + $0x7c] sm:$0x1] %v5096
        %v5114 = vcombine.high %v4252, %v4252
        %v5116 = vunpack.c.l.s4 1966171168
        %v5117 = vunpack.c.0.s8 %v5116
        %v5118 = vlaneseq
        %v5119 = vshrl.u32 %v5118, 7
        %v5120 = vsub.s32 %v5117, %v5119
        %v5121 = vrot.slane %v4252, %v5120
        %v5123 = vunpack.c.l.s4 1966171168
        %v5124 = vunpack.c.0.s8 %v5123
        %v5125 = vlaneseq
        %v5126 = vshrl.u32 %v5125, 7
        %v5127 = vsub.s32 %v5124, %v5126
        %v5128 = vrot.slane %v5114, %v5127
        %v5129 = vcombine.high %v5121, %v5121
        %v5130 = vcombine.high %v5128, %v5128
        %v5132 = vunpack.c.l.s4 1966171168
        %v5133 = vunpack.c.0.s8 %v5132
        %v5134 = vlaneseq
        %v5135 = vshrl.u32 %v5134, 7
        %v5136 = vsub.s32 %v5133, %v5135
        %v5137 = vrot.slane %v5121, %v5136
        %v5139 = vunpack.c.l.s4 1966171168
        %v5140 = vunpack.c.0.s8 %v5139
        %v5141 = vlaneseq
        %v5142 = vshrl.u32 %v5141, 7
        %v5143 = vsub.s32 %v5140, %v5142
        %v5144 = vrot.slane %v5128, %v5143
        %v5146 = vunpack.c.l.s4 1966171168
        %v5147 = vunpack.c.0.s8 %v5146
        %v5148 = vlaneseq
        %v5149 = vshrl.u32 %v5148, 7
        %v5150 = vsub.s32 %v5147, %v5149
        %v5151 = vrot.slane %v5129, %v5150
        %v5153 = vunpack.c.l.s4 1966171168
        %v5154 = vunpack.c.0.s8 %v5153
        %v5155 = vlaneseq
        %v5156 = vshrl.u32 %v5155, 7
        %v5157 = vsub.s32 %v5154, %v5156
        %v5158 = vrot.slane %v5130, %v5157
        %v5159 = vcombine.high %v5137, %v5137
        %v5160 = vcombine.high %v5144, %v5144
        %v5161 = vcombine.high %v5151, %v5151
        %v5162 = vcombine.high %v5158, %v5158
        %5171 = vst [vmem:[#allocation4 + $0xd] sm:$0x1] %v5137
        %5172 = vst [vmem:[#allocation4 + $0x1d] sm:$0x1] %v5151
        %5173 = vst [vmem:[#allocation4 + $0x2d] sm:$0x1] %v5159
        %5174 = vst [vmem:[#allocation4 + $0x3d] sm:$0x1] %v5161
        %5175 = vst [vmem:[#allocation4 + $0x4d] sm:$0x1] %v5144
        %5176 = vst [vmem:[#allocation4 + $0x5d] sm:$0x1] %v5158
        %5177 = vst [vmem:[#allocation4 + $0x6d] sm:$0x1] %v5160
        %5178 = vst [vmem:[#allocation4 + $0x7d] sm:$0x1] %v5162
        %v5180 = vcombine.high %v4253, %v4253
        %v5182 = vunpack.c.l.s4 1966171168
        %v5183 = vunpack.c.0.s8 %v5182
        %v5184 = vlaneseq
        %v5185 = vshrl.u32 %v5184, 7
        %v5186 = vsub.s32 %v5183, %v5185
        %v5187 = vrot.slane %v4253, %v5186
        %v5189 = vunpack.c.l.s4 1966171168
        %v5190 = vunpack.c.0.s8 %v5189
        %v5191 = vlaneseq
        %v5192 = vshrl.u32 %v5191, 7
        %v5193 = vsub.s32 %v5190, %v5192
        %v5194 = vrot.slane %v5180, %v5193
        %v5195 = vcombine.high %v5187, %v5187
        %v5196 = vcombine.high %v5194, %v5194
        %v5198 = vunpack.c.l.s4 1966171168
        %v5199 = vunpack.c.0.s8 %v5198
        %v5200 = vlaneseq
        %v5201 = vshrl.u32 %v5200, 7
        %v5202 = vsub.s32 %v5199, %v5201
        %v5203 = vrot.slane %v5187, %v5202
        %v5205 = vunpack.c.l.s4 1966171168
        %v5206 = vunpack.c.0.s8 %v5205
        %v5207 = vlaneseq
        %v5208 = vshrl.u32 %v5207, 7
        %v5209 = vsub.s32 %v5206, %v5208
        %v5210 = vrot.slane %v5194, %v5209
        %v5212 = vunpack.c.l.s4 1966171168
        %v5213 = vunpack.c.0.s8 %v5212
        %v5214 = vlaneseq
        %v5215 = vshrl.u32 %v5214, 7
        %v5216 = vsub.s32 %v5213, %v5215
        %v5217 = vrot.slane %v5195, %v5216
        %v5219 = vunpack.c.l.s4 1966171168
        %v5220 = vunpack.c.0.s8 %v5219
        %v5221 = vlaneseq
        %v5222 = vshrl.u32 %v5221, 7
        %v5223 = vsub.s32 %v5220, %v5222
        %v5224 = vrot.slane %v5196, %v5223
        %v5225 = vcombine.high %v5203, %v5203
        %v5226 = vcombine.high %v5210, %v5210
        %v5227 = vcombine.high %v5217, %v5217
        %v5228 = vcombine.high %v5224, %v5224
        %5237 = vst [vmem:[#allocation4 + $0xe] sm:$0x1] %v5203
        %5238 = vst [vmem:[#allocation4 + $0x1e] sm:$0x1] %v5217
        %5239 = vst [vmem:[#allocation4 + $0x2e] sm:$0x1] %v5225
        %5240 = vst [vmem:[#allocation4 + $0x3e] sm:$0x1] %v5227
        %5241 = vst [vmem:[#allocation4 + $0x4e] sm:$0x1] %v5210
        %5242 = vst [vmem:[#allocation4 + $0x5e] sm:$0x1] %v5224
        %5243 = vst [vmem:[#allocation4 + $0x6e] sm:$0x1] %v5226
        %5244 = vst [vmem:[#allocation4 + $0x7e] sm:$0x1] %v5228
        %v5246 = vcombine.high %v4254, %v4254
        %v5248 = vunpack.c.l.s4 1966171168
        %v5249 = vunpack.c.0.s8 %v5248
        %v5250 = vlaneseq
        %v5251 = vshrl.u32 %v5250, 7
        %v5252 = vsub.s32 %v5249, %v5251
        %v5253 = vrot.slane %v4254, %v5252
        %v5255 = vunpack.c.l.s4 1966171168
        %v5256 = vunpack.c.0.s8 %v5255
        %v5257 = vlaneseq
        %v5258 = vshrl.u32 %v5257, 7
        %v5259 = vsub.s32 %v5256, %v5258
        %v5260 = vrot.slane %v5246, %v5259
        %v5261 = vcombine.high %v5253, %v5253
        %v5262 = vcombine.high %v5260, %v5260
        %v5264 = vunpack.c.l.s4 1966171168
        %v5265 = vunpack.c.0.s8 %v5264
        %v5266 = vlaneseq
        %v5267 = vshrl.u32 %v5266, 7
        %v5268 = vsub.s32 %v5265, %v5267
        %v5269 = vrot.slane %v5253, %v5268
        %v5271 = vunpack.c.l.s4 1966171168
        %v5272 = vunpack.c.0.s8 %v5271
        %v5273 = vlaneseq
        %v5274 = vshrl.u32 %v5273, 7
        %v5275 = vsub.s32 %v5272, %v5274
        %v5276 = vrot.slane %v5260, %v5275
        %v5278 = vunpack.c.l.s4 1966171168
        %v5279 = vunpack.c.0.s8 %v5278
        %v5280 = vlaneseq
        %v5281 = vshrl.u32 %v5280, 7
        %v5282 = vsub.s32 %v5279, %v5281
        %v5283 = vrot.slane %v5261, %v5282
        %v5285 = vunpack.c.l.s4 1966171168
        %v5286 = vunpack.c.0.s8 %v5285
        %v5287 = vlaneseq
        %v5288 = vshrl.u32 %v5287, 7
        %v5289 = vsub.s32 %v5286, %v5288
        %v5290 = vrot.slane %v5262, %v5289
        %v5291 = vcombine.high %v5269, %v5269
        %v5292 = vcombine.high %v5276, %v5276
        %v5293 = vcombine.high %v5283, %v5283
        %v5294 = vcombine.high %v5290, %v5290
        %5303 = vst [vmem:[#allocation4 + $0xf] sm:$0x1] %v5269
        %5304 = vst [vmem:[#allocation4 + $0x1f] sm:$0x1] %v5283
        %5305 = vst [vmem:[#allocation4 + $0x2f] sm:$0x1] %v5291
        %5306 = vst [vmem:[#allocation4 + $0x3f] sm:$0x1] %v5293
        %5307 = vst [vmem:[#allocation4 + $0x4f] sm:$0x1] %v5276
        %5308 = vst [vmem:[#allocation4 + $0x5f] sm:$0x1] %v5290
        %5309 = vst [vmem:[#allocation4 + $0x6f] sm:$0x1] %v5292
        %5310 = vst [vmem:[#allocation4 + $0x7f] sm:$0x1] %v5294
        %v5311 = vld [vmem:[#allocation4] sm:$0xff]
        %v5312 = vld [vmem:[#allocation4 + $0x8] sm:$0xff]
        %v5313 = vld [vmem:[#allocation4 + $0x10] sm:$0xff]
        %v5314 = vld [vmem:[#allocation4 + $0x18] sm:$0xff]
        %v5315 = vld [vmem:[#allocation4 + $0x20] sm:$0xff]
        %v5316 = vld [vmem:[#allocation4 + $0x28] sm:$0xff]
        %v5317 = vld [vmem:[#allocation4 + $0x30] sm:$0xff]
        %v5318 = vld [vmem:[#allocation4 + $0x38] sm:$0xff]
        %v5319 = vld [vmem:[#allocation4 + $0x40] sm:$0xff]
        %v5320 = vld [vmem:[#allocation4 + $0x48] sm:$0xff]
        %v5321 = vld [vmem:[#allocation4 + $0x50] sm:$0xff]
        %v5322 = vld [vmem:[#allocation4 + $0x58] sm:$0xff]
        %v5323 = vld [vmem:[#allocation4 + $0x60] sm:$0xff]
        %v5324 = vld [vmem:[#allocation4 + $0x68] sm:$0xff]
        %v5325 = vld [vmem:[#allocation4 + $0x70] sm:$0xff]
        %v5326 = vld [vmem:[#allocation4 + $0x78] sm:$0xff]
        %v5327 = vld [vmem:[%s475] sm:$0xff]
        %v5328 = vld [vmem:[%s475 + $0x8] sm:$0xff]
        %v5329 = vld [vmem:[%s475 + $0x10] sm:$0xff]
        %v5330 = vld [vmem:[%s475 + $0x18] sm:$0xff]
        %v5331 = vld [vmem:[%s475 + $0x20] sm:$0xff]
        %v5332 = vld [vmem:[%s475 + $0x28] sm:$0xff]
        %v5333 = vld [vmem:[%s475 + $0x30] sm:$0xff]
        %v5334 = vld [vmem:[%s475 + $0x38] sm:$0xff]
        %v5335 = vld [vmem:[%s475 + $0x40] sm:$0xff]
        %v5336 = vld [vmem:[%s475 + $0x48] sm:$0xff]
        %v5337 = vld [vmem:[%s475 + $0x50] sm:$0xff]
        %v5338 = vld [vmem:[%s475 + $0x58] sm:$0xff]
        %v5339 = vld [vmem:[%s475 + $0x60] sm:$0xff]
        %v5340 = vld [vmem:[%s475 + $0x68] sm:$0xff]
        %v5341 = vld [vmem:[%s475 + $0x70] sm:$0xff]
        %v5342 = vld [vmem:[%s475 + $0x78] sm:$0xff]
        %5343 = vst [vmem:[#allocation3] sm:$0xff] 0
        %5344 = vst [vmem:[#allocation3 + $0x8] sm:$0xff] 0
        %5345 = vst [vmem:[#allocation3 + $0x10] sm:$0xff] 0
        %5346 = vst [vmem:[#allocation3 + $0x18] sm:$0xff] 0
        %s5347 = scalar_lea.vmem [#allocation3], 160
        %5348 = vst [vmem:[%s5347] sm:$0xff] 0
        %5349 = vst [vmem:[%s5347 + $0x8] sm:$0xff] 0
        %5350 = vst [vmem:[%s5347 + $0x10] sm:$0xff] 0
        %5351 = vst [vmem:[%s5347 + $0x18] sm:$0xff] 0
        %v5352 = vpack.c.bf16 %v5312, %v5311
        %v5353 = vpack.c.bf16 %v5314, %v5313
        %v5354 = vpack.c.bf16 %v5316, %v5315
        %v5355 = vpack.c.bf16 %v5318, %v5317
        %v5356 = vpack.c.bf16 %v5320, %v5319
        %v5357 = vpack.c.bf16 %v5322, %v5321
        %v5358 = vpack.c.bf16 %v5324, %v5323
        %v5359 = vpack.c.bf16 %v5326, %v5325
        %v5368 = vunpack.c.l.b16 %v5352
        %v5369 = vunpack.c.h.b16 %v5352
        %v5370 = vunpack.c.l.b16 %v5353
        %v5371 = vunpack.c.h.b16 %v5353
        %v5372 = vunpack.c.l.b16 %v5354
        %v5373 = vunpack.c.h.b16 %v5354
        %v5374 = vunpack.c.l.b16 %v5355
        %v5375 = vunpack.c.h.b16 %v5355
        %v5376 = vunpack.c.l.b16 %v5356
        %v5377 = vunpack.c.h.b16 %v5356
        %v5378 = vunpack.c.l.b16 %v5357
        %v5379 = vunpack.c.h.b16 %v5357
        %v5380 = vunpack.c.l.b16 %v5358
        %v5381 = vunpack.c.h.b16 %v5358
        %v5382 = vunpack.c.l.b16 %v5359
        %v5383 = vunpack.c.h.b16 %v5359
        %v5384 = vpack.c.b16 %v5368, %v5368
        %v5385 = vpack.c.b16 %v5369, %v5369
        %v5386 = vpack.c.b16 %v5370, %v5370
        %v5387 = vpack.c.b16 %v5371, %v5371
        %v5388 = vpack.c.b16 %v5372, %v5372
        %v5389 = vpack.c.b16 %v5373, %v5373
        %v5390 = vpack.c.b16 %v5374, %v5374
        %v5391 = vpack.c.b16 %v5375, %v5375
        %v5392 = vpack.c.b16 %v5376, %v5376
        %v5393 = vpack.c.b16 %v5377, %v5377
        %v5394 = vpack.c.b16 %v5378, %v5378
        %v5395 = vpack.c.b16 %v5379, %v5379
        %v5396 = vpack.c.b16 %v5380, %v5380
        %v5397 = vpack.c.b16 %v5381, %v5381
        %v5398 = vpack.c.b16 %v5382, %v5382
        %v5399 = vpack.c.b16 %v5383, %v5383
        %s5416 = scalar_lea.vmem [#allocation3], 32
        %5417 = vst [vmem:[%s5416] sm:$0xf] %v5384
        %5418 = vst [vmem:[%s5416 + $0x8] sm:$0xf] %v5385
        %5419 = vst [vmem:[%s5416 + $0x10] sm:$0xf] %v5386
        %5420 = vst [vmem:[%s5416 + $0x18] sm:$0xf] %v5387
        %5421 = vst [vmem:[%s5416 + $0x20] sm:$0xf] %v5388
        %5422 = vst [vmem:[%s5416 + $0x28] sm:$0xf] %v5389
        %5423 = vst [vmem:[%s5416 + $0x30] sm:$0xf] %v5390
        %5424 = vst [vmem:[%s5416 + $0x38] sm:$0xf] %v5391
        %5425 = vst [vmem:[%s5416 + $0x40] sm:$0xf] %v5392
        %5426 = vst [vmem:[%s5416 + $0x48] sm:$0xf] %v5393
        %5427 = vst [vmem:[%s5416 + $0x50] sm:$0xf] %v5394
        %5428 = vst [vmem:[%s5416 + $0x58] sm:$0xf] %v5395
        %5429 = vst [vmem:[%s5416 + $0x60] sm:$0xf] %v5396
        %5430 = vst [vmem:[%s5416 + $0x68] sm:$0xf] %v5397
        %5431 = vst [vmem:[%s5416 + $0x70] sm:$0xf] %v5398
        %5432 = vst [vmem:[%s5416 + $0x78] sm:$0xf] %v5399
        %v5433 = vpack.c.bf16 %v5328, %v5327
        %v5434 = vpack.c.bf16 %v5330, %v5329
        %v5435 = vpack.c.bf16 %v5332, %v5331
        %v5436 = vpack.c.bf16 %v5334, %v5333
        %v5437 = vpack.c.bf16 %v5336, %v5335
        %v5438 = vpack.c.bf16 %v5338, %v5337
        %v5439 = vpack.c.bf16 %v5340, %v5339
        %v5440 = vpack.c.bf16 %v5342, %v5341
        %v5449 = vunpack.c.l.b16 %v5433
        %v5450 = vunpack.c.h.b16 %v5433
        %v5451 = vunpack.c.l.b16 %v5434
        %v5452 = vunpack.c.h.b16 %v5434
        %v5453 = vunpack.c.l.b16 %v5435
        %v5454 = vunpack.c.h.b16 %v5435
        %v5455 = vunpack.c.l.b16 %v5436
        %v5456 = vunpack.c.h.b16 %v5436
        %v5457 = vunpack.c.l.b16 %v5437
        %v5458 = vunpack.c.h.b16 %v5437
        %v5459 = vunpack.c.l.b16 %v5438
        %v5460 = vunpack.c.h.b16 %v5438
        %v5461 = vunpack.c.l.b16 %v5439
        %v5462 = vunpack.c.h.b16 %v5439
        %v5463 = vunpack.c.l.b16 %v5440
        %v5464 = vunpack.c.h.b16 %v5440
        %v5465 = vpack.c.b16 %v5449, %v5449
        %v5466 = vpack.c.b16 %v5450, %v5450
        %v5467 = vpack.c.b16 %v5451, %v5451
        %v5468 = vpack.c.b16 %v5452, %v5452
        %v5469 = vpack.c.b16 %v5453, %v5453
        %v5470 = vpack.c.b16 %v5454, %v5454
        %v5471 = vpack.c.b16 %v5455, %v5455
        %v5472 = vpack.c.b16 %v5456, %v5456
        %v5473 = vpack.c.b16 %v5457, %v5457
        %v5474 = vpack.c.b16 %v5458, %v5458
        %v5475 = vpack.c.b16 %v5459, %v5459
        %v5476 = vpack.c.b16 %v5460, %v5460
        %v5477 = vpack.c.b16 %v5461, %v5461
        %v5478 = vpack.c.b16 %v5462, %v5462
        %v5479 = vpack.c.b16 %v5463, %v5463
        %v5480 = vpack.c.b16 %v5464, %v5464
        %5497 = vst [vmem:[%s5416 + $0x4] sm:$0xf] %v5465
        %5498 = vst [vmem:[%s5416 + $0xc] sm:$0xf] %v5466
        %5499 = vst [vmem:[%s5416 + $0x14] sm:$0xf] %v5467
        %5500 = vst [vmem:[%s5416 + $0x1c] sm:$0xf] %v5468
        %5501 = vst [vmem:[%s5416 + $0x24] sm:$0xf] %v5469
        %5502 = vst [vmem:[%s5416 + $0x2c] sm:$0xf] %v5470
        %5503 = vst [vmem:[%s5416 + $0x34] sm:$0xf] %v5471
        %5504 = vst [vmem:[%s5416 + $0x3c] sm:$0xf] %v5472
        %5505 = vst [vmem:[%s5416 + $0x44] sm:$0xf] %v5473
        %5506 = vst [vmem:[%s5416 + $0x4c] sm:$0xf] %v5474
        %5507 = vst [vmem:[%s5416 + $0x54] sm:$0xf] %v5475
        %5508 = vst [vmem:[%s5416 + $0x5c] sm:$0xf] %v5476
        %5509 = vst [vmem:[%s5416 + $0x64] sm:$0xf] %v5477
        %5510 = vst [vmem:[%s5416 + $0x6c] sm:$0xf] %v5478
        %5511 = vst [vmem:[%s5416 + $0x74] sm:$0xf] %v5479
        %5512 = vst [vmem:[%s5416 + $0x7c] sm:$0xf] %v5480
        %v5513 = vld [vmem:[#allocation3] sm:$0xff]
        %v5514 = vld [vmem:[#allocation3 + $0x8] sm:$0xff]
        %v5515 = vld [vmem:[#allocation3 + $0x10] sm:$0xff]
        %v5516 = vld [vmem:[#allocation3 + $0x18] sm:$0xff]
        %v5517 = vld [vmem:[#allocation3 + $0x20] sm:$0xff]
        %v5518 = vld [vmem:[#allocation3 + $0x28] sm:$0xff]
        %v5519 = vld [vmem:[#allocation3 + $0x30] sm:$0xff]
        %v5520 = vld [vmem:[#allocation3 + $0x38] sm:$0xff]
        %v5521 = vld [vmem:[#allocation3 + $0x40] sm:$0xff]
        %v5522 = vld [vmem:[#allocation3 + $0x48] sm:$0xff]
        %v5523 = vld [vmem:[#allocation3 + $0x50] sm:$0xff]
        %v5524 = vld [vmem:[#allocation3 + $0x58] sm:$0xff]
        %v5525 = vld [vmem:[#allocation3 + $0x60] sm:$0xff]
        %v5526 = vld [vmem:[#allocation3 + $0x68] sm:$0xff]
        %v5527 = vld [vmem:[#allocation3 + $0x70] sm:$0xff]
        %v5528 = vld [vmem:[#allocation3 + $0x78] sm:$0xff]
        %v5529 = vld [vmem:[#allocation14] sm:$0xff]
        %v5530 = vld [vmem:[#allocation14 + $0x8] sm:$0xff]
        %v5531 = vld [vmem:[#allocation14 + $0x10] sm:$0xff]
        %v5532 = vld [vmem:[#allocation14 + $0x18] sm:$0xff]
        %v5533 = vld [vmem:[#allocation14 + $0x20] sm:$0xff]
        %v5534 = vld [vmem:[#allocation14 + $0x28] sm:$0xff]
        %v5535 = vld [vmem:[#allocation14 + $0x30] sm:$0xff]
        %v5536 = vld [vmem:[#allocation14 + $0x38] sm:$0xff]
        %v5537 = vld [vmem:[#allocation14 + $0x40] sm:$0xff]
        %v5538 = vld [vmem:[#allocation14 + $0x48] sm:$0xff]
        %v5539 = vld [vmem:[#allocation14 + $0x50] sm:$0xff]
        %v5540 = vld [vmem:[#allocation14 + $0x58] sm:$0xff]
        %v5541 = vld [vmem:[#allocation14 + $0x60] sm:$0xff]
        %v5542 = vld [vmem:[#allocation14 + $0x68] sm:$0xff]
        %v5543 = vld [vmem:[#allocation14 + $0x70] sm:$0xff]
        %v5544 = vld [vmem:[#allocation14 + $0x78] sm:$0xff]
        %v5545 = vld [vmem:[#allocation14 + $0x80] sm:$0xff]
        %v5546 = vld [vmem:[#allocation14 + $0x88] sm:$0xff]
        %v5547 = vld [vmem:[#allocation14 + $0x90] sm:$0xff]
        %v5548 = vld [vmem:[#allocation14 + $0x98] sm:$0xff]
        %v5549 = vld [vmem:[#allocation14 + $0xa0] sm:$0xff]
        %v5550 = vld [vmem:[#allocation14 + $0xa8] sm:$0xff]
        %v5551 = vld [vmem:[#allocation14 + $0xb0] sm:$0xff]
        %v5552 = vld [vmem:[#allocation14 + $0xb8] sm:$0xff]
        %v5553 = vld [vmem:[#allocation14 + $0xc0] sm:$0xff]
        %v5554 = vld [vmem:[#allocation14 + $0xc8] sm:$0xff]
        %v5555 = vld [vmem:[#allocation14 + $0xd0] sm:$0xff]
        %v5556 = vld [vmem:[#allocation14 + $0xd8] sm:$0xff]
        %v5557 = vld [vmem:[#allocation14 + $0xe0] sm:$0xff]
        %v5558 = vld [vmem:[#allocation14 + $0xe8] sm:$0xff]
        %v5559 = vld [vmem:[#allocation14 + $0xf0] sm:$0xff]
        %v5560 = vld [vmem:[#allocation14 + $0xf8] sm:$0xff]
        %s5561 = scalar_lea.vmem [#allocation3], 16
        %v5562 = vld [vmem:[%s5561] sm:$0xff]
        %v5563 = vld [vmem:[%s5561 + $0x8] sm:$0xff]
        %v5564 = vld [vmem:[%s5561 + $0x10] sm:$0xff]
        %v5565 = vld [vmem:[%s5561 + $0x18] sm:$0xff]
        %v5566 = vld [vmem:[%s5561 + $0x20] sm:$0xff]
        %v5567 = vld [vmem:[%s5561 + $0x28] sm:$0xff]
        %v5568 = vld [vmem:[%s5561 + $0x30] sm:$0xff]
        %v5569 = vld [vmem:[%s5561 + $0x38] sm:$0xff]
        %v5570 = vld [vmem:[%s5561 + $0x40] sm:$0xff]
        %v5571 = vld [vmem:[%s5561 + $0x48] sm:$0xff]
        %v5572 = vld [vmem:[%s5561 + $0x50] sm:$0xff]
        %v5573 = vld [vmem:[%s5561 + $0x58] sm:$0xff]
        %v5574 = vld [vmem:[%s5561 + $0x60] sm:$0xff]
        %v5575 = vld [vmem:[%s5561 + $0x68] sm:$0xff]
        %v5576 = vld [vmem:[%s5561 + $0x70] sm:$0xff]
        %v5577 = vld [vmem:[%s5561 + $0x78] sm:$0xff]
        %s5578 = scalar_lea.vmem [#allocation14], 256
        %v5579 = vld [vmem:[%s5578] sm:$0xff]
        %v5580 = vld [vmem:[%s5578 + $0x8] sm:$0xff]
        %v5581 = vld [vmem:[%s5578 + $0x10] sm:$0xff]
        %v5582 = vld [vmem:[%s5578 + $0x18] sm:$0xff]
        %v5583 = vld [vmem:[%s5578 + $0x20] sm:$0xff]
        %v5584 = vld [vmem:[%s5578 + $0x28] sm:$0xff]
        %v5585 = vld [vmem:[%s5578 + $0x30] sm:$0xff]
        %v5586 = vld [vmem:[%s5578 + $0x38] sm:$0xff]
        %v5587 = vld [vmem:[%s5578 + $0x40] sm:$0xff]
        %v5588 = vld [vmem:[%s5578 + $0x48] sm:$0xff]
        %v5589 = vld [vmem:[%s5578 + $0x50] sm:$0xff]
        %v5590 = vld [vmem:[%s5578 + $0x58] sm:$0xff]
        %v5591 = vld [vmem:[%s5578 + $0x60] sm:$0xff]
        %v5592 = vld [vmem:[%s5578 + $0x68] sm:$0xff]
        %v5593 = vld [vmem:[%s5578 + $0x70] sm:$0xff]
        %v5594 = vld [vmem:[%s5578 + $0x78] sm:$0xff]
        %v5595 = vld [vmem:[%s5578 + $0x80] sm:$0xff]
        %v5596 = vld [vmem:[%s5578 + $0x88] sm:$0xff]
        %v5597 = vld [vmem:[%s5578 + $0x90] sm:$0xff]
        %v5598 = vld [vmem:[%s5578 + $0x98] sm:$0xff]
        %v5599 = vld [vmem:[%s5578 + $0xa0] sm:$0xff]
        %v5600 = vld [vmem:[%s5578 + $0xa8] sm:$0xff]
        %v5601 = vld [vmem:[%s5578 + $0xb0] sm:$0xff]
        %v5602 = vld [vmem:[%s5578 + $0xb8] sm:$0xff]
        %v5603 = vld [vmem:[%s5578 + $0xc0] sm:$0xff]
        %v5604 = vld [vmem:[%s5578 + $0xc8] sm:$0xff]
        %v5605 = vld [vmem:[%s5578 + $0xd0] sm:$0xff]
        %v5606 = vld [vmem:[%s5578 + $0xd8] sm:$0xff]
        %v5607 = vld [vmem:[%s5578 + $0xe0] sm:$0xff]
        %v5608 = vld [vmem:[%s5578 + $0xe8] sm:$0xff]
        %v5609 = vld [vmem:[%s5578 + $0xf0] sm:$0xff]
        %v5610 = vld [vmem:[%s5578 + $0xf8] sm:$0xff]
        %v5627 = vunpack.c.l.b16 %v5562
        %v5628 = vunpack.c.h.b16 %v5562
        %v5629 = vunpack.c.l.b16 %v5563
        %v5630 = vunpack.c.h.b16 %v5563
        %v5631 = vunpack.c.l.b16 %v5564
        %v5632 = vunpack.c.h.b16 %v5564
        %v5633 = vunpack.c.l.b16 %v5565
        %v5634 = vunpack.c.h.b16 %v5565
        %v5635 = vunpack.c.l.b16 %v5566
        %v5636 = vunpack.c.h.b16 %v5566
        %v5637 = vunpack.c.l.b16 %v5567
        %v5638 = vunpack.c.h.b16 %v5567
        %v5639 = vunpack.c.l.b16 %v5568
        %v5640 = vunpack.c.h.b16 %v5568
        %v5641 = vunpack.c.l.b16 %v5569
        %v5642 = vunpack.c.h.b16 %v5569
        %v5643 = vunpack.c.l.b16 %v5570
        %v5644 = vunpack.c.h.b16 %v5570
        %v5645 = vunpack.c.l.b16 %v5571
        %v5646 = vunpack.c.h.b16 %v5571
        %v5647 = vunpack.c.l.b16 %v5572
        %v5648 = vunpack.c.h.b16 %v5572
        %v5649 = vunpack.c.l.b16 %v5573
        %v5650 = vunpack.c.h.b16 %v5573
        %v5651 = vunpack.c.l.b16 %v5574
        %v5652 = vunpack.c.h.b16 %v5574
        %v5653 = vunpack.c.l.b16 %v5575
        %v5654 = vunpack.c.h.b16 %v5575
        %v5655 = vunpack.c.l.b16 %v5576
        %v5656 = vunpack.c.h.b16 %v5576
        %v5657 = vunpack.c.l.b16 %v5577
        %v5658 = vunpack.c.h.b16 %v5577
        %v5659 = vpack.c.b16 %v5629, %v5627
        %v5660 = vpack.c.b16 %v5630, %v5628
        %v5661 = vpack.c.b16 %v5633, %v5631
        %v5662 = vpack.c.b16 %v5634, %v5632
        %v5663 = vpack.c.b16 %v5637, %v5635
        %v5664 = vpack.c.b16 %v5638, %v5636
        %v5665 = vpack.c.b16 %v5641, %v5639
        %v5666 = vpack.c.b16 %v5642, %v5640
        %v5667 = vpack.c.b16 %v5645, %v5643
        %v5668 = vpack.c.b16 %v5646, %v5644
        %v5669 = vpack.c.b16 %v5649, %v5647
        %v5670 = vpack.c.b16 %v5650, %v5648
        %v5671 = vpack.c.b16 %v5653, %v5651
        %v5672 = vpack.c.b16 %v5654, %v5652
        %v5673 = vpack.c.b16 %v5657, %v5655
        %v5674 = vpack.c.b16 %v5658, %v5656
        %v5723 = vunpack.c.l.b16 %v5579
        %v5724 = vunpack.c.h.b16 %v5579
        %v5725 = vunpack.c.l.b16 %v5580
        %v5726 = vunpack.c.h.b16 %v5580
        %v5727 = vunpack.c.l.b16 %v5581
        %v5728 = vunpack.c.h.b16 %v5581
        %v5729 = vunpack.c.l.b16 %v5582
        %v5730 = vunpack.c.h.b16 %v5582
        %v5731 = vunpack.c.l.b16 %v5583
        %v5732 = vunpack.c.h.b16 %v5583
        %v5733 = vunpack.c.l.b16 %v5584
        %v5734 = vunpack.c.h.b16 %v5584
        %v5735 = vunpack.c.l.b16 %v5585
        %v5736 = vunpack.c.h.b16 %v5585
        %v5737 = vunpack.c.l.b16 %v5586
        %v5738 = vunpack.c.h.b16 %v5586
        %v5739 = vunpack.c.l.b16 %v5587
        %v5740 = vunpack.c.h.b16 %v5587
        %v5741 = vunpack.c.l.b16 %v5588
        %v5742 = vunpack.c.h.b16 %v5588
        %v5743 = vunpack.c.l.b16 %v5589
        %v5744 = vunpack.c.h.b16 %v5589
        %v5745 = vunpack.c.l.b16 %v5590
        %v5746 = vunpack.c.h.b16 %v5590
        %v5747 = vunpack.c.l.b16 %v5591
        %v5748 = vunpack.c.h.b16 %v5591
        %v5749 = vunpack.c.l.b16 %v5592
        %v5750 = vunpack.c.h.b16 %v5592
        %v5751 = vunpack.c.l.b16 %v5593
        %v5752 = vunpack.c.h.b16 %v5593
        %v5753 = vunpack.c.l.b16 %v5594
        %v5754 = vunpack.c.h.b16 %v5594
        %v5755 = vunpack.c.l.b16 %v5595
        %v5756 = vunpack.c.h.b16 %v5595
        %v5757 = vunpack.c.l.b16 %v5596
        %v5758 = vunpack.c.h.b16 %v5596
        %v5759 = vunpack.c.l.b16 %v5597
        %v5760 = vunpack.c.h.b16 %v5597
        %v5761 = vunpack.c.l.b16 %v5598
        %v5762 = vunpack.c.h.b16 %v5598
        %v5763 = vunpack.c.l.b16 %v5599
        %v5764 = vunpack.c.h.b16 %v5599
        %v5765 = vunpack.c.l.b16 %v5600
        %v5766 = vunpack.c.h.b16 %v5600
        %v5767 = vunpack.c.l.b16 %v5601
        %v5768 = vunpack.c.h.b16 %v5601
        %v5769 = vunpack.c.l.b16 %v5602
        %v5770 = vunpack.c.h.b16 %v5602
        %v5771 = vunpack.c.l.b16 %v5603
        %v5772 = vunpack.c.h.b16 %v5603
        %v5773 = vunpack.c.l.b16 %v5604
        %v5774 = vunpack.c.h.b16 %v5604
        %v5775 = vunpack.c.l.b16 %v5605
        %v5776 = vunpack.c.h.b16 %v5605
        %v5777 = vunpack.c.l.b16 %v5606
        %v5778 = vunpack.c.h.b16 %v5606
        %v5779 = vunpack.c.l.b16 %v5607
        %v5780 = vunpack.c.h.b16 %v5607
        %v5781 = vunpack.c.l.b16 %v5608
        %v5782 = vunpack.c.h.b16 %v5608
        %v5783 = vunpack.c.l.b16 %v5609
        %v5784 = vunpack.c.h.b16 %v5609
        %v5785 = vunpack.c.l.b16 %v5610
        %v5786 = vunpack.c.h.b16 %v5610
        %v5787 = vpack.c.b16 %v5725, %v5723
        %v5788 = vpack.c.b16 %v5726, %v5724
        %v5789 = vpack.c.b16 %v5729, %v5727
        %v5790 = vpack.c.b16 %v5730, %v5728
        %v5791 = vpack.c.b16 %v5733, %v5731
        %v5792 = vpack.c.b16 %v5734, %v5732
        %v5793 = vpack.c.b16 %v5737, %v5735
        %v5794 = vpack.c.b16 %v5738, %v5736
        %v5795 = vpack.c.b16 %v5741, %v5739
        %v5796 = vpack.c.b16 %v5742, %v5740
        %v5797 = vpack.c.b16 %v5745, %v5743
        %v5798 = vpack.c.b16 %v5746, %v5744
        %v5799 = vpack.c.b16 %v5749, %v5747
        %v5800 = vpack.c.b16 %v5750, %v5748
        %v5801 = vpack.c.b16 %v5753, %v5751
        %v5802 = vpack.c.b16 %v5754, %v5752
        %v5803 = vpack.c.b16 %v5757, %v5755
        %v5804 = vpack.c.b16 %v5758, %v5756
        %v5805 = vpack.c.b16 %v5761, %v5759
        %v5806 = vpack.c.b16 %v5762, %v5760
        %v5807 = vpack.c.b16 %v5765, %v5763
        %v5808 = vpack.c.b16 %v5766, %v5764
        %v5809 = vpack.c.b16 %v5769, %v5767
        %v5810 = vpack.c.b16 %v5770, %v5768
        %v5811 = vpack.c.b16 %v5773, %v5771
        %v5812 = vpack.c.b16 %v5774, %v5772
        %v5813 = vpack.c.b16 %v5777, %v5775
        %v5814 = vpack.c.b16 %v5778, %v5776
        %v5815 = vpack.c.b16 %v5781, %v5779
        %v5816 = vpack.c.b16 %v5782, %v5780
        %v5817 = vpack.c.b16 %v5785, %v5783
        %v5818 = vpack.c.b16 %v5786, %v5784
        %5851 = vmatprep.subr.bf16.mxu0 %v5802
        %5852 = vmatpush1.bf16.msra.mxu0 %v5801
        %5853 = vmatprep.subr.bf16.mxu0 %v5800
        %5854 = vmatpush1.bf16.msra.mxu0 %v5799
        %5855 = vmatprep.subr.bf16.mxu0 %v5798
        %5856 = vmatpush1.bf16.msra.mxu0 %v5797
        %5857 = vmatprep.subr.bf16.mxu0 %v5796
        %5858 = vmatpush1.bf16.msra.mxu0 %v5795
        %5859 = vmatprep.subr.bf16.mxu0 %v5794
        %5860 = vmatpush1.bf16.msra.mxu0 %v5793
        %5861 = vmatprep.subr.bf16.mxu0 %v5792
        %5862 = vmatpush1.bf16.msra.mxu0 %v5791
        %5863 = vmatprep.subr.bf16.mxu0 %v5790
        %5864 = vmatpush1.bf16.msra.mxu0 %v5789
        %5865 = vmatprep.subr.bf16.mxu0 %v5788
        %5866 = vmatpush1.bf16.msra.mxu0 %v5787
        %5867 = vmatprep.subr.bf16.mxu0 %v5818
        %5868 = vmatpush2.bf16.msra.mxu0 %v5817
        %5869 = vmatprep.subr.bf16.mxu0 %v5816
        %5870 = vmatpush2.bf16.msra.mxu0 %v5815
        %5871 = vmatprep.subr.bf16.mxu0 %v5814
        %5872 = vmatpush2.bf16.msra.mxu0 %v5813
        %5873 = vmatprep.subr.bf16.mxu0 %v5812
        %5874 = vmatpush2.bf16.msra.mxu0 %v5811
        %5875 = vmatprep.subr.bf16.mxu0 %v5810
        %5876 = vmatpush2.bf16.msra.mxu0 %v5809
        %5877 = vmatprep.subr.bf16.mxu0 %v5808
        %5878 = vmatpush2.bf16.msra.mxu0 %v5807
        %5879 = vmatprep.subr.bf16.mxu0 %v5806
        %5880 = vmatpush2.bf16.msra.mxu0 %v5805
        %5881 = vmatprep.subr.bf16.mxu0 %v5804
        %5882 = vmatpush2.bf16.msra.mxu0 %v5803
        %5883 = vmatprep.mubr.bf16.mxu0 %v5660
        %5884 = vmatmul.mubr.bf16.gmra.mxu0 %v5659
        %v5885 = vpop.f32.mrf.mxu0
        %v5886 = vadd.f32 0.0, %v5885
        %v5887 = vpop.f32.mrf.mxu0
        %v5888 = vadd.f32 0.0, %v5887
        %v5889 = vpop.f32.mrf.mxu0
        %v5890 = vadd.f32 0.0, %v5889
        %v5891 = vpop.f32.mrf.mxu0
        %v5892 = vadd.f32 0.0, %v5891
        %5893 = vmatprep.mubr.bf16.mxu0 %v5662
        %5894 = vmatmul.mubr.bf16.gmra.mxu0 %v5661
        %v5895 = vpop.f32.mrf.mxu0
        %v5896 = vadd.f32 0.0, %v5895
        %v5897 = vpop.f32.mrf.mxu0
        %v5898 = vadd.f32 0.0, %v5897
        %v5899 = vpop.f32.mrf.mxu0
        %v5900 = vadd.f32 0.0, %v5899
        %v5901 = vpop.f32.mrf.mxu0
        %v5902 = vadd.f32 0.0, %v5901
        %5903 = vmatprep.mubr.bf16.mxu0 %v5664
        %5904 = vmatmul.mubr.bf16.gmra.mxu0 %v5663
        %v5905 = vpop.f32.mrf.mxu0
        %v5906 = vadd.f32 0.0, %v5905
        %v5907 = vpop.f32.mrf.mxu0
        %v5908 = vadd.f32 0.0, %v5907
        %v5909 = vpop.f32.mrf.mxu0
        %v5910 = vadd.f32 0.0, %v5909
        %v5911 = vpop.f32.mrf.mxu0
        %v5912 = vadd.f32 0.0, %v5911
        %5913 = vmatprep.mubr.bf16.mxu0 %v5666
        %5914 = vmatmul.mubr.bf16.gmra.mxu0 %v5665
        %v5915 = vpop.f32.mrf.mxu0
        %v5916 = vadd.f32 0.0, %v5915
        %v5917 = vpop.f32.mrf.mxu0
        %v5918 = vadd.f32 0.0, %v5917
        %v5919 = vpop.f32.mrf.mxu0
        %v5920 = vadd.f32 0.0, %v5919
        %v5921 = vpop.f32.mrf.mxu0
        %v5922 = vadd.f32 0.0, %v5921
        %5923 = vmatprep.mubr.bf16.mxu0 %v5668
        %5924 = vmatmul.mubr.bf16.gmra.mxu0 %v5667
        %v5925 = vpop.f32.mrf.mxu0
        %v5926 = vadd.f32 0.0, %v5925
        %v5927 = vpop.f32.mrf.mxu0
        %v5928 = vadd.f32 0.0, %v5927
        %v5929 = vpop.f32.mrf.mxu0
        %v5930 = vadd.f32 0.0, %v5929
        %v5931 = vpop.f32.mrf.mxu0
        %v5932 = vadd.f32 0.0, %v5931
        %5933 = vmatprep.mubr.bf16.mxu0 %v5670
        %5934 = vmatmul.mubr.bf16.gmra.mxu0 %v5669
        %v5935 = vpop.f32.mrf.mxu0
        %v5936 = vadd.f32 0.0, %v5935
        %v5937 = vpop.f32.mrf.mxu0
        %v5938 = vadd.f32 0.0, %v5937
        %v5939 = vpop.f32.mrf.mxu0
        %v5940 = vadd.f32 0.0, %v5939
        %v5941 = vpop.f32.mrf.mxu0
        %v5942 = vadd.f32 0.0, %v5941
        %5943 = vmatprep.mubr.bf16.mxu0 %v5672
        %5944 = vmatmul.mubr.bf16.gmra.mxu0 %v5671
        %v5945 = vpop.f32.mrf.mxu0
        %v5946 = vadd.f32 0.0, %v5945
        %v5947 = vpop.f32.mrf.mxu0
        %v5948 = vadd.f32 0.0, %v5947
        %v5949 = vpop.f32.mrf.mxu0
        %v5950 = vadd.f32 0.0, %v5949
        %v5951 = vpop.f32.mrf.mxu0
        %v5952 = vadd.f32 0.0, %v5951
        %5953 = vmatprep.mubr.bf16.mxu0 %v5674
        %5954 = vmatmul.mubr.bf16.gmra.mxu0 %v5673
        %v5955 = vpop.f32.mrf.mxu0
        %v5956 = vadd.f32 0.0, %v5955
        %v5957 = vpop.f32.mrf.mxu0
        %v5958 = vadd.f32 0.0, %v5957
        %v5959 = vpop.f32.mrf.mxu0
        %v5960 = vadd.f32 0.0, %v5959
        %v5961 = vpop.f32.mrf.mxu0
        %v5962 = vadd.f32 0.0, %v5961
        %5963 = vdwg.mxu0
        %v5980 = vunpack.c.l.b16 %v5513
        %v5981 = vunpack.c.h.b16 %v5513
        %v5982 = vunpack.c.l.b16 %v5514
        %v5983 = vunpack.c.h.b16 %v5514
        %v5984 = vunpack.c.l.b16 %v5515
        %v5985 = vunpack.c.h.b16 %v5515
        %v5986 = vunpack.c.l.b16 %v5516
        %v5987 = vunpack.c.h.b16 %v5516
        %v5988 = vunpack.c.l.b16 %v5517
        %v5989 = vunpack.c.h.b16 %v5517
        %v5990 = vunpack.c.l.b16 %v5518
        %v5991 = vunpack.c.h.b16 %v5518
        %v5992 = vunpack.c.l.b16 %v5519
        %v5993 = vunpack.c.h.b16 %v5519
        %v5994 = vunpack.c.l.b16 %v5520
        %v5995 = vunpack.c.h.b16 %v5520
        %v5996 = vunpack.c.l.b16 %v5521
        %v5997 = vunpack.c.h.b16 %v5521
        %v5998 = vunpack.c.l.b16 %v5522
        %v5999 = vunpack.c.h.b16 %v5522
        %v6000 = vunpack.c.l.b16 %v5523
        %v6001 = vunpack.c.h.b16 %v5523
        %v6002 = vunpack.c.l.b16 %v5524
        %v6003 = vunpack.c.h.b16 %v5524
        %v6004 = vunpack.c.l.b16 %v5525
        %v6005 = vunpack.c.h.b16 %v5525
        %v6006 = vunpack.c.l.b16 %v5526
        %v6007 = vunpack.c.h.b16 %v5526
        %v6008 = vunpack.c.l.b16 %v5527
        %v6009 = vunpack.c.h.b16 %v5527
        %v6010 = vunpack.c.l.b16 %v5528
        %v6011 = vunpack.c.h.b16 %v5528
        %v6012 = vpack.c.b16 %v5982, %v5980
        %v6013 = vpack.c.b16 %v5983, %v5981
        %v6014 = vpack.c.b16 %v5986, %v5984
        %v6015 = vpack.c.b16 %v5987, %v5985
        %v6016 = vpack.c.b16 %v5990, %v5988
        %v6017 = vpack.c.b16 %v5991, %v5989
        %v6018 = vpack.c.b16 %v5994, %v5992
        %v6019 = vpack.c.b16 %v5995, %v5993
        %v6020 = vpack.c.b16 %v5998, %v5996
        %v6021 = vpack.c.b16 %v5999, %v5997
        %v6022 = vpack.c.b16 %v6002, %v6000
        %v6023 = vpack.c.b16 %v6003, %v6001
        %v6024 = vpack.c.b16 %v6006, %v6004
        %v6025 = vpack.c.b16 %v6007, %v6005
        %v6026 = vpack.c.b16 %v6010, %v6008
        %v6027 = vpack.c.b16 %v6011, %v6009
        %v6076 = vunpack.c.l.b16 %v5529
        %v6077 = vunpack.c.h.b16 %v5529
        %v6078 = vunpack.c.l.b16 %v5530
        %v6079 = vunpack.c.h.b16 %v5530
        %v6080 = vunpack.c.l.b16 %v5531
        %v6081 = vunpack.c.h.b16 %v5531
        %v6082 = vunpack.c.l.b16 %v5532
        %v6083 = vunpack.c.h.b16 %v5532
        %v6084 = vunpack.c.l.b16 %v5533
        %v6085 = vunpack.c.h.b16 %v5533
        %v6086 = vunpack.c.l.b16 %v5534
        %v6087 = vunpack.c.h.b16 %v5534
        %v6088 = vunpack.c.l.b16 %v5535
        %v6089 = vunpack.c.h.b16 %v5535
        %v6090 = vunpack.c.l.b16 %v5536
        %v6091 = vunpack.c.h.b16 %v5536
        %v6092 = vunpack.c.l.b16 %v5537
        %v6093 = vunpack.c.h.b16 %v5537
        %v6094 = vunpack.c.l.b16 %v5538
        %v6095 = vunpack.c.h.b16 %v5538
        %v6096 = vunpack.c.l.b16 %v5539
        %v6097 = vunpack.c.h.b16 %v5539
        %v6098 = vunpack.c.l.b16 %v5540
        %v6099 = vunpack.c.h.b16 %v5540
        %v6100 = vunpack.c.l.b16 %v5541
        %v6101 = vunpack.c.h.b16 %v5541
        %v6102 = vunpack.c.l.b16 %v5542
        %v6103 = vunpack.c.h.b16 %v5542
        %v6104 = vunpack.c.l.b16 %v5543
        %v6105 = vunpack.c.h.b16 %v5543
        %v6106 = vunpack.c.l.b16 %v5544
        %v6107 = vunpack.c.h.b16 %v5544
        %v6108 = vunpack.c.l.b16 %v5545
        %v6109 = vunpack.c.h.b16 %v5545
        %v6110 = vunpack.c.l.b16 %v5546
        %v6111 = vunpack.c.h.b16 %v5546
        %v6112 = vunpack.c.l.b16 %v5547
        %v6113 = vunpack.c.h.b16 %v5547
        %v6114 = vunpack.c.l.b16 %v5548
        %v6115 = vunpack.c.h.b16 %v5548
        %v6116 = vunpack.c.l.b16 %v5549
        %v6117 = vunpack.c.h.b16 %v5549
        %v6118 = vunpack.c.l.b16 %v5550
        %v6119 = vunpack.c.h.b16 %v5550
        %v6120 = vunpack.c.l.b16 %v5551
        %v6121 = vunpack.c.h.b16 %v5551
        %v6122 = vunpack.c.l.b16 %v5552
        %v6123 = vunpack.c.h.b16 %v5552
        %v6124 = vunpack.c.l.b16 %v5553
        %v6125 = vunpack.c.h.b16 %v5553
        %v6126 = vunpack.c.l.b16 %v5554
        %v6127 = vunpack.c.h.b16 %v5554
        %v6128 = vunpack.c.l.b16 %v5555
        %v6129 = vunpack.c.h.b16 %v5555
        %v6130 = vunpack.c.l.b16 %v5556
        %v6131 = vunpack.c.h.b16 %v5556
        %v6132 = vunpack.c.l.b16 %v5557
        %v6133 = vunpack.c.h.b16 %v5557
        %v6134 = vunpack.c.l.b16 %v5558
        %v6135 = vunpack.c.h.b16 %v5558
        %v6136 = vunpack.c.l.b16 %v5559
        %v6137 = vunpack.c.h.b16 %v5559
        %v6138 = vunpack.c.l.b16 %v5560
        %v6139 = vunpack.c.h.b16 %v5560
        %v6140 = vpack.c.b16 %v6078, %v6076
        %v6141 = vpack.c.b16 %v6079, %v6077
        %v6142 = vpack.c.b16 %v6082, %v6080
        %v6143 = vpack.c.b16 %v6083, %v6081
        %v6144 = vpack.c.b16 %v6086, %v6084
        %v6145 = vpack.c.b16 %v6087, %v6085
        %v6146 = vpack.c.b16 %v6090, %v6088
        %v6147 = vpack.c.b16 %v6091, %v6089
        %v6148 = vpack.c.b16 %v6094, %v6092
        %v6149 = vpack.c.b16 %v6095, %v6093
        %v6150 = vpack.c.b16 %v6098, %v6096
        %v6151 = vpack.c.b16 %v6099, %v6097
        %v6152 = vpack.c.b16 %v6102, %v6100
        %v6153 = vpack.c.b16 %v6103, %v6101
        %v6154 = vpack.c.b16 %v6106, %v6104
        %v6155 = vpack.c.b16 %v6107, %v6105
        %v6156 = vpack.c.b16 %v6110, %v6108
        %v6157 = vpack.c.b16 %v6111, %v6109
        %v6158 = vpack.c.b16 %v6114, %v6112
        %v6159 = vpack.c.b16 %v6115, %v6113
        %v6160 = vpack.c.b16 %v6118, %v6116
        %v6161 = vpack.c.b16 %v6119, %v6117
        %v6162 = vpack.c.b16 %v6122, %v6120
        %v6163 = vpack.c.b16 %v6123, %v6121
        %v6164 = vpack.c.b16 %v6126, %v6124
        %v6165 = vpack.c.b16 %v6127, %v6125
        %v6166 = vpack.c.b16 %v6130, %v6128
        %v6167 = vpack.c.b16 %v6131, %v6129
        %v6168 = vpack.c.b16 %v6134, %v6132
        %v6169 = vpack.c.b16 %v6135, %v6133
        %v6170 = vpack.c.b16 %v6138, %v6136
        %v6171 = vpack.c.b16 %v6139, %v6137
        %6204 = vmatprep.subr.bf16.mxu0 %v6155
        %6205 = vmatpush1.bf16.msra.mxu0 %v6154
        %6206 = vmatprep.subr.bf16.mxu0 %v6153
        %6207 = vmatpush1.bf16.msra.mxu0 %v6152
        %6208 = vmatprep.subr.bf16.mxu0 %v6151
        %6209 = vmatpush1.bf16.msra.mxu0 %v6150
        %6210 = vmatprep.subr.bf16.mxu0 %v6149
        %6211 = vmatpush1.bf16.msra.mxu0 %v6148
        %6212 = vmatprep.subr.bf16.mxu0 %v6147
        %6213 = vmatpush1.bf16.msra.mxu0 %v6146
        %6214 = vmatprep.subr.bf16.mxu0 %v6145
        %6215 = vmatpush1.bf16.msra.mxu0 %v6144
        %6216 = vmatprep.subr.bf16.mxu0 %v6143
        %6217 = vmatpush1.bf16.msra.mxu0 %v6142
        %6218 = vmatprep.subr.bf16.mxu0 %v6141
        %6219 = vmatpush1.bf16.msra.mxu0 %v6140
        %6220 = vmatprep.subr.bf16.mxu0 %v6171
        %6221 = vmatpush2.bf16.msra.mxu0 %v6170
        %6222 = vmatprep.subr.bf16.mxu0 %v6169
        %6223 = vmatpush2.bf16.msra.mxu0 %v6168
        %6224 = vmatprep.subr.bf16.mxu0 %v6167
        %6225 = vmatpush2.bf16.msra.mxu0 %v6166
        %6226 = vmatprep.subr.bf16.mxu0 %v6165
        %6227 = vmatpush2.bf16.msra.mxu0 %v6164
        %6228 = vmatprep.subr.bf16.mxu0 %v6163
        %6229 = vmatpush2.bf16.msra.mxu0 %v6162
        %6230 = vmatprep.subr.bf16.mxu0 %v6161
        %6231 = vmatpush2.bf16.msra.mxu0 %v6160
        %6232 = vmatprep.subr.bf16.mxu0 %v6159
        %6233 = vmatpush2.bf16.msra.mxu0 %v6158
        %6234 = vmatprep.subr.bf16.mxu0 %v6157
        %6235 = vmatpush2.bf16.msra.mxu0 %v6156
        %6236 = vmatprep.mubr.bf16.mxu0 %v6013
        %6237 = vmatmul.mubr.bf16.gmra.mxu0 %v6012
        %v6238 = vpop.f32.mrf.mxu0
        %v6239 = vadd.f32 %v5886, %v6238
        %v6240 = vpop.f32.mrf.mxu0
        %v6241 = vadd.f32 %v5888, %v6240
        %v6242 = vpop.f32.mrf.mxu0
        %v6243 = vadd.f32 %v5890, %v6242
        %v6244 = vpop.f32.mrf.mxu0
        %v6245 = vadd.f32 %v5892, %v6244
        %6246 = vmatprep.mubr.bf16.mxu0 %v6015
        %6247 = vmatmul.mubr.bf16.gmra.mxu0 %v6014
        %v6248 = vpop.f32.mrf.mxu0
        %v6249 = vadd.f32 %v5896, %v6248
        %v6250 = vpop.f32.mrf.mxu0
        %v6251 = vadd.f32 %v5898, %v6250
        %v6252 = vpop.f32.mrf.mxu0
        %v6253 = vadd.f32 %v5900, %v6252
        %v6254 = vpop.f32.mrf.mxu0
        %v6255 = vadd.f32 %v5902, %v6254
        %6256 = vmatprep.mubr.bf16.mxu0 %v6017
        %6257 = vmatmul.mubr.bf16.gmra.mxu0 %v6016
        %v6258 = vpop.f32.mrf.mxu0
        %v6259 = vadd.f32 %v5906, %v6258
        %v6260 = vpop.f32.mrf.mxu0
        %v6261 = vadd.f32 %v5908, %v6260
        %v6262 = vpop.f32.mrf.mxu0
        %v6263 = vadd.f32 %v5910, %v6262
        %v6264 = vpop.f32.mrf.mxu0
        %v6265 = vadd.f32 %v5912, %v6264
        %6266 = vmatprep.mubr.bf16.mxu0 %v6019
        %6267 = vmatmul.mubr.bf16.gmra.mxu0 %v6018
        %v6268 = vpop.f32.mrf.mxu0
        %v6269 = vadd.f32 %v5916, %v6268
        %v6270 = vpop.f32.mrf.mxu0
        %v6271 = vadd.f32 %v5918, %v6270
        %v6272 = vpop.f32.mrf.mxu0
        %v6273 = vadd.f32 %v5920, %v6272
        %v6274 = vpop.f32.mrf.mxu0
        %v6275 = vadd.f32 %v5922, %v6274
        %6276 = vmatprep.mubr.bf16.mxu0 %v6021
        %6277 = vmatmul.mubr.bf16.gmra.mxu0 %v6020
        %v6278 = vpop.f32.mrf.mxu0
        %v6279 = vadd.f32 %v5926, %v6278
        %v6280 = vpop.f32.mrf.mxu0
        %v6281 = vadd.f32 %v5928, %v6280
        %v6282 = vpop.f32.mrf.mxu0
        %v6283 = vadd.f32 %v5930, %v6282
        %v6284 = vpop.f32.mrf.mxu0
        %v6285 = vadd.f32 %v5932, %v6284
        %6286 = vmatprep.mubr.bf16.mxu0 %v6023
        %6287 = vmatmul.mubr.bf16.gmra.mxu0 %v6022
        %v6288 = vpop.f32.mrf.mxu0
        %v6289 = vadd.f32 %v5936, %v6288
        %v6290 = vpop.f32.mrf.mxu0
        %v6291 = vadd.f32 %v5938, %v6290
        %v6292 = vpop.f32.mrf.mxu0
        %v6293 = vadd.f32 %v5940, %v6292
        %v6294 = vpop.f32.mrf.mxu0
        %v6295 = vadd.f32 %v5942, %v6294
        %6296 = vmatprep.mubr.bf16.mxu0 %v6025
        %6297 = vmatmul.mubr.bf16.gmra.mxu0 %v6024
        %v6298 = vpop.f32.mrf.mxu0
        %v6299 = vadd.f32 %v5946, %v6298
        %v6300 = vpop.f32.mrf.mxu0
        %v6301 = vadd.f32 %v5948, %v6300
        %v6302 = vpop.f32.mrf.mxu0
        %v6303 = vadd.f32 %v5950, %v6302
        %v6304 = vpop.f32.mrf.mxu0
        %v6305 = vadd.f32 %v5952, %v6304
        %6306 = vmatprep.mubr.bf16.mxu0 %v6027
        %6307 = vmatmul.mubr.bf16.gmra.mxu0 %v6026
        %v6308 = vpop.f32.mrf.mxu0
        %v6309 = vadd.f32 %v5956, %v6308
        %v6310 = vpop.f32.mrf.mxu0
        %v6311 = vadd.f32 %v5958, %v6310
        %v6312 = vpop.f32.mrf.mxu0
        %v6313 = vadd.f32 %v5960, %v6312
        %v6314 = vpop.f32.mrf.mxu0
        %v6315 = vadd.f32 %v5962, %v6314
        %6316 = vdwg.mxu0
        %v6317 = vld [vmem:[%s5416] sm:$0xff]
        %v6318 = vld [vmem:[%s5416 + $0x8] sm:$0xff]
        %v6319 = vld [vmem:[%s5416 + $0x10] sm:$0xff]
        %v6320 = vld [vmem:[%s5416 + $0x18] sm:$0xff]
        %v6321 = vld [vmem:[%s5416 + $0x20] sm:$0xff]
        %v6322 = vld [vmem:[%s5416 + $0x28] sm:$0xff]
        %v6323 = vld [vmem:[%s5416 + $0x30] sm:$0xff]
        %v6324 = vld [vmem:[%s5416 + $0x38] sm:$0xff]
        %v6325 = vld [vmem:[%s5416 + $0x40] sm:$0xff]
        %v6326 = vld [vmem:[%s5416 + $0x48] sm:$0xff]
        %v6327 = vld [vmem:[%s5416 + $0x50] sm:$0xff]
        %v6328 = vld [vmem:[%s5416 + $0x58] sm:$0xff]
        %v6329 = vld [vmem:[%s5416 + $0x60] sm:$0xff]
        %v6330 = vld [vmem:[%s5416 + $0x68] sm:$0xff]
        %v6331 = vld [vmem:[%s5416 + $0x70] sm:$0xff]
        %v6332 = vld [vmem:[%s5416 + $0x78] sm:$0xff]
        %s6333 = scalar_lea.vmem [#allocation14], 512
        %v6334 = vld [vmem:[%s6333] sm:$0xff]
        %v6335 = vld [vmem:[%s6333 + $0x8] sm:$0xff]
        %v6336 = vld [vmem:[%s6333 + $0x10] sm:$0xff]
        %v6337 = vld [vmem:[%s6333 + $0x18] sm:$0xff]
        %v6338 = vld [vmem:[%s6333 + $0x20] sm:$0xff]
        %v6339 = vld [vmem:[%s6333 + $0x28] sm:$0xff]
        %v6340 = vld [vmem:[%s6333 + $0x30] sm:$0xff]
        %v6341 = vld [vmem:[%s6333 + $0x38] sm:$0xff]
        %v6342 = vld [vmem:[%s6333 + $0x40] sm:$0xff]
        %v6343 = vld [vmem:[%s6333 + $0x48] sm:$0xff]
        %v6344 = vld [vmem:[%s6333 + $0x50] sm:$0xff]
        %v6345 = vld [vmem:[%s6333 + $0x58] sm:$0xff]
        %v6346 = vld [vmem:[%s6333 + $0x60] sm:$0xff]
        %v6347 = vld [vmem:[%s6333 + $0x68] sm:$0xff]
        %v6348 = vld [vmem:[%s6333 + $0x70] sm:$0xff]
        %v6349 = vld [vmem:[%s6333 + $0x78] sm:$0xff]
        %v6350 = vld [vmem:[%s6333 + $0x80] sm:$0xff]
        %v6351 = vld [vmem:[%s6333 + $0x88] sm:$0xff]
        %v6352 = vld [vmem:[%s6333 + $0x90] sm:$0xff]
        %v6353 = vld [vmem:[%s6333 + $0x98] sm:$0xff]
        %v6354 = vld [vmem:[%s6333 + $0xa0] sm:$0xff]
        %v6355 = vld [vmem:[%s6333 + $0xa8] sm:$0xff]
        %v6356 = vld [vmem:[%s6333 + $0xb0] sm:$0xff]
        %v6357 = vld [vmem:[%s6333 + $0xb8] sm:$0xff]
        %v6358 = vld [vmem:[%s6333 + $0xc0] sm:$0xff]
        %v6359 = vld [vmem:[%s6333 + $0xc8] sm:$0xff]
        %v6360 = vld [vmem:[%s6333 + $0xd0] sm:$0xff]
        %v6361 = vld [vmem:[%s6333 + $0xd8] sm:$0xff]
        %v6362 = vld [vmem:[%s6333 + $0xe0] sm:$0xff]
        %v6363 = vld [vmem:[%s6333 + $0xe8] sm:$0xff]
        %v6364 = vld [vmem:[%s6333 + $0xf0] sm:$0xff]
        %v6365 = vld [vmem:[%s6333 + $0xf8] sm:$0xff]
        %v6382 = vunpack.c.l.b16 %v6317
        %v6383 = vunpack.c.h.b16 %v6317
        %v6384 = vunpack.c.l.b16 %v6318
        %v6385 = vunpack.c.h.b16 %v6318
        %v6386 = vunpack.c.l.b16 %v6319
        %v6387 = vunpack.c.h.b16 %v6319
        %v6388 = vunpack.c.l.b16 %v6320
        %v6389 = vunpack.c.h.b16 %v6320
        %v6390 = vunpack.c.l.b16 %v6321
        %v6391 = vunpack.c.h.b16 %v6321
        %v6392 = vunpack.c.l.b16 %v6322
        %v6393 = vunpack.c.h.b16 %v6322
        %v6394 = vunpack.c.l.b16 %v6323
        %v6395 = vunpack.c.h.b16 %v6323
        %v6396 = vunpack.c.l.b16 %v6324
        %v6397 = vunpack.c.h.b16 %v6324
        %v6398 = vunpack.c.l.b16 %v6325
        %v6399 = vunpack.c.h.b16 %v6325
        %v6400 = vunpack.c.l.b16 %v6326
        %v6401 = vunpack.c.h.b16 %v6326
        %v6402 = vunpack.c.l.b16 %v6327
        %v6403 = vunpack.c.h.b16 %v6327
        %v6404 = vunpack.c.l.b16 %v6328
        %v6405 = vunpack.c.h.b16 %v6328
        %v6406 = vunpack.c.l.b16 %v6329
        %v6407 = vunpack.c.h.b16 %v6329
        %v6408 = vunpack.c.l.b16 %v6330
        %v6409 = vunpack.c.h.b16 %v6330
        %v6410 = vunpack.c.l.b16 %v6331
        %v6411 = vunpack.c.h.b16 %v6331
        %v6412 = vunpack.c.l.b16 %v6332
        %v6413 = vunpack.c.h.b16 %v6332
        %v6414 = vpack.c.b16 %v6384, %v6382
        %v6415 = vpack.c.b16 %v6385, %v6383
        %v6416 = vpack.c.b16 %v6388, %v6386
        %v6417 = vpack.c.b16 %v6389, %v6387
        %v6418 = vpack.c.b16 %v6392, %v6390
        %v6419 = vpack.c.b16 %v6393, %v6391
        %v6420 = vpack.c.b16 %v6396, %v6394
        %v6421 = vpack.c.b16 %v6397, %v6395
        %v6422 = vpack.c.b16 %v6400, %v6398
        %v6423 = vpack.c.b16 %v6401, %v6399
        %v6424 = vpack.c.b16 %v6404, %v6402
        %v6425 = vpack.c.b16 %v6405, %v6403
        %v6426 = vpack.c.b16 %v6408, %v6406
        %v6427 = vpack.c.b16 %v6409, %v6407
        %v6428 = vpack.c.b16 %v6412, %v6410
        %v6429 = vpack.c.b16 %v6413, %v6411
        %v6478 = vunpack.c.l.b16 %v6334
        %v6479 = vunpack.c.h.b16 %v6334
        %v6480 = vunpack.c.l.b16 %v6335
        %v6481 = vunpack.c.h.b16 %v6335
        %v6482 = vunpack.c.l.b16 %v6336
        %v6483 = vunpack.c.h.b16 %v6336
        %v6484 = vunpack.c.l.b16 %v6337
        %v6485 = vunpack.c.h.b16 %v6337
        %v6486 = vunpack.c.l.b16 %v6338
        %v6487 = vunpack.c.h.b16 %v6338
        %v6488 = vunpack.c.l.b16 %v6339
        %v6489 = vunpack.c.h.b16 %v6339
        %v6490 = vunpack.c.l.b16 %v6340
        %v6491 = vunpack.c.h.b16 %v6340
        %v6492 = vunpack.c.l.b16 %v6341
        %v6493 = vunpack.c.h.b16 %v6341
        %v6494 = vunpack.c.l.b16 %v6342
        %v6495 = vunpack.c.h.b16 %v6342
        %v6496 = vunpack.c.l.b16 %v6343
        %v6497 = vunpack.c.h.b16 %v6343
        %v6498 = vunpack.c.l.b16 %v6344
        %v6499 = vunpack.c.h.b16 %v6344
        %v6500 = vunpack.c.l.b16 %v6345
        %v6501 = vunpack.c.h.b16 %v6345
        %v6502 = vunpack.c.l.b16 %v6346
        %v6503 = vunpack.c.h.b16 %v6346
        %v6504 = vunpack.c.l.b16 %v6347
        %v6505 = vunpack.c.h.b16 %v6347
        %v6506 = vunpack.c.l.b16 %v6348
        %v6507 = vunpack.c.h.b16 %v6348
        %v6508 = vunpack.c.l.b16 %v6349
        %v6509 = vunpack.c.h.b16 %v6349
        %v6510 = vunpack.c.l.b16 %v6350
        %v6511 = vunpack.c.h.b16 %v6350
        %v6512 = vunpack.c.l.b16 %v6351
        %v6513 = vunpack.c.h.b16 %v6351
        %v6514 = vunpack.c.l.b16 %v6352
        %v6515 = vunpack.c.h.b16 %v6352
        %v6516 = vunpack.c.l.b16 %v6353
        %v6517 = vunpack.c.h.b16 %v6353
        %v6518 = vunpack.c.l.b16 %v6354
        %v6519 = vunpack.c.h.b16 %v6354
        %v6520 = vunpack.c.l.b16 %v6355
        %v6521 = vunpack.c.h.b16 %v6355
        %v6522 = vunpack.c.l.b16 %v6356
        %v6523 = vunpack.c.h.b16 %v6356
        %v6524 = vunpack.c.l.b16 %v6357
        %v6525 = vunpack.c.h.b16 %v6357
        %v6526 = vunpack.c.l.b16 %v6358
        %v6527 = vunpack.c.h.b16 %v6358
        %v6528 = vunpack.c.l.b16 %v6359
        %v6529 = vunpack.c.h.b16 %v6359
        %v6530 = vunpack.c.l.b16 %v6360
        %v6531 = vunpack.c.h.b16 %v6360
        %v6532 = vunpack.c.l.b16 %v6361
        %v6533 = vunpack.c.h.b16 %v6361
        %v6534 = vunpack.c.l.b16 %v6362
        %v6535 = vunpack.c.h.b16 %v6362
        %v6536 = vunpack.c.l.b16 %v6363
        %v6537 = vunpack.c.h.b16 %v6363
        %v6538 = vunpack.c.l.b16 %v6364
        %v6539 = vunpack.c.h.b16 %v6364
        %v6540 = vunpack.c.l.b16 %v6365
        %v6541 = vunpack.c.h.b16 %v6365
        %v6542 = vpack.c.b16 %v6480, %v6478
        %v6543 = vpack.c.b16 %v6481, %v6479
        %v6544 = vpack.c.b16 %v6484, %v6482
        %v6545 = vpack.c.b16 %v6485, %v6483
        %v6546 = vpack.c.b16 %v6488, %v6486
        %v6547 = vpack.c.b16 %v6489, %v6487
        %v6548 = vpack.c.b16 %v6492, %v6490
        %v6549 = vpack.c.b16 %v6493, %v6491
        %v6550 = vpack.c.b16 %v6496, %v6494
        %v6551 = vpack.c.b16 %v6497, %v6495
        %v6552 = vpack.c.b16 %v6500, %v6498
        %v6553 = vpack.c.b16 %v6501, %v6499
        %v6554 = vpack.c.b16 %v6504, %v6502
        %v6555 = vpack.c.b16 %v6505, %v6503
        %v6556 = vpack.c.b16 %v6508, %v6506
        %v6557 = vpack.c.b16 %v6509, %v6507
        %v6558 = vpack.c.b16 %v6512, %v6510
        %v6559 = vpack.c.b16 %v6513, %v6511
        %v6560 = vpack.c.b16 %v6516, %v6514
        %v6561 = vpack.c.b16 %v6517, %v6515
        %v6562 = vpack.c.b16 %v6520, %v6518
        %v6563 = vpack.c.b16 %v6521, %v6519
        %v6564 = vpack.c.b16 %v6524, %v6522
        %v6565 = vpack.c.b16 %v6525, %v6523
        %v6566 = vpack.c.b16 %v6528, %v6526
        %v6567 = vpack.c.b16 %v6529, %v6527
        %v6568 = vpack.c.b16 %v6532, %v6530
        %v6569 = vpack.c.b16 %v6533, %v6531
        %v6570 = vpack.c.b16 %v6536, %v6534
        %v6571 = vpack.c.b16 %v6537, %v6535
        %v6572 = vpack.c.b16 %v6540, %v6538
        %v6573 = vpack.c.b16 %v6541, %v6539
        %6606 = vmatprep.subr.bf16.mxu0 %v6557
        %6607 = vmatpush1.bf16.msra.mxu0 %v6556
        %6608 = vmatprep.subr.bf16.mxu0 %v6555
        %6609 = vmatpush1.bf16.msra.mxu0 %v6554
        %6610 = vmatprep.subr.bf16.mxu0 %v6553
        %6611 = vmatpush1.bf16.msra.mxu0 %v6552
        %6612 = vmatprep.subr.bf16.mxu0 %v6551
        %6613 = vmatpush1.bf16.msra.mxu0 %v6550
        %6614 = vmatprep.subr.bf16.mxu0 %v6549
        %6615 = vmatpush1.bf16.msra.mxu0 %v6548
        %6616 = vmatprep.subr.bf16.mxu0 %v6547
        %6617 = vmatpush1.bf16.msra.mxu0 %v6546
        %6618 = vmatprep.subr.bf16.mxu0 %v6545
        %6619 = vmatpush1.bf16.msra.mxu0 %v6544
        %6620 = vmatprep.subr.bf16.mxu0 %v6543
        %6621 = vmatpush1.bf16.msra.mxu0 %v6542
        %6622 = vmatprep.subr.bf16.mxu0 %v6573
        %6623 = vmatpush2.bf16.msra.mxu0 %v6572
        %6624 = vmatprep.subr.bf16.mxu0 %v6571
        %6625 = vmatpush2.bf16.msra.mxu0 %v6570
        %6626 = vmatprep.subr.bf16.mxu0 %v6569
        %6627 = vmatpush2.bf16.msra.mxu0 %v6568
        %6628 = vmatprep.subr.bf16.mxu0 %v6567
        %6629 = vmatpush2.bf16.msra.mxu0 %v6566
        %6630 = vmatprep.subr.bf16.mxu0 %v6565
        %6631 = vmatpush2.bf16.msra.mxu0 %v6564
        %6632 = vmatprep.subr.bf16.mxu0 %v6563
        %6633 = vmatpush2.bf16.msra.mxu0 %v6562
        %6634 = vmatprep.subr.bf16.mxu0 %v6561
        %6635 = vmatpush2.bf16.msra.mxu0 %v6560
        %6636 = vmatprep.subr.bf16.mxu0 %v6559
        %6637 = vmatpush2.bf16.msra.mxu0 %v6558
        %6638 = vmatprep.mubr.bf16.mxu0 %v6415
        %6639 = vmatmul.mubr.bf16.gmra.mxu0 %v6414
        %v6640 = vpop.f32.mrf.mxu0
        %v6641 = vadd.f32 0.0, %v6640
        %v6642 = vpop.f32.mrf.mxu0
        %v6643 = vadd.f32 0.0, %v6642
        %v6644 = vpop.f32.mrf.mxu0
        %v6645 = vadd.f32 0.0, %v6644
        %v6646 = vpop.f32.mrf.mxu0
        %v6647 = vadd.f32 0.0, %v6646
        %6648 = vmatprep.mubr.bf16.mxu0 %v6417
        %6649 = vmatmul.mubr.bf16.gmra.mxu0 %v6416
        %v6650 = vpop.f32.mrf.mxu0
        %v6651 = vadd.f32 0.0, %v6650
        %v6652 = vpop.f32.mrf.mxu0
        %v6653 = vadd.f32 0.0, %v6652
        %v6654 = vpop.f32.mrf.mxu0
        %v6655 = vadd.f32 0.0, %v6654
        %v6656 = vpop.f32.mrf.mxu0
        %v6657 = vadd.f32 0.0, %v6656
        %6658 = vmatprep.mubr.bf16.mxu0 %v6419
        %6659 = vmatmul.mubr.bf16.gmra.mxu0 %v6418
        %v6660 = vpop.f32.mrf.mxu0
        %v6661 = vadd.f32 0.0, %v6660
        %v6662 = vpop.f32.mrf.mxu0
        %v6663 = vadd.f32 0.0, %v6662
        %v6664 = vpop.f32.mrf.mxu0
        %v6665 = vadd.f32 0.0, %v6664
        %v6666 = vpop.f32.mrf.mxu0
        %v6667 = vadd.f32 0.0, %v6666
        %6668 = vmatprep.mubr.bf16.mxu0 %v6421
        %6669 = vmatmul.mubr.bf16.gmra.mxu0 %v6420
        %v6670 = vpop.f32.mrf.mxu0
        %v6671 = vadd.f32 0.0, %v6670
        %v6672 = vpop.f32.mrf.mxu0
        %v6673 = vadd.f32 0.0, %v6672
        %v6674 = vpop.f32.mrf.mxu0
        %v6675 = vadd.f32 0.0, %v6674
        %v6676 = vpop.f32.mrf.mxu0
        %v6677 = vadd.f32 0.0, %v6676
        %6678 = vmatprep.mubr.bf16.mxu0 %v6423
        %6679 = vmatmul.mubr.bf16.gmra.mxu0 %v6422
        %v6680 = vpop.f32.mrf.mxu0
        %v6681 = vadd.f32 0.0, %v6680
        %v6682 = vpop.f32.mrf.mxu0
        %v6683 = vadd.f32 0.0, %v6682
        %v6684 = vpop.f32.mrf.mxu0
        %v6685 = vadd.f32 0.0, %v6684
        %v6686 = vpop.f32.mrf.mxu0
        %v6687 = vadd.f32 0.0, %v6686
        %6688 = vmatprep.mubr.bf16.mxu0 %v6425
        %6689 = vmatmul.mubr.bf16.gmra.mxu0 %v6424
        %v6690 = vpop.f32.mrf.mxu0
        %v6691 = vadd.f32 0.0, %v6690
        %v6692 = vpop.f32.mrf.mxu0
        %v6693 = vadd.f32 0.0, %v6692
        %v6694 = vpop.f32.mrf.mxu0
        %v6695 = vadd.f32 0.0, %v6694
        %v6696 = vpop.f32.mrf.mxu0
        %v6697 = vadd.f32 0.0, %v6696
        %6698 = vmatprep.mubr.bf16.mxu0 %v6427
        %6699 = vmatmul.mubr.bf16.gmra.mxu0 %v6426
        %v6700 = vpop.f32.mrf.mxu0
        %v6701 = vadd.f32 0.0, %v6700
        %v6702 = vpop.f32.mrf.mxu0
        %v6703 = vadd.f32 0.0, %v6702
        %v6704 = vpop.f32.mrf.mxu0
        %v6705 = vadd.f32 0.0, %v6704
        %v6706 = vpop.f32.mrf.mxu0
        %v6707 = vadd.f32 0.0, %v6706
        %6708 = vmatprep.mubr.bf16.mxu0 %v6429
        %6709 = vmatmul.mubr.bf16.gmra.mxu0 %v6428
        %v6710 = vpop.f32.mrf.mxu0
        %v6711 = vadd.f32 0.0, %v6710
        %v6712 = vpop.f32.mrf.mxu0
        %v6713 = vadd.f32 0.0, %v6712
        %v6714 = vpop.f32.mrf.mxu0
        %v6715 = vadd.f32 0.0, %v6714
        %v6716 = vpop.f32.mrf.mxu0
        %v6717 = vadd.f32 0.0, %v6716
        %6718 = vdwg.mxu0
        %v6719 = vadd.f32 %v6239, %v6641
        %v6720 = vadd.f32 %v6241, %v6643
        %v6721 = vadd.f32 %v6243, %v6645
        %v6722 = vadd.f32 %v6245, %v6647
        %v6723 = vadd.f32 %v6249, %v6651
        %v6724 = vadd.f32 %v6251, %v6653
        %v6725 = vadd.f32 %v6253, %v6655
        %v6726 = vadd.f32 %v6255, %v6657
        %v6727 = vadd.f32 %v6259, %v6661
        %v6728 = vadd.f32 %v6261, %v6663
        %v6729 = vadd.f32 %v6263, %v6665
        %v6730 = vadd.f32 %v6265, %v6667
        %v6731 = vadd.f32 %v6269, %v6671
        %v6732 = vadd.f32 %v6271, %v6673
        %v6733 = vadd.f32 %v6273, %v6675
        %v6734 = vadd.f32 %v6275, %v6677
        %v6735 = vadd.f32 %v6279, %v6681
        %v6736 = vadd.f32 %v6281, %v6683
        %v6737 = vadd.f32 %v6283, %v6685
        %v6738 = vadd.f32 %v6285, %v6687
        %v6739 = vadd.f32 %v6289, %v6691
        %v6740 = vadd.f32 %v6291, %v6693
        %v6741 = vadd.f32 %v6293, %v6695
        %v6742 = vadd.f32 %v6295, %v6697
        %v6743 = vadd.f32 %v6299, %v6701
        %v6744 = vadd.f32 %v6301, %v6703
        %v6745 = vadd.f32 %v6303, %v6705
        %v6746 = vadd.f32 %v6305, %v6707
        %v6747 = vadd.f32 %v6309, %v6711
        %v6748 = vadd.f32 %v6311, %v6713
        %v6749 = vadd.f32 %v6313, %v6715
        %v6750 = vadd.f32 %v6315, %v6717
        %s6751 = scalar_lea.vmem [#allocation3], 48
        %v6752 = vld [vmem:[%s6751] sm:$0xff]
        %v6753 = vld [vmem:[%s6751 + $0x8] sm:$0xff]
        %v6754 = vld [vmem:[%s6751 + $0x10] sm:$0xff]
        %v6755 = vld [vmem:[%s6751 + $0x18] sm:$0xff]
        %v6756 = vld [vmem:[%s6751 + $0x20] sm:$0xff]
        %v6757 = vld [vmem:[%s6751 + $0x28] sm:$0xff]
        %v6758 = vld [vmem:[%s6751 + $0x30] sm:$0xff]
        %v6759 = vld [vmem:[%s6751 + $0x38] sm:$0xff]
        %v6760 = vld [vmem:[%s6751 + $0x40] sm:$0xff]
        %v6761 = vld [vmem:[%s6751 + $0x48] sm:$0xff]
        %v6762 = vld [vmem:[%s6751 + $0x50] sm:$0xff]
        %v6763 = vld [vmem:[%s6751 + $0x58] sm:$0xff]
        %v6764 = vld [vmem:[%s6751 + $0x60] sm:$0xff]
        %v6765 = vld [vmem:[%s6751 + $0x68] sm:$0xff]
        %v6766 = vld [vmem:[%s6751 + $0x70] sm:$0xff]
        %v6767 = vld [vmem:[%s6751 + $0x78] sm:$0xff]
        %s6768 = scalar_lea.vmem [#allocation14], 768
        %v6769 = vld [vmem:[%s6768] sm:$0xff]
        %v6770 = vld [vmem:[%s6768 + $0x8] sm:$0xff]
        %v6771 = vld [vmem:[%s6768 + $0x10] sm:$0xff]
        %v6772 = vld [vmem:[%s6768 + $0x18] sm:$0xff]
        %v6773 = vld [vmem:[%s6768 + $0x20] sm:$0xff]
        %v6774 = vld [vmem:[%s6768 + $0x28] sm:$0xff]
        %v6775 = vld [vmem:[%s6768 + $0x30] sm:$0xff]
        %v6776 = vld [vmem:[%s6768 + $0x38] sm:$0xff]
        %v6777 = vld [vmem:[%s6768 + $0x40] sm:$0xff]
        %v6778 = vld [vmem:[%s6768 + $0x48] sm:$0xff]
        %v6779 = vld [vmem:[%s6768 + $0x50] sm:$0xff]
        %v6780 = vld [vmem:[%s6768 + $0x58] sm:$0xff]
        %v6781 = vld [vmem:[%s6768 + $0x60] sm:$0xff]
        %v6782 = vld [vmem:[%s6768 + $0x68] sm:$0xff]
        %v6783 = vld [vmem:[%s6768 + $0x70] sm:$0xff]
        %v6784 = vld [vmem:[%s6768 + $0x78] sm:$0xff]
        %v6785 = vld [vmem:[%s6768 + $0x80] sm:$0xff]
        %v6786 = vld [vmem:[%s6768 + $0x88] sm:$0xff]
        %v6787 = vld [vmem:[%s6768 + $0x90] sm:$0xff]
        %v6788 = vld [vmem:[%s6768 + $0x98] sm:$0xff]
        %v6789 = vld [vmem:[%s6768 + $0xa0] sm:$0xff]
        %v6790 = vld [vmem:[%s6768 + $0xa8] sm:$0xff]
        %v6791 = vld [vmem:[%s6768 + $0xb0] sm:$0xff]
        %v6792 = vld [vmem:[%s6768 + $0xb8] sm:$0xff]
        %v6793 = vld [vmem:[%s6768 + $0xc0] sm:$0xff]
        %v6794 = vld [vmem:[%s6768 + $0xc8] sm:$0xff]
        %v6795 = vld [vmem:[%s6768 + $0xd0] sm:$0xff]
        %v6796 = vld [vmem:[%s6768 + $0xd8] sm:$0xff]
        %v6797 = vld [vmem:[%s6768 + $0xe0] sm:$0xff]
        %v6798 = vld [vmem:[%s6768 + $0xe8] sm:$0xff]
        %v6799 = vld [vmem:[%s6768 + $0xf0] sm:$0xff]
        %v6800 = vld [vmem:[%s6768 + $0xf8] sm:$0xff]
        %v6817 = vunpack.c.l.b16 %v6752
        %v6818 = vunpack.c.h.b16 %v6752
        %v6819 = vunpack.c.l.b16 %v6753
        %v6820 = vunpack.c.h.b16 %v6753
        %v6821 = vunpack.c.l.b16 %v6754
        %v6822 = vunpack.c.h.b16 %v6754
        %v6823 = vunpack.c.l.b16 %v6755
        %v6824 = vunpack.c.h.b16 %v6755
        %v6825 = vunpack.c.l.b16 %v6756
        %v6826 = vunpack.c.h.b16 %v6756
        %v6827 = vunpack.c.l.b16 %v6757
        %v6828 = vunpack.c.h.b16 %v6757
        %v6829 = vunpack.c.l.b16 %v6758
        %v6830 = vunpack.c.h.b16 %v6758
        %v6831 = vunpack.c.l.b16 %v6759
        %v6832 = vunpack.c.h.b16 %v6759
        %v6833 = vunpack.c.l.b16 %v6760
        %v6834 = vunpack.c.h.b16 %v6760
        %v6835 = vunpack.c.l.b16 %v6761
        %v6836 = vunpack.c.h.b16 %v6761
        %v6837 = vunpack.c.l.b16 %v6762
        %v6838 = vunpack.c.h.b16 %v6762
        %v6839 = vunpack.c.l.b16 %v6763
        %v6840 = vunpack.c.h.b16 %v6763
        %v6841 = vunpack.c.l.b16 %v6764
        %v6842 = vunpack.c.h.b16 %v6764
        %v6843 = vunpack.c.l.b16 %v6765
        %v6844 = vunpack.c.h.b16 %v6765
        %v6845 = vunpack.c.l.b16 %v6766
        %v6846 = vunpack.c.h.b16 %v6766
        %v6847 = vunpack.c.l.b16 %v6767
        %v6848 = vunpack.c.h.b16 %v6767
        %v6849 = vpack.c.b16 %v6819, %v6817
        %v6850 = vpack.c.b16 %v6820, %v6818
        %v6851 = vpack.c.b16 %v6823, %v6821
        %v6852 = vpack.c.b16 %v6824, %v6822
        %v6853 = vpack.c.b16 %v6827, %v6825
        %v6854 = vpack.c.b16 %v6828, %v6826
        %v6855 = vpack.c.b16 %v6831, %v6829
        %v6856 = vpack.c.b16 %v6832, %v6830
        %v6857 = vpack.c.b16 %v6835, %v6833
        %v6858 = vpack.c.b16 %v6836, %v6834
        %v6859 = vpack.c.b16 %v6839, %v6837
        %v6860 = vpack.c.b16 %v6840, %v6838
        %v6861 = vpack.c.b16 %v6843, %v6841
        %v6862 = vpack.c.b16 %v6844, %v6842
        %v6863 = vpack.c.b16 %v6847, %v6845
        %v6864 = vpack.c.b16 %v6848, %v6846
        %v6913 = vunpack.c.l.b16 %v6769
        %v6914 = vunpack.c.h.b16 %v6769
        %v6915 = vunpack.c.l.b16 %v6770
        %v6916 = vunpack.c.h.b16 %v6770
        %v6917 = vunpack.c.l.b16 %v6771
        %v6918 = vunpack.c.h.b16 %v6771
        %v6919 = vunpack.c.l.b16 %v6772
        %v6920 = vunpack.c.h.b16 %v6772
        %v6921 = vunpack.c.l.b16 %v6773
        %v6922 = vunpack.c.h.b16 %v6773
        %v6923 = vunpack.c.l.b16 %v6774
        %v6924 = vunpack.c.h.b16 %v6774
        %v6925 = vunpack.c.l.b16 %v6775
        %v6926 = vunpack.c.h.b16 %v6775
        %v6927 = vunpack.c.l.b16 %v6776
        %v6928 = vunpack.c.h.b16 %v6776
        %v6929 = vunpack.c.l.b16 %v6777
        %v6930 = vunpack.c.h.b16 %v6777
        %v6931 = vunpack.c.l.b16 %v6778
        %v6932 = vunpack.c.h.b16 %v6778
        %v6933 = vunpack.c.l.b16 %v6779
        %v6934 = vunpack.c.h.b16 %v6779
        %v6935 = vunpack.c.l.b16 %v6780
        %v6936 = vunpack.c.h.b16 %v6780
        %v6937 = vunpack.c.l.b16 %v6781
        %v6938 = vunpack.c.h.b16 %v6781
        %v6939 = vunpack.c.l.b16 %v6782
        %v6940 = vunpack.c.h.b16 %v6782
        %v6941 = vunpack.c.l.b16 %v6783
        %v6942 = vunpack.c.h.b16 %v6783
        %v6943 = vunpack.c.l.b16 %v6784
        %v6944 = vunpack.c.h.b16 %v6784
        %v6945 = vunpack.c.l.b16 %v6785
        %v6946 = vunpack.c.h.b16 %v6785
        %v6947 = vunpack.c.l.b16 %v6786
        %v6948 = vunpack.c.h.b16 %v6786
        %v6949 = vunpack.c.l.b16 %v6787
        %v6950 = vunpack.c.h.b16 %v6787
        %v6951 = vunpack.c.l.b16 %v6788
        %v6952 = vunpack.c.h.b16 %v6788
        %v6953 = vunpack.c.l.b16 %v6789
        %v6954 = vunpack.c.h.b16 %v6789
        %v6955 = vunpack.c.l.b16 %v6790
        %v6956 = vunpack.c.h.b16 %v6790
        %v6957 = vunpack.c.l.b16 %v6791
        %v6958 = vunpack.c.h.b16 %v6791
        %v6959 = vunpack.c.l.b16 %v6792
        %v6960 = vunpack.c.h.b16 %v6792
        %v6961 = vunpack.c.l.b16 %v6793
        %v6962 = vunpack.c.h.b16 %v6793
        %v6963 = vunpack.c.l.b16 %v6794
        %v6964 = vunpack.c.h.b16 %v6794
        %v6965 = vunpack.c.l.b16 %v6795
        %v6966 = vunpack.c.h.b16 %v6795
        %v6967 = vunpack.c.l.b16 %v6796
        %v6968 = vunpack.c.h.b16 %v6796
        %v6969 = vunpack.c.l.b16 %v6797
        %v6970 = vunpack.c.h.b16 %v6797
        %v6971 = vunpack.c.l.b16 %v6798
        %v6972 = vunpack.c.h.b16 %v6798
        %v6973 = vunpack.c.l.b16 %v6799
        %v6974 = vunpack.c.h.b16 %v6799
        %v6975 = vunpack.c.l.b16 %v6800
        %v6976 = vunpack.c.h.b16 %v6800
        %v6977 = vpack.c.b16 %v6915, %v6913
        %v6978 = vpack.c.b16 %v6916, %v6914
        %v6979 = vpack.c.b16 %v6919, %v6917
        %v6980 = vpack.c.b16 %v6920, %v6918
        %v6981 = vpack.c.b16 %v6923, %v6921
        %v6982 = vpack.c.b16 %v6924, %v6922
        %v6983 = vpack.c.b16 %v6927, %v6925
        %v6984 = vpack.c.b16 %v6928, %v6926
        %v6985 = vpack.c.b16 %v6931, %v6929
        %v6986 = vpack.c.b16 %v6932, %v6930
        %v6987 = vpack.c.b16 %v6935, %v6933
        %v6988 = vpack.c.b16 %v6936, %v6934
        %v6989 = vpack.c.b16 %v6939, %v6937
        %v6990 = vpack.c.b16 %v6940, %v6938
        %v6991 = vpack.c.b16 %v6943, %v6941
        %v6992 = vpack.c.b16 %v6944, %v6942
        %v6993 = vpack.c.b16 %v6947, %v6945
        %v6994 = vpack.c.b16 %v6948, %v6946
        %v6995 = vpack.c.b16 %v6951, %v6949
        %v6996 = vpack.c.b16 %v6952, %v6950
        %v6997 = vpack.c.b16 %v6955, %v6953
        %v6998 = vpack.c.b16 %v6956, %v6954
        %v6999 = vpack.c.b16 %v6959, %v6957
        %v7000 = vpack.c.b16 %v6960, %v6958
        %v7001 = vpack.c.b16 %v6963, %v6961
        %v7002 = vpack.c.b16 %v6964, %v6962
        %v7003 = vpack.c.b16 %v6967, %v6965
        %v7004 = vpack.c.b16 %v6968, %v6966
        %v7005 = vpack.c.b16 %v6971, %v6969
        %v7006 = vpack.c.b16 %v6972, %v6970
        %v7007 = vpack.c.b16 %v6975, %v6973
        %v7008 = vpack.c.b16 %v6976, %v6974
        %7041 = vmatprep.subr.bf16.mxu0 %v6992
        %7042 = vmatpush1.bf16.msra.mxu0 %v6991
        %7043 = vmatprep.subr.bf16.mxu0 %v6990
        %7044 = vmatpush1.bf16.msra.mxu0 %v6989
        %7045 = vmatprep.subr.bf16.mxu0 %v6988
        %7046 = vmatpush1.bf16.msra.mxu0 %v6987
        %7047 = vmatprep.subr.bf16.mxu0 %v6986
        %7048 = vmatpush1.bf16.msra.mxu0 %v6985
        %7049 = vmatprep.subr.bf16.mxu0 %v6984
        %7050 = vmatpush1.bf16.msra.mxu0 %v6983
        %7051 = vmatprep.subr.bf16.mxu0 %v6982
        %7052 = vmatpush1.bf16.msra.mxu0 %v6981
        %7053 = vmatprep.subr.bf16.mxu0 %v6980
        %7054 = vmatpush1.bf16.msra.mxu0 %v6979
        %7055 = vmatprep.subr.bf16.mxu0 %v6978
        %7056 = vmatpush1.bf16.msra.mxu0 %v6977
        %7057 = vmatprep.subr.bf16.mxu0 %v7008
        %7058 = vmatpush2.bf16.msra.mxu0 %v7007
        %7059 = vmatprep.subr.bf16.mxu0 %v7006
        %7060 = vmatpush2.bf16.msra.mxu0 %v7005
        %7061 = vmatprep.subr.bf16.mxu0 %v7004
        %7062 = vmatpush2.bf16.msra.mxu0 %v7003
        %7063 = vmatprep.subr.bf16.mxu0 %v7002
        %7064 = vmatpush2.bf16.msra.mxu0 %v7001
        %7065 = vmatprep.subr.bf16.mxu0 %v7000
        %7066 = vmatpush2.bf16.msra.mxu0 %v6999
        %7067 = vmatprep.subr.bf16.mxu0 %v6998
        %7068 = vmatpush2.bf16.msra.mxu0 %v6997
        %7069 = vmatprep.subr.bf16.mxu0 %v6996
        %7070 = vmatpush2.bf16.msra.mxu0 %v6995
        %7071 = vmatprep.subr.bf16.mxu0 %v6994
        %7072 = vmatpush2.bf16.msra.mxu0 %v6993
        %7073 = vmatprep.mubr.bf16.mxu0 %v6850
        %7074 = vmatmul.mubr.bf16.gmra.mxu0 %v6849
        %v7075 = vpop.f32.mrf.mxu0
        %v7076 = vadd.f32 0.0, %v7075
        %v7077 = vpop.f32.mrf.mxu0
        %v7078 = vadd.f32 0.0, %v7077
        %v7079 = vpop.f32.mrf.mxu0
        %v7080 = vadd.f32 0.0, %v7079
        %v7081 = vpop.f32.mrf.mxu0
        %v7082 = vadd.f32 0.0, %v7081
        %7083 = vmatprep.mubr.bf16.mxu0 %v6852
        %7084 = vmatmul.mubr.bf16.gmra.mxu0 %v6851
        %v7085 = vpop.f32.mrf.mxu0
        %v7086 = vadd.f32 0.0, %v7085
        %v7087 = vpop.f32.mrf.mxu0
        %v7088 = vadd.f32 0.0, %v7087
        %v7089 = vpop.f32.mrf.mxu0
        %v7090 = vadd.f32 0.0, %v7089
        %v7091 = vpop.f32.mrf.mxu0
        %v7092 = vadd.f32 0.0, %v7091
        %7093 = vmatprep.mubr.bf16.mxu0 %v6854
        %7094 = vmatmul.mubr.bf16.gmra.mxu0 %v6853
        %v7095 = vpop.f32.mrf.mxu0
        %v7096 = vadd.f32 0.0, %v7095
        %v7097 = vpop.f32.mrf.mxu0
        %v7098 = vadd.f32 0.0, %v7097
        %v7099 = vpop.f32.mrf.mxu0
        %v7100 = vadd.f32 0.0, %v7099
        %v7101 = vpop.f32.mrf.mxu0
        %v7102 = vadd.f32 0.0, %v7101
        %7103 = vmatprep.mubr.bf16.mxu0 %v6856
        %7104 = vmatmul.mubr.bf16.gmra.mxu0 %v6855
        %v7105 = vpop.f32.mrf.mxu0
        %v7106 = vadd.f32 0.0, %v7105
        %v7107 = vpop.f32.mrf.mxu0
        %v7108 = vadd.f32 0.0, %v7107
        %v7109 = vpop.f32.mrf.mxu0
        %v7110 = vadd.f32 0.0, %v7109
        %v7111 = vpop.f32.mrf.mxu0
        %v7112 = vadd.f32 0.0, %v7111
        %7113 = vmatprep.mubr.bf16.mxu0 %v6858
        %7114 = vmatmul.mubr.bf16.gmra.mxu0 %v6857
        %v7115 = vpop.f32.mrf.mxu0
        %v7116 = vadd.f32 0.0, %v7115
        %v7117 = vpop.f32.mrf.mxu0
        %v7118 = vadd.f32 0.0, %v7117
        %v7119 = vpop.f32.mrf.mxu0
        %v7120 = vadd.f32 0.0, %v7119
        %v7121 = vpop.f32.mrf.mxu0
        %v7122 = vadd.f32 0.0, %v7121
        %7123 = vmatprep.mubr.bf16.mxu0 %v6860
        %7124 = vmatmul.mubr.bf16.gmra.mxu0 %v6859
        %v7125 = vpop.f32.mrf.mxu0
        %v7126 = vadd.f32 0.0, %v7125
        %v7127 = vpop.f32.mrf.mxu0
        %v7128 = vadd.f32 0.0, %v7127
        %v7129 = vpop.f32.mrf.mxu0
        %v7130 = vadd.f32 0.0, %v7129
        %v7131 = vpop.f32.mrf.mxu0
        %v7132 = vadd.f32 0.0, %v7131
        %7133 = vmatprep.mubr.bf16.mxu0 %v6862
        %7134 = vmatmul.mubr.bf16.gmra.mxu0 %v6861
        %v7135 = vpop.f32.mrf.mxu0
        %v7136 = vadd.f32 0.0, %v7135
        %v7137 = vpop.f32.mrf.mxu0
        %v7138 = vadd.f32 0.0, %v7137
        %v7139 = vpop.f32.mrf.mxu0
        %v7140 = vadd.f32 0.0, %v7139
        %v7141 = vpop.f32.mrf.mxu0
        %v7142 = vadd.f32 0.0, %v7141
        %7143 = vmatprep.mubr.bf16.mxu0 %v6864
        %7144 = vmatmul.mubr.bf16.gmra.mxu0 %v6863
        %v7145 = vpop.f32.mrf.mxu0
        %v7146 = vadd.f32 0.0, %v7145
        %v7147 = vpop.f32.mrf.mxu0
        %v7148 = vadd.f32 0.0, %v7147
        %v7149 = vpop.f32.mrf.mxu0
        %v7150 = vadd.f32 0.0, %v7149
        %v7151 = vpop.f32.mrf.mxu0
        %v7152 = vadd.f32 0.0, %v7151
        %7153 = vdwg.mxu0
        %v7154 = vadd.f32 %v6719, %v7076
        %v7155 = vadd.f32 %v6720, %v7078
        %v7156 = vadd.f32 %v6721, %v7080
        %v7157 = vadd.f32 %v6722, %v7082
        %v7158 = vadd.f32 %v6723, %v7086
        %v7159 = vadd.f32 %v6724, %v7088
        %v7160 = vadd.f32 %v6725, %v7090
        %v7161 = vadd.f32 %v6726, %v7092
        %v7162 = vadd.f32 %v6727, %v7096
        %v7163 = vadd.f32 %v6728, %v7098
        %v7164 = vadd.f32 %v6729, %v7100
        %v7165 = vadd.f32 %v6730, %v7102
        %v7166 = vadd.f32 %v6731, %v7106
        %v7167 = vadd.f32 %v6732, %v7108
        %v7168 = vadd.f32 %v6733, %v7110
        %v7169 = vadd.f32 %v6734, %v7112
        %v7170 = vadd.f32 %v6735, %v7116
        %v7171 = vadd.f32 %v6736, %v7118
        %v7172 = vadd.f32 %v6737, %v7120
        %v7173 = vadd.f32 %v6738, %v7122
        %v7174 = vadd.f32 %v6739, %v7126
        %v7175 = vadd.f32 %v6740, %v7128
        %v7176 = vadd.f32 %v6741, %v7130
        %v7177 = vadd.f32 %v6742, %v7132
        %v7178 = vadd.f32 %v6743, %v7136
        %v7179 = vadd.f32 %v6744, %v7138
        %v7180 = vadd.f32 %v6745, %v7140
        %v7181 = vadd.f32 %v6746, %v7142
        %v7182 = vadd.f32 %v6747, %v7146
        %v7183 = vadd.f32 %v6748, %v7148
        %v7184 = vadd.f32 %v6749, %v7150
        %v7185 = vadd.f32 %v6750, %v7152
        %s7186 = scalar_lea.vmem [#allocation3], 64
        %v7187 = vld [vmem:[%s7186] sm:$0xff]
        %v7188 = vld [vmem:[%s7186 + $0x8] sm:$0xff]
        %v7189 = vld [vmem:[%s7186 + $0x10] sm:$0xff]
        %v7190 = vld [vmem:[%s7186 + $0x18] sm:$0xff]
        %v7191 = vld [vmem:[%s7186 + $0x20] sm:$0xff]
        %v7192 = vld [vmem:[%s7186 + $0x28] sm:$0xff]
        %v7193 = vld [vmem:[%s7186 + $0x30] sm:$0xff]
        %v7194 = vld [vmem:[%s7186 + $0x38] sm:$0xff]
        %v7195 = vld [vmem:[%s7186 + $0x40] sm:$0xff]
        %v7196 = vld [vmem:[%s7186 + $0x48] sm:$0xff]
        %v7197 = vld [vmem:[%s7186 + $0x50] sm:$0xff]
        %v7198 = vld [vmem:[%s7186 + $0x58] sm:$0xff]
        %v7199 = vld [vmem:[%s7186 + $0x60] sm:$0xff]
        %v7200 = vld [vmem:[%s7186 + $0x68] sm:$0xff]
        %v7201 = vld [vmem:[%s7186 + $0x70] sm:$0xff]
        %v7202 = vld [vmem:[%s7186 + $0x78] sm:$0xff]
        %s7203 = scalar_lea.vmem [#allocation14], 1024
        %v7204 = vld [vmem:[%s7203] sm:$0xff]
        %v7205 = vld [vmem:[%s7203 + $0x8] sm:$0xff]
        %v7206 = vld [vmem:[%s7203 + $0x10] sm:$0xff]
        %v7207 = vld [vmem:[%s7203 + $0x18] sm:$0xff]
        %v7208 = vld [vmem:[%s7203 + $0x20] sm:$0xff]
        %v7209 = vld [vmem:[%s7203 + $0x28] sm:$0xff]
        %v7210 = vld [vmem:[%s7203 + $0x30] sm:$0xff]
        %v7211 = vld [vmem:[%s7203 + $0x38] sm:$0xff]
        %v7212 = vld [vmem:[%s7203 + $0x40] sm:$0xff]
        %v7213 = vld [vmem:[%s7203 + $0x48] sm:$0xff]
        %v7214 = vld [vmem:[%s7203 + $0x50] sm:$0xff]
        %v7215 = vld [vmem:[%s7203 + $0x58] sm:$0xff]
        %v7216 = vld [vmem:[%s7203 + $0x60] sm:$0xff]
        %v7217 = vld [vmem:[%s7203 + $0x68] sm:$0xff]
        %v7218 = vld [vmem:[%s7203 + $0x70] sm:$0xff]
        %v7219 = vld [vmem:[%s7203 + $0x78] sm:$0xff]
        %v7220 = vld [vmem:[%s7203 + $0x80] sm:$0xff]
        %v7221 = vld [vmem:[%s7203 + $0x88] sm:$0xff]
        %v7222 = vld [vmem:[%s7203 + $0x90] sm:$0xff]
        %v7223 = vld [vmem:[%s7203 + $0x98] sm:$0xff]
        %v7224 = vld [vmem:[%s7203 + $0xa0] sm:$0xff]
        %v7225 = vld [vmem:[%s7203 + $0xa8] sm:$0xff]
        %v7226 = vld [vmem:[%s7203 + $0xb0] sm:$0xff]
        %v7227 = vld [vmem:[%s7203 + $0xb8] sm:$0xff]
        %v7228 = vld [vmem:[%s7203 + $0xc0] sm:$0xff]
        %v7229 = vld [vmem:[%s7203 + $0xc8] sm:$0xff]
        %v7230 = vld [vmem:[%s7203 + $0xd0] sm:$0xff]
        %v7231 = vld [vmem:[%s7203 + $0xd8] sm:$0xff]
        %v7232 = vld [vmem:[%s7203 + $0xe0] sm:$0xff]
        %v7233 = vld [vmem:[%s7203 + $0xe8] sm:$0xff]
        %v7234 = vld [vmem:[%s7203 + $0xf0] sm:$0xff]
        %v7235 = vld [vmem:[%s7203 + $0xf8] sm:$0xff]
        %v7252 = vunpack.c.l.b16 %v7187
        %v7253 = vunpack.c.h.b16 %v7187
        %v7254 = vunpack.c.l.b16 %v7188
        %v7255 = vunpack.c.h.b16 %v7188
        %v7256 = vunpack.c.l.b16 %v7189
        %v7257 = vunpack.c.h.b16 %v7189
        %v7258 = vunpack.c.l.b16 %v7190
        %v7259 = vunpack.c.h.b16 %v7190
        %v7260 = vunpack.c.l.b16 %v7191
        %v7261 = vunpack.c.h.b16 %v7191
        %v7262 = vunpack.c.l.b16 %v7192
        %v7263 = vunpack.c.h.b16 %v7192
        %v7264 = vunpack.c.l.b16 %v7193
        %v7265 = vunpack.c.h.b16 %v7193
        %v7266 = vunpack.c.l.b16 %v7194
        %v7267 = vunpack.c.h.b16 %v7194
        %v7268 = vunpack.c.l.b16 %v7195
        %v7269 = vunpack.c.h.b16 %v7195
        %v7270 = vunpack.c.l.b16 %v7196
        %v7271 = vunpack.c.h.b16 %v7196
        %v7272 = vunpack.c.l.b16 %v7197
        %v7273 = vunpack.c.h.b16 %v7197
        %v7274 = vunpack.c.l.b16 %v7198
        %v7275 = vunpack.c.h.b16 %v7198
        %v7276 = vunpack.c.l.b16 %v7199
        %v7277 = vunpack.c.h.b16 %v7199
        %v7278 = vunpack.c.l.b16 %v7200
        %v7279 = vunpack.c.h.b16 %v7200
        %v7280 = vunpack.c.l.b16 %v7201
        %v7281 = vunpack.c.h.b16 %v7201
        %v7282 = vunpack.c.l.b16 %v7202
        %v7283 = vunpack.c.h.b16 %v7202
        %v7284 = vpack.c.b16 %v7254, %v7252
        %v7285 = vpack.c.b16 %v7255, %v7253
        %v7286 = vpack.c.b16 %v7258, %v7256
        %v7287 = vpack.c.b16 %v7259, %v7257
        %v7288 = vpack.c.b16 %v7262, %v7260
        %v7289 = vpack.c.b16 %v7263, %v7261
        %v7290 = vpack.c.b16 %v7266, %v7264
        %v7291 = vpack.c.b16 %v7267, %v7265
        %v7292 = vpack.c.b16 %v7270, %v7268
        %v7293 = vpack.c.b16 %v7271, %v7269
        %v7294 = vpack.c.b16 %v7274, %v7272
        %v7295 = vpack.c.b16 %v7275, %v7273
        %v7296 = vpack.c.b16 %v7278, %v7276
        %v7297 = vpack.c.b16 %v7279, %v7277
        %v7298 = vpack.c.b16 %v7282, %v7280
        %v7299 = vpack.c.b16 %v7283, %v7281
        %v7348 = vunpack.c.l.b16 %v7204
        %v7349 = vunpack.c.h.b16 %v7204
        %v7350 = vunpack.c.l.b16 %v7205
        %v7351 = vunpack.c.h.b16 %v7205
        %v7352 = vunpack.c.l.b16 %v7206
        %v7353 = vunpack.c.h.b16 %v7206
        %v7354 = vunpack.c.l.b16 %v7207
        %v7355 = vunpack.c.h.b16 %v7207
        %v7356 = vunpack.c.l.b16 %v7208
        %v7357 = vunpack.c.h.b16 %v7208
        %v7358 = vunpack.c.l.b16 %v7209
        %v7359 = vunpack.c.h.b16 %v7209
        %v7360 = vunpack.c.l.b16 %v7210
        %v7361 = vunpack.c.h.b16 %v7210
        %v7362 = vunpack.c.l.b16 %v7211
        %v7363 = vunpack.c.h.b16 %v7211
        %v7364 = vunpack.c.l.b16 %v7212
        %v7365 = vunpack.c.h.b16 %v7212
        %v7366 = vunpack.c.l.b16 %v7213
        %v7367 = vunpack.c.h.b16 %v7213
        %v7368 = vunpack.c.l.b16 %v7214
        %v7369 = vunpack.c.h.b16 %v7214
        %v7370 = vunpack.c.l.b16 %v7215
        %v7371 = vunpack.c.h.b16 %v7215
        %v7372 = vunpack.c.l.b16 %v7216
        %v7373 = vunpack.c.h.b16 %v7216
        %v7374 = vunpack.c.l.b16 %v7217
        %v7375 = vunpack.c.h.b16 %v7217
        %v7376 = vunpack.c.l.b16 %v7218
        %v7377 = vunpack.c.h.b16 %v7218
        %v7378 = vunpack.c.l.b16 %v7219
        %v7379 = vunpack.c.h.b16 %v7219
        %v7380 = vunpack.c.l.b16 %v7220
        %v7381 = vunpack.c.h.b16 %v7220
        %v7382 = vunpack.c.l.b16 %v7221
        %v7383 = vunpack.c.h.b16 %v7221
        %v7384 = vunpack.c.l.b16 %v7222
        %v7385 = vunpack.c.h.b16 %v7222
        %v7386 = vunpack.c.l.b16 %v7223
        %v7387 = vunpack.c.h.b16 %v7223
        %v7388 = vunpack.c.l.b16 %v7224
        %v7389 = vunpack.c.h.b16 %v7224
        %v7390 = vunpack.c.l.b16 %v7225
        %v7391 = vunpack.c.h.b16 %v7225
        %v7392 = vunpack.c.l.b16 %v7226
        %v7393 = vunpack.c.h.b16 %v7226
        %v7394 = vunpack.c.l.b16 %v7227
        %v7395 = vunpack.c.h.b16 %v7227
        %v7396 = vunpack.c.l.b16 %v7228
        %v7397 = vunpack.c.h.b16 %v7228
        %v7398 = vunpack.c.l.b16 %v7229
        %v7399 = vunpack.c.h.b16 %v7229
        %v7400 = vunpack.c.l.b16 %v7230
        %v7401 = vunpack.c.h.b16 %v7230
        %v7402 = vunpack.c.l.b16 %v7231
        %v7403 = vunpack.c.h.b16 %v7231
        %v7404 = vunpack.c.l.b16 %v7232
        %v7405 = vunpack.c.h.b16 %v7232
        %v7406 = vunpack.c.l.b16 %v7233
        %v7407 = vunpack.c.h.b16 %v7233
        %v7408 = vunpack.c.l.b16 %v7234
        %v7409 = vunpack.c.h.b16 %v7234
        %v7410 = vunpack.c.l.b16 %v7235
        %v7411 = vunpack.c.h.b16 %v7235
        %v7412 = vpack.c.b16 %v7350, %v7348
        %v7413 = vpack.c.b16 %v7351, %v7349
        %v7414 = vpack.c.b16 %v7354, %v7352
        %v7415 = vpack.c.b16 %v7355, %v7353
        %v7416 = vpack.c.b16 %v7358, %v7356
        %v7417 = vpack.c.b16 %v7359, %v7357
        %v7418 = vpack.c.b16 %v7362, %v7360
        %v7419 = vpack.c.b16 %v7363, %v7361
        %v7420 = vpack.c.b16 %v7366, %v7364
        %v7421 = vpack.c.b16 %v7367, %v7365
        %v7422 = vpack.c.b16 %v7370, %v7368
        %v7423 = vpack.c.b16 %v7371, %v7369
        %v7424 = vpack.c.b16 %v7374, %v7372
        %v7425 = vpack.c.b16 %v7375, %v7373
        %v7426 = vpack.c.b16 %v7378, %v7376
        %v7427 = vpack.c.b16 %v7379, %v7377
        %v7428 = vpack.c.b16 %v7382, %v7380
        %v7429 = vpack.c.b16 %v7383, %v7381
        %v7430 = vpack.c.b16 %v7386, %v7384
        %v7431 = vpack.c.b16 %v7387, %v7385
        %v7432 = vpack.c.b16 %v7390, %v7388
        %v7433 = vpack.c.b16 %v7391, %v7389
        %v7434 = vpack.c.b16 %v7394, %v7392
        %v7435 = vpack.c.b16 %v7395, %v7393
        %v7436 = vpack.c.b16 %v7398, %v7396
        %v7437 = vpack.c.b16 %v7399, %v7397
        %v7438 = vpack.c.b16 %v7402, %v7400
        %v7439 = vpack.c.b16 %v7403, %v7401
        %v7440 = vpack.c.b16 %v7406, %v7404
        %v7441 = vpack.c.b16 %v7407, %v7405
        %v7442 = vpack.c.b16 %v7410, %v7408
        %v7443 = vpack.c.b16 %v7411, %v7409
        %7476 = vmatprep.subr.bf16.mxu0 %v7427
        %7477 = vmatpush1.bf16.msra.mxu0 %v7426
        %7478 = vmatprep.subr.bf16.mxu0 %v7425
        %7479 = vmatpush1.bf16.msra.mxu0 %v7424
        %7480 = vmatprep.subr.bf16.mxu0 %v7423
        %7481 = vmatpush1.bf16.msra.mxu0 %v7422
        %7482 = vmatprep.subr.bf16.mxu0 %v7421
        %7483 = vmatpush1.bf16.msra.mxu0 %v7420
        %7484 = vmatprep.subr.bf16.mxu0 %v7419
        %7485 = vmatpush1.bf16.msra.mxu0 %v7418
        %7486 = vmatprep.subr.bf16.mxu0 %v7417
        %7487 = vmatpush1.bf16.msra.mxu0 %v7416
        %7488 = vmatprep.subr.bf16.mxu0 %v7415
        %7489 = vmatpush1.bf16.msra.mxu0 %v7414
        %7490 = vmatprep.subr.bf16.mxu0 %v7413
        %7491 = vmatpush1.bf16.msra.mxu0 %v7412
        %7492 = vmatprep.subr.bf16.mxu0 %v7443
        %7493 = vmatpush2.bf16.msra.mxu0 %v7442
        %7494 = vmatprep.subr.bf16.mxu0 %v7441
        %7495 = vmatpush2.bf16.msra.mxu0 %v7440
        %7496 = vmatprep.subr.bf16.mxu0 %v7439
        %7497 = vmatpush2.bf16.msra.mxu0 %v7438
        %7498 = vmatprep.subr.bf16.mxu0 %v7437
        %7499 = vmatpush2.bf16.msra.mxu0 %v7436
        %7500 = vmatprep.subr.bf16.mxu0 %v7435
        %7501 = vmatpush2.bf16.msra.mxu0 %v7434
        %7502 = vmatprep.subr.bf16.mxu0 %v7433
        %7503 = vmatpush2.bf16.msra.mxu0 %v7432
        %7504 = vmatprep.subr.bf16.mxu0 %v7431
        %7505 = vmatpush2.bf16.msra.mxu0 %v7430
        %7506 = vmatprep.subr.bf16.mxu0 %v7429
        %7507 = vmatpush2.bf16.msra.mxu0 %v7428
        %7508 = vmatprep.mubr.bf16.mxu0 %v7285
        %7509 = vmatmul.mubr.bf16.gmra.mxu0 %v7284
        %v7510 = vpop.f32.mrf.mxu0
        %v7511 = vadd.f32 0.0, %v7510
        %v7512 = vpop.f32.mrf.mxu0
        %v7513 = vadd.f32 0.0, %v7512
        %v7514 = vpop.f32.mrf.mxu0
        %v7515 = vadd.f32 0.0, %v7514
        %v7516 = vpop.f32.mrf.mxu0
        %v7517 = vadd.f32 0.0, %v7516
        %7518 = vmatprep.mubr.bf16.mxu0 %v7287
        %7519 = vmatmul.mubr.bf16.gmra.mxu0 %v7286
        %v7520 = vpop.f32.mrf.mxu0
        %v7521 = vadd.f32 0.0, %v7520
        %v7522 = vpop.f32.mrf.mxu0
        %v7523 = vadd.f32 0.0, %v7522
        %v7524 = vpop.f32.mrf.mxu0
        %v7525 = vadd.f32 0.0, %v7524
        %v7526 = vpop.f32.mrf.mxu0
        %v7527 = vadd.f32 0.0, %v7526
        %7528 = vmatprep.mubr.bf16.mxu0 %v7289
        %7529 = vmatmul.mubr.bf16.gmra.mxu0 %v7288
        %v7530 = vpop.f32.mrf.mxu0
        %v7531 = vadd.f32 0.0, %v7530
        %v7532 = vpop.f32.mrf.mxu0
        %v7533 = vadd.f32 0.0, %v7532
        %v7534 = vpop.f32.mrf.mxu0
        %v7535 = vadd.f32 0.0, %v7534
        %v7536 = vpop.f32.mrf.mxu0
        %v7537 = vadd.f32 0.0, %v7536
        %7538 = vmatprep.mubr.bf16.mxu0 %v7291
        %7539 = vmatmul.mubr.bf16.gmra.mxu0 %v7290
        %v7540 = vpop.f32.mrf.mxu0
        %v7541 = vadd.f32 0.0, %v7540
        %v7542 = vpop.f32.mrf.mxu0
        %v7543 = vadd.f32 0.0, %v7542
        %v7544 = vpop.f32.mrf.mxu0
        %v7545 = vadd.f32 0.0, %v7544
        %v7546 = vpop.f32.mrf.mxu0
        %v7547 = vadd.f32 0.0, %v7546
        %7548 = vmatprep.mubr.bf16.mxu0 %v7293
        %7549 = vmatmul.mubr.bf16.gmra.mxu0 %v7292
        %v7550 = vpop.f32.mrf.mxu0
        %v7551 = vadd.f32 0.0, %v7550
        %v7552 = vpop.f32.mrf.mxu0
        %v7553 = vadd.f32 0.0, %v7552
        %v7554 = vpop.f32.mrf.mxu0
        %v7555 = vadd.f32 0.0, %v7554
        %v7556 = vpop.f32.mrf.mxu0
        %v7557 = vadd.f32 0.0, %v7556
        %7558 = vmatprep.mubr.bf16.mxu0 %v7295
        %7559 = vmatmul.mubr.bf16.gmra.mxu0 %v7294
        %v7560 = vpop.f32.mrf.mxu0
        %v7561 = vadd.f32 0.0, %v7560
        %v7562 = vpop.f32.mrf.mxu0
        %v7563 = vadd.f32 0.0, %v7562
        %v7564 = vpop.f32.mrf.mxu0
        %v7565 = vadd.f32 0.0, %v7564
        %v7566 = vpop.f32.mrf.mxu0
        %v7567 = vadd.f32 0.0, %v7566
        %7568 = vmatprep.mubr.bf16.mxu0 %v7297
        %7569 = vmatmul.mubr.bf16.gmra.mxu0 %v7296
        %v7570 = vpop.f32.mrf.mxu0
        %v7571 = vadd.f32 0.0, %v7570
        %v7572 = vpop.f32.mrf.mxu0
        %v7573 = vadd.f32 0.0, %v7572
        %v7574 = vpop.f32.mrf.mxu0
        %v7575 = vadd.f32 0.0, %v7574
        %v7576 = vpop.f32.mrf.mxu0
        %v7577 = vadd.f32 0.0, %v7576
        %7578 = vmatprep.mubr.bf16.mxu0 %v7299
        %7579 = vmatmul.mubr.bf16.gmra.mxu0 %v7298
        %v7580 = vpop.f32.mrf.mxu0
        %v7581 = vadd.f32 0.0, %v7580
        %v7582 = vpop.f32.mrf.mxu0
        %v7583 = vadd.f32 0.0, %v7582
        %v7584 = vpop.f32.mrf.mxu0
        %v7585 = vadd.f32 0.0, %v7584
        %v7586 = vpop.f32.mrf.mxu0
        %v7587 = vadd.f32 0.0, %v7586
        %7588 = vdwg.mxu0
        %v7589 = vadd.f32 %v7154, %v7511
        %v7590 = vadd.f32 %v7155, %v7513
        %v7591 = vadd.f32 %v7156, %v7515
        %v7592 = vadd.f32 %v7157, %v7517
        %v7593 = vadd.f32 %v7158, %v7521
        %v7594 = vadd.f32 %v7159, %v7523
        %v7595 = vadd.f32 %v7160, %v7525
        %v7596 = vadd.f32 %v7161, %v7527
        %v7597 = vadd.f32 %v7162, %v7531
        %v7598 = vadd.f32 %v7163, %v7533
        %v7599 = vadd.f32 %v7164, %v7535
        %v7600 = vadd.f32 %v7165, %v7537
        %v7601 = vadd.f32 %v7166, %v7541
        %v7602 = vadd.f32 %v7167, %v7543
        %v7603 = vadd.f32 %v7168, %v7545
        %v7604 = vadd.f32 %v7169, %v7547
        %v7605 = vadd.f32 %v7170, %v7551
        %v7606 = vadd.f32 %v7171, %v7553
        %v7607 = vadd.f32 %v7172, %v7555
        %v7608 = vadd.f32 %v7173, %v7557
        %v7609 = vadd.f32 %v7174, %v7561
        %v7610 = vadd.f32 %v7175, %v7563
        %v7611 = vadd.f32 %v7176, %v7565
        %v7612 = vadd.f32 %v7177, %v7567
        %v7613 = vadd.f32 %v7178, %v7571
        %v7614 = vadd.f32 %v7179, %v7573
        %v7615 = vadd.f32 %v7180, %v7575
        %v7616 = vadd.f32 %v7181, %v7577
        %v7617 = vadd.f32 %v7182, %v7581
        %v7618 = vadd.f32 %v7183, %v7583
        %v7619 = vadd.f32 %v7184, %v7585
        %v7620 = vadd.f32 %v7185, %v7587
        %v7621 = vld [vmem:[%s8] sm:$0x3]
        %v7623 = vlaneseq
        %v7624 = vshrl.u32 %v7623, 7
        %v7625 = vsub.s32 0, %v7624
        %v7626 = vrot.slane %v7621, %v7625
        %v7627 = vlaneseq
        %v7628 = vshrl.u32 %v7627, 7
        %v7629 = vsub.s32 1, %v7628
        %v7630 = vrot.slane %v7621, %v7629
        %v7633 = vadd.f32 %v7589, %v7626
        %v7634 = vadd.f32 %v7590, %v7630
        %v7635 = vadd.f32 %v7591, %v7626
        %v7636 = vadd.f32 %v7592, %v7630
        %v7637 = vadd.f32 %v7593, %v7626
        %v7638 = vadd.f32 %v7594, %v7630
        %v7639 = vadd.f32 %v7595, %v7626
        %v7640 = vadd.f32 %v7596, %v7630
        %v7641 = vadd.f32 %v7597, %v7626
        %v7642 = vadd.f32 %v7598, %v7630
        %v7643 = vadd.f32 %v7599, %v7626
        %v7644 = vadd.f32 %v7600, %v7630
        %v7645 = vadd.f32 %v7601, %v7626
        %v7646 = vadd.f32 %v7602, %v7630
        %v7647 = vadd.f32 %v7603, %v7626
        %v7648 = vadd.f32 %v7604, %v7630
        %v7649 = vadd.f32 %v7605, %v7626
        %v7650 = vadd.f32 %v7606, %v7630
        %v7651 = vadd.f32 %v7607, %v7626
        %v7652 = vadd.f32 %v7608, %v7630
        %v7653 = vadd.f32 %v7609, %v7626
        %v7654 = vadd.f32 %v7610, %v7630
        %v7655 = vadd.f32 %v7611, %v7626
        %v7656 = vadd.f32 %v7612, %v7630
        %v7657 = vadd.f32 %v7613, %v7626
        %v7658 = vadd.f32 %v7614, %v7630
        %v7659 = vadd.f32 %v7615, %v7626
        %v7660 = vadd.f32 %v7616, %v7630
        %v7661 = vadd.f32 %v7617, %v7626
        %v7662 = vadd.f32 %v7618, %v7630
        %v7663 = vadd.f32 %v7619, %v7626
        %v7664 = vadd.f32 %v7620, %v7630
        %v7665 = vxor.u32 %v7633, 2147483648
        %v7666 = vxor.u32 %v7634, 2147483648
        %v7667 = vxor.u32 %v7635, 2147483648
        %v7668 = vxor.u32 %v7636, 2147483648
        %v7669 = vxor.u32 %v7637, 2147483648
        %v7670 = vxor.u32 %v7638, 2147483648
        %v7671 = vxor.u32 %v7639, 2147483648
        %v7672 = vxor.u32 %v7640, 2147483648
        %v7673 = vxor.u32 %v7641, 2147483648
        %v7674 = vxor.u32 %v7642, 2147483648
        %v7675 = vxor.u32 %v7643, 2147483648
        %v7676 = vxor.u32 %v7644, 2147483648
        %v7677 = vxor.u32 %v7645, 2147483648
        %v7678 = vxor.u32 %v7646, 2147483648
        %v7679 = vxor.u32 %v7647, 2147483648
        %v7680 = vxor.u32 %v7648, 2147483648
        %v7681 = vxor.u32 %v7649, 2147483648
        %v7682 = vxor.u32 %v7650, 2147483648
        %v7683 = vxor.u32 %v7651, 2147483648
        %v7684 = vxor.u32 %v7652, 2147483648
        %v7685 = vxor.u32 %v7653, 2147483648
        %v7686 = vxor.u32 %v7654, 2147483648
        %v7687 = vxor.u32 %v7655, 2147483648
        %v7688 = vxor.u32 %v7656, 2147483648
        %v7689 = vxor.u32 %v7657, 2147483648
        %v7690 = vxor.u32 %v7658, 2147483648
        %v7691 = vxor.u32 %v7659, 2147483648
        %v7692 = vxor.u32 %v7660, 2147483648
        %v7693 = vxor.u32 %v7661, 2147483648
        %v7694 = vxor.u32 %v7662, 2147483648
        %v7695 = vxor.u32 %v7663, 2147483648
        %v7696 = vxor.u32 %v7664, 2147483648
        %v7697 = vmul.f32 %v7665, 1.442695
        %v7698 = vpow.pop %v7697
        %v7699 = vmul.f32 %v7666, 1.442695
        %v7700 = vpow.pop %v7699
        %v7701 = vmul.f32 %v7667, 1.442695
        %v7702 = vpow.pop %v7701
        %v7703 = vmul.f32 %v7668, 1.442695
        %v7704 = vpow.pop %v7703
        %v7705 = vmul.f32 %v7669, 1.442695
        %v7706 = vpow.pop %v7705
        %v7707 = vmul.f32 %v7670, 1.442695
        %v7708 = vpow.pop %v7707
        %v7709 = vmul.f32 %v7671, 1.442695
        %v7710 = vpow.pop %v7709
        %v7711 = vmul.f32 %v7672, 1.442695
        %v7712 = vpow.pop %v7711
        %v7713 = vmul.f32 %v7673, 1.442695
        %v7714 = vpow.pop %v7713
        %v7715 = vmul.f32 %v7674, 1.442695
        %v7716 = vpow.pop %v7715
        %v7717 = vmul.f32 %v7675, 1.442695
        %v7718 = vpow.pop %v7717
        %v7719 = vmul.f32 %v7676, 1.442695
        %v7720 = vpow.pop %v7719
        %v7721 = vmul.f32 %v7677, 1.442695
        %v7722 = vpow.pop %v7721
        %v7723 = vmul.f32 %v7678, 1.442695
        %v7724 = vpow.pop %v7723
        %v7725 = vmul.f32 %v7679, 1.442695
        %v7726 = vpow.pop %v7725
        %v7727 = vmul.f32 %v7680, 1.442695
        %v7728 = vpow.pop %v7727
        %v7729 = vmul.f32 %v7681, 1.442695
        %v7730 = vpow.pop %v7729
        %v7731 = vmul.f32 %v7682, 1.442695
        %v7732 = vpow.pop %v7731
        %v7733 = vmul.f32 %v7683, 1.442695
        %v7734 = vpow.pop %v7733
        %v7735 = vmul.f32 %v7684, 1.442695
        %v7736 = vpow.pop %v7735
        %v7737 = vmul.f32 %v7685, 1.442695
        %v7738 = vpow.pop %v7737
        %v7739 = vmul.f32 %v7686, 1.442695
        %v7740 = vpow.pop %v7739
        %v7741 = vmul.f32 %v7687, 1.442695
        %v7742 = vpow.pop %v7741
        %v7743 = vmul.f32 %v7688, 1.442695
        %v7744 = vpow.pop %v7743
        %v7745 = vmul.f32 %v7689, 1.442695
        %v7746 = vpow.pop %v7745
        %v7747 = vmul.f32 %v7690, 1.442695
        %v7748 = vpow.pop %v7747
        %v7749 = vmul.f32 %v7691, 1.442695
        %v7750 = vpow.pop %v7749
        %v7751 = vmul.f32 %v7692, 1.442695
        %v7752 = vpow.pop %v7751
        %v7753 = vmul.f32 %v7693, 1.442695
        %v7754 = vpow.pop %v7753
        %v7755 = vmul.f32 %v7694, 1.442695
        %v7756 = vpow.pop %v7755
        %v7757 = vmul.f32 %v7695, 1.442695
        %v7758 = vpow.pop %v7757
        %v7759 = vmul.f32 %v7696, 1.442695
        %v7760 = vpow.pop %v7759
        %v7761 = vadd.f32 %v7698, 1.0
        %v7762 = vadd.f32 %v7700, 1.0
        %v7763 = vadd.f32 %v7702, 1.0
        %v7764 = vadd.f32 %v7704, 1.0
        %v7765 = vadd.f32 %v7706, 1.0
        %v7766 = vadd.f32 %v7708, 1.0
        %v7767 = vadd.f32 %v7710, 1.0
        %v7768 = vadd.f32 %v7712, 1.0
        %v7769 = vadd.f32 %v7714, 1.0
        %v7770 = vadd.f32 %v7716, 1.0
        %v7771 = vadd.f32 %v7718, 1.0
        %v7772 = vadd.f32 %v7720, 1.0
        %v7773 = vadd.f32 %v7722, 1.0
        %v7774 = vadd.f32 %v7724, 1.0
        %v7775 = vadd.f32 %v7726, 1.0
        %v7776 = vadd.f32 %v7728, 1.0
        %v7777 = vadd.f32 %v7730, 1.0
        %v7778 = vadd.f32 %v7732, 1.0
        %v7779 = vadd.f32 %v7734, 1.0
        %v7780 = vadd.f32 %v7736, 1.0
        %v7781 = vadd.f32 %v7738, 1.0
        %v7782 = vadd.f32 %v7740, 1.0
        %v7783 = vadd.f32 %v7742, 1.0
        %v7784 = vadd.f32 %v7744, 1.0
        %v7785 = vadd.f32 %v7746, 1.0
        %v7786 = vadd.f32 %v7748, 1.0
        %v7787 = vadd.f32 %v7750, 1.0
        %v7788 = vadd.f32 %v7752, 1.0
        %v7789 = vadd.f32 %v7754, 1.0
        %v7790 = vadd.f32 %v7756, 1.0
        %v7791 = vadd.f32 %v7758, 1.0
        %v7792 = vadd.f32 %v7760, 1.0
        %v7793 = vrcp.pop %v7761
        %v7794 = vmul.f32 1.0, %v7793
        %v7795 = vrcp.pop %v7762
        %v7796 = vmul.f32 1.0, %v7795
        %v7797 = vrcp.pop %v7763
        %v7798 = vmul.f32 1.0, %v7797
        %v7799 = vrcp.pop %v7764
        %v7800 = vmul.f32 1.0, %v7799
        %v7801 = vrcp.pop %v7765
        %v7802 = vmul.f32 1.0, %v7801
        %v7803 = vrcp.pop %v7766
        %v7804 = vmul.f32 1.0, %v7803
        %v7805 = vrcp.pop %v7767
        %v7806 = vmul.f32 1.0, %v7805
        %v7807 = vrcp.pop %v7768
        %v7808 = vmul.f32 1.0, %v7807
        %v7809 = vrcp.pop %v7769
        %v7810 = vmul.f32 1.0, %v7809
        %v7811 = vrcp.pop %v7770
        %v7812 = vmul.f32 1.0, %v7811
        %v7813 = vrcp.pop %v7771
        %v7814 = vmul.f32 1.0, %v7813
        %v7815 = vrcp.pop %v7772
        %v7816 = vmul.f32 1.0, %v7815
        %v7817 = vrcp.pop %v7773
        %v7818 = vmul.f32 1.0, %v7817
        %v7819 = vrcp.pop %v7774
        %v7820 = vmul.f32 1.0, %v7819
        %v7821 = vrcp.pop %v7775
        %v7822 = vmul.f32 1.0, %v7821
        %v7823 = vrcp.pop %v7776
        %v7824 = vmul.f32 1.0, %v7823
        %v7825 = vrcp.pop %v7777
        %v7826 = vmul.f32 1.0, %v7825
        %v7827 = vrcp.pop %v7778
        %v7828 = vmul.f32 1.0, %v7827
        %v7829 = vrcp.pop %v7779
        %v7830 = vmul.f32 1.0, %v7829
        %v7831 = vrcp.pop %v7780
        %v7832 = vmul.f32 1.0, %v7831
        %v7833 = vrcp.pop %v7781
        %v7834 = vmul.f32 1.0, %v7833
        %v7835 = vrcp.pop %v7782
        %v7836 = vmul.f32 1.0, %v7835
        %v7837 = vrcp.pop %v7783
        %v7838 = vmul.f32 1.0, %v7837
        %v7839 = vrcp.pop %v7784
        %v7840 = vmul.f32 1.0, %v7839
        %v7841 = vrcp.pop %v7785
        %v7842 = vmul.f32 1.0, %v7841
        %v7843 = vrcp.pop %v7786
        %v7844 = vmul.f32 1.0, %v7843
        %v7845 = vrcp.pop %v7787
        %v7846 = vmul.f32 1.0, %v7845
        %v7847 = vrcp.pop %v7788
        %v7848 = vmul.f32 1.0, %v7847
        %v7849 = vrcp.pop %v7789
        %v7850 = vmul.f32 1.0, %v7849
        %v7851 = vrcp.pop %v7790
        %v7852 = vmul.f32 1.0, %v7851
        %v7853 = vrcp.pop %v7791
        %v7854 = vmul.f32 1.0, %v7853
        %v7855 = vrcp.pop %v7792
        %v7856 = vmul.f32 1.0, %v7855
        %v7857 = vmul.f32 %v7796, %v5311
        %v7858 = vmul.f32 %v7800, %v5312
        %v7859 = vmul.f32 %v7804, %v5313
        %v7860 = vmul.f32 %v7808, %v5314
        %v7861 = vmul.f32 %v7812, %v5315
        %v7862 = vmul.f32 %v7816, %v5316
        %v7863 = vmul.f32 %v7820, %v5317
        %v7864 = vmul.f32 %v7824, %v5318
        %v7865 = vmul.f32 %v7828, %v5319
        %v7866 = vmul.f32 %v7832, %v5320
        %v7867 = vmul.f32 %v7836, %v5321
        %v7868 = vmul.f32 %v7840, %v5322
        %v7869 = vmul.f32 %v7844, %v5323
        %v7870 = vmul.f32 %v7848, %v5324
        %v7871 = vmul.f32 %v7852, %v5325
        %v7872 = vmul.f32 %v7856, %v5326
        %v7873 = vpack.c.bf16 %v7858, %v7857
        %v7874 = vpack.c.bf16 %v7860, %v7859
        %v7875 = vpack.c.bf16 %v7862, %v7861
        %v7876 = vpack.c.bf16 %v7864, %v7863
        %v7877 = vpack.c.bf16 %v7866, %v7865
        %v7878 = vpack.c.bf16 %v7868, %v7867
        %v7879 = vpack.c.bf16 %v7870, %v7869
        %v7880 = vpack.c.bf16 %v7872, %v7871
        %v7889 = vunpack.c.l.b16 %v7873
        %v7890 = vunpack.c.h.b16 %v7873
        %v7891 = vunpack.c.l.b16 %v7874
        %v7892 = vunpack.c.h.b16 %v7874
        %v7893 = vunpack.c.l.b16 %v7875
        %v7894 = vunpack.c.h.b16 %v7875
        %v7895 = vunpack.c.l.b16 %v7876
        %v7896 = vunpack.c.h.b16 %v7876
        %v7897 = vunpack.c.l.b16 %v7877
        %v7898 = vunpack.c.h.b16 %v7877
        %v7899 = vunpack.c.l.b16 %v7878
        %v7900 = vunpack.c.h.b16 %v7878
        %v7901 = vunpack.c.l.b16 %v7879
        %v7902 = vunpack.c.h.b16 %v7879
        %v7903 = vunpack.c.l.b16 %v7880
        %v7904 = vunpack.c.h.b16 %v7880
        %v7905 = vpack.c.b16 %v7889, %v7889
        %v7906 = vpack.c.b16 %v7890, %v7890
        %v7907 = vpack.c.b16 %v7891, %v7891
        %v7908 = vpack.c.b16 %v7892, %v7892
        %v7909 = vpack.c.b16 %v7893, %v7893
        %v7910 = vpack.c.b16 %v7894, %v7894
        %v7911 = vpack.c.b16 %v7895, %v7895
        %v7912 = vpack.c.b16 %v7896, %v7896
        %v7913 = vpack.c.b16 %v7897, %v7897
        %v7914 = vpack.c.b16 %v7898, %v7898
        %v7915 = vpack.c.b16 %v7899, %v7899
        %v7916 = vpack.c.b16 %v7900, %v7900
        %v7917 = vpack.c.b16 %v7901, %v7901
        %v7918 = vpack.c.b16 %v7902, %v7902
        %v7919 = vpack.c.b16 %v7903, %v7903
        %v7920 = vpack.c.b16 %v7904, %v7904
        %7937 = vst [vmem:[%s5416] sm:$0xf] %v7905
        %7938 = vst [vmem:[%s5416 + $0x8] sm:$0xf] %v7906
        %7939 = vst [vmem:[%s5416 + $0x10] sm:$0xf] %v7907
        %7940 = vst [vmem:[%s5416 + $0x18] sm:$0xf] %v7908
        %7941 = vst [vmem:[%s5416 + $0x20] sm:$0xf] %v7909
        %7942 = vst [vmem:[%s5416 + $0x28] sm:$0xf] %v7910
        %7943 = vst [vmem:[%s5416 + $0x30] sm:$0xf] %v7911
        %7944 = vst [vmem:[%s5416 + $0x38] sm:$0xf] %v7912
        %7945 = vst [vmem:[%s5416 + $0x40] sm:$0xf] %v7913
        %7946 = vst [vmem:[%s5416 + $0x48] sm:$0xf] %v7914
        %7947 = vst [vmem:[%s5416 + $0x50] sm:$0xf] %v7915
        %7948 = vst [vmem:[%s5416 + $0x58] sm:$0xf] %v7916
        %7949 = vst [vmem:[%s5416 + $0x60] sm:$0xf] %v7917
        %7950 = vst [vmem:[%s5416 + $0x68] sm:$0xf] %v7918
        %7951 = vst [vmem:[%s5416 + $0x70] sm:$0xf] %v7919
        %7952 = vst [vmem:[%s5416 + $0x78] sm:$0xf] %v7920
        %v7953 = vld [vmem:[#allocation3] sm:$0xff]
        %v7954 = vld [vmem:[#allocation3 + $0x8] sm:$0xff]
        %v7955 = vld [vmem:[#allocation3 + $0x10] sm:$0xff]
        %v7956 = vld [vmem:[#allocation3 + $0x18] sm:$0xff]
        %v7957 = vld [vmem:[#allocation3 + $0x20] sm:$0xff]
        %v7958 = vld [vmem:[#allocation3 + $0x28] sm:$0xff]
        %v7959 = vld [vmem:[#allocation3 + $0x30] sm:$0xff]
        %v7960 = vld [vmem:[#allocation3 + $0x38] sm:$0xff]
        %v7961 = vld [vmem:[#allocation3 + $0x40] sm:$0xff]
        %v7962 = vld [vmem:[#allocation3 + $0x48] sm:$0xff]
        %v7963 = vld [vmem:[#allocation3 + $0x50] sm:$0xff]
        %v7964 = vld [vmem:[#allocation3 + $0x58] sm:$0xff]
        %v7965 = vld [vmem:[#allocation3 + $0x60] sm:$0xff]
        %v7966 = vld [vmem:[#allocation3 + $0x68] sm:$0xff]
        %v7967 = vld [vmem:[#allocation3 + $0x70] sm:$0xff]
        %v7968 = vld [vmem:[#allocation3 + $0x78] sm:$0xff]
        %v7969 = vld [vmem:[#allocation16] sm:$0xf]
        %v7970 = vld [vmem:[#allocation16 + $0x4] sm:$0xf]
        %v7971 = vld [vmem:[#allocation16 + $0x8] sm:$0xf]
        %v7972 = vld [vmem:[#allocation16 + $0xc] sm:$0xf]
        %v7973 = vld [vmem:[#allocation16 + $0x10] sm:$0xf]
        %v7974 = vld [vmem:[#allocation16 + $0x14] sm:$0xf]
        %v7975 = vld [vmem:[#allocation16 + $0x18] sm:$0xf]
        %v7976 = vld [vmem:[#allocation16 + $0x1c] sm:$0xf]
        %v7977 = vld [vmem:[#allocation16 + $0x20] sm:$0xf]
        %v7978 = vld [vmem:[#allocation16 + $0x24] sm:$0xf]
        %v7979 = vld [vmem:[#allocation16 + $0x28] sm:$0xf]
        %v7980 = vld [vmem:[#allocation16 + $0x2c] sm:$0xf]
        %v7981 = vld [vmem:[#allocation16 + $0x30] sm:$0xf]
        %v7982 = vld [vmem:[#allocation16 + $0x34] sm:$0xf]
        %v7983 = vld [vmem:[#allocation16 + $0x38] sm:$0xf]
        %v7984 = vld [vmem:[#allocation16 + $0x3c] sm:$0xf]
        %v7985 = vld [vmem:[#allocation16 + $0x40] sm:$0xf]
        %v7986 = vld [vmem:[#allocation16 + $0x44] sm:$0xf]
        %v7987 = vld [vmem:[#allocation16 + $0x48] sm:$0xf]
        %v7988 = vld [vmem:[#allocation16 + $0x4c] sm:$0xf]
        %v7989 = vld [vmem:[#allocation16 + $0x50] sm:$0xf]
        %v7990 = vld [vmem:[#allocation16 + $0x54] sm:$0xf]
        %v7991 = vld [vmem:[#allocation16 + $0x58] sm:$0xf]
        %v7992 = vld [vmem:[#allocation16 + $0x5c] sm:$0xf]
        %v7993 = vld [vmem:[#allocation16 + $0x60] sm:$0xf]
        %v7994 = vld [vmem:[#allocation16 + $0x64] sm:$0xf]
        %v7995 = vld [vmem:[#allocation16 + $0x68] sm:$0xf]
        %v7996 = vld [vmem:[#allocation16 + $0x6c] sm:$0xf]
        %v7997 = vld [vmem:[#allocation16 + $0x70] sm:$0xf]
        %v7998 = vld [vmem:[#allocation16 + $0x74] sm:$0xf]
        %v7999 = vld [vmem:[#allocation16 + $0x78] sm:$0xf]
        %v8000 = vld [vmem:[#allocation16 + $0x7c] sm:$0xf]
        %v8001 = vld [vmem:[%s5561] sm:$0xff]
        %v8002 = vld [vmem:[%s5561 + $0x8] sm:$0xff]
        %v8003 = vld [vmem:[%s5561 + $0x10] sm:$0xff]
        %v8004 = vld [vmem:[%s5561 + $0x18] sm:$0xff]
        %v8005 = vld [vmem:[%s5561 + $0x20] sm:$0xff]
        %v8006 = vld [vmem:[%s5561 + $0x28] sm:$0xff]
        %v8007 = vld [vmem:[%s5561 + $0x30] sm:$0xff]
        %v8008 = vld [vmem:[%s5561 + $0x38] sm:$0xff]
        %v8009 = vld [vmem:[%s5561 + $0x40] sm:$0xff]
        %v8010 = vld [vmem:[%s5561 + $0x48] sm:$0xff]
        %v8011 = vld [vmem:[%s5561 + $0x50] sm:$0xff]
        %v8012 = vld [vmem:[%s5561 + $0x58] sm:$0xff]
        %v8013 = vld [vmem:[%s5561 + $0x60] sm:$0xff]
        %v8014 = vld [vmem:[%s5561 + $0x68] sm:$0xff]
        %v8015 = vld [vmem:[%s5561 + $0x70] sm:$0xff]
        %v8016 = vld [vmem:[%s5561 + $0x78] sm:$0xff]
        %s8017 = scalar_lea.vmem [#allocation16], 128
        %v8018 = vld [vmem:[%s8017] sm:$0xf]
        %v8019 = vld [vmem:[%s8017 + $0x4] sm:$0xf]
        %v8020 = vld [vmem:[%s8017 + $0x8] sm:$0xf]
        %v8021 = vld [vmem:[%s8017 + $0xc] sm:$0xf]
        %v8022 = vld [vmem:[%s8017 + $0x10] sm:$0xf]
        %v8023 = vld [vmem:[%s8017 + $0x14] sm:$0xf]
        %v8024 = vld [vmem:[%s8017 + $0x18] sm:$0xf]
        %v8025 = vld [vmem:[%s8017 + $0x1c] sm:$0xf]
        %v8026 = vld [vmem:[%s8017 + $0x20] sm:$0xf]
        %v8027 = vld [vmem:[%s8017 + $0x24] sm:$0xf]
        %v8028 = vld [vmem:[%s8017 + $0x28] sm:$0xf]
        %v8029 = vld [vmem:[%s8017 + $0x2c] sm:$0xf]
        %v8030 = vld [vmem:[%s8017 + $0x30] sm:$0xf]
        %v8031 = vld [vmem:[%s8017 + $0x34] sm:$0xf]
        %v8032 = vld [vmem:[%s8017 + $0x38] sm:$0xf]
        %v8033 = vld [vmem:[%s8017 + $0x3c] sm:$0xf]
        %v8034 = vld [vmem:[%s8017 + $0x40] sm:$0xf]
        %v8035 = vld [vmem:[%s8017 + $0x44] sm:$0xf]
        %v8036 = vld [vmem:[%s8017 + $0x48] sm:$0xf]
        %v8037 = vld [vmem:[%s8017 + $0x4c] sm:$0xf]
        %v8038 = vld [vmem:[%s8017 + $0x50] sm:$0xf]
        %v8039 = vld [vmem:[%s8017 + $0x54] sm:$0xf]
        %v8040 = vld [vmem:[%s8017 + $0x58] sm:$0xf]
        %v8041 = vld [vmem:[%s8017 + $0x5c] sm:$0xf]
        %v8042 = vld [vmem:[%s8017 + $0x60] sm:$0xf]
        %v8043 = vld [vmem:[%s8017 + $0x64] sm:$0xf]
        %v8044 = vld [vmem:[%s8017 + $0x68] sm:$0xf]
        %v8045 = vld [vmem:[%s8017 + $0x6c] sm:$0xf]
        %v8046 = vld [vmem:[%s8017 + $0x70] sm:$0xf]
        %v8047 = vld [vmem:[%s8017 + $0x74] sm:$0xf]
        %v8048 = vld [vmem:[%s8017 + $0x78] sm:$0xf]
        %v8049 = vld [vmem:[%s8017 + $0x7c] sm:$0xf]
        %v8066 = vunpack.c.l.b16 %v8001
        %v8067 = vunpack.c.h.b16 %v8001
        %v8068 = vunpack.c.l.b16 %v8002
        %v8069 = vunpack.c.h.b16 %v8002
        %v8070 = vunpack.c.l.b16 %v8003
        %v8071 = vunpack.c.h.b16 %v8003
        %v8072 = vunpack.c.l.b16 %v8004
        %v8073 = vunpack.c.h.b16 %v8004
        %v8074 = vunpack.c.l.b16 %v8005
        %v8075 = vunpack.c.h.b16 %v8005
        %v8076 = vunpack.c.l.b16 %v8006
        %v8077 = vunpack.c.h.b16 %v8006
        %v8078 = vunpack.c.l.b16 %v8007
        %v8079 = vunpack.c.h.b16 %v8007
        %v8080 = vunpack.c.l.b16 %v8008
        %v8081 = vunpack.c.h.b16 %v8008
        %v8082 = vunpack.c.l.b16 %v8009
        %v8083 = vunpack.c.h.b16 %v8009
        %v8084 = vunpack.c.l.b16 %v8010
        %v8085 = vunpack.c.h.b16 %v8010
        %v8086 = vunpack.c.l.b16 %v8011
        %v8087 = vunpack.c.h.b16 %v8011
        %v8088 = vunpack.c.l.b16 %v8012
        %v8089 = vunpack.c.h.b16 %v8012
        %v8090 = vunpack.c.l.b16 %v8013
        %v8091 = vunpack.c.h.b16 %v8013
        %v8092 = vunpack.c.l.b16 %v8014
        %v8093 = vunpack.c.h.b16 %v8014
        %v8094 = vunpack.c.l.b16 %v8015
        %v8095 = vunpack.c.h.b16 %v8015
        %v8096 = vunpack.c.l.b16 %v8016
        %v8097 = vunpack.c.h.b16 %v8016
        %v8098 = vpack.c.b16 %v8068, %v8066
        %v8099 = vpack.c.b16 %v8069, %v8067
        %v8100 = vpack.c.b16 %v8072, %v8070
        %v8101 = vpack.c.b16 %v8073, %v8071
        %v8102 = vpack.c.b16 %v8076, %v8074
        %v8103 = vpack.c.b16 %v8077, %v8075
        %v8104 = vpack.c.b16 %v8080, %v8078
        %v8105 = vpack.c.b16 %v8081, %v8079
        %v8106 = vpack.c.b16 %v8084, %v8082
        %v8107 = vpack.c.b16 %v8085, %v8083
        %v8108 = vpack.c.b16 %v8088, %v8086
        %v8109 = vpack.c.b16 %v8089, %v8087
        %v8110 = vpack.c.b16 %v8092, %v8090
        %v8111 = vpack.c.b16 %v8093, %v8091
        %v8112 = vpack.c.b16 %v8096, %v8094
        %v8113 = vpack.c.b16 %v8097, %v8095
        %v8162 = vunpack.c.l.b16 %v8018
        %v8163 = vunpack.c.l.b16 %v8019
        %v8164 = vunpack.c.l.b16 %v8020
        %v8165 = vunpack.c.l.b16 %v8021
        %v8166 = vunpack.c.l.b16 %v8022
        %v8167 = vunpack.c.l.b16 %v8023
        %v8168 = vunpack.c.l.b16 %v8024
        %v8169 = vunpack.c.l.b16 %v8025
        %v8170 = vunpack.c.l.b16 %v8026
        %v8171 = vunpack.c.l.b16 %v8027
        %v8172 = vunpack.c.l.b16 %v8028
        %v8173 = vunpack.c.l.b16 %v8029
        %v8174 = vunpack.c.l.b16 %v8030
        %v8175 = vunpack.c.l.b16 %v8031
        %v8176 = vunpack.c.l.b16 %v8032
        %v8177 = vunpack.c.l.b16 %v8033
        %v8178 = vunpack.c.l.b16 %v8034
        %v8179 = vunpack.c.l.b16 %v8035
        %v8180 = vunpack.c.l.b16 %v8036
        %v8181 = vunpack.c.l.b16 %v8037
        %v8182 = vunpack.c.l.b16 %v8038
        %v8183 = vunpack.c.l.b16 %v8039
        %v8184 = vunpack.c.l.b16 %v8040
        %v8185 = vunpack.c.l.b16 %v8041
        %v8186 = vunpack.c.l.b16 %v8042
        %v8187 = vunpack.c.l.b16 %v8043
        %v8188 = vunpack.c.l.b16 %v8044
        %v8189 = vunpack.c.l.b16 %v8045
        %v8190 = vunpack.c.l.b16 %v8046
        %v8191 = vunpack.c.l.b16 %v8047
        %v8192 = vunpack.c.l.b16 %v8048
        %v8193 = vunpack.c.l.b16 %v8049
        %v8194 = vpack.c.b16 %v8163, %v8162
        %v8195 = vpack.c.b16 %v8165, %v8164
        %v8196 = vpack.c.b16 %v8167, %v8166
        %v8197 = vpack.c.b16 %v8169, %v8168
        %v8198 = vpack.c.b16 %v8171, %v8170
        %v8199 = vpack.c.b16 %v8173, %v8172
        %v8200 = vpack.c.b16 %v8175, %v8174
        %v8201 = vpack.c.b16 %v8177, %v8176
        %v8202 = vpack.c.b16 %v8179, %v8178
        %v8203 = vpack.c.b16 %v8181, %v8180
        %v8204 = vpack.c.b16 %v8183, %v8182
        %v8205 = vpack.c.b16 %v8185, %v8184
        %v8206 = vpack.c.b16 %v8187, %v8186
        %v8207 = vpack.c.b16 %v8189, %v8188
        %v8208 = vpack.c.b16 %v8191, %v8190
        %v8209 = vpack.c.b16 %v8193, %v8192
        %8226 = vmatprep.subr.bf16.mxu0 0
        %8227 = vmatpush1.bf16.msra.mxu0 %v8201
        %8228 = vmatprep.subr.bf16.mxu0 0
        %8229 = vmatpush1.bf16.msra.mxu0 %v8200
        %8230 = vmatprep.subr.bf16.mxu0 0
        %8231 = vmatpush1.bf16.msra.mxu0 %v8199
        %8232 = vmatprep.subr.bf16.mxu0 0
        %8233 = vmatpush1.bf16.msra.mxu0 %v8198
        %8234 = vmatprep.subr.bf16.mxu0 0
        %8235 = vmatpush1.bf16.msra.mxu0 %v8197
        %8236 = vmatprep.subr.bf16.mxu0 0
        %8237 = vmatpush1.bf16.msra.mxu0 %v8196
        %8238 = vmatprep.subr.bf16.mxu0 0
        %8239 = vmatpush1.bf16.msra.mxu0 %v8195
        %8240 = vmatprep.subr.bf16.mxu0 0
        %8241 = vmatpush1.bf16.msra.mxu0 %v8194
        %8242 = vmatprep.subr.bf16.mxu0 0
        %8243 = vmatpush2.bf16.msra.mxu0 %v8209
        %8244 = vmatprep.subr.bf16.mxu0 0
        %8245 = vmatpush2.bf16.msra.mxu0 %v8208
        %8246 = vmatprep.subr.bf16.mxu0 0
        %8247 = vmatpush2.bf16.msra.mxu0 %v8207
        %8248 = vmatprep.subr.bf16.mxu0 0
        %8249 = vmatpush2.bf16.msra.mxu0 %v8206
        %8250 = vmatprep.subr.bf16.mxu0 0
        %8251 = vmatpush2.bf16.msra.mxu0 %v8205
        %8252 = vmatprep.subr.bf16.mxu0 0
        %8253 = vmatpush2.bf16.msra.mxu0 %v8204
        %8254 = vmatprep.subr.bf16.mxu0 0
        %8255 = vmatpush2.bf16.msra.mxu0 %v8203
        %8256 = vmatprep.subr.bf16.mxu0 0
        %8257 = vmatpush2.bf16.msra.mxu0 %v8202
        %8258 = vmatprep.mubr.bf16.mxu0 %v8099
        %8259 = vmatmul.mubr.bf16.gmra.mxu0 %v8098
        %v8260 = vpop.f32.mrf.mxu0
        %v8261 = vadd.f32 0.0, %v8260
        %v8262 = vpop.f32.mrf.mxu0
        %v8263 = vpop.f32.mrf.mxu0
        %v8264 = vadd.f32 0.0, %v8263
        %v8265 = vpop.f32.mrf.mxu0
        %8266 = vmatprep.mubr.bf16.mxu0 %v8101
        %8267 = vmatmul.mubr.bf16.gmra.mxu0 %v8100
        %v8268 = vpop.f32.mrf.mxu0
        %v8269 = vadd.f32 0.0, %v8268
        %v8270 = vpop.f32.mrf.mxu0
        %v8271 = vpop.f32.mrf.mxu0
        %v8272 = vadd.f32 0.0, %v8271
        %v8273 = vpop.f32.mrf.mxu0
        %8274 = vmatprep.mubr.bf16.mxu0 %v8103
        %8275 = vmatmul.mubr.bf16.gmra.mxu0 %v8102
        %v8276 = vpop.f32.mrf.mxu0
        %v8277 = vadd.f32 0.0, %v8276
        %v8278 = vpop.f32.mrf.mxu0
        %v8279 = vpop.f32.mrf.mxu0
        %v8280 = vadd.f32 0.0, %v8279
        %v8281 = vpop.f32.mrf.mxu0
        %8282 = vmatprep.mubr.bf16.mxu0 %v8105
        %8283 = vmatmul.mubr.bf16.gmra.mxu0 %v8104
        %v8284 = vpop.f32.mrf.mxu0
        %v8285 = vadd.f32 0.0, %v8284
        %v8286 = vpop.f32.mrf.mxu0
        %v8287 = vpop.f32.mrf.mxu0
        %v8288 = vadd.f32 0.0, %v8287
        %v8289 = vpop.f32.mrf.mxu0
        %8290 = vmatprep.mubr.bf16.mxu0 %v8107
        %8291 = vmatmul.mubr.bf16.gmra.mxu0 %v8106
        %v8292 = vpop.f32.mrf.mxu0
        %v8293 = vadd.f32 0.0, %v8292
        %v8294 = vpop.f32.mrf.mxu0
        %v8295 = vpop.f32.mrf.mxu0
        %v8296 = vadd.f32 0.0, %v8295
        %v8297 = vpop.f32.mrf.mxu0
        %8298 = vmatprep.mubr.bf16.mxu0 %v8109
        %8299 = vmatmul.mubr.bf16.gmra.mxu0 %v8108
        %v8300 = vpop.f32.mrf.mxu0
        %v8301 = vadd.f32 0.0, %v8300
        %v8302 = vpop.f32.mrf.mxu0
        %v8303 = vpop.f32.mrf.mxu0
        %v8304 = vadd.f32 0.0, %v8303
        %v8305 = vpop.f32.mrf.mxu0
        %8306 = vmatprep.mubr.bf16.mxu0 %v8111
        %8307 = vmatmul.mubr.bf16.gmra.mxu0 %v8110
        %v8308 = vpop.f32.mrf.mxu0
        %v8309 = vadd.f32 0.0, %v8308
        %v8310 = vpop.f32.mrf.mxu0
        %v8311 = vpop.f32.mrf.mxu0
        %v8312 = vadd.f32 0.0, %v8311
        %v8313 = vpop.f32.mrf.mxu0
        %8314 = vmatprep.mubr.bf16.mxu0 %v8113
        %8315 = vmatmul.mubr.bf16.gmra.mxu0 %v8112
        %v8316 = vpop.f32.mrf.mxu0
        %v8317 = vadd.f32 0.0, %v8316
        %v8318 = vpop.f32.mrf.mxu0
        %v8319 = vpop.f32.mrf.mxu0
        %v8320 = vadd.f32 0.0, %v8319
        %v8321 = vpop.f32.mrf.mxu0
        %8322 = vdwg.mxu0
        %v8339 = vunpack.c.l.b16 %v7953
        %v8340 = vunpack.c.h.b16 %v7953
        %v8341 = vunpack.c.l.b16 %v7954
        %v8342 = vunpack.c.h.b16 %v7954
        %v8343 = vunpack.c.l.b16 %v7955
        %v8344 = vunpack.c.h.b16 %v7955
        %v8345 = vunpack.c.l.b16 %v7956
        %v8346 = vunpack.c.h.b16 %v7956
        %v8347 = vunpack.c.l.b16 %v7957
        %v8348 = vunpack.c.h.b16 %v7957
        %v8349 = vunpack.c.l.b16 %v7958
        %v8350 = vunpack.c.h.b16 %v7958
        %v8351 = vunpack.c.l.b16 %v7959
        %v8352 = vunpack.c.h.b16 %v7959
        %v8353 = vunpack.c.l.b16 %v7960
        %v8354 = vunpack.c.h.b16 %v7960
        %v8355 = vunpack.c.l.b16 %v7961
        %v8356 = vunpack.c.h.b16 %v7961
        %v8357 = vunpack.c.l.b16 %v7962
        %v8358 = vunpack.c.h.b16 %v7962
        %v8359 = vunpack.c.l.b16 %v7963
        %v8360 = vunpack.c.h.b16 %v7963
        %v8361 = vunpack.c.l.b16 %v7964
        %v8362 = vunpack.c.h.b16 %v7964
        %v8363 = vunpack.c.l.b16 %v7965
        %v8364 = vunpack.c.h.b16 %v7965
        %v8365 = vunpack.c.l.b16 %v7966
        %v8366 = vunpack.c.h.b16 %v7966
        %v8367 = vunpack.c.l.b16 %v7967
        %v8368 = vunpack.c.h.b16 %v7967
        %v8369 = vunpack.c.l.b16 %v7968
        %v8370 = vunpack.c.h.b16 %v7968
        %v8371 = vpack.c.b16 %v8341, %v8339
        %v8372 = vpack.c.b16 %v8342, %v8340
        %v8373 = vpack.c.b16 %v8345, %v8343
        %v8374 = vpack.c.b16 %v8346, %v8344
        %v8375 = vpack.c.b16 %v8349, %v8347
        %v8376 = vpack.c.b16 %v8350, %v8348
        %v8377 = vpack.c.b16 %v8353, %v8351
        %v8378 = vpack.c.b16 %v8354, %v8352
        %v8379 = vpack.c.b16 %v8357, %v8355
        %v8380 = vpack.c.b16 %v8358, %v8356
        %v8381 = vpack.c.b16 %v8361, %v8359
        %v8382 = vpack.c.b16 %v8362, %v8360
        %v8383 = vpack.c.b16 %v8365, %v8363
        %v8384 = vpack.c.b16 %v8366, %v8364
        %v8385 = vpack.c.b16 %v8369, %v8367
        %v8386 = vpack.c.b16 %v8370, %v8368
        %v8435 = vunpack.c.l.b16 %v7969
        %v8436 = vunpack.c.l.b16 %v7970
        %v8437 = vunpack.c.l.b16 %v7971
        %v8438 = vunpack.c.l.b16 %v7972
        %v8439 = vunpack.c.l.b16 %v7973
        %v8440 = vunpack.c.l.b16 %v7974
        %v8441 = vunpack.c.l.b16 %v7975
        %v8442 = vunpack.c.l.b16 %v7976
        %v8443 = vunpack.c.l.b16 %v7977
        %v8444 = vunpack.c.l.b16 %v7978
        %v8445 = vunpack.c.l.b16 %v7979
        %v8446 = vunpack.c.l.b16 %v7980
        %v8447 = vunpack.c.l.b16 %v7981
        %v8448 = vunpack.c.l.b16 %v7982
        %v8449 = vunpack.c.l.b16 %v7983
        %v8450 = vunpack.c.l.b16 %v7984
        %v8451 = vunpack.c.l.b16 %v7985
        %v8452 = vunpack.c.l.b16 %v7986
        %v8453 = vunpack.c.l.b16 %v7987
        %v8454 = vunpack.c.l.b16 %v7988
        %v8455 = vunpack.c.l.b16 %v7989
        %v8456 = vunpack.c.l.b16 %v7990
        %v8457 = vunpack.c.l.b16 %v7991
        %v8458 = vunpack.c.l.b16 %v7992
        %v8459 = vunpack.c.l.b16 %v7993
        %v8460 = vunpack.c.l.b16 %v7994
        %v8461 = vunpack.c.l.b16 %v7995
        %v8462 = vunpack.c.l.b16 %v7996
        %v8463 = vunpack.c.l.b16 %v7997
        %v8464 = vunpack.c.l.b16 %v7998
        %v8465 = vunpack.c.l.b16 %v7999
        %v8466 = vunpack.c.l.b16 %v8000
        %v8467 = vpack.c.b16 %v8436, %v8435
        %v8468 = vpack.c.b16 %v8438, %v8437
        %v8469 = vpack.c.b16 %v8440, %v8439
        %v8470 = vpack.c.b16 %v8442, %v8441
        %v8471 = vpack.c.b16 %v8444, %v8443
        %v8472 = vpack.c.b16 %v8446, %v8445
        %v8473 = vpack.c.b16 %v8448, %v8447
        %v8474 = vpack.c.b16 %v8450, %v8449
        %v8475 = vpack.c.b16 %v8452, %v8451
        %v8476 = vpack.c.b16 %v8454, %v8453
        %v8477 = vpack.c.b16 %v8456, %v8455
        %v8478 = vpack.c.b16 %v8458, %v8457
        %v8479 = vpack.c.b16 %v8460, %v8459
        %v8480 = vpack.c.b16 %v8462, %v8461
        %v8481 = vpack.c.b16 %v8464, %v8463
        %v8482 = vpack.c.b16 %v8466, %v8465
        %8499 = vmatprep.subr.bf16.mxu0 0
        %8500 = vmatpush1.bf16.msra.mxu0 %v8474
        %8501 = vmatprep.subr.bf16.mxu0 0
        %8502 = vmatpush1.bf16.msra.mxu0 %v8473
        %8503 = vmatprep.subr.bf16.mxu0 0
        %8504 = vmatpush1.bf16.msra.mxu0 %v8472
        %8505 = vmatprep.subr.bf16.mxu0 0
        %8506 = vmatpush1.bf16.msra.mxu0 %v8471
        %8507 = vmatprep.subr.bf16.mxu0 0
        %8508 = vmatpush1.bf16.msra.mxu0 %v8470
        %8509 = vmatprep.subr.bf16.mxu0 0
        %8510 = vmatpush1.bf16.msra.mxu0 %v8469
        %8511 = vmatprep.subr.bf16.mxu0 0
        %8512 = vmatpush1.bf16.msra.mxu0 %v8468
        %8513 = vmatprep.subr.bf16.mxu0 0
        %8514 = vmatpush1.bf16.msra.mxu0 %v8467
        %8515 = vmatprep.subr.bf16.mxu0 0
        %8516 = vmatpush2.bf16.msra.mxu0 %v8482
        %8517 = vmatprep.subr.bf16.mxu0 0
        %8518 = vmatpush2.bf16.msra.mxu0 %v8481
        %8519 = vmatprep.subr.bf16.mxu0 0
        %8520 = vmatpush2.bf16.msra.mxu0 %v8480
        %8521 = vmatprep.subr.bf16.mxu0 0
        %8522 = vmatpush2.bf16.msra.mxu0 %v8479
        %8523 = vmatprep.subr.bf16.mxu0 0
        %8524 = vmatpush2.bf16.msra.mxu0 %v8478
        %8525 = vmatprep.subr.bf16.mxu0 0
        %8526 = vmatpush2.bf16.msra.mxu0 %v8477
        %8527 = vmatprep.subr.bf16.mxu0 0
        %8528 = vmatpush2.bf16.msra.mxu0 %v8476
        %8529 = vmatprep.subr.bf16.mxu0 0
        %8530 = vmatpush2.bf16.msra.mxu0 %v8475
        %8531 = vmatprep.mubr.bf16.mxu0 %v8372
        %8532 = vmatmul.mubr.bf16.gmra.mxu0 %v8371
        %v8533 = vpop.f32.mrf.mxu0
        %v8534 = vadd.f32 %v8261, %v8533
        %v8535 = vpop.f32.mrf.mxu0
        %v8536 = vpop.f32.mrf.mxu0
        %v8537 = vadd.f32 %v8264, %v8536
        %v8538 = vpop.f32.mrf.mxu0
        %8539 = vmatprep.mubr.bf16.mxu0 %v8374
        %8540 = vmatmul.mubr.bf16.gmra.mxu0 %v8373
        %v8541 = vpop.f32.mrf.mxu0
        %v8542 = vadd.f32 %v8269, %v8541
        %v8543 = vpop.f32.mrf.mxu0
        %v8544 = vpop.f32.mrf.mxu0
        %v8545 = vadd.f32 %v8272, %v8544
        %v8546 = vpop.f32.mrf.mxu0
        %8547 = vmatprep.mubr.bf16.mxu0 %v8376
        %8548 = vmatmul.mubr.bf16.gmra.mxu0 %v8375
        %v8549 = vpop.f32.mrf.mxu0
        %v8550 = vadd.f32 %v8277, %v8549
        %v8551 = vpop.f32.mrf.mxu0
        %v8552 = vpop.f32.mrf.mxu0
        %v8553 = vadd.f32 %v8280, %v8552
        %v8554 = vpop.f32.mrf.mxu0
        %8555 = vmatprep.mubr.bf16.mxu0 %v8378
        %8556 = vmatmul.mubr.bf16.gmra.mxu0 %v8377
        %v8557 = vpop.f32.mrf.mxu0
        %v8558 = vadd.f32 %v8285, %v8557
        %v8559 = vpop.f32.mrf.mxu0
        %v8560 = vpop.f32.mrf.mxu0
        %v8561 = vadd.f32 %v8288, %v8560
        %v8562 = vpop.f32.mrf.mxu0
        %8563 = vmatprep.mubr.bf16.mxu0 %v8380
        %8564 = vmatmul.mubr.bf16.gmra.mxu0 %v8379
        %v8565 = vpop.f32.mrf.mxu0
        %v8566 = vadd.f32 %v8293, %v8565
        %v8567 = vpop.f32.mrf.mxu0
        %v8568 = vpop.f32.mrf.mxu0
        %v8569 = vadd.f32 %v8296, %v8568
        %v8570 = vpop.f32.mrf.mxu0
        %8571 = vmatprep.mubr.bf16.mxu0 %v8382
        %8572 = vmatmul.mubr.bf16.gmra.mxu0 %v8381
        %v8573 = vpop.f32.mrf.mxu0
        %v8574 = vadd.f32 %v8301, %v8573
        %v8575 = vpop.f32.mrf.mxu0
        %v8576 = vpop.f32.mrf.mxu0
        %v8577 = vadd.f32 %v8304, %v8576
        %v8578 = vpop.f32.mrf.mxu0
        %8579 = vmatprep.mubr.bf16.mxu0 %v8384
        %8580 = vmatmul.mubr.bf16.gmra.mxu0 %v8383
        %v8581 = vpop.f32.mrf.mxu0
        %v8582 = vadd.f32 %v8309, %v8581
        %v8583 = vpop.f32.mrf.mxu0
        %v8584 = vpop.f32.mrf.mxu0
        %v8585 = vadd.f32 %v8312, %v8584
        %v8586 = vpop.f32.mrf.mxu0
        %8587 = vmatprep.mubr.bf16.mxu0 %v8386
        %8588 = vmatmul.mubr.bf16.gmra.mxu0 %v8385
        %v8589 = vpop.f32.mrf.mxu0
        %v8590 = vadd.f32 %v8317, %v8589
        %v8591 = vpop.f32.mrf.mxu0
        %v8592 = vpop.f32.mrf.mxu0
        %v8593 = vadd.f32 %v8320, %v8592
        %v8594 = vpop.f32.mrf.mxu0
        %8595 = vdwg.mxu0
        %v8596 = vld [vmem:[%s5416] sm:$0xff]
        %v8597 = vld [vmem:[%s5416 + $0x8] sm:$0xff]
        %v8598 = vld [vmem:[%s5416 + $0x10] sm:$0xff]
        %v8599 = vld [vmem:[%s5416 + $0x18] sm:$0xff]
        %v8600 = vld [vmem:[%s5416 + $0x20] sm:$0xff]
        %v8601 = vld [vmem:[%s5416 + $0x28] sm:$0xff]
        %v8602 = vld [vmem:[%s5416 + $0x30] sm:$0xff]
        %v8603 = vld [vmem:[%s5416 + $0x38] sm:$0xff]
        %v8604 = vld [vmem:[%s5416 + $0x40] sm:$0xff]
        %v8605 = vld [vmem:[%s5416 + $0x48] sm:$0xff]
        %v8606 = vld [vmem:[%s5416 + $0x50] sm:$0xff]
        %v8607 = vld [vmem:[%s5416 + $0x58] sm:$0xff]
        %v8608 = vld [vmem:[%s5416 + $0x60] sm:$0xff]
        %v8609 = vld [vmem:[%s5416 + $0x68] sm:$0xff]
        %v8610 = vld [vmem:[%s5416 + $0x70] sm:$0xff]
        %v8611 = vld [vmem:[%s5416 + $0x78] sm:$0xff]
        %s8612 = scalar_lea.vmem [#allocation16], 256
        %v8613 = vld [vmem:[%s8612] sm:$0xf]
        %v8614 = vld [vmem:[%s8612 + $0x4] sm:$0xf]
        %v8615 = vld [vmem:[%s8612 + $0x8] sm:$0xf]
        %v8616 = vld [vmem:[%s8612 + $0xc] sm:$0xf]
        %v8617 = vld [vmem:[%s8612 + $0x10] sm:$0xf]
        %v8618 = vld [vmem:[%s8612 + $0x14] sm:$0xf]
        %v8619 = vld [vmem:[%s8612 + $0x18] sm:$0xf]
        %v8620 = vld [vmem:[%s8612 + $0x1c] sm:$0xf]
        %v8621 = vld [vmem:[%s8612 + $0x20] sm:$0xf]
        %v8622 = vld [vmem:[%s8612 + $0x24] sm:$0xf]
        %v8623 = vld [vmem:[%s8612 + $0x28] sm:$0xf]
        %v8624 = vld [vmem:[%s8612 + $0x2c] sm:$0xf]
        %v8625 = vld [vmem:[%s8612 + $0x30] sm:$0xf]
        %v8626 = vld [vmem:[%s8612 + $0x34] sm:$0xf]
        %v8627 = vld [vmem:[%s8612 + $0x38] sm:$0xf]
        %v8628 = vld [vmem:[%s8612 + $0x3c] sm:$0xf]
        %v8629 = vld [vmem:[%s8612 + $0x40] sm:$0xf]
        %v8630 = vld [vmem:[%s8612 + $0x44] sm:$0xf]
        %v8631 = vld [vmem:[%s8612 + $0x48] sm:$0xf]
        %v8632 = vld [vmem:[%s8612 + $0x4c] sm:$0xf]
        %v8633 = vld [vmem:[%s8612 + $0x50] sm:$0xf]
        %v8634 = vld [vmem:[%s8612 + $0x54] sm:$0xf]
        %v8635 = vld [vmem:[%s8612 + $0x58] sm:$0xf]
        %v8636 = vld [vmem:[%s8612 + $0x5c] sm:$0xf]
        %v8637 = vld [vmem:[%s8612 + $0x60] sm:$0xf]
        %v8638 = vld [vmem:[%s8612 + $0x64] sm:$0xf]
        %v8639 = vld [vmem:[%s8612 + $0x68] sm:$0xf]
        %v8640 = vld [vmem:[%s8612 + $0x6c] sm:$0xf]
        %v8641 = vld [vmem:[%s8612 + $0x70] sm:$0xf]
        %v8642 = vld [vmem:[%s8612 + $0x74] sm:$0xf]
        %v8643 = vld [vmem:[%s8612 + $0x78] sm:$0xf]
        %v8644 = vld [vmem:[%s8612 + $0x7c] sm:$0xf]
        %v8661 = vunpack.c.l.b16 %v8596
        %v8662 = vunpack.c.h.b16 %v8596
        %v8663 = vunpack.c.l.b16 %v8597
        %v8664 = vunpack.c.h.b16 %v8597
        %v8665 = vunpack.c.l.b16 %v8598
        %v8666 = vunpack.c.h.b16 %v8598
        %v8667 = vunpack.c.l.b16 %v8599
        %v8668 = vunpack.c.h.b16 %v8599
        %v8669 = vunpack.c.l.b16 %v8600
        %v8670 = vunpack.c.h.b16 %v8600
        %v8671 = vunpack.c.l.b16 %v8601
        %v8672 = vunpack.c.h.b16 %v8601
        %v8673 = vunpack.c.l.b16 %v8602
        %v8674 = vunpack.c.h.b16 %v8602
        %v8675 = vunpack.c.l.b16 %v8603
        %v8676 = vunpack.c.h.b16 %v8603
        %v8677 = vunpack.c.l.b16 %v8604
        %v8678 = vunpack.c.h.b16 %v8604
        %v8679 = vunpack.c.l.b16 %v8605
        %v8680 = vunpack.c.h.b16 %v8605
        %v8681 = vunpack.c.l.b16 %v8606
        %v8682 = vunpack.c.h.b16 %v8606
        %v8683 = vunpack.c.l.b16 %v8607
        %v8684 = vunpack.c.h.b16 %v8607
        %v8685 = vunpack.c.l.b16 %v8608
        %v8686 = vunpack.c.h.b16 %v8608
        %v8687 = vunpack.c.l.b16 %v8609
        %v8688 = vunpack.c.h.b16 %v8609
        %v8689 = vunpack.c.l.b16 %v8610
        %v8690 = vunpack.c.h.b16 %v8610
        %v8691 = vunpack.c.l.b16 %v8611
        %v8692 = vunpack.c.h.b16 %v8611
        %v8693 = vpack.c.b16 %v8663, %v8661
        %v8694 = vpack.c.b16 %v8664, %v8662
        %v8695 = vpack.c.b16 %v8667, %v8665
        %v8696 = vpack.c.b16 %v8668, %v8666
        %v8697 = vpack.c.b16 %v8671, %v8669
        %v8698 = vpack.c.b16 %v8672, %v8670
        %v8699 = vpack.c.b16 %v8675, %v8673
        %v8700 = vpack.c.b16 %v8676, %v8674
        %v8701 = vpack.c.b16 %v8679, %v8677
        %v8702 = vpack.c.b16 %v8680, %v8678
        %v8703 = vpack.c.b16 %v8683, %v8681
        %v8704 = vpack.c.b16 %v8684, %v8682
        %v8705 = vpack.c.b16 %v8687, %v8685
        %v8706 = vpack.c.b16 %v8688, %v8686
        %v8707 = vpack.c.b16 %v8691, %v8689
        %v8708 = vpack.c.b16 %v8692, %v8690
        %v8757 = vunpack.c.l.b16 %v8613
        %v8758 = vunpack.c.l.b16 %v8614
        %v8759 = vunpack.c.l.b16 %v8615
        %v8760 = vunpack.c.l.b16 %v8616
        %v8761 = vunpack.c.l.b16 %v8617
        %v8762 = vunpack.c.l.b16 %v8618
        %v8763 = vunpack.c.l.b16 %v8619
        %v8764 = vunpack.c.l.b16 %v8620
        %v8765 = vunpack.c.l.b16 %v8621
        %v8766 = vunpack.c.l.b16 %v8622
        %v8767 = vunpack.c.l.b16 %v8623
        %v8768 = vunpack.c.l.b16 %v8624
        %v8769 = vunpack.c.l.b16 %v8625
        %v8770 = vunpack.c.l.b16 %v8626
        %v8771 = vunpack.c.l.b16 %v8627
        %v8772 = vunpack.c.l.b16 %v8628
        %v8773 = vunpack.c.l.b16 %v8629
        %v8774 = vunpack.c.l.b16 %v8630
        %v8775 = vunpack.c.l.b16 %v8631
        %v8776 = vunpack.c.l.b16 %v8632
        %v8777 = vunpack.c.l.b16 %v8633
        %v8778 = vunpack.c.l.b16 %v8634
        %v8779 = vunpack.c.l.b16 %v8635
        %v8780 = vunpack.c.l.b16 %v8636
        %v8781 = vunpack.c.l.b16 %v8637
        %v8782 = vunpack.c.l.b16 %v8638
        %v8783 = vunpack.c.l.b16 %v8639
        %v8784 = vunpack.c.l.b16 %v8640
        %v8785 = vunpack.c.l.b16 %v8641
        %v8786 = vunpack.c.l.b16 %v8642
        %v8787 = vunpack.c.l.b16 %v8643
        %v8788 = vunpack.c.l.b16 %v8644
        %v8789 = vpack.c.b16 %v8758, %v8757
        %v8790 = vpack.c.b16 %v8760, %v8759
        %v8791 = vpack.c.b16 %v8762, %v8761
        %v8792 = vpack.c.b16 %v8764, %v8763
        %v8793 = vpack.c.b16 %v8766, %v8765
        %v8794 = vpack.c.b16 %v8768, %v8767
        %v8795 = vpack.c.b16 %v8770, %v8769
        %v8796 = vpack.c.b16 %v8772, %v8771
        %v8797 = vpack.c.b16 %v8774, %v8773
        %v8798 = vpack.c.b16 %v8776, %v8775
        %v8799 = vpack.c.b16 %v8778, %v8777
        %v8800 = vpack.c.b16 %v8780, %v8779
        %v8801 = vpack.c.b16 %v8782, %v8781
        %v8802 = vpack.c.b16 %v8784, %v8783
        %v8803 = vpack.c.b16 %v8786, %v8785
        %v8804 = vpack.c.b16 %v8788, %v8787
        %8821 = vmatprep.subr.bf16.mxu0 0
        %8822 = vmatpush1.bf16.msra.mxu0 %v8796
        %8823 = vmatprep.subr.bf16.mxu0 0
        %8824 = vmatpush1.bf16.msra.mxu0 %v8795
        %8825 = vmatprep.subr.bf16.mxu0 0
        %8826 = vmatpush1.bf16.msra.mxu0 %v8794
        %8827 = vmatprep.subr.bf16.mxu0 0
        %8828 = vmatpush1.bf16.msra.mxu0 %v8793
        %8829 = vmatprep.subr.bf16.mxu0 0
        %8830 = vmatpush1.bf16.msra.mxu0 %v8792
        %8831 = vmatprep.subr.bf16.mxu0 0
        %8832 = vmatpush1.bf16.msra.mxu0 %v8791
        %8833 = vmatprep.subr.bf16.mxu0 0
        %8834 = vmatpush1.bf16.msra.mxu0 %v8790
        %8835 = vmatprep.subr.bf16.mxu0 0
        %8836 = vmatpush1.bf16.msra.mxu0 %v8789
        %8837 = vmatprep.subr.bf16.mxu0 0
        %8838 = vmatpush2.bf16.msra.mxu0 %v8804
        %8839 = vmatprep.subr.bf16.mxu0 0
        %8840 = vmatpush2.bf16.msra.mxu0 %v8803
        %8841 = vmatprep.subr.bf16.mxu0 0
        %8842 = vmatpush2.bf16.msra.mxu0 %v8802
        %8843 = vmatprep.subr.bf16.mxu0 0
        %8844 = vmatpush2.bf16.msra.mxu0 %v8801
        %8845 = vmatprep.subr.bf16.mxu0 0
        %8846 = vmatpush2.bf16.msra.mxu0 %v8800
        %8847 = vmatprep.subr.bf16.mxu0 0
        %8848 = vmatpush2.bf16.msra.mxu0 %v8799
        %8849 = vmatprep.subr.bf16.mxu0 0
        %8850 = vmatpush2.bf16.msra.mxu0 %v8798
        %8851 = vmatprep.subr.bf16.mxu0 0
        %8852 = vmatpush2.bf16.msra.mxu0 %v8797
        %8853 = vmatprep.mubr.bf16.mxu0 %v8694
        %8854 = vmatmul.mubr.bf16.gmra.mxu0 %v8693
        %v8855 = vpop.f32.mrf.mxu0
        %v8856 = vadd.f32 0.0, %v8855
        %v8857 = vpop.f32.mrf.mxu0
        %v8858 = vpop.f32.mrf.mxu0
        %v8859 = vadd.f32 0.0, %v8858
        %v8860 = vpop.f32.mrf.mxu0
        %8861 = vmatprep.mubr.bf16.mxu0 %v8696
        %8862 = vmatmul.mubr.bf16.gmra.mxu0 %v8695
        %v8863 = vpop.f32.mrf.mxu0
        %v8864 = vadd.f32 0.0, %v8863
        %v8865 = vpop.f32.mrf.mxu0
        %v8866 = vpop.f32.mrf.mxu0
        %v8867 = vadd.f32 0.0, %v8866
        %v8868 = vpop.f32.mrf.mxu0
        %8869 = vmatprep.mubr.bf16.mxu0 %v8698
        %8870 = vmatmul.mubr.bf16.gmra.mxu0 %v8697
        %v8871 = vpop.f32.mrf.mxu0
        %v8872 = vadd.f32 0.0, %v8871
        %v8873 = vpop.f32.mrf.mxu0
        %v8874 = vpop.f32.mrf.mxu0
        %v8875 = vadd.f32 0.0, %v8874
        %v8876 = vpop.f32.mrf.mxu0
        %8877 = vmatprep.mubr.bf16.mxu0 %v8700
        %8878 = vmatmul.mubr.bf16.gmra.mxu0 %v8699
        %v8879 = vpop.f32.mrf.mxu0
        %v8880 = vadd.f32 0.0, %v8879
        %v8881 = vpop.f32.mrf.mxu0
        %v8882 = vpop.f32.mrf.mxu0
        %v8883 = vadd.f32 0.0, %v8882
        %v8884 = vpop.f32.mrf.mxu0
        %8885 = vmatprep.mubr.bf16.mxu0 %v8702
        %8886 = vmatmul.mubr.bf16.gmra.mxu0 %v8701
        %v8887 = vpop.f32.mrf.mxu0
        %v8888 = vadd.f32 0.0, %v8887
        %v8889 = vpop.f32.mrf.mxu0
        %v8890 = vpop.f32.mrf.mxu0
        %v8891 = vadd.f32 0.0, %v8890
        %v8892 = vpop.f32.mrf.mxu0
        %8893 = vmatprep.mubr.bf16.mxu0 %v8704
        %8894 = vmatmul.mubr.bf16.gmra.mxu0 %v8703
        %v8895 = vpop.f32.mrf.mxu0
        %v8896 = vadd.f32 0.0, %v8895
        %v8897 = vpop.f32.mrf.mxu0
        %v8898 = vpop.f32.mrf.mxu0
        %v8899 = vadd.f32 0.0, %v8898
        %v8900 = vpop.f32.mrf.mxu0
        %8901 = vmatprep.mubr.bf16.mxu0 %v8706
        %8902 = vmatmul.mubr.bf16.gmra.mxu0 %v8705
        %v8903 = vpop.f32.mrf.mxu0
        %v8904 = vadd.f32 0.0, %v8903
        %v8905 = vpop.f32.mrf.mxu0
        %v8906 = vpop.f32.mrf.mxu0
        %v8907 = vadd.f32 0.0, %v8906
        %v8908 = vpop.f32.mrf.mxu0
        %8909 = vmatprep.mubr.bf16.mxu0 %v8708
        %8910 = vmatmul.mubr.bf16.gmra.mxu0 %v8707
        %v8911 = vpop.f32.mrf.mxu0
        %v8912 = vadd.f32 0.0, %v8911
        %v8913 = vpop.f32.mrf.mxu0
        %v8914 = vpop.f32.mrf.mxu0
        %v8915 = vadd.f32 0.0, %v8914
        %v8916 = vpop.f32.mrf.mxu0
        %8917 = vdwg.mxu0
        %v8918 = vadd.f32 %v8534, %v8856
        %v8919 = vadd.f32 %v8537, %v8859
        %v8920 = vadd.f32 %v8542, %v8864
        %v8921 = vadd.f32 %v8545, %v8867
        %v8922 = vadd.f32 %v8550, %v8872
        %v8923 = vadd.f32 %v8553, %v8875
        %v8924 = vadd.f32 %v8558, %v8880
        %v8925 = vadd.f32 %v8561, %v8883
        %v8926 = vadd.f32 %v8566, %v8888
        %v8927 = vadd.f32 %v8569, %v8891
        %v8928 = vadd.f32 %v8574, %v8896
        %v8929 = vadd.f32 %v8577, %v8899
        %v8930 = vadd.f32 %v8582, %v8904
        %v8931 = vadd.f32 %v8585, %v8907
        %v8932 = vadd.f32 %v8590, %v8912
        %v8933 = vadd.f32 %v8593, %v8915
        %v8934 = vld [vmem:[%s6751] sm:$0xff]
        %v8935 = vld [vmem:[%s6751 + $0x8] sm:$0xff]
        %v8936 = vld [vmem:[%s6751 + $0x10] sm:$0xff]
        %v8937 = vld [vmem:[%s6751 + $0x18] sm:$0xff]
        %v8938 = vld [vmem:[%s6751 + $0x20] sm:$0xff]
        %v8939 = vld [vmem:[%s6751 + $0x28] sm:$0xff]
        %v8940 = vld [vmem:[%s6751 + $0x30] sm:$0xff]
        %v8941 = vld [vmem:[%s6751 + $0x38] sm:$0xff]
        %v8942 = vld [vmem:[%s6751 + $0x40] sm:$0xff]
        %v8943 = vld [vmem:[%s6751 + $0x48] sm:$0xff]
        %v8944 = vld [vmem:[%s6751 + $0x50] sm:$0xff]
        %v8945 = vld [vmem:[%s6751 + $0x58] sm:$0xff]
        %v8946 = vld [vmem:[%s6751 + $0x60] sm:$0xff]
        %v8947 = vld [vmem:[%s6751 + $0x68] sm:$0xff]
        %v8948 = vld [vmem:[%s6751 + $0x70] sm:$0xff]
        %v8949 = vld [vmem:[%s6751 + $0x78] sm:$0xff]
        %s8950 = scalar_lea.vmem [#allocation16], 384
        %v8951 = vld [vmem:[%s8950] sm:$0xf]
        %v8952 = vld [vmem:[%s8950 + $0x4] sm:$0xf]
        %v8953 = vld [vmem:[%s8950 + $0x8] sm:$0xf]
        %v8954 = vld [vmem:[%s8950 + $0xc] sm:$0xf]
        %v8955 = vld [vmem:[%s8950 + $0x10] sm:$0xf]
        %v8956 = vld [vmem:[%s8950 + $0x14] sm:$0xf]
        %v8957 = vld [vmem:[%s8950 + $0x18] sm:$0xf]
        %v8958 = vld [vmem:[%s8950 + $0x1c] sm:$0xf]
        %v8959 = vld [vmem:[%s8950 + $0x20] sm:$0xf]
        %v8960 = vld [vmem:[%s8950 + $0x24] sm:$0xf]
        %v8961 = vld [vmem:[%s8950 + $0x28] sm:$0xf]
        %v8962 = vld [vmem:[%s8950 + $0x2c] sm:$0xf]
        %v8963 = vld [vmem:[%s8950 + $0x30] sm:$0xf]
        %v8964 = vld [vmem:[%s8950 + $0x34] sm:$0xf]
        %v8965 = vld [vmem:[%s8950 + $0x38] sm:$0xf]
        %v8966 = vld [vmem:[%s8950 + $0x3c] sm:$0xf]
        %v8967 = vld [vmem:[%s8950 + $0x40] sm:$0xf]
        %v8968 = vld [vmem:[%s8950 + $0x44] sm:$0xf]
        %v8969 = vld [vmem:[%s8950 + $0x48] sm:$0xf]
        %v8970 = vld [vmem:[%s8950 + $0x4c] sm:$0xf]
        %v8971 = vld [vmem:[%s8950 + $0x50] sm:$0xf]
        %v8972 = vld [vmem:[%s8950 + $0x54] sm:$0xf]
        %v8973 = vld [vmem:[%s8950 + $0x58] sm:$0xf]
        %v8974 = vld [vmem:[%s8950 + $0x5c] sm:$0xf]
        %v8975 = vld [vmem:[%s8950 + $0x60] sm:$0xf]
        %v8976 = vld [vmem:[%s8950 + $0x64] sm:$0xf]
        %v8977 = vld [vmem:[%s8950 + $0x68] sm:$0xf]
        %v8978 = vld [vmem:[%s8950 + $0x6c] sm:$0xf]
        %v8979 = vld [vmem:[%s8950 + $0x70] sm:$0xf]
        %v8980 = vld [vmem:[%s8950 + $0x74] sm:$0xf]
        %v8981 = vld [vmem:[%s8950 + $0x78] sm:$0xf]
        %v8982 = vld [vmem:[%s8950 + $0x7c] sm:$0xf]
        %v8999 = vunpack.c.l.b16 %v8934
        %v9000 = vunpack.c.h.b16 %v8934
        %v9001 = vunpack.c.l.b16 %v8935
        %v9002 = vunpack.c.h.b16 %v8935
        %v9003 = vunpack.c.l.b16 %v8936
        %v9004 = vunpack.c.h.b16 %v8936
        %v9005 = vunpack.c.l.b16 %v8937
        %v9006 = vunpack.c.h.b16 %v8937
        %v9007 = vunpack.c.l.b16 %v8938
        %v9008 = vunpack.c.h.b16 %v8938
        %v9009 = vunpack.c.l.b16 %v8939
        %v9010 = vunpack.c.h.b16 %v8939
        %v9011 = vunpack.c.l.b16 %v8940
        %v9012 = vunpack.c.h.b16 %v8940
        %v9013 = vunpack.c.l.b16 %v8941
        %v9014 = vunpack.c.h.b16 %v8941
        %v9015 = vunpack.c.l.b16 %v8942
        %v9016 = vunpack.c.h.b16 %v8942
        %v9017 = vunpack.c.l.b16 %v8943
        %v9018 = vunpack.c.h.b16 %v8943
        %v9019 = vunpack.c.l.b16 %v8944
        %v9020 = vunpack.c.h.b16 %v8944
        %v9021 = vunpack.c.l.b16 %v8945
        %v9022 = vunpack.c.h.b16 %v8945
        %v9023 = vunpack.c.l.b16 %v8946
        %v9024 = vunpack.c.h.b16 %v8946
        %v9025 = vunpack.c.l.b16 %v8947
        %v9026 = vunpack.c.h.b16 %v8947
        %v9027 = vunpack.c.l.b16 %v8948
        %v9028 = vunpack.c.h.b16 %v8948
        %v9029 = vunpack.c.l.b16 %v8949
        %v9030 = vunpack.c.h.b16 %v8949
        %v9031 = vpack.c.b16 %v9001, %v8999
        %v9032 = vpack.c.b16 %v9002, %v9000
        %v9033 = vpack.c.b16 %v9005, %v9003
        %v9034 = vpack.c.b16 %v9006, %v9004
        %v9035 = vpack.c.b16 %v9009, %v9007
        %v9036 = vpack.c.b16 %v9010, %v9008
        %v9037 = vpack.c.b16 %v9013, %v9011
        %v9038 = vpack.c.b16 %v9014, %v9012
        %v9039 = vpack.c.b16 %v9017, %v9015
        %v9040 = vpack.c.b16 %v9018, %v9016
        %v9041 = vpack.c.b16 %v9021, %v9019
        %v9042 = vpack.c.b16 %v9022, %v9020
        %v9043 = vpack.c.b16 %v9025, %v9023
        %v9044 = vpack.c.b16 %v9026, %v9024
        %v9045 = vpack.c.b16 %v9029, %v9027
        %v9046 = vpack.c.b16 %v9030, %v9028
        %v9095 = vunpack.c.l.b16 %v8951
        %v9096 = vunpack.c.l.b16 %v8952
        %v9097 = vunpack.c.l.b16 %v8953
        %v9098 = vunpack.c.l.b16 %v8954
        %v9099 = vunpack.c.l.b16 %v8955
        %v9100 = vunpack.c.l.b16 %v8956
        %v9101 = vunpack.c.l.b16 %v8957
        %v9102 = vunpack.c.l.b16 %v8958
        %v9103 = vunpack.c.l.b16 %v8959
        %v9104 = vunpack.c.l.b16 %v8960
        %v9105 = vunpack.c.l.b16 %v8961
        %v9106 = vunpack.c.l.b16 %v8962
        %v9107 = vunpack.c.l.b16 %v8963
        %v9108 = vunpack.c.l.b16 %v8964
        %v9109 = vunpack.c.l.b16 %v8965
        %v9110 = vunpack.c.l.b16 %v8966
        %v9111 = vunpack.c.l.b16 %v8967
        %v9112 = vunpack.c.l.b16 %v8968
        %v9113 = vunpack.c.l.b16 %v8969
        %v9114 = vunpack.c.l.b16 %v8970
        %v9115 = vunpack.c.l.b16 %v8971
        %v9116 = vunpack.c.l.b16 %v8972
        %v9117 = vunpack.c.l.b16 %v8973
        %v9118 = vunpack.c.l.b16 %v8974
        %v9119 = vunpack.c.l.b16 %v8975
        %v9120 = vunpack.c.l.b16 %v8976
        %v9121 = vunpack.c.l.b16 %v8977
        %v9122 = vunpack.c.l.b16 %v8978
        %v9123 = vunpack.c.l.b16 %v8979
        %v9124 = vunpack.c.l.b16 %v8980
        %v9125 = vunpack.c.l.b16 %v8981
        %v9126 = vunpack.c.l.b16 %v8982
        %v9127 = vpack.c.b16 %v9096, %v9095
        %v9128 = vpack.c.b16 %v9098, %v9097
        %v9129 = vpack.c.b16 %v9100, %v9099
        %v9130 = vpack.c.b16 %v9102, %v9101
        %v9131 = vpack.c.b16 %v9104, %v9103
        %v9132 = vpack.c.b16 %v9106, %v9105
        %v9133 = vpack.c.b16 %v9108, %v9107
        %v9134 = vpack.c.b16 %v9110, %v9109
        %v9135 = vpack.c.b16 %v9112, %v9111
        %v9136 = vpack.c.b16 %v9114, %v9113
        %v9137 = vpack.c.b16 %v9116, %v9115
        %v9138 = vpack.c.b16 %v9118, %v9117
        %v9139 = vpack.c.b16 %v9120, %v9119
        %v9140 = vpack.c.b16 %v9122, %v9121
        %v9141 = vpack.c.b16 %v9124, %v9123
        %v9142 = vpack.c.b16 %v9126, %v9125
        %9159 = vmatprep.subr.bf16.mxu0 0
        %9160 = vmatpush1.bf16.msra.mxu0 %v9134
        %9161 = vmatprep.subr.bf16.mxu0 0
        %9162 = vmatpush1.bf16.msra.mxu0 %v9133
        %9163 = vmatprep.subr.bf16.mxu0 0
        %9164 = vmatpush1.bf16.msra.mxu0 %v9132
        %9165 = vmatprep.subr.bf16.mxu0 0
        %9166 = vmatpush1.bf16.msra.mxu0 %v9131
        %9167 = vmatprep.subr.bf16.mxu0 0
        %9168 = vmatpush1.bf16.msra.mxu0 %v9130
        %9169 = vmatprep.subr.bf16.mxu0 0
        %9170 = vmatpush1.bf16.msra.mxu0 %v9129
        %9171 = vmatprep.subr.bf16.mxu0 0
        %9172 = vmatpush1.bf16.msra.mxu0 %v9128
        %9173 = vmatprep.subr.bf16.mxu0 0
        %9174 = vmatpush1.bf16.msra.mxu0 %v9127
        %9175 = vmatprep.subr.bf16.mxu0 0
        %9176 = vmatpush2.bf16.msra.mxu0 %v9142
        %9177 = vmatprep.subr.bf16.mxu0 0
        %9178 = vmatpush2.bf16.msra.mxu0 %v9141
        %9179 = vmatprep.subr.bf16.mxu0 0
        %9180 = vmatpush2.bf16.msra.mxu0 %v9140
        %9181 = vmatprep.subr.bf16.mxu0 0
        %9182 = vmatpush2.bf16.msra.mxu0 %v9139
        %9183 = vmatprep.subr.bf16.mxu0 0
        %9184 = vmatpush2.bf16.msra.mxu0 %v9138
        %9185 = vmatprep.subr.bf16.mxu0 0
        %9186 = vmatpush2.bf16.msra.mxu0 %v9137
        %9187 = vmatprep.subr.bf16.mxu0 0
        %9188 = vmatpush2.bf16.msra.mxu0 %v9136
        %9189 = vmatprep.subr.bf16.mxu0 0
        %9190 = vmatpush2.bf16.msra.mxu0 %v9135
        %9191 = vmatprep.mubr.bf16.mxu0 %v9032
        %9192 = vmatmul.mubr.bf16.gmra.mxu0 %v9031
        %v9193 = vpop.f32.mrf.mxu0
        %v9194 = vadd.f32 0.0, %v9193
        %v9195 = vpop.f32.mrf.mxu0
        %v9196 = vpop.f32.mrf.mxu0
        %v9197 = vadd.f32 0.0, %v9196
        %v9198 = vpop.f32.mrf.mxu0
        %9199 = vmatprep.mubr.bf16.mxu0 %v9034
        %9200 = vmatmul.mubr.bf16.gmra.mxu0 %v9033
        %v9201 = vpop.f32.mrf.mxu0
        %v9202 = vadd.f32 0.0, %v9201
        %v9203 = vpop.f32.mrf.mxu0
        %v9204 = vpop.f32.mrf.mxu0
        %v9205 = vadd.f32 0.0, %v9204
        %v9206 = vpop.f32.mrf.mxu0
        %9207 = vmatprep.mubr.bf16.mxu0 %v9036
        %9208 = vmatmul.mubr.bf16.gmra.mxu0 %v9035
        %v9209 = vpop.f32.mrf.mxu0
        %v9210 = vadd.f32 0.0, %v9209
        %v9211 = vpop.f32.mrf.mxu0
        %v9212 = vpop.f32.mrf.mxu0
        %v9213 = vadd.f32 0.0, %v9212
        %v9214 = vpop.f32.mrf.mxu0
        %9215 = vmatprep.mubr.bf16.mxu0 %v9038
        %9216 = vmatmul.mubr.bf16.gmra.mxu0 %v9037
        %v9217 = vpop.f32.mrf.mxu0
        %v9218 = vadd.f32 0.0, %v9217
        %v9219 = vpop.f32.mrf.mxu0
        %v9220 = vpop.f32.mrf.mxu0
        %v9221 = vadd.f32 0.0, %v9220
        %v9222 = vpop.f32.mrf.mxu0
        %9223 = vmatprep.mubr.bf16.mxu0 %v9040
        %9224 = vmatmul.mubr.bf16.gmra.mxu0 %v9039
        %v9225 = vpop.f32.mrf.mxu0
        %v9226 = vadd.f32 0.0, %v9225
        %v9227 = vpop.f32.mrf.mxu0
        %v9228 = vpop.f32.mrf.mxu0
        %v9229 = vadd.f32 0.0, %v9228
        %v9230 = vpop.f32.mrf.mxu0
        %9231 = vmatprep.mubr.bf16.mxu0 %v9042
        %9232 = vmatmul.mubr.bf16.gmra.mxu0 %v9041
        %v9233 = vpop.f32.mrf.mxu0
        %v9234 = vadd.f32 0.0, %v9233
        %v9235 = vpop.f32.mrf.mxu0
        %v9236 = vpop.f32.mrf.mxu0
        %v9237 = vadd.f32 0.0, %v9236
        %v9238 = vpop.f32.mrf.mxu0
        %9239 = vmatprep.mubr.bf16.mxu0 %v9044
        %9240 = vmatmul.mubr.bf16.gmra.mxu0 %v9043
        %v9241 = vpop.f32.mrf.mxu0
        %v9242 = vadd.f32 0.0, %v9241
        %v9243 = vpop.f32.mrf.mxu0
        %v9244 = vpop.f32.mrf.mxu0
        %v9245 = vadd.f32 0.0, %v9244
        %v9246 = vpop.f32.mrf.mxu0
        %9247 = vmatprep.mubr.bf16.mxu0 %v9046
        %9248 = vmatmul.mubr.bf16.gmra.mxu0 %v9045
        %v9249 = vpop.f32.mrf.mxu0
        %v9250 = vadd.f32 0.0, %v9249
        %v9251 = vpop.f32.mrf.mxu0
        %v9252 = vpop.f32.mrf.mxu0
        %v9253 = vadd.f32 0.0, %v9252
        %v9254 = vpop.f32.mrf.mxu0
        %9255 = vdwg.mxu0
        %v9256 = vadd.f32 %v8918, %v9194
        %v9257 = vadd.f32 %v8919, %v9197
        %v9258 = vadd.f32 %v8920, %v9202
        %v9259 = vadd.f32 %v8921, %v9205
        %v9260 = vadd.f32 %v8922, %v9210
        %v9261 = vadd.f32 %v8923, %v9213
        %v9262 = vadd.f32 %v8924, %v9218
        %v9263 = vadd.f32 %v8925, %v9221
        %v9264 = vadd.f32 %v8926, %v9226
        %v9265 = vadd.f32 %v8927, %v9229
        %v9266 = vadd.f32 %v8928, %v9234
        %v9267 = vadd.f32 %v8929, %v9237
        %v9268 = vadd.f32 %v8930, %v9242
        %v9269 = vadd.f32 %v8931, %v9245
        %v9270 = vadd.f32 %v8932, %v9250
        %v9271 = vadd.f32 %v8933, %v9253
        %v9272 = vld [vmem:[%s7186] sm:$0xff]
        %v9273 = vld [vmem:[%s7186 + $0x8] sm:$0xff]
        %v9274 = vld [vmem:[%s7186 + $0x10] sm:$0xff]
        %v9275 = vld [vmem:[%s7186 + $0x18] sm:$0xff]
        %v9276 = vld [vmem:[%s7186 + $0x20] sm:$0xff]
        %v9277 = vld [vmem:[%s7186 + $0x28] sm:$0xff]
        %v9278 = vld [vmem:[%s7186 + $0x30] sm:$0xff]
        %v9279 = vld [vmem:[%s7186 + $0x38] sm:$0xff]
        %v9280 = vld [vmem:[%s7186 + $0x40] sm:$0xff]
        %v9281 = vld [vmem:[%s7186 + $0x48] sm:$0xff]
        %v9282 = vld [vmem:[%s7186 + $0x50] sm:$0xff]
        %v9283 = vld [vmem:[%s7186 + $0x58] sm:$0xff]
        %v9284 = vld [vmem:[%s7186 + $0x60] sm:$0xff]
        %v9285 = vld [vmem:[%s7186 + $0x68] sm:$0xff]
        %v9286 = vld [vmem:[%s7186 + $0x70] sm:$0xff]
        %v9287 = vld [vmem:[%s7186 + $0x78] sm:$0xff]
        %s9288 = scalar_lea.vmem [#allocation16], 512
        %v9289 = vld [vmem:[%s9288] sm:$0xf]
        %v9290 = vld [vmem:[%s9288 + $0x4] sm:$0xf]
        %v9291 = vld [vmem:[%s9288 + $0x8] sm:$0xf]
        %v9292 = vld [vmem:[%s9288 + $0xc] sm:$0xf]
        %v9293 = vld [vmem:[%s9288 + $0x10] sm:$0xf]
        %v9294 = vld [vmem:[%s9288 + $0x14] sm:$0xf]
        %v9295 = vld [vmem:[%s9288 + $0x18] sm:$0xf]
        %v9296 = vld [vmem:[%s9288 + $0x1c] sm:$0xf]
        %v9297 = vld [vmem:[%s9288 + $0x20] sm:$0xf]
        %v9298 = vld [vmem:[%s9288 + $0x24] sm:$0xf]
        %v9299 = vld [vmem:[%s9288 + $0x28] sm:$0xf]
        %v9300 = vld [vmem:[%s9288 + $0x2c] sm:$0xf]
        %v9301 = vld [vmem:[%s9288 + $0x30] sm:$0xf]
        %v9302 = vld [vmem:[%s9288 + $0x34] sm:$0xf]
        %v9303 = vld [vmem:[%s9288 + $0x38] sm:$0xf]
        %v9304 = vld [vmem:[%s9288 + $0x3c] sm:$0xf]
        %v9305 = vld [vmem:[%s9288 + $0x40] sm:$0xf]
        %v9306 = vld [vmem:[%s9288 + $0x44] sm:$0xf]
        %v9307 = vld [vmem:[%s9288 + $0x48] sm:$0xf]
        %v9308 = vld [vmem:[%s9288 + $0x4c] sm:$0xf]
        %v9309 = vld [vmem:[%s9288 + $0x50] sm:$0xf]
        %v9310 = vld [vmem:[%s9288 + $0x54] sm:$0xf]
        %v9311 = vld [vmem:[%s9288 + $0x58] sm:$0xf]
        %v9312 = vld [vmem:[%s9288 + $0x5c] sm:$0xf]
        %v9313 = vld [vmem:[%s9288 + $0x60] sm:$0xf]
        %v9314 = vld [vmem:[%s9288 + $0x64] sm:$0xf]
        %v9315 = vld [vmem:[%s9288 + $0x68] sm:$0xf]
        %v9316 = vld [vmem:[%s9288 + $0x6c] sm:$0xf]
        %v9317 = vld [vmem:[%s9288 + $0x70] sm:$0xf]
        %v9318 = vld [vmem:[%s9288 + $0x74] sm:$0xf]
        %v9319 = vld [vmem:[%s9288 + $0x78] sm:$0xf]
        %v9320 = vld [vmem:[%s9288 + $0x7c] sm:$0xf]
        %v9337 = vunpack.c.l.b16 %v9272
        %v9338 = vunpack.c.h.b16 %v9272
        %v9339 = vunpack.c.l.b16 %v9273
        %v9340 = vunpack.c.h.b16 %v9273
        %v9341 = vunpack.c.l.b16 %v9274
        %v9342 = vunpack.c.h.b16 %v9274
        %v9343 = vunpack.c.l.b16 %v9275
        %v9344 = vunpack.c.h.b16 %v9275
        %v9345 = vunpack.c.l.b16 %v9276
        %v9346 = vunpack.c.h.b16 %v9276
        %v9347 = vunpack.c.l.b16 %v9277
        %v9348 = vunpack.c.h.b16 %v9277
        %v9349 = vunpack.c.l.b16 %v9278
        %v9350 = vunpack.c.h.b16 %v9278
        %v9351 = vunpack.c.l.b16 %v9279
        %v9352 = vunpack.c.h.b16 %v9279
        %v9353 = vunpack.c.l.b16 %v9280
        %v9354 = vunpack.c.h.b16 %v9280
        %v9355 = vunpack.c.l.b16 %v9281
        %v9356 = vunpack.c.h.b16 %v9281
        %v9357 = vunpack.c.l.b16 %v9282
        %v9358 = vunpack.c.h.b16 %v9282
        %v9359 = vunpack.c.l.b16 %v9283
        %v9360 = vunpack.c.h.b16 %v9283
        %v9361 = vunpack.c.l.b16 %v9284
        %v9362 = vunpack.c.h.b16 %v9284
        %v9363 = vunpack.c.l.b16 %v9285
        %v9364 = vunpack.c.h.b16 %v9285
        %v9365 = vunpack.c.l.b16 %v9286
        %v9366 = vunpack.c.h.b16 %v9286
        %v9367 = vunpack.c.l.b16 %v9287
        %v9368 = vunpack.c.h.b16 %v9287
        %v9369 = vpack.c.b16 %v9339, %v9337
        %v9370 = vpack.c.b16 %v9340, %v9338
        %v9371 = vpack.c.b16 %v9343, %v9341
        %v9372 = vpack.c.b16 %v9344, %v9342
        %v9373 = vpack.c.b16 %v9347, %v9345
        %v9374 = vpack.c.b16 %v9348, %v9346
        %v9375 = vpack.c.b16 %v9351, %v9349
        %v9376 = vpack.c.b16 %v9352, %v9350
        %v9377 = vpack.c.b16 %v9355, %v9353
        %v9378 = vpack.c.b16 %v9356, %v9354
        %v9379 = vpack.c.b16 %v9359, %v9357
        %v9380 = vpack.c.b16 %v9360, %v9358
        %v9381 = vpack.c.b16 %v9363, %v9361
        %v9382 = vpack.c.b16 %v9364, %v9362
        %v9383 = vpack.c.b16 %v9367, %v9365
        %v9384 = vpack.c.b16 %v9368, %v9366
        %v9433 = vunpack.c.l.b16 %v9289
        %v9434 = vunpack.c.l.b16 %v9290
        %v9435 = vunpack.c.l.b16 %v9291
        %v9436 = vunpack.c.l.b16 %v9292
        %v9437 = vunpack.c.l.b16 %v9293
        %v9438 = vunpack.c.l.b16 %v9294
        %v9439 = vunpack.c.l.b16 %v9295
        %v9440 = vunpack.c.l.b16 %v9296
        %v9441 = vunpack.c.l.b16 %v9297
        %v9442 = vunpack.c.l.b16 %v9298
        %v9443 = vunpack.c.l.b16 %v9299
        %v9444 = vunpack.c.l.b16 %v9300
        %v9445 = vunpack.c.l.b16 %v9301
        %v9446 = vunpack.c.l.b16 %v9302
        %v9447 = vunpack.c.l.b16 %v9303
        %v9448 = vunpack.c.l.b16 %v9304
        %v9449 = vunpack.c.l.b16 %v9305
        %v9450 = vunpack.c.l.b16 %v9306
        %v9451 = vunpack.c.l.b16 %v9307
        %v9452 = vunpack.c.l.b16 %v9308
        %v9453 = vunpack.c.l.b16 %v9309
        %v9454 = vunpack.c.l.b16 %v9310
        %v9455 = vunpack.c.l.b16 %v9311
        %v9456 = vunpack.c.l.b16 %v9312
        %v9457 = vunpack.c.l.b16 %v9313
        %v9458 = vunpack.c.l.b16 %v9314
        %v9459 = vunpack.c.l.b16 %v9315
        %v9460 = vunpack.c.l.b16 %v9316
        %v9461 = vunpack.c.l.b16 %v9317
        %v9462 = vunpack.c.l.b16 %v9318
        %v9463 = vunpack.c.l.b16 %v9319
        %v9464 = vunpack.c.l.b16 %v9320
        %v9465 = vpack.c.b16 %v9434, %v9433
        %v9466 = vpack.c.b16 %v9436, %v9435
        %v9467 = vpack.c.b16 %v9438, %v9437
        %v9468 = vpack.c.b16 %v9440, %v9439
        %v9469 = vpack.c.b16 %v9442, %v9441
        %v9470 = vpack.c.b16 %v9444, %v9443
        %v9471 = vpack.c.b16 %v9446, %v9445
        %v9472 = vpack.c.b16 %v9448, %v9447
        %v9473 = vpack.c.b16 %v9450, %v9449
        %v9474 = vpack.c.b16 %v9452, %v9451
        %v9475 = vpack.c.b16 %v9454, %v9453
        %v9476 = vpack.c.b16 %v9456, %v9455
        %v9477 = vpack.c.b16 %v9458, %v9457
        %v9478 = vpack.c.b16 %v9460, %v9459
        %v9479 = vpack.c.b16 %v9462, %v9461
        %v9480 = vpack.c.b16 %v9464, %v9463
        %9497 = vmatprep.subr.bf16.mxu0 0
        %9498 = vmatpush1.bf16.msra.mxu0 %v9472
        %9499 = vmatprep.subr.bf16.mxu0 0
        %9500 = vmatpush1.bf16.msra.mxu0 %v9471
        %9501 = vmatprep.subr.bf16.mxu0 0
        %9502 = vmatpush1.bf16.msra.mxu0 %v9470
        %9503 = vmatprep.subr.bf16.mxu0 0
        %9504 = vmatpush1.bf16.msra.mxu0 %v9469
        %9505 = vmatprep.subr.bf16.mxu0 0
        %9506 = vmatpush1.bf16.msra.mxu0 %v9468
        %9507 = vmatprep.subr.bf16.mxu0 0
        %9508 = vmatpush1.bf16.msra.mxu0 %v9467
        %9509 = vmatprep.subr.bf16.mxu0 0
        %9510 = vmatpush1.bf16.msra.mxu0 %v9466
        %9511 = vmatprep.subr.bf16.mxu0 0
        %9512 = vmatpush1.bf16.msra.mxu0 %v9465
        %9513 = vmatprep.subr.bf16.mxu0 0
        %9514 = vmatpush2.bf16.msra.mxu0 %v9480
        %9515 = vmatprep.subr.bf16.mxu0 0
        %9516 = vmatpush2.bf16.msra.mxu0 %v9479
        %9517 = vmatprep.subr.bf16.mxu0 0
        %9518 = vmatpush2.bf16.msra.mxu0 %v9478
        %9519 = vmatprep.subr.bf16.mxu0 0
        %9520 = vmatpush2.bf16.msra.mxu0 %v9477
        %9521 = vmatprep.subr.bf16.mxu0 0
        %9522 = vmatpush2.bf16.msra.mxu0 %v9476
        %9523 = vmatprep.subr.bf16.mxu0 0
        %9524 = vmatpush2.bf16.msra.mxu0 %v9475
        %9525 = vmatprep.subr.bf16.mxu0 0
        %9526 = vmatpush2.bf16.msra.mxu0 %v9474
        %9527 = vmatprep.subr.bf16.mxu0 0
        %9528 = vmatpush2.bf16.msra.mxu0 %v9473
        %9529 = vmatprep.mubr.bf16.mxu0 %v9370
        %9530 = vmatmul.mubr.bf16.gmra.mxu0 %v9369
        %v9531 = vpop.f32.mrf.mxu0
        %v9532 = vadd.f32 0.0, %v9531
        %v9533 = vpop.f32.mrf.mxu0
        %v9534 = vpop.f32.mrf.mxu0
        %v9535 = vadd.f32 0.0, %v9534
        %v9536 = vpop.f32.mrf.mxu0
        %9537 = vmatprep.mubr.bf16.mxu0 %v9372
        %9538 = vmatmul.mubr.bf16.gmra.mxu0 %v9371
        %v9539 = vpop.f32.mrf.mxu0
        %v9540 = vadd.f32 0.0, %v9539
        %v9541 = vpop.f32.mrf.mxu0
        %v9542 = vpop.f32.mrf.mxu0
        %v9543 = vadd.f32 0.0, %v9542
        %v9544 = vpop.f32.mrf.mxu0
        %9545 = vmatprep.mubr.bf16.mxu0 %v9374
        %9546 = vmatmul.mubr.bf16.gmra.mxu0 %v9373
        %v9547 = vpop.f32.mrf.mxu0
        %v9548 = vadd.f32 0.0, %v9547
        %v9549 = vpop.f32.mrf.mxu0
        %v9550 = vpop.f32.mrf.mxu0
        %v9551 = vadd.f32 0.0, %v9550
        %v9552 = vpop.f32.mrf.mxu0
        %9553 = vmatprep.mubr.bf16.mxu0 %v9376
        %9554 = vmatmul.mubr.bf16.gmra.mxu0 %v9375
        %v9555 = vpop.f32.mrf.mxu0
        %v9556 = vadd.f32 0.0, %v9555
        %v9557 = vpop.f32.mrf.mxu0
        %v9558 = vpop.f32.mrf.mxu0
        %v9559 = vadd.f32 0.0, %v9558
        %v9560 = vpop.f32.mrf.mxu0
        %9561 = vmatprep.mubr.bf16.mxu0 %v9378
        %9562 = vmatmul.mubr.bf16.gmra.mxu0 %v9377
        %v9563 = vpop.f32.mrf.mxu0
        %v9564 = vadd.f32 0.0, %v9563
        %v9565 = vpop.f32.mrf.mxu0
        %v9566 = vpop.f32.mrf.mxu0
        %v9567 = vadd.f32 0.0, %v9566
        %v9568 = vpop.f32.mrf.mxu0
        %9569 = vmatprep.mubr.bf16.mxu0 %v9380
        %9570 = vmatmul.mubr.bf16.gmra.mxu0 %v9379
        %v9571 = vpop.f32.mrf.mxu0
        %v9572 = vadd.f32 0.0, %v9571
        %v9573 = vpop.f32.mrf.mxu0
        %v9574 = vpop.f32.mrf.mxu0
        %v9575 = vadd.f32 0.0, %v9574
        %v9576 = vpop.f32.mrf.mxu0
        %9577 = vmatprep.mubr.bf16.mxu0 %v9382
        %9578 = vmatmul.mubr.bf16.gmra.mxu0 %v9381
        %v9579 = vpop.f32.mrf.mxu0
        %v9580 = vadd.f32 0.0, %v9579
        %v9581 = vpop.f32.mrf.mxu0
        %v9582 = vpop.f32.mrf.mxu0
        %v9583 = vadd.f32 0.0, %v9582
        %v9584 = vpop.f32.mrf.mxu0
        %9585 = vmatprep.mubr.bf16.mxu0 %v9384
        %9586 = vmatmul.mubr.bf16.gmra.mxu0 %v9383
        %v9587 = vpop.f32.mrf.mxu0
        %v9588 = vadd.f32 0.0, %v9587
        %v9589 = vpop.f32.mrf.mxu0
        %v9590 = vpop.f32.mrf.mxu0
        %v9591 = vadd.f32 0.0, %v9590
        %v9592 = vpop.f32.mrf.mxu0
        %9593 = vdwg.mxu0
        %v9594 = vadd.f32 %v9256, %v9532
        %v9595 = vadd.f32 %v9257, %v9535
        %v9596 = vadd.f32 %v9258, %v9540
        %v9597 = vadd.f32 %v9259, %v9543
        %v9598 = vadd.f32 %v9260, %v9548
        %v9599 = vadd.f32 %v9261, %v9551
        %v9600 = vadd.f32 %v9262, %v9556
        %v9601 = vadd.f32 %v9263, %v9559
        %v9602 = vadd.f32 %v9264, %v9564
        %v9603 = vadd.f32 %v9265, %v9567
        %v9604 = vadd.f32 %v9266, %v9572
        %v9605 = vadd.f32 %v9267, %v9575
        %v9606 = vadd.f32 %v9268, %v9580
        %v9607 = vadd.f32 %v9269, %v9583
        %v9608 = vadd.f32 %v9270, %v9588
        %v9609 = vadd.f32 %v9271, %v9591
        %v9610 = vld [vmem:[%s10] sm:$0x1]
        %v9612 = vlaneseq
        %v9613 = vshrl.u32 %v9612, 7
        %v9614 = vsub.s32 0, %v9613
        %v9615 = vrot.slane %v9610, %v9614
        %v9617 = vadd.f32 %v9594, %v9615
        %v9618 = vadd.f32 %v9595, %v9615
        %v9619 = vadd.f32 %v9596, %v9615
        %v9620 = vadd.f32 %v9597, %v9615
        %v9621 = vadd.f32 %v9598, %v9615
        %v9622 = vadd.f32 %v9599, %v9615
        %v9623 = vadd.f32 %v9600, %v9615
        %v9624 = vadd.f32 %v9601, %v9615
        %v9625 = vadd.f32 %v9602, %v9615
        %v9626 = vadd.f32 %v9603, %v9615
        %v9627 = vadd.f32 %v9604, %v9615
        %v9628 = vadd.f32 %v9605, %v9615
        %v9629 = vadd.f32 %v9606, %v9615
        %v9630 = vadd.f32 %v9607, %v9615
        %v9631 = vadd.f32 %v9608, %v9615
        %v9632 = vadd.f32 %v9609, %v9615
        %v9633 = vtanh.pop %v9617
        %v9634 = vtanh.pop %v9618
        %v9635 = vtanh.pop %v9619
        %v9636 = vtanh.pop %v9620
        %v9637 = vtanh.pop %v9621
        %v9638 = vtanh.pop %v9622
        %v9639 = vtanh.pop %v9623
        %v9640 = vtanh.pop %v9624
        %v9641 = vtanh.pop %v9625
        %v9642 = vtanh.pop %v9626
        %v9643 = vtanh.pop %v9627
        %v9644 = vtanh.pop %v9628
        %v9645 = vtanh.pop %v9629
        %v9646 = vtanh.pop %v9630
        %v9647 = vtanh.pop %v9631
        %v9648 = vtanh.pop %v9632
        %v9649 = vsub.f32 %v9633, %v5311
        %v9650 = vsub.f32 %v9634, %v5312
        %v9651 = vsub.f32 %v9635, %v5313
        %v9652 = vsub.f32 %v9636, %v5314
        %v9653 = vsub.f32 %v9637, %v5315
        %v9654 = vsub.f32 %v9638, %v5316
        %v9655 = vsub.f32 %v9639, %v5317
        %v9656 = vsub.f32 %v9640, %v5318
        %v9657 = vsub.f32 %v9641, %v5319
        %v9658 = vsub.f32 %v9642, %v5320
        %v9659 = vsub.f32 %v9643, %v5321
        %v9660 = vsub.f32 %v9644, %v5322
        %v9661 = vsub.f32 %v9645, %v5323
        %v9662 = vsub.f32 %v9646, %v5324
        %v9663 = vsub.f32 %v9647, %v5325
        %v9664 = vsub.f32 %v9648, %v5326
        %v9665 = vmul.f32 %v7794, %v9649
        %v9666 = vmul.f32 %v7798, %v9650
        %v9667 = vmul.f32 %v7802, %v9651
        %v9668 = vmul.f32 %v7806, %v9652
        %v9669 = vmul.f32 %v7810, %v9653
        %v9670 = vmul.f32 %v7814, %v9654
        %v9671 = vmul.f32 %v7818, %v9655
        %v9672 = vmul.f32 %v7822, %v9656
        %v9673 = vmul.f32 %v7826, %v9657
        %v9674 = vmul.f32 %v7830, %v9658
        %v9675 = vmul.f32 %v7834, %v9659
        %v9676 = vmul.f32 %v7838, %v9660
        %v9677 = vmul.f32 %v7842, %v9661
        %v9678 = vmul.f32 %v7846, %v9662
        %v9679 = vmul.f32 %v7850, %v9663
        %v9680 = vmul.f32 %v7854, %v9664
        %v9681 = vadd.f32 %v5311, %v9665
        %v9682 = vadd.f32 %v5312, %v9666
        %v9683 = vadd.f32 %v5313, %v9667
        %v9684 = vadd.f32 %v5314, %v9668
        %v9685 = vadd.f32 %v5315, %v9669
        %v9686 = vadd.f32 %v5316, %v9670
        %v9687 = vadd.f32 %v5317, %v9671
        %v9688 = vadd.f32 %v5318, %v9672
        %v9689 = vadd.f32 %v5319, %v9673
        %v9690 = vadd.f32 %v5320, %v9674
        %v9691 = vadd.f32 %v5321, %v9675
        %v9692 = vadd.f32 %v5322, %v9676
        %v9693 = vadd.f32 %v5323, %v9677
        %v9694 = vadd.f32 %v5324, %v9678
        %v9695 = vadd.f32 %v5325, %v9679
        %v9696 = vadd.f32 %v5326, %v9680
        %9697 = vst [vmem:[%s539] sm:$0xff] %v9681
        %9698 = vst [vmem:[%s539 + $0x8] sm:$0xff] %v9682
        %9699 = vst [vmem:[%s539 + $0x10] sm:$0xff] %v9683
        %9700 = vst [vmem:[%s539 + $0x18] sm:$0xff] %v9684
        %9701 = vst [vmem:[%s539 + $0x20] sm:$0xff] %v9685
        %9702 = vst [vmem:[%s539 + $0x28] sm:$0xff] %v9686
        %9703 = vst [vmem:[%s539 + $0x30] sm:$0xff] %v9687
        %9704 = vst [vmem:[%s539 + $0x38] sm:$0xff] %v9688
        %9705 = vst [vmem:[%s539 + $0x40] sm:$0xff] %v9689
        %9706 = vst [vmem:[%s539 + $0x48] sm:$0xff] %v9690
        %9707 = vst [vmem:[%s539 + $0x50] sm:$0xff] %v9691
        %9708 = vst [vmem:[%s539 + $0x58] sm:$0xff] %v9692
        %9709 = vst [vmem:[%s539 + $0x60] sm:$0xff] %v9693
        %9710 = vst [vmem:[%s539 + $0x68] sm:$0xff] %v9694
        %9711 = vst [vmem:[%s539 + $0x70] sm:$0xff] %v9695
        %9712 = vst [vmem:[%s539 + $0x78] sm:$0xff] %v9696
        %s9713 = sand.u32 %s287, 1
        %s9714 = scalar_lea.sflag [#allocation7], %s9713
        %s9715 = sand.u32 %s287, 1
        %s9716 = smul.addr %s9715, 128
        %s9717 = scalar_lea.vmem [#allocation17], %s9716
        // Predicated region
        $region93: #{tpu_custom_call.1} parent=63 // pred_check
          %p9718 = pneg %p297
        $region94: #{tpu_custom_call.1} parent=63 // pred_check_branch
          %9720 = sbr.rel (%p9718) target = $region96
        $region95: #{tpu_custom_call.1} parent=63 // pred_region
          %s9722 = ssub.s32 2048, 2048
          %9723 = vsyncadd %s9714, %s9722
          %s9724 = smul.addr %s33, 16
          %s9725 = smul.addr %s9724, 128
          %s9726 = scalar_lea.hbm %s11, %s9725
          %s9727 = sshll.u32 %s9717, 4
          %s9728 = int_to_ptr.vmem [resolvable:$true] %s9727
          %9733 = dma.vmem_to_hbm [thread:$0]  %s9728, 2048, %s9726, %s9714, 128, 128, 8
        $region96: #{tpu_custom_call.1} parent=63 // pred_fallthru
          _
      $region64: #{tpu_custom_call.1} parent=5 // pred_fallthru
        _
      %p9734 = scmp.le.s32.totalorder 2, %s28
      // Predicated region
      $region97: #{tpu_custom_call.1} parent=5 // pred_check
        %p9735 = pneg %p9734
      $region98: #{tpu_custom_call.1} parent=5 // pred_check_branch
        %9737 = sbr.rel (%p9735) target = $region100
      $region99: #{tpu_custom_call.1} parent=5 // pred_region
        %s9738 = ssub.s32 %s28, 2
        // Predicated region
        $region101: #{tpu_custom_call.1} parent=99 // pred_check
          %p9739 = pneg %p303
        $region102: #{tpu_custom_call.1} parent=99 // pred_check_branch
          %9741 = sbr.rel (%p9739) target = $region104
        $region103: #{tpu_custom_call.1} parent=99 // pred_region
          %s9742 = sand.u32 %s288, 1
          %s9743 = scalar_lea.sflag [#allocation7], %s9742
          %s9744 = sand.u32 %s288, 1
          %s9745 = smul.addr %s9744, 128
          %s9746 = scalar_lea.vmem [#allocation17], %s9745
          %9747 = dma.done %s9743, 2048
        $region104: #{tpu_custom_call.1} parent=99 // pred_fallthru
          _
      $region100: #{tpu_custom_call.1} parent=5 // pred_fallthru
        _
    $region6: #{tpu_custom_call.1} parent=1 // loop_footer
      %s32 = sadd.s32 1, %s28
    $region7: #{tpu_custom_call.1} parent=1 // loop_footer_branch
      %27 = sbr.rel target = $region3
    $region8: #{tpu_custom_call.1} parent=1 // loop_exit
      _
    %9748 = vsyncpa [#allocation6], 1
    %s9749 = scalar_lea.sflag [#allocation6], 1
    %9750 = vsyncpa %s9749, 1
    %9751 = vsyncpa [#allocation9], 1
    %s9752 = scalar_lea.sflag [#allocation9], 1
    %9753 = vsyncpa %s9752, 1
    %9754 = vsyncpa [#allocation12], 1
    %9755 = vsyncpa [#allocation15], 1
    %9756 = vsyncpa [#allocation7], 1
    %s9757 = scalar_lea.sflag [#allocation7], 1
    %9758 = vsyncpa %s9757, 1

</llo_original>
